<compile_context>
chip_gen: v6e
topology: v6e:2x2x1
jax: 0.10.0
libtpu: 0.0.40
codegen_flags: <defaults>
</compile_context>

<pallas_src>
import functools

import jax
import jax.numpy as jnp
from jax import lax
from jax.experimental import pallas as pl
from jax.experimental.pallas import tpu as pltpu


def _round_up(x, m):
    return (x + m - 1) // m * m


def _pick_tile(n, candidates):
    for c in candidates:
        if n % c == 0:
            return c
    return None


# ---------------------------------------------------------------------------
# Shared epilogue: bias-added f32 tile -> output store + per-channel partial
# sums for batch-norm statistics, finalized (mean, rstd) on the last tile.
# ---------------------------------------------------------------------------
def _store_and_accumulate_stats(out, i, o_ref, s_ref, ss_ref,
                                *, m_valid, mask_rows):
    o_ref[...] = out.astype(o_ref.dtype)
    if mask_rows:   # static: only emitted when padded rows exist
        tm = out.shape[0]
        row = i * tm + lax.broadcasted_iota(jnp.int32, (tm, 1), 0)
        out = jnp.where(row < m_valid, out, 0.0)
    s_ref[...] += jnp.sum(out, axis=0, keepdims=True)
    ss_ref[...] += jnp.sum(out * out, axis=0, keepdims=True)


def _finalize_stats(mean_ref, rstd_ref, s_ref, ss_ref, *, n_total, eps):
    inv_n = 1.0 / float(n_total)
    mean = s_ref[...] * inv_n
    var = jnp.maximum(ss_ref[...] * inv_n - mean * mean, 0.0)
    mean_ref[...] = mean
    rstd_ref[...] = lax.rsqrt(var + eps)


# ---------------------------------------------------------------------------
# Kernel 1: batched matmul + bias with fused batch-norm statistics.
#   (G, M, K) @ (G, K, N) + bias -> Y bf16, mean (1, N), rstd (1, N)
# Grid: (N-tiles [parallel], G, M-tiles, K-tiles).
# ---------------------------------------------------------------------------
def _bmm_bias_stats_kernel(a_ref, b_ref, bias_ref,
                           o_ref, mean_ref, rstd_ref,
                           acc_ref, s_ref, ss_ref,
                           *, m_valid, mask_rows, n_total, eps):
    g, i, k = pl.program_id(1), pl.program_id(2), pl.program_id(3)
    ng, ni, nk = pl.num_programs(1), pl.num_programs(2), pl.num_programs(3)

    @pl.when((g == 0) & (i == 0) & (k == 0))
    def _():
        s_ref[...] = jnp.zeros_like(s_ref)
        ss_ref[...] = jnp.zeros_like(ss_ref)

    @pl.when(k == 0)
    def _():
        acc_ref[...] = jnp.zeros_like(acc_ref)

    acc_ref[...] += jnp.dot(a_ref[...], b_ref[...],
                            preferred_element_type=jnp.float32)

    @pl.when(k == nk - 1)
    def _():
        out = acc_ref[...] + bias_ref[...]
        _store_and_accumulate_stats(out, i, o_ref, s_ref, ss_ref,
                                    m_valid=m_valid, mask_rows=mask_rows)

    @pl.when((g == ng - 1) & (i == ni - 1) & (k == nk - 1))
    def _():
        _finalize_stats(mean_ref, rstd_ref, s_ref, ss_ref,
                        n_total=n_total, eps=eps)


# ---------------------------------------------------------------------------
# Kernel 2: fused (BN-apply + LeakyReLU) -> 1x1-conv matmul + bias -> BN stats.
#   a: (G, M, K) bf16, normalized per-channel on the fly, times shared (K, N).
# ---------------------------------------------------------------------------
def _bn_act_bmm_bias_stats_kernel(a_ref, mu_ref, rs_ref, gam_ref, bet_ref,
                                  b_ref, bias_ref,
                                  o_ref, mean_ref, rstd_ref,
                                  acc_ref, s_ref, ss_ref,
                                  *, m_valid, mask_rows, n_total, eps, slope):
    g, i, k = pl.program_id(1), pl.program_id(2), pl.program_id(3)
    ng, ni, nk = pl.num_programs(1), pl.num_programs(2), pl.num_programs(3)

    @pl.when((g == 0) & (i == 0) & (k == 0))
    def _():
        s_ref[...] = jnp.zeros_like(s_ref)
        ss_ref[...] = jnp.zeros_like(ss_ref)

    @pl.when(k == 0)
    def _():
        acc_ref[...] = jnp.zeros_like(acc_ref)

    a = a_ref[...].astype(jnp.float32)
    a = (a - mu_ref[...]) * rs_ref[...] * gam_ref[...] + bet_ref[...]
    a = jnp.where(a > 0, a, slope * a)
    acc_ref[...] += jnp.dot(a.astype(jnp.bfloat16), b_ref[...],
                            preferred_element_type=jnp.float32)

    @pl.when(k == nk - 1)
    def _():
        out = acc_ref[...] + bias_ref[...]
        _store_and_accumulate_stats(out, i, o_ref, s_ref, ss_ref,
                                    m_valid=m_valid, mask_rows=mask_rows)

    @pl.when((g == ng - 1) & (i == ni - 1) & (k == nk - 1))
    def _():
        _finalize_stats(mean_ref, rstd_ref, s_ref, ss_ref,
                        n_total=n_total, eps=eps)


# ---------------------------------------------------------------------------
# Kernel 3: BatchNorm apply + LeakyReLU (row-tiled elementwise).
# ---------------------------------------------------------------------------
def _bn_apply_leaky_kernel(x_ref, mean_ref, rstd_ref, gamma_ref, beta_ref,
                           o_ref, *, slope):
    x = x_ref[...].astype(jnp.float32)
    y = (x - mean_ref[...]) * rstd_ref[...] * gamma_ref[...] + beta_ref[...]
    o_ref[...] = jnp.where(y > 0, y, slope * y).astype(o_ref.dtype)


# ---------------------------------------------------------------------------
# Wrappers around pallas_call.
# ---------------------------------------------------------------------------
def convt_matmul_bn_stats(a, w, bias, *, m_valid, n_total,
                          out_dtype=jnp.bfloat16, eps=1e-5):
    """a: (G, M, K), w: (G, K, N), bias: (N,).

    Returns (Y, mean, rstd): Y is (G, Mp, Np) with channels zero-padded to a
    lane-dense multiple of 128; mean/rstd are batch statistics over the
    n_total valid (row, phase) positions.
    """
    G, M, K = a.shape
    _, _, N = w.shape
    Kp, Np = _round_up(K, 128), _round_up(N, 128)

    tm = _pick_tile(M, (512, 256, 128))
    Mp = M if tm is not None else _round_up(M, 128)
    tm = tm if tm is not None else 128
    tn = 256 if Np % 256 == 0 else 128
    tk = _pick_tile(Kp, (1024, 512, 256, 128))

    a_p = a.astype(jnp.bfloat16)
    if (Mp, Kp) != (M, K):
        a_p = jnp.pad(a_p, ((0, 0), (0, Mp - M), (0, Kp - K)))
    w_p = w.astype(jnp.bfloat16)
    if (Kp, Np) != (K, N):
        w_p = jnp.pad(w_p, ((0, 0), (0, Kp - K), (0, Np - N)))
    bias_p = bias.astype(jnp.float32).reshape(1, -1)
    if bias_p.shape[1] != Np:
        bias_p = jnp.pad(bias_p, ((0, 0), (0, Np - bias_p.shape[1])))

    kernel = functools.partial(_bmm_bias_stats_kernel, m_valid=m_valid,
                               mask_rows=(Mp != M), n_total=n_total, eps=eps)

    return pl.pallas_call(
        kernel,
        out_shape=(jax.ShapeDtypeStruct((G, Mp, Np), out_dtype),
                   jax.ShapeDtypeStruct((1, Np), jnp.float32),
                   jax.ShapeDtypeStruct((1, Np), jnp.float32)),
        grid_spec=pltpu.PrefetchScalarGridSpec(
            num_scalar_prefetch=0,
            grid=(Np // tn, G, Mp // tm, Kp // tk),
            in_specs=[
                pl.BlockSpec((None, tm, tk), lambda j, g, i, k: (g, i, k)),
                pl.BlockSpec((None, tk, tn), lambda j, g, i, k: (g, k, j)),
                pl.BlockSpec((1, tn), lambda j, g, i, k: (0, j)),
            ],
            out_specs=[
                pl.BlockSpec((None, tm, tn), lambda j, g, i, k: (g, i, j)),
                pl.BlockSpec((1, tn), lambda j, g, i, k: (0, j)),
                pl.BlockSpec((1, tn), lambda j, g, i, k: (0, j)),
            ],
            scratch_shapes=[pltpu.VMEM((tm, tn), jnp.float32),
                            pltpu.VMEM((1, tn), jnp.float32),
                            pltpu.VMEM((1, tn), jnp.float32)],
        ),
        compiler_params=pltpu.CompilerParams(
            dimension_semantics=("parallel", "arbitrary", "arbitrary",
                                 "arbitrary")),
    )(a_p, w_p, bias_p)


def bn_act_matmul_bn_stats(y1, mean1, rstd1, gamma1, beta1, w2d, bias2d,
                           *, m_valid, n_total, out_dtype=jnp.bfloat16,
                           eps=1e-5, slope=0.2):
    """All operands already lane-padded: y1 (G, Mp, K), w2d (K, N),
    mean1/rstd1/gamma1/beta1 (1, K), bias2d (1, N)."""
    G, Mp, K = y1.shape
    Kw, N = w2d.shape
    assert Kw == K and K % 128 == 0 and N % 128 == 0 and Mp % 128 == 0

    tm = _pick_tile(Mp, (512, 256, 128))
    tn = 256 if N % 256 == 0 else 128
    tk = _pick_tile(K, (1024, 512, 256, 128))

    kernel = functools.partial(
        _bn_act_bmm_bias_stats_kernel, m_valid=m_valid,
        mask_rows=(m_valid != Mp), n_total=n_total, eps=eps, slope=slope)

    return pl.pallas_call(
        kernel,
        out_shape=(jax.ShapeDtypeStruct((G, Mp, N), out_dtype),
                   jax.ShapeDtypeStruct((1, N), jnp.float32),
                   jax.ShapeDtypeStruct((1, N), jnp.float32)),
        grid_spec=pltpu.PrefetchScalarGridSpec(
            num_scalar_prefetch=0,
            grid=(N // tn, G, Mp // tm, K // tk),
            in_specs=[
                pl.BlockSpec((None, tm, tk), lambda j, g, i, k: (g, i, k)),
                pl.BlockSpec((1, tk), lambda j, g, i, k: (0, k)),
                pl.BlockSpec((1, tk), lambda j, g, i, k: (0, k)),
                pl.BlockSpec((1, tk), lambda j, g, i, k: (0, k)),
                pl.BlockSpec((1, tk), lambda j, g, i, k: (0, k)),
                pl.BlockSpec((tk, tn), lambda j, g, i, k: (k, j)),
                pl.BlockSpec((1, tn), lambda j, g, i, k: (0, j)),
            ],
            out_specs=[
                pl.BlockSpec((None, tm, tn), lambda j, g, i, k: (g, i, j)),
                pl.BlockSpec((1, tn), lambda j, g, i, k: (0, j)),
                pl.BlockSpec((1, tn), lambda j, g, i, k: (0, j)),
            ],
            scratch_shapes=[pltpu.VMEM((tm, tn), jnp.float32),
                            pltpu.VMEM((1, tn), jnp.float32),
                            pltpu.VMEM((1, tn), jnp.float32)],
        ),
        compiler_params=pltpu.CompilerParams(
            dimension_semantics=("parallel", "arbitrary", "arbitrary",
                                 "arbitrary")),
    )(y1, mean1, rstd1, gamma1, beta1, w2d, bias2d)


def bn_apply_leaky(x2d, mean, rstd, gamma, beta, out_dtype=jnp.float32,
                   slope=0.2):
    R, C = x2d.shape
    cands = [c for c in (1024, 512, 256, 128, 64, 32, 16, 8)
             if c * C <= 262144]
    tr = _pick_tile(R, cands)
    assert tr is not None
    return pl.pallas_call(
        functools.partial(_bn_apply_leaky_kernel, slope=slope),
        out_shape=jax.ShapeDtypeStruct((R, C), out_dtype),
        grid_spec=pltpu.PrefetchScalarGridSpec(
            num_scalar_prefetch=0,
            grid=(R // tr,),
            in_specs=[pl.BlockSpec((tr, C), lambda i: (i, 0)),
                      pl.BlockSpec((1, C), lambda i: (0, 0)),
                      pl.BlockSpec((1, C), lambda i: (0, 0)),
                      pl.BlockSpec((1, C), lambda i: (0, 0)),
                      pl.BlockSpec((1, C), lambda i: (0, 0))],
            out_specs=pl.BlockSpec((tr, C), lambda i: (i, 0)),
        ),
        compiler_params=pltpu.CompilerParams(
            dimension_semantics=("parallel",)),
    )(x2d, mean, rstd, gamma, beta)


# ---------------------------------------------------------------------------
# ConvTranspose2d(k=4, s=2, p=1): 4-phase (sub-pixel) decomposition.
# From oh = 2*ih - 1 + kh: each output parity gets exactly two kernel taps
# per spatial axis -> four (B*H*W, 4*Cin) x (4*Cin, Cout) matmuls.
# ---------------------------------------------------------------------------
_PHASE_TAPS = {0: ((0, 1), (-1, 3)),   # even outputs: (ih=q, kh=1), (ih=q-1, kh=3)
               1: ((0, 2), (1, 0))}    # odd outputs:  (ih=q, kh=2), (ih=q+1, kh=0)


def _shift2d(x, dh, dw):
    """result[b, q, r, :] = x[b, q+dh, r+dw, :], zero outside (dh, dw in {-1,0,1})."""
    _, H, W, _ = x.shape
    xp = jnp.pad(x, ((0, 0), (max(-dh, 0), max(dh, 0)),
                     (max(-dw, 0), max(dw, 0)), (0, 0)))
    return xp[:, max(dh, 0):max(dh, 0) + H, max(dw, 0):max(dw, 0) + W, :]


def conv_trans_bn_conv1(x_nchw, params):
    """Forward of ConvTransBNConv1. x: (B, Cin, H, W) f32 -> (B, Cout, 2H, 2W)."""
    wt, bt, g1, be1, wc, bc, g2, be2 = params
    Cin, Cout = wt.shape[0], wt.shape[1]
    Cp = _round_up(Cout, 128)                 # lane-dense channel width
    B, _, H, W = x_nchw.shape
    Ho, Wo = 2 * H, 2 * W
    M = B * H * W                             # rows per output-parity phase
    n_total = B * Ho * Wo                     # = 4 * M valid positions

    # TODO(synk): NCHW<->NHWC transposes, the shift/concat phase packing and
    # the final pixel-shuffle interleave are thin XLA glue, not Pallas kernels.
    x = jnp.transpose(x_nchw, (0, 2, 3, 1)).astype(jnp.bfloat16)   # NHWC bf16

    # ---- ConvTranspose2d(4,2,1) as one batched matmul over 4 phases,
    #      with BatchNorm-1 statistics fused into the epilogue --------------
    a_list, w_list = [], []
    for ph in (0, 1):
        for pw in (0, 1):
            cols, rows = [], []
            for dh, kh in _PHASE_TAPS[ph]:
                for dw, kw in _PHASE_TAPS[pw]:
                    cols.append(_shift2d(x, dh, dw))
                    rows.append(wt[:, :, kh, kw])                  # (Cin, Cout)
            a_list.append(
                jnp.concatenate(cols, axis=-1).reshape(M, 4 * Cin))
            w_list.append(jnp.concatenate(rows, axis=0))           # (4Cin, Cout)
    A = jnp.stack(a_list)                                          # (4, M, 4Cin)
    Wb = jnp.stack(w_list)                                         # (4, 4Cin, Cout)
    y1, mean1, rstd1 = convt_matmul_bn_stats(A, Wb, bt, m_valid=M,
                                             n_total=n_total)
    Mp = y1.shape[1]

    def pad_c(v, fill=0.0):
        return jnp.pad(v.astype(jnp.float32), (0, Cp - Cout),
                       constant_values=fill).reshape(1, Cp)

    g1p, b1p = pad_c(g1, 1.0), pad_c(be1)
    g2p, b2p = pad_c(g2, 1.0), pad_c(be2)

    # ---- BN1-apply + LeakyReLU + Conv2d 1x1 + bias + BN2 stats (one kernel) -
    wc2 = jnp.transpose(wc[:, :, 0, 0], (1, 0))                    # (Cin, Cout)
    wc2 = jnp.pad(wc2, ((0, Cp - Cout), (0, Cp - Cout))).astype(jnp.bfloat16)
    bc2 = jnp.pad(bc.astype(jnp.float32), (0, Cp - Cout)).reshape(1, Cp)
    y2, mean2, rstd2 = bn_act_matmul_bn_stats(
        y1, mean1, rstd1, g1p, b1p, wc2, bc2, m_valid=M, n_total=n_total)

    # ---- BN2-apply + LeakyReLU(0.2), f32 output -----------------------------
    y3 = bn_apply_leaky(y2.reshape(4 * Mp, Cp), mean2, rstd2, g2p, b2p,
                        out_dtype=jnp.float32)

    # ---- pixel-shuffle interleave (deferred to the very end) + unpad --------
    y = y3.reshape(4, Mp, Cp)[:, :M, :].reshape(2, 2, B, H, W, Cp)
    y = jnp.transpose(y, (2, 3, 0, 4, 1, 5)).reshape(B, Ho, Wo, Cp)
    y = y[..., :Cout]                                  # drop padded lanes once
    return jnp.transpose(y, (0, 3, 1, 2))              # back to NCHW


# ---------------------------------------------------------------------------
# Deterministic synthetic parameters (shapes match the PyTorch module).
# ---------------------------------------------------------------------------
def init_params(key, in_c, out_c):
    k1, k2, k3, k4 = jax.random.split(key, 4)
    wt = jax.random.normal(k1, (in_c, out_c, 4, 4), jnp.float32) * 0.05
    bt = jax.random.normal(k2, (out_c,), jnp.float32) * 0.05
    g1, be1 = jnp.ones((out_c,), jnp.float32), jnp.zeros((out_c,), jnp.float32)
    wc = jax.random.normal(k3, (out_c, out_c, 1, 1), jnp.float32) * 0.05
    bc = jax.random.normal(k4, (out_c,), jnp.float32) * 0.05
    g2, be2 = jnp.ones((out_c,), jnp.float32), jnp.zeros((out_c,), jnp.float32)
    return (wt, bt, g1, be1, wc, bc, g2, be2)


# Pure-XLA f32 reference of the same forward pass (for correctness checking).
def reference_forward(x, params):
    wt, bt, g1, be1, wc, bc, g2, be2 = params
    w_conv = jnp.transpose(wt, (1, 0, 2, 3))[:, :, ::-1, ::-1]     # OIHW, flipped
    y = lax.conv_general_dilated(
        x, w_conv, window_strides=(1, 1), padding=((2, 2), (2, 2)),
        lhs_dilation=(2, 2), dimension_numbers=("NCHW", "OIHW", "NCHW"))
    y = y + bt.reshape(1, -1, 1, 1)

    def bn_lrelu(y, g, b):
        mean = jnp.mean(y, axis=(0, 2, 3), keepdims=True)
        var = jnp.mean(jnp.square(y - mean), axis=(0, 2, 3), keepdims=True)
        y = ((y - mean) * lax.rsqrt(var + 1e-5) * g.reshape(1, -1, 1, 1)
             + b.reshape(1, -1, 1, 1))
        return jnp.where(y > 0, y, 0.2 * y)

    y = bn_lrelu(y, g1, be1)
    y = lax.conv_general_dilated(
        y, wc, window_strides=(1, 1), padding="VALID",
        dimension_numbers=("NCHW", "OIHW", "NCHW")) + bc.reshape(1, -1, 1, 1)
    return bn_lrelu(y, g2, be2)


if __name__ == "__main__":
    key = jax.random.PRNGKey(0)
    kx, kp = jax.random.split(key)
    B, Cin, Cout, H, W = 2, 16, 32, 16, 16
    x = jax.random.normal(kx, (B, Cin, H, W), jnp.float32)
    params = init_params(kp, Cin, Cout)

    fwd = jax.jit(conv_trans_bn_conv1)
    out = jax.block_until_ready(fwd(x, params))

    assert out.shape == (B, Cout, 2 * H, 2 * W), out.shape
    assert bool(jnp.all(jnp.isfinite(out)))
    ref = reference_forward(x, params)
    err = float(jnp.max(jnp.abs(out - ref)))
    assert err < 0.2, f"max abs err vs reference: {err}"
    print("KERNEL_OK")
</pallas_src>

<mosaic_0001>
module attributes {stable_mosaic.version = 11 : i64} {
  func.func @_bmm_bias_stats_kernel(%arg0: i32, %arg1: i32, %arg2: i32, %arg3: i32, %arg4: memref<1x512x128xbf16, #tpu.memory_space<vmem>>, %arg5: memref<1x128x128xbf16, #tpu.memory_space<vmem>>, %arg6: memref<1x128xf32, #tpu.memory_space<vmem>>, %arg7: memref<1x512x128xbf16, #tpu.memory_space<vmem>>, %arg8: memref<1x128xf32, #tpu.memory_space<vmem>>, %arg9: memref<1x128xf32, #tpu.memory_space<vmem>>, %arg10: memref<512x128xf32, #tpu.memory_space<vmem>>, %arg11: memref<1x128xf32, #tpu.memory_space<vmem>>, %arg12: memref<1x128xf32, #tpu.memory_space<vmem>>) attributes {dimension_semantics = [#tpu.dimension_semantics<parallel>, #tpu.dimension_semantics<arbitrary>, #tpu.dimension_semantics<arbitrary>, #tpu.dimension_semantics<arbitrary>], iteration_bounds = array<i64: 1, 4, 1, 1>, scalar_prefetch = 0 : i64, scratch_operands = 3 : i64, tpu.core_type = #tpu.core_type<tc>, window_params = [{transform_indices = @transform_0, window_bounds = array<i64: 1, 512, 128>}, {transform_indices = @transform_1, window_bounds = array<i64: 1, 128, 128>}, {transform_indices = @transform_2, window_bounds = array<i64: 1, 128>}, {transform_indices = @transform_3, window_bounds = array<i64: 1, 512, 128>}, {transform_indices = @transform_4, window_bounds = array<i64: 1, 128>}, {transform_indices = @transform_5, window_bounds = array<i64: 1, 128>}]} {
    %c0_i32 = arith.constant 0 : i32
    %0 = arith.cmpi eq, %arg1, %c0_i32 : i32
    %c0_i32_0 = arith.constant 0 : i32
    %1 = arith.cmpi eq, %arg2, %c0_i32_0 : i32
    %2 = arith.andi %0, %1 : i1
    %c0_i32_1 = arith.constant 0 : i32
    %3 = arith.cmpi eq, %arg3, %c0_i32_1 : i32
    %4 = arith.andi %2, %3 : i1
    %5 = arith.extui %4 : i1 to i32
    %c0_i32_2 = arith.constant 0 : i32
    %6 = arith.cmpi ne, %5, %c0_i32_2 : i32
    scf.if %6 {
      %cst_19 = arith.constant 0.000000e+00 : f32
      %28 = vector.broadcast %cst_19 : f32 to vector<1x128xf32>
      %c0_20 = arith.constant 0 : index
      %c0_21 = arith.constant 0 : index
      %29 = vector.load %arg11[%c0_20, %c0_21] : memref<1x128xf32, #tpu.memory_space<vmem>>, vector<1x128xf32>
      tpu.vector_store %arg11[%c0_20, %c0_21], %28 {strides = array<i32>} : memref<1x128xf32, #tpu.memory_space<vmem>>, vector<1x128xf32>,
      %cst_22 = arith.constant 0.000000e+00 : f32
      %30 = vector.broadcast %cst_22 : f32 to vector<1x128xf32>
      %c0_23 = arith.constant 0 : index
      %c0_24 = arith.constant 0 : index
      %31 = vector.load %arg12[%c0_23, %c0_24] : memref<1x128xf32, #tpu.memory_space<vmem>>, vector<1x128xf32>
      tpu.vector_store %arg12[%c0_23, %c0_24], %30 {strides = array<i32>} : memref<1x128xf32, #tpu.memory_space<vmem>>, vector<1x128xf32>,
    } else {
    }
    %c0_i32_3 = arith.constant 0 : i32
    %7 = arith.cmpi eq, %arg3, %c0_i32_3 : i32
    %8 = arith.extui %7 : i1 to i32
    %c0_i32_4 = arith.constant 0 : i32
    %9 = arith.cmpi ne, %8, %c0_i32_4 : i32
    scf.if %9 {
      %cst_19 = arith.constant 0.000000e+00 : f32
      %28 = vector.broadcast %cst_19 : f32 to vector<512x128xf32>
      %c0_20 = arith.constant 0 : index
      %c0_21 = arith.constant 0 : index
      %29 = vector.load %arg10[%c0_20, %c0_21] : memref<512x128xf32, #tpu.memory_space<vmem>>, vector<512x128xf32>
      tpu.vector_store %arg10[%c0_20, %c0_21], %28 {strides = array<i32>} : memref<512x128xf32, #tpu.memory_space<vmem>>, vector<512x128xf32>,
    } else {
    }
    %c0 = arith.constant 0 : index
    %c0_5 = arith.constant 0 : index
    %10 = vector.load %arg10[%c0, %c0_5] : memref<512x128xf32, #tpu.memory_space<vmem>>, vector<512x128xf32>
    %c0_6 = arith.constant 0 : index
    %c0_7 = arith.constant 0 : index
    %c0_8 = arith.constant 0 : index
    %11 = vector.load %arg4[%c0_6, %c0_7, %c0_8] : memref<1x512x128xbf16, #tpu.memory_space<vmem>>, vector<1x512x128xbf16>
    %12 = vector.shape_cast %11 : vector<1x512x128xbf16> to vector<512x128xbf16>
    %c0_9 = arith.constant 0 : index
    %c0_10 = arith.constant 0 : index
    %c0_11 = arith.constant 0 : index
    %13 = vector.load %arg5[%c0_9, %c0_10, %c0_11] : memref<1x128x128xbf16, #tpu.memory_space<vmem>>, vector<1x128x128xbf16>
    %14 = vector.shape_cast %13 : vector<1x128x128xbf16> to vector<128x128xbf16>
    %cst = arith.constant dense<0.000000e+00> : vector<512x128xf32>
    %15 = tpu.matmul %12, %14, %cst {dimension_numbers = #tpu.dot_dimension_numbers<[1], [0], [0], [1], [0, 0, 1, 1], [], []>} : vector<512x128xbf16>, vector<128x128xbf16>, vector<512x128xf32> -> vector<512x128xf32>
    %16 = arith.addf %10, %15 : vector<512x128xf32>
    %c0_12 = arith.constant 0 : index
    %c0_13 = arith.constant 0 : index
    %17 = vector.load %arg10[%c0_12, %c0_13] : memref<512x128xf32, #tpu.memory_space<vmem>>, vector<512x128xf32>
    tpu.vector_store %arg10[%c0_12, %c0_13], %16 {strides = array<i32>} : memref<512x128xf32, #tpu.memory_space<vmem>>, vector<512x128xf32>,
    %c0_i32_14 = arith.constant 0 : i32
    %18 = arith.cmpi eq, %arg3, %c0_i32_14 : i32
    %19 = arith.extui %18 : i1 to i32
    %c0_i32_15 = arith.constant 0 : i32
    %20 = arith.cmpi ne, %19, %c0_i32_15 : i32
    scf.if %20 {
      %c0_19 = arith.constant 0 : index
      %c0_20 = arith.constant 0 : index
      %28 = vector.load %arg10[%c0_19, %c0_20] : memref<512x128xf32, #tpu.memory_space<vmem>>, vector<512x128xf32>
      %c0_21 = arith.constant 0 : index
      %c0_22 = arith.constant 0 : index
      %29 = vector.load %arg6[%c0_21, %c0_22] : memref<1x128xf32, #tpu.memory_space<vmem>>, vector<1x128xf32>
      %30 = vector.broadcast %29 : vector<1x128xf32> to vector<512x128xf32>
      %31 = arith.addf %28, %30 : vector<512x128xf32>
      %32 = arith.truncf %31 : vector<512x128xf32> to vector<512x128xbf16>
      %c0_23 = arith.constant 0 : index
      %c0_24 = arith.constant 0 : index
      %c0_25 = arith.constant 0 : index
      %33 = vector.load %arg7[%c0_23, %c0_24, %c0_25] : memref<1x512x128xbf16, #tpu.memory_space<vmem>>, vector<1x512x128xbf16>
      %34 = vector.shape_cast %33 : vector<1x512x128xbf16> to vector<512x128xbf16>
      %35 = vector.shape_cast %32 : vector<512x128xbf16> to vector<1x512x128xbf16>
      tpu.vector_store %arg7[%c0_23, %c0_24, %c0_25], %35 {strides = array<i32>} : memref<1x512x128xbf16, #tpu.memory_space<vmem>>, vector<1x512x128xbf16>,
      %c0_26 = arith.constant 0 : index
      %c0_27 = arith.constant 0 : index
      %36 = vector.load %arg11[%c0_26, %c0_27] : memref<1x128xf32, #tpu.memory_space<vmem>>, vector<1x128xf32>
      %cst_28 = arith.constant dense<0.000000e+00> : vector<128xf32>
      %37 = vector.multi_reduction <add>, %31, %cst_28 [0] : vector<512x128xf32> to vector<128xf32>
      %38 = vector.shape_cast %37 : vector<128xf32> to vector<1x128xf32>
      %39 = arith.addf %36, %38 : vector<1x128xf32>
      %c0_29 = arith.constant 0 : index
      %c0_30 = arith.constant 0 : index
      %40 = vector.load %arg11[%c0_29, %c0_30] : memref<1x128xf32, #tpu.memory_space<vmem>>, vector<1x128xf32>
      tpu.vector_store %arg11[%c0_29, %c0_30], %39 {strides = array<i32>} : memref<1x128xf32, #tpu.memory_space<vmem>>, vector<1x128xf32>,
      %c0_31 = arith.constant 0 : index
      %c0_32 = arith.constant 0 : index
      %41 = vector.load %arg12[%c0_31, %c0_32] : memref<1x128xf32, #tpu.memory_space<vmem>>, vector<1x128xf32>
      %42 = arith.mulf %31, %31 : vector<512x128xf32>
      %cst_33 = arith.constant dense<0.000000e+00> : vector<128xf32>
      %43 = vector.multi_reduction <add>, %42, %cst_33 [0] : vector<512x128xf32> to vector<128xf32>
      %44 = vector.shape_cast %43 : vector<128xf32> to vector<1x128xf32>
      %45 = arith.addf %41, %44 : vector<1x128xf32>
      %c0_34 = arith.constant 0 : index
      %c0_35 = arith.constant 0 : index
      %46 = vector.load %arg12[%c0_34, %c0_35] : memref<1x128xf32, #tpu.memory_space<vmem>>, vector<1x128xf32>
      tpu.vector_store %arg12[%c0_34, %c0_35], %45 {strides = array<i32>} : memref<1x128xf32, #tpu.memory_space<vmem>>, vector<1x128xf32>,
    } else {
    }
    %c3_i32 = arith.constant 3 : i32
    %21 = arith.cmpi eq, %arg1, %c3_i32 : i32
    %c0_i32_16 = arith.constant 0 : i32
    %22 = arith.cmpi eq, %arg2, %c0_i32_16 : i32
    %23 = arith.andi %21, %22 : i1
    %c0_i32_17 = arith.constant 0 : i32
    %24 = arith.cmpi eq, %arg3, %c0_i32_17 : i32
    %25 = arith.andi %23, %24 : i1
    %26 = arith.extui %25 : i1 to i32
    %c0_i32_18 = arith.constant 0 : i32
    %27 = arith.cmpi ne, %26, %c0_i32_18 : i32
    scf.if %27 {
      %c0_19 = arith.constant 0 : index
      %c0_20 = arith.constant 0 : index
      %28 = vector.load %arg11[%c0_19, %c0_20] : memref<1x128xf32, #tpu.memory_space<vmem>>, vector<1x128xf32>
      %cst_21 = arith.constant 4.8828125E-4 : f32
      %29 = vector.broadcast %cst_21 : f32 to vector<1x128xf32>
      %30 = arith.mulf %28, %29 : vector<1x128xf32>
      %c0_22 = arith.constant 0 : index
      %c0_23 = arith.constant 0 : index
      %31 = vector.load %arg12[%c0_22, %c0_23] : memref<1x128xf32, #tpu.memory_space<vmem>>, vector<1x128xf32>
      %cst_24 = arith.constant 4.8828125E-4 : f32
      %32 = vector.broadcast %cst_24 : f32 to vector<1x128xf32>
      %33 = arith.mulf %31, %32 : vector<1x128xf32>
      %34 = arith.mulf %30, %30 : vector<1x128xf32>
      %35 = arith.subf %33, %34 : vector<1x128xf32>
      %cst_25 = arith.constant 0.000000e+00 : f32
      %36 = vector.broadcast %cst_25 : f32 to vector<1x128xf32>
      %37 = arith.maximumf %35, %36 : vector<1x128xf32>
      %c0_26 = arith.constant 0 : index
      %c0_27 = arith.constant 0 : index
      %38 = vector.load %arg8[%c0_26, %c0_27] : memref<1x128xf32, #tpu.memory_space<vmem>>, vector<1x128xf32>
      tpu.vector_store %arg8[%c0_26, %c0_27], %30 {strides = array<i32>} : memref<1x128xf32, #tpu.memory_space<vmem>>, vector<1x128xf32>,
      %cst_28 = arith.constant 9.99999974E-6 : f32
      %39 = vector.broadcast %cst_28 : f32 to vector<1x128xf32>
      %40 = arith.addf %37, %39 : vector<1x128xf32>
      %41 = math.rsqrt %40 : vector<1x128xf32>
      %c0_29 = arith.constant 0 : index
      %c0_30 = arith.constant 0 : index
      %42 = vector.load %arg9[%c0_29, %c0_30] : memref<1x128xf32, #tpu.memory_space<vmem>>, vector<1x128xf32>
      tpu.vector_store %arg9[%c0_29, %c0_30], %41 {strides = array<i32>} : memref<1x128xf32, #tpu.memory_space<vmem>>, vector<1x128xf32>,
    } else {
    }
    return
  }
  func.func @transform_0(%arg0: i32, %arg1: i32, %arg2: i32, %arg3: i32) -> (i32, i32, i32) {
    %c0_i32 = arith.constant 0 : i32
    return %arg1, %arg2, %arg3 : i32, i32, i32
  }
  func.func @transform_1(%arg0: i32, %arg1: i32, %arg2: i32, %arg3: i32) -> (i32, i32, i32) {
    %c0_i32 = arith.constant 0 : i32
    return %arg1, %arg3, %arg0 : i32, i32, i32
  }
  func.func @transform_2(%arg0: i32, %arg1: i32, %arg2: i32, %arg3: i32) -> (i32, i32) {
    %c0_i32 = arith.constant 0 : i32
    %c0_i32_0 = arith.constant 0 : i32
    return %c0_i32, %arg0 : i32, i32
  }
  func.func @transform_3(%arg0: i32, %arg1: i32, %arg2: i32, %arg3: i32) -> (i32, i32, i32) {
    %c0_i32 = arith.constant 0 : i32
    return %arg1, %arg2, %arg0 : i32, i32, i32
  }
  func.func @transform_4(%arg0: i32, %arg1: i32, %arg2: i32, %arg3: i32) -> (i32, i32) {
    %c0_i32 = arith.constant 0 : i32
    %c0_i32_0 = arith.constant 0 : i32
    return %c0_i32, %arg0 : i32, i32
  }
  func.func @transform_5(%arg0: i32, %arg1: i32, %arg2: i32, %arg3: i32) -> (i32, i32) {
    %c0_i32 = arith.constant 0 : i32
    %c0_i32_0 = arith.constant 0 : i32
    return %c0_i32, %arg0 : i32, i32
  }
}

module attributes {stable_mosaic.version = 11 : i64} {
  func.func @_bn_act_bmm_bias_stats_kernel(%arg0: i32, %arg1: i32, %arg2: i32, %arg3: i32, %arg4: memref<1x512x128xbf16, #tpu.memory_space<vmem>>, %arg5: memref<1x128xf32, #tpu.memory_space<vmem>>, %arg6: memref<1x128xf32, #tpu.memory_space<vmem>>, %arg7: memref<1x128xf32, #tpu.memory_space<vmem>>, %arg8: memref<1x128xf32, #tpu.memory_space<vmem>>, %arg9: memref<128x128xbf16, #tpu.memory_space<vmem>>, %arg10: memref<1x128xf32, #tpu.memory_space<vmem>>, %arg11: memref<1x512x128xbf16, #tpu.memory_space<vmem>>, %arg12: memref<1x128xf32, #tpu.memory_space<vmem>>, %arg13: memref<1x128xf32, #tpu.memory_space<vmem>>, %arg14: memref<512x128xf32, #tpu.memory_space<vmem>>, %arg15: memref<1x128xf32, #tpu.memory_space<vmem>>, %arg16: memref<1x128xf32, #tpu.memory_space<vmem>>) attributes {dimension_semantics = [#tpu.dimension_semantics<parallel>, #tpu.dimension_semantics<arbitrary>, #tpu.dimension_semantics<arbitrary>, #tpu.dimension_semantics<arbitrary>], iteration_bounds = array<i64: 1, 4, 1, 1>, scalar_prefetch = 0 : i64, scratch_operands = 3 : i64, tpu.core_type = #tpu.core_type<tc>, window_params = [{transform_indices = @transform_0, window_bounds = array<i64: 1, 512, 128>}, {transform_indices = @transform_1, window_bounds = array<i64: 1, 128>}, {transform_indices = @transform_2, window_bounds = array<i64: 1, 128>}, {transform_indices = @transform_3, window_bounds = array<i64: 1, 128>}, {transform_indices = @transform_4, window_bounds = array<i64: 1, 128>}, {transform_indices = @transform_5, window_bounds = array<i64: 128, 128>}, {transform_indices = @transform_6, window_bounds = array<i64: 1, 128>}, {transform_indices = @transform_7, window_bounds = array<i64: 1, 512, 128>}, {transform_indices = @transform_8, window_bounds = array<i64: 1, 128>}, {transform_indices = @transform_9, window_bounds = array<i64: 1, 128>}]} {
    %c0_i32 = arith.constant 0 : i32
    %0 = arith.cmpi eq, %arg1, %c0_i32 : i32
    %c0_i32_0 = arith.constant 0 : i32
    %1 = arith.cmpi eq, %arg2, %c0_i32_0 : i32
    %2 = arith.andi %0, %1 : i1
    %c0_i32_1 = arith.constant 0 : i32
    %3 = arith.cmpi eq, %arg3, %c0_i32_1 : i32
    %4 = arith.andi %2, %3 : i1
    %5 = arith.extui %4 : i1 to i32
    %c0_i32_2 = arith.constant 0 : i32
    %6 = arith.cmpi ne, %5, %c0_i32_2 : i32
    scf.if %6 {
      %cst_28 = arith.constant 0.000000e+00 : f32
      %46 = vector.broadcast %cst_28 : f32 to vector<1x128xf32>
      %c0_29 = arith.constant 0 : index
      %c0_30 = arith.constant 0 : index
      %47 = vector.load %arg15[%c0_29, %c0_30] : memref<1x128xf32, #tpu.memory_space<vmem>>, vector<1x128xf32>
      tpu.vector_store %arg15[%c0_29, %c0_30], %46 {strides = array<i32>} : memref<1x128xf32, #tpu.memory_space<vmem>>, vector<1x128xf32>,
      %cst_31 = arith.constant 0.000000e+00 : f32
      %48 = vector.broadcast %cst_31 : f32 to vector<1x128xf32>
      %c0_32 = arith.constant 0 : index
      %c0_33 = arith.constant 0 : index
      %49 = vector.load %arg16[%c0_32, %c0_33] : memref<1x128xf32, #tpu.memory_space<vmem>>, vector<1x128xf32>
      tpu.vector_store %arg16[%c0_32, %c0_33], %48 {strides = array<i32>} : memref<1x128xf32, #tpu.memory_space<vmem>>, vector<1x128xf32>,
    } else {
    }
    %c0_i32_3 = arith.constant 0 : i32
    %7 = arith.cmpi eq, %arg3, %c0_i32_3 : i32
    %8 = arith.extui %7 : i1 to i32
    %c0_i32_4 = arith.constant 0 : i32
    %9 = arith.cmpi ne, %8, %c0_i32_4 : i32
    scf.if %9 {
      %cst_28 = arith.constant 0.000000e+00 : f32
      %46 = vector.broadcast %cst_28 : f32 to vector<512x128xf32>
      %c0_29 = arith.constant 0 : index
      %c0_30 = arith.constant 0 : index
      %47 = vector.load %arg14[%c0_29, %c0_30] : memref<512x128xf32, #tpu.memory_space<vmem>>, vector<512x128xf32>
      tpu.vector_store %arg14[%c0_29, %c0_30], %46 {strides = array<i32>} : memref<512x128xf32, #tpu.memory_space<vmem>>, vector<512x128xf32>,
    } else {
    }
    %c0 = arith.constant 0 : index
    %c0_5 = arith.constant 0 : index
    %c0_6 = arith.constant 0 : index
    %10 = vector.load %arg4[%c0, %c0_5, %c0_6] : memref<1x512x128xbf16, #tpu.memory_space<vmem>>, vector<1x512x128xbf16>
    %11 = vector.shape_cast %10 : vector<1x512x128xbf16> to vector<512x128xbf16>
    %12 = arith.extf %11 : vector<512x128xbf16> to vector<512x128xf32>
    %c0_7 = arith.constant 0 : index
    %c0_8 = arith.constant 0 : index
    %13 = vector.load %arg5[%c0_7, %c0_8] : memref<1x128xf32, #tpu.memory_space<vmem>>, vector<1x128xf32>
    %14 = vector.broadcast %13 : vector<1x128xf32> to vector<512x128xf32>
    %15 = arith.subf %12, %14 : vector<512x128xf32>
    %c0_9 = arith.constant 0 : index
    %c0_10 = arith.constant 0 : index
    %16 = vector.load %arg6[%c0_9, %c0_10] : memref<1x128xf32, #tpu.memory_space<vmem>>, vector<1x128xf32>
    %17 = vector.broadcast %16 : vector<1x128xf32> to vector<512x128xf32>
    %18 = arith.mulf %15, %17 : vector<512x128xf32>
    %c0_11 = arith.constant 0 : index
    %c0_12 = arith.constant 0 : index
    %19 = vector.load %arg7[%c0_11, %c0_12] : memref<1x128xf32, #tpu.memory_space<vmem>>, vector<1x128xf32>
    %20 = vector.broadcast %19 : vector<1x128xf32> to vector<512x128xf32>
    %21 = arith.mulf %18, %20 : vector<512x128xf32>
    %c0_13 = arith.constant 0 : index
    %c0_14 = arith.constant 0 : index
    %22 = vector.load %arg8[%c0_13, %c0_14] : memref<1x128xf32, #tpu.memory_space<vmem>>, vector<1x128xf32>
    %23 = vector.broadcast %22 : vector<1x128xf32> to vector<512x128xf32>
    %24 = arith.addf %21, %23 : vector<512x128xf32>
    %cst = arith.constant 0.000000e+00 : f32
    %25 = vector.broadcast %cst : f32 to vector<512x128xf32>
    %26 = arith.cmpf ogt, %24, %25 : vector<512x128xf32>
    %cst_15 = arith.constant 2.000000e-01 : f32
    %27 = vector.broadcast %cst_15 : f32 to vector<512x128xf32>
    %28 = arith.mulf %27, %24 : vector<512x128xf32>
    %29 = arith.select %26, %24, %28 : vector<512x128xi1>, vector<512x128xf32>
    %c0_16 = arith.constant 0 : index
    %c0_17 = arith.constant 0 : index
    %30 = vector.load %arg14[%c0_16, %c0_17] : memref<512x128xf32, #tpu.memory_space<vmem>>, vector<512x128xf32>
    %31 = arith.truncf %29 : vector<512x128xf32> to vector<512x128xbf16>
    %c0_18 = arith.constant 0 : index
    %c0_19 = arith.constant 0 : index
    %32 = vector.load %arg9[%c0_18, %c0_19] : memref<128x128xbf16, #tpu.memory_space<vmem>>, vector<128x128xbf16>
    %cst_20 = arith.constant dense<0.000000e+00> : vector<512x128xf32>
    %33 = tpu.matmul %31, %32, %cst_20 {dimension_numbers = #tpu.dot_dimension_numbers<[1], [0], [0], [1], [0, 0, 1, 1], [], []>} : vector<512x128xbf16>, vector<128x128xbf16>, vector<512x128xf32> -> vector<512x128xf32>
    %34 = arith.addf %30, %33 : vector<512x128xf32>
    %c0_21 = arith.constant 0 : index
    %c0_22 = arith.constant 0 : index
    %35 = vector.load %arg14[%c0_21, %c0_22] : memref<512x128xf32, #tpu.memory_space<vmem>>, vector<512x128xf32>
    tpu.vector_store %arg14[%c0_21, %c0_22], %34 {strides = array<i32>} : memref<512x128xf32, #tpu.memory_space<vmem>>, vector<512x128xf32>,
    %c0_i32_23 = arith.constant 0 : i32
    %36 = arith.cmpi eq, %arg3, %c0_i32_23 : i32
    %37 = arith.extui %36 : i1 to i32
    %c0_i32_24 = arith.constant 0 : i32
    %38 = arith.cmpi ne, %37, %c0_i32_24 : i32
    scf.if %38 {
      %c0_28 = arith.constant 0 : index
      %c0_29 = arith.constant 0 : index
      %46 = vector.load %arg14[%c0_28, %c0_29] : memref<512x128xf32, #tpu.memory_space<vmem>>, vector<512x128xf32>
      %c0_30 = arith.constant 0 : index
      %c0_31 = arith.constant 0 : index
      %47 = vector.load %arg10[%c0_30, %c0_31] : memref<1x128xf32, #tpu.memory_space<vmem>>, vector<1x128xf32>
      %48 = vector.broadcast %47 : vector<1x128xf32> to vector<512x128xf32>
      %49 = arith.addf %46, %48 : vector<512x128xf32>
      %50 = arith.truncf %49 : vector<512x128xf32> to vector<512x128xbf16>
      %c0_32 = arith.constant 0 : index
      %c0_33 = arith.constant 0 : index
      %c0_34 = arith.constant 0 : index
      %51 = vector.load %arg11[%c0_32, %c0_33, %c0_34] : memref<1x512x128xbf16, #tpu.memory_space<vmem>>, vector<1x512x128xbf16>
      %52 = vector.shape_cast %51 : vector<1x512x128xbf16> to vector<512x128xbf16>
      %53 = vector.shape_cast %50 : vector<512x128xbf16> to vector<1x512x128xbf16>
      tpu.vector_store %arg11[%c0_32, %c0_33, %c0_34], %53 {strides = array<i32>} : memref<1x512x128xbf16, #tpu.memory_space<vmem>>, vector<1x512x128xbf16>,
      %c0_35 = arith.constant 0 : index
      %c0_36 = arith.constant 0 : index
      %54 = vector.load %arg15[%c0_35, %c0_36] : memref<1x128xf32, #tpu.memory_space<vmem>>, vector<1x128xf32>
      %cst_37 = arith.constant dense<0.000000e+00> : vector<128xf32>
      %55 = vector.multi_reduction <add>, %49, %cst_37 [0] : vector<512x128xf32> to vector<128xf32>
      %56 = vector.shape_cast %55 : vector<128xf32> to vector<1x128xf32>
      %57 = arith.addf %54, %56 : vector<1x128xf32>
      %c0_38 = arith.constant 0 : index
      %c0_39 = arith.constant 0 : index
      %58 = vector.load %arg15[%c0_38, %c0_39] : memref<1x128xf32, #tpu.memory_space<vmem>>, vector<1x128xf32>
      tpu.vector_store %arg15[%c0_38, %c0_39], %57 {strides = array<i32>} : memref<1x128xf32, #tpu.memory_space<vmem>>, vector<1x128xf32>,
      %c0_40 = arith.constant 0 : index
      %c0_41 = arith.constant 0 : index
      %59 = vector.load %arg16[%c0_40, %c0_41] : memref<1x128xf32, #tpu.memory_space<vmem>>, vector<1x128xf32>
      %60 = arith.mulf %49, %49 : vector<512x128xf32>
      %cst_42 = arith.constant dense<0.000000e+00> : vector<128xf32>
      %61 = vector.multi_reduction <add>, %60, %cst_42 [0] : vector<512x128xf32> to vector<128xf32>
      %62 = vector.shape_cast %61 : vector<128xf32> to vector<1x128xf32>
      %63 = arith.addf %59, %62 : vector<1x128xf32>
      %c0_43 = arith.constant 0 : index
      %c0_44 = arith.constant 0 : index
      %64 = vector.load %arg16[%c0_43, %c0_44] : memref<1x128xf32, #tpu.memory_space<vmem>>, vector<1x128xf32>
      tpu.vector_store %arg16[%c0_43, %c0_44], %63 {strides = array<i32>} : memref<1x128xf32, #tpu.memory_space<vmem>>, vector<1x128xf32>,
    } else {
    }
    %c3_i32 = arith.constant 3 : i32
    %39 = arith.cmpi eq, %arg1, %c3_i32 : i32
    %c0_i32_25 = arith.constant 0 : i32
    %40 = arith.cmpi eq, %arg2, %c0_i32_25 : i32
    %41 = arith.andi %39, %40 : i1
    %c0_i32_26 = arith.constant 0 : i32
    %42 = arith.cmpi eq, %arg3, %c0_i32_26 : i32
    %43 = arith.andi %41, %42 : i1
    %44 = arith.extui %43 : i1 to i32
    %c0_i32_27 = arith.constant 0 : i32
    %45 = arith.cmpi ne, %44, %c0_i32_27 : i32
    scf.if %45 {
      %c0_28 = arith.constant 0 : index
      %c0_29 = arith.constant 0 : index
      %46 = vector.load %arg15[%c0_28, %c0_29] : memref<1x128xf32, #tpu.memory_space<vmem>>, vector<1x128xf32>
      %cst_30 = arith.constant 4.8828125E-4 : f32
      %47 = vector.broadcast %cst_30 : f32 to vector<1x128xf32>
      %48 = arith.mulf %46, %47 : vector<1x128xf32>
      %c0_31 = arith.constant 0 : index
      %c0_32 = arith.constant 0 : index
      %49 = vector.load %arg16[%c0_31, %c0_32] : memref<1x128xf32, #tpu.memory_space<vmem>>, vector<1x128xf32>
      %cst_33 = arith.constant 4.8828125E-4 : f32
      %50 = vector.broadcast %cst_33 : f32 to vector<1x128xf32>
      %51 = arith.mulf %49, %50 : vector<1x128xf32>
      %52 = arith.mulf %48, %48 : vector<1x128xf32>
      %53 = arith.subf %51, %52 : vector<1x128xf32>
      %cst_34 = arith.constant 0.000000e+00 : f32
      %54 = vector.broadcast %cst_34 : f32 to vector<1x128xf32>
      %55 = arith.maximumf %53, %54 : vector<1x128xf32>
      %c0_35 = arith.constant 0 : index
      %c0_36 = arith.constant 0 : index
      %56 = vector.load %arg12[%c0_35, %c0_36] : memref<1x128xf32, #tpu.memory_space<vmem>>, vector<1x128xf32>
      tpu.vector_store %arg12[%c0_35, %c0_36], %48 {strides = array<i32>} : memref<1x128xf32, #tpu.memory_space<vmem>>, vector<1x128xf32>,
      %cst_37 = arith.constant 9.99999974E-6 : f32
      %57 = vector.broadcast %cst_37 : f32 to vector<1x128xf32>
      %58 = arith.addf %55, %57 : vector<1x128xf32>
      %59 = math.rsqrt %58 : vector<1x128xf32>
      %c0_38 = arith.constant 0 : index
      %c0_39 = arith.constant 0 : index
      %60 = vector.load %arg13[%c0_38, %c0_39] : memref<1x128xf32, #tpu.memory_space<vmem>>, vector<1x128xf32>
      tpu.vector_store %arg13[%c0_38, %c0_39], %59 {strides = array<i32>} : memref<1x128xf32, #tpu.memory_space<vmem>>, vector<1x128xf32>,
    } else {
    }
    return
  }
  func.func @transform_0(%arg0: i32, %arg1: i32, %arg2: i32, %arg3: i32) -> (i32, i32, i32) {
    %c0_i32 = arith.constant 0 : i32
    return %arg1, %arg2, %arg3 : i32, i32, i32
  }
  func.func @transform_1(%arg0: i32, %arg1: i32, %arg2: i32, %arg3: i32) -> (i32, i32) {
    %c0_i32 = arith.constant 0 : i32
    %c0_i32_0 = arith.constant 0 : i32
    return %c0_i32, %arg3 : i32, i32
  }
  func.func @transform_2(%arg0: i32, %arg1: i32, %arg2: i32, %arg3: i32) -> (i32, i32) {
    %c0_i32 = arith.constant 0 : i32
    %c0_i32_0 = arith.constant 0 : i32
    return %c0_i32, %arg3 : i32, i32
  }
  func.func @transform_3(%arg0: i32, %arg1: i32, %arg2: i32, %arg3: i32) -> (i32, i32) {
    %c0_i32 = arith.constant 0 : i32
    %c0_i32_0 = arith.constant 0 : i32
    return %c0_i32, %arg3 : i32, i32
  }
  func.func @transform_4(%arg0: i32, %arg1: i32, %arg2: i32, %arg3: i32) -> (i32, i32) {
    %c0_i32 = arith.constant 0 : i32
    %c0_i32_0 = arith.constant 0 : i32
    return %c0_i32, %arg3 : i32, i32
  }
  func.func @transform_5(%arg0: i32, %arg1: i32, %arg2: i32, %arg3: i32) -> (i32, i32) {
    %c0_i32 = arith.constant 0 : i32
    return %arg3, %arg0 : i32, i32
  }
  func.func @transform_6(%arg0: i32, %arg1: i32, %arg2: i32, %arg3: i32) -> (i32, i32) {
    %c0_i32 = arith.constant 0 : i32
    %c0_i32_0 = arith.constant 0 : i32
    return %c0_i32, %arg0 : i32, i32
  }
  func.func @transform_7(%arg0: i32, %arg1: i32, %arg2: i32, %arg3: i32) -> (i32, i32, i32) {
    %c0_i32 = arith.constant 0 : i32
    return %arg1, %arg2, %arg0 : i32, i32, i32
  }
  func.func @transform_8(%arg0: i32, %arg1: i32, %arg2: i32, %arg3: i32) -> (i32, i32) {
    %c0_i32 = arith.constant 0 : i32
    %c0_i32_0 = arith.constant 0 : i32
    return %c0_i32, %arg0 : i32, i32
  }
  func.func @transform_9(%arg0: i32, %arg1: i32, %arg2: i32, %arg3: i32) -> (i32, i32) {
    %c0_i32 = arith.constant 0 : i32
    %c0_i32_0 = arith.constant 0 : i32
    return %c0_i32, %arg0 : i32, i32
  }
}

module attributes {stable_mosaic.version = 11 : i64} {
  func.func @_bn_apply_leaky_kernel(%arg0: i32, %arg1: memref<1024x128xbf16, #tpu.memory_space<vmem>>, %arg2: memref<1x128xf32, #tpu.memory_space<vmem>>, %arg3: memref<1x128xf32, #tpu.memory_space<vmem>>, %arg4: memref<1x128xf32, #tpu.memory_space<vmem>>, %arg5: memref<1x128xf32, #tpu.memory_space<vmem>>, %arg6: memref<1024x128xf32, #tpu.memory_space<vmem>>) attributes {dimension_semantics = [#tpu.dimension_semantics<parallel>], iteration_bounds = array<i64: 2>, scalar_prefetch = 0 : i64, scratch_operands = 0 : i64, tpu.core_type = #tpu.core_type<tc>, window_params = [{transform_indices = @transform_0, window_bounds = array<i64: 1024, 128>}, {pipeline_mode = #tpu.pipeline_mode<synchronous>, transform_indices = @transform_1, window_bounds = array<i64: 1, 128>}, {pipeline_mode = #tpu.pipeline_mode<synchronous>, transform_indices = @transform_2, window_bounds = array<i64: 1, 128>}, {pipeline_mode = #tpu.pipeline_mode<synchronous>, transform_indices = @transform_3, window_bounds = array<i64: 1, 128>}, {pipeline_mode = #tpu.pipeline_mode<synchronous>, transform_indices = @transform_4, window_bounds = array<i64: 1, 128>}, {transform_indices = @transform_5, window_bounds = array<i64: 1024, 128>}]} {
    %c0 = arith.constant 0 : index
    %c0_0 = arith.constant 0 : index
    %0 = vector.load %arg1[%c0, %c0_0] : memref<1024x128xbf16, #tpu.memory_space<vmem>>, vector<1024x128xbf16>
    %1 = arith.extf %0 : vector<1024x128xbf16> to vector<1024x128xf32>
    %c0_1 = arith.constant 0 : index
    %c0_2 = arith.constant 0 : index
    %2 = vector.load %arg2[%c0_1, %c0_2] : memref<1x128xf32, #tpu.memory_space<vmem>>, vector<1x128xf32>
    %3 = vector.broadcast %2 : vector<1x128xf32> to vector<1024x128xf32>
    %4 = arith.subf %1, %3 : vector<1024x128xf32>
    %c0_3 = arith.constant 0 : index
    %c0_4 = arith.constant 0 : index
    %5 = vector.load %arg3[%c0_3, %c0_4] : memref<1x128xf32, #tpu.memory_space<vmem>>, vector<1x128xf32>
    %6 = vector.broadcast %5 : vector<1x128xf32> to vector<1024x128xf32>
    %7 = arith.mulf %4, %6 : vector<1024x128xf32>
    %c0_5 = arith.constant 0 : index
    %c0_6 = arith.constant 0 : index
    %8 = vector.load %arg4[%c0_5, %c0_6] : memref<1x128xf32, #tpu.memory_space<vmem>>, vector<1x128xf32>
    %9 = vector.broadcast %8 : vector<1x128xf32> to vector<1024x128xf32>
    %10 = arith.mulf %7, %9 : vector<1024x128xf32>
    %c0_7 = arith.constant 0 : index
    %c0_8 = arith.constant 0 : index
    %11 = vector.load %arg5[%c0_7, %c0_8] : memref<1x128xf32, #tpu.memory_space<vmem>>, vector<1x128xf32>
    %12 = vector.broadcast %11 : vector<1x128xf32> to vector<1024x128xf32>
    %13 = arith.addf %10, %12 : vector<1024x128xf32>
    %cst = arith.constant 0.000000e+00 : f32
    %14 = vector.broadcast %cst : f32 to vector<1024x128xf32>
    %15 = arith.cmpf ogt, %13, %14 : vector<1024x128xf32>
    %cst_9 = arith.constant 2.000000e-01 : f32
    %16 = vector.broadcast %cst_9 : f32 to vector<1024x128xf32>
    %17 = arith.mulf %16, %13 : vector<1024x128xf32>
    %18 = arith.select %15, %13, %17 : vector<1024x128xi1>, vector<1024x128xf32>
    %c0_10 = arith.constant 0 : index
    %c0_11 = arith.constant 0 : index
    %19 = vector.load %arg6[%c0_10, %c0_11] : memref<1024x128xf32, #tpu.memory_space<vmem>>, vector<1024x128xf32>
    tpu.vector_store %arg6[%c0_10, %c0_11], %18 {strides = array<i32>} : memref<1024x128xf32, #tpu.memory_space<vmem>>, vector<1024x128xf32>,
    return
  }
  func.func @transform_0(%arg0: i32) -> (i32, i32) {
    %c0_i32 = arith.constant 0 : i32
    %c0_i32_0 = arith.constant 0 : i32
    return %arg0, %c0_i32 : i32, i32
  }
  func.func @transform_1(%arg0: i32) -> (i32, i32) {
    %c0_i32 = arith.constant 0 : i32
    %c0_i32_0 = arith.constant 0 : i32
    %c0_i32_1 = arith.constant 0 : i32
    return %c0_i32, %c0_i32_0 : i32, i32
  }
  func.func @transform_2(%arg0: i32) -> (i32, i32) {
    %c0_i32 = arith.constant 0 : i32
    %c0_i32_0 = arith.constant 0 : i32
    %c0_i32_1 = arith.constant 0 : i32
    return %c0_i32, %c0_i32_0 : i32, i32
  }
  func.func @transform_3(%arg0: i32) -> (i32, i32) {
    %c0_i32 = arith.constant 0 : i32
    %c0_i32_0 = arith.constant 0 : i32
    %c0_i32_1 = arith.constant 0 : i32
    return %c0_i32, %c0_i32_0 : i32, i32
  }
  func.func @transform_4(%arg0: i32) -> (i32, i32) {
    %c0_i32 = arith.constant 0 : i32
    %c0_i32_0 = arith.constant 0 : i32
    %c0_i32_1 = arith.constant 0 : i32
    return %c0_i32, %c0_i32_0 : i32, i32
  }
  func.func @transform_5(%arg0: i32) -> (i32, i32) {
    %c0_i32 = arith.constant 0 : i32
    %c0_i32_0 = arith.constant 0 : i32
    return %arg0, %c0_i32 : i32, i32
  }
}

</mosaic_0001>

<llo_original>
// kernel: conv_trans_bn_conv1.3
$region0: #{conv_trans_bn_conv1.3}
  #allocation0 [shape = 'u32[]', space=smem, size = 0x4, offset = 0x4, fixed_abs, tag = 'smem constant byte address 0x4 - core index']
  #allocation1 [shape = 'u32[144,128]{1,0:T(1,128)}', space=vmem, size = 0x12000, scoped, tag = 'internal scratch']
  #allocation2 [shape = 'f32[512,128]{1,0:T(8,128)}', space=vmem, size = 0x40000, scoped, tag = 'scratch operand']
  #allocation3 [shape = 'f32[1,128]{1,0:T(1,128)}', space=vmem, size = 0x200, scoped, tag = 'scratch operand']
  #allocation4 [shape = 'f32[1,128]{1,0:T(1,128)}', space=vmem, size = 0x200, scoped, tag = 'scratch operand']
  %s0 = inlined_call_operand.vmem [shape: bf16[4,512,128], index: 0, kind: input, shape index: {}]
  %s1 = inlined_call_operand.vmem [shape: bf16[4,128,128], index: 1, kind: input, shape index: {}]
  %s2 = inlined_call_operand.vmem [shape: f32[1,128], index: 2, kind: input, shape index: {}]
  %s3 = inlined_call_operand.vmem [shape: bf16[4,512,128], index: 3, kind: output, shape index: {0}]
  %s4 = inlined_call_operand.vmem [shape: f32[1,128], index: 4, kind: output, shape index: {1}]
  %s5 = inlined_call_operand.vmem [shape: f32[1,128], index: 5, kind: output, shape index: {2}]
  %6 = xla_tuple %s3, %s4, %s5
  %s7 = sld [smem:[#allocation0]]
  $region77: #{conv_trans_bn_conv1.3} parent=0
    _
  %s9 = ssub.s32 1, %s7
  %s10 = scalar_select 0, %s9, %s7
  loop: start=0, step=1, limit=6
  $region2: #{conv_trans_bn_conv1.3} parent=0 // loop_pre_header
    _
  $region3: #{conv_trans_bn_conv1.3} parent=0 // loop_header
    %s12 = sphi 0, %s16
    %p13 = scmp.ge.s32.totalorder %s12, 6
    %s19 = sphi 0, %s45
    %s20 = sphi 0, %s41
    %s21 = sphi 0, %s37
    %s22 = sphi 0, %s33
    %s23 = sphi 0, %s19
    %s24 = sphi 0, %s20
    %s25 = sphi 0, %s21
    %s26 = sphi 0, %s22
    %s27 = sphi 0, %s23
    %s28 = sphi 0, %s24
    %s29 = sphi 0, %s25
    %s30 = sphi 0, %s26
    %s52 = sphi 0, %s54
    %s55 = sphi 0, %s52
    %s56 = sphi 0, %s55
    %s72 = sphi 0, %s56
    %s82 = sphi 0, %s84
    %s85 = sphi 0, %s82
    %s86 = sphi 0, %s85
    %s102 = sphi 0, %s86
    %s108 = sphi 0, %s110
    %s111 = sphi 0, %s108
    %s112 = sphi 0, %s111
    %s128 = sphi 0, %s112
    %s138 = sphi 0, %s140
    %s141 = sphi 0, %s138
    %s142 = sphi 0, %s141
    %s158 = sphi 0, %s142
    %s164 = sphi 0, %s166
    %s167 = sphi 0, %s164
    %s168 = sphi 0, %s167
    %s184 = sphi 0, %s168
    %s190 = sphi 0, %s192
    %s193 = sphi 0, %s190
    %s194 = sphi 0, %s193
    %s210 = sphi 0, %s194
  $region4: #{conv_trans_bn_conv1.3} parent=0 // loop_header_branch
    %15 = sbr.rel (%p13) target = $region8
  $region5: #{conv_trans_bn_conv1.3} parent=0 // loop_body
    %s17 = ssub.s32 %s12, 1
    %s18 = ssub.s32 %s12, 2
    %s31 = sadd.s32 1, %s22
    %p32 = scmp.ge.s32.totalorder %s31, 1
    %s33 = scalar_select %p32, 0, %s31
    %s34 = sadd.s32 1, %s21
    %s35 = scalar_select %p32, %s34, %s21
    %p36 = scmp.ge.s32.totalorder %s35, 1
    %s37 = scalar_select %p36, 0, %s35
    %s38 = sadd.s32 1, %s20
    %s39 = scalar_select %p36, %s38, %s20
    %p40 = scmp.ge.s32.totalorder %s39, 4
    %s41 = scalar_select %p40, 0, %s39
    %s42 = sadd.s32 1, %s19
    %s43 = scalar_select %p40, %s42, %s19
    %p44 = scmp.ge.s32.totalorder %s43, 1
    %s45 = scalar_select %p44, 0, %s43
    %s46 = ssub.s32 %s20, %s41
    %s47 = ssub.s32 %s21, %s37
    %s48 = sor.u32 %s46, %s47
    %s49 = ssub.s32 %s22, %s33
    %s50 = sor.u32 %s48, %s49
    %p51 = scmp.eq.s32.totalorder %s50, 0
    %s53 = sadd.s32 %s52, 1
    %s54 = scalar_select %p51, %s52, %s53
    %p57 = pneg %p51
    %p58 = scmp.eq.s32.totalorder %s12, 3
    %p59 = por %p57, %p58
    %p60 = scmp.ne.s32.totalorder %s52, %s55
    %p61 = scmp.eq.s32.totalorder %s12, 0
    %p62 = por %p60, %p61
    %p63 = scmp.ne.s32.totalorder %s52, %s55
    %p64 = scmp.eq.s32.totalorder %s17, 3
    %p65 = por %p63, %p64
    %p66 = scmp.ne.s32.totalorder %s55, %s56
    %p67 = scmp.eq.s32.totalorder %s17, 0
    %p68 = por %p66, %p67
    %p69 = scmp.ne.s32.totalorder %s55, %s56
    %p70 = scmp.eq.s32.totalorder %s18, 3
    %p71 = por %p69, %p70
    %p73 = scmp.ne.s32.totalorder %s56, %s72
    %p74 = scmp.eq.s32.totalorder %s18, 0
    %p75 = por %p73, %p74
    %s76 = ssub.s32 %s20, %s41
    %s77 = ssub.s32 %s22, %s33
    %s78 = sor.u32 %s76, %s77
    %s79 = ssub.s32 %s19, %s45
    %s80 = sor.u32 %s78, %s79
    %p81 = scmp.eq.s32.totalorder %s80, 0
    %s83 = sadd.s32 %s82, 1
    %s84 = scalar_select %p81, %s82, %s83
    %p87 = pneg %p81
    %p88 = scmp.eq.s32.totalorder %s12, 3
    %p89 = por %p87, %p88
    %p90 = scmp.ne.s32.totalorder %s82, %s85
    %p91 = scmp.eq.s32.totalorder %s12, 0
    %p92 = por %p90, %p91
    %p93 = scmp.ne.s32.totalorder %s82, %s85
    %p94 = scmp.eq.s32.totalorder %s17, 3
    %p95 = por %p93, %p94
    %p96 = scmp.ne.s32.totalorder %s85, %s86
    %p97 = scmp.eq.s32.totalorder %s17, 0
    %p98 = por %p96, %p97
    %p99 = scmp.ne.s32.totalorder %s85, %s86
    %p100 = scmp.eq.s32.totalorder %s18, 3
    %p101 = por %p99, %p100
    %p103 = scmp.ne.s32.totalorder %s86, %s102
    %p104 = scmp.eq.s32.totalorder %s18, 0
    %p105 = por %p103, %p104
    %s106 = ssub.s32 %s19, %s45
    %p107 = scmp.eq.s32.totalorder %s106, 0
    %s109 = sadd.s32 %s108, 1
    %s110 = scalar_select %p107, %s108, %s109
    %p113 = pneg %p107
    %p114 = scmp.eq.s32.totalorder %s12, 3
    %p115 = por %p113, %p114
    %p116 = scmp.ne.s32.totalorder %s108, %s111
    %p117 = scmp.eq.s32.totalorder %s12, 0
    %p118 = por %p116, %p117
    %p119 = scmp.ne.s32.totalorder %s108, %s111
    %p120 = scmp.eq.s32.totalorder %s17, 3
    %p121 = por %p119, %p120
    %p122 = scmp.ne.s32.totalorder %s111, %s112
    %p123 = scmp.eq.s32.totalorder %s17, 0
    %p124 = por %p122, %p123
    %p125 = scmp.ne.s32.totalorder %s111, %s112
    %p126 = scmp.eq.s32.totalorder %s18, 3
    %p127 = por %p125, %p126
    %p129 = scmp.ne.s32.totalorder %s112, %s128
    %p130 = scmp.eq.s32.totalorder %s18, 0
    %p131 = por %p129, %p130
    %s132 = ssub.s32 %s20, %s41
    %s133 = ssub.s32 %s21, %s37
    %s134 = sor.u32 %s132, %s133
    %s135 = ssub.s32 %s19, %s45
    %s136 = sor.u32 %s134, %s135
    %p137 = scmp.eq.s32.totalorder %s136, 0
    %s139 = sadd.s32 %s138, 1
    %s140 = scalar_select %p137, %s138, %s139
    %p143 = pneg %p137
    %p144 = scmp.eq.s32.totalorder %s12, 3
    %p145 = por %p143, %p144
    %p146 = scmp.ne.s32.totalorder %s138, %s141
    %p147 = scmp.eq.s32.totalorder %s12, 0
    %p148 = por %p146, %p147
    %p149 = scmp.ne.s32.totalorder %s138, %s141
    %p150 = scmp.eq.s32.totalorder %s17, 3
    %p151 = por %p149, %p150
    %p152 = scmp.ne.s32.totalorder %s141, %s142
    %p153 = scmp.eq.s32.totalorder %s17, 0
    %p154 = por %p152, %p153
    %p155 = scmp.ne.s32.totalorder %s141, %s142
    %p156 = scmp.eq.s32.totalorder %s18, 3
    %p157 = por %p155, %p156
    %p159 = scmp.ne.s32.totalorder %s142, %s158
    %p160 = scmp.eq.s32.totalorder %s18, 0
    %p161 = por %p159, %p160
    %s162 = ssub.s32 %s19, %s45
    %p163 = scmp.eq.s32.totalorder %s162, 0
    %s165 = sadd.s32 %s164, 1
    %s166 = scalar_select %p163, %s164, %s165
    %p169 = pneg %p163
    %p170 = scmp.eq.s32.totalorder %s12, 3
    %p171 = por %p169, %p170
    %p172 = scmp.ne.s32.totalorder %s164, %s167
    %p173 = scmp.eq.s32.totalorder %s12, 0
    %p174 = por %p172, %p173
    %p175 = scmp.ne.s32.totalorder %s164, %s167
    %p176 = scmp.eq.s32.totalorder %s17, 3
    %p177 = por %p175, %p176
    %p178 = scmp.ne.s32.totalorder %s167, %s168
    %p179 = scmp.eq.s32.totalorder %s17, 0
    %p180 = por %p178, %p179
    %p181 = scmp.ne.s32.totalorder %s167, %s168
    %p182 = scmp.eq.s32.totalorder %s18, 3
    %p183 = por %p181, %p182
    %p185 = scmp.ne.s32.totalorder %s168, %s184
    %p186 = scmp.eq.s32.totalorder %s18, 0
    %p187 = por %p185, %p186
    %s188 = ssub.s32 %s19, %s45
    %p189 = scmp.eq.s32.totalorder %s188, 0
    %s191 = sadd.s32 %s190, 1
    %s192 = scalar_select %p189, %s190, %s191
    %p195 = pneg %p189
    %p196 = scmp.eq.s32.totalorder %s12, 3
    %p197 = por %p195, %p196
    %p198 = scmp.ne.s32.totalorder %s190, %s193
    %p199 = scmp.eq.s32.totalorder %s12, 0
    %p200 = por %p198, %p199
    %p201 = scmp.ne.s32.totalorder %s190, %s193
    %p202 = scmp.eq.s32.totalorder %s17, 3
    %p203 = por %p201, %p202
    %p204 = scmp.ne.s32.totalorder %s193, %s194
    %p205 = scmp.eq.s32.totalorder %s17, 0
    %p206 = por %p204, %p205
    %p207 = scmp.ne.s32.totalorder %s193, %s194
    %p208 = scmp.eq.s32.totalorder %s18, 3
    %p209 = por %p207, %p208
    %p211 = scmp.ne.s32.totalorder %s194, %s210
    %p212 = scmp.eq.s32.totalorder %s18, 0
    %p213 = por %p211, %p212
    %p214 = scmp.le.s32.totalorder 1, %s12
    %p215 = scmp.lt.s32.totalorder %s12, 5
    %p216 = pnand %p214, %p215
    %p217 = pneg %p216
    // Predicated region
    $region9: #{conv_trans_bn_conv1.3} parent=5 // pred_check
      _
    $region10: #{conv_trans_bn_conv1.3} parent=5 // pred_check_branch
      %219 = sbr.rel (%p216) target = $region12
    $region11: #{conv_trans_bn_conv1.3} parent=5 // pred_region
      %s220 = ssub.s32 %s12, 1
      // Predicated region
      $region13: #{conv_trans_bn_conv1.3} parent=11 // pred_check
        %p221 = pneg %p124
      $region14: #{conv_trans_bn_conv1.3} parent=11 // pred_check_branch
        %223 = sbr.rel (%p221) target = $region16
      $region15: #{conv_trans_bn_conv1.3} parent=11 // pred_region
        %p224 = scmp.lt.s32.totalorder %s23, 0
        %s225 = scalar_select %p224, %s23, 0
        %s226 = scalar_lea.vmem %s2, %s225
      $region16: #{conv_trans_bn_conv1.3} parent=11 // pred_fallthru
        _
    $region12: #{conv_trans_bn_conv1.3} parent=5 // pred_fallthru
      _
    %p227 = scmp.lt.s32.totalorder %s12, 4
    // Predicated region
    $region17: #{conv_trans_bn_conv1.3} parent=5 // pred_check
      %p228 = pneg %p227
    $region18: #{conv_trans_bn_conv1.3} parent=5 // pred_check_branch
      %230 = sbr.rel (%p228) target = $region20
    $region19: #{conv_trans_bn_conv1.3} parent=5 // pred_region
      // Predicated region
      $region21: #{conv_trans_bn_conv1.3} parent=19 // pred_check
        %p231 = pneg %p62
      $region22: #{conv_trans_bn_conv1.3} parent=19 // pred_check_branch
        %233 = sbr.rel (%p231) target = $region24
      $region23: #{conv_trans_bn_conv1.3} parent=19 // pred_region
        %s234 = smul.u32 64, %s21
        %p235 = scmp.lt.s32.totalorder %s20, 3
        %s236 = scalar_select %p235, %s20, 3
        %p237 = scmp.lt.s32.totalorder %s234, 63
        %s238 = scalar_select %p237, %s234, 63
        %p239 = scmp.lt.s32.totalorder %s22, 0
        %s240 = scalar_select %p239, %s22, 0
        %s241 = sadd.s32 %s240, %s238
        %s242 = smul.addr %s236, 64
        %s243 = sadd.s32 %s241, %s242
        %s244 = smul.addr %s243, 4
        %s245 = scalar_lea.vmem %s0, %s244
        %s246 = smul.u32 64, %s21
      $region24: #{conv_trans_bn_conv1.3} parent=19 // pred_fallthru
        _
      // Predicated region
      $region25: #{conv_trans_bn_conv1.3} parent=19 // pred_check
        %p247 = pneg %p92
      $region26: #{conv_trans_bn_conv1.3} parent=19 // pred_check_branch
        %249 = sbr.rel (%p247) target = $region28
      $region27: #{conv_trans_bn_conv1.3} parent=19 // pred_region
        %s250 = smul.u32 16, %s22
        %p251 = scmp.lt.s32.totalorder %s20, 3
        %s252 = scalar_select %p251, %s20, 3
        %p253 = scmp.lt.s32.totalorder %s250, 15
        %s254 = scalar_select %p253, %s250, 15
        %p255 = scmp.lt.s32.totalorder %s19, 0
        %s256 = scalar_select %p255, %s19, 0
        %s257 = sadd.s32 %s256, %s254
        %s258 = smul.addr %s252, 16
        %s259 = sadd.s32 %s257, %s258
        %s260 = smul.addr %s259, 4
        %s261 = scalar_lea.vmem %s1, %s260
        %s262 = smul.u32 16, %s22
      $region28: #{conv_trans_bn_conv1.3} parent=19 // pred_fallthru
        _
    $region20: #{conv_trans_bn_conv1.3} parent=5 // pred_fallthru
      _
    %p263 = scmp.le.s32.totalorder 1, %s12
    %p264 = scmp.lt.s32.totalorder %s12, 5
    %p265 = pnand %p263, %p264
    %p266 = pneg %p265
    // Predicated region
    $region29: #{conv_trans_bn_conv1.3} parent=5 // pred_check
      _
    $region30: #{conv_trans_bn_conv1.3} parent=5 // pred_check_branch
      %268 = sbr.rel (%p265) target = $region32
    $region31: #{conv_trans_bn_conv1.3} parent=5 // pred_region
      %s269 = ssub.s32 %s12, 1
      %s270 = smul.u32 64, %s25
      %p271 = scmp.lt.s32.totalorder %s24, 3
      %s272 = scalar_select %p271, %s24, 3
      %p273 = scmp.lt.s32.totalorder %s270, 63
      %s274 = scalar_select %p273, %s270, 63
      %p275 = scmp.lt.s32.totalorder %s26, 0
      %s276 = scalar_select %p275, %s26, 0
      %s277 = sadd.s32 %s276, %s274
      %s278 = smul.addr %s272, 64
      %s279 = sadd.s32 %s277, %s278
      %s280 = smul.addr %s279, 4
      %s281 = scalar_lea.vmem %s0, %s280
      %p282 = pneg %p68
      %p283 = pneg %p65
      %s284 = smul.u32 16, %s26
      %p285 = scmp.lt.s32.totalorder %s24, 3
      %s286 = scalar_select %p285, %s24, 3
      %p287 = scmp.lt.s32.totalorder %s284, 15
      %s288 = scalar_select %p287, %s284, 15
      %p289 = scmp.lt.s32.totalorder %s23, 0
      %s290 = scalar_select %p289, %s23, 0
      %s291 = sadd.s32 %s290, %s288
      %s292 = smul.addr %s286, 16
      %s293 = sadd.s32 %s291, %s292
      %s294 = smul.addr %s293, 4
      %s295 = scalar_lea.vmem %s1, %s294
      %p296 = pneg %p98
      %p297 = pneg %p95
      %p298 = scmp.lt.s32.totalorder %s23, 0
      %s299 = scalar_select %p298, %s23, 0
      %s300 = scalar_lea.vmem %s2, %s299
      %p301 = pneg %p124
      %p302 = pneg %p121
      %p303 = pneg %p154
      %p304 = pneg %p151
      %s305 = smul.u32 64, %s25
      %p306 = scmp.lt.s32.totalorder %s24, 3
      %s307 = scalar_select %p306, %s24, 3
      %p308 = scmp.lt.s32.totalorder %s305, 63
      %s309 = scalar_select %p308, %s305, 63
      %p310 = scmp.lt.s32.totalorder %s23, 0
      %s311 = scalar_select %p310, %s23, 0
      %s312 = sadd.s32 %s311, %s309
      %s313 = smul.addr %s307, 64
      %s314 = sadd.s32 %s312, %s313
      %s315 = smul.addr %s314, 4
      %s316 = scalar_lea.vmem %s3, %s315
      %p317 = pneg %p180
      %p318 = pneg %p177
      %p319 = scmp.lt.s32.totalorder %s23, 0
      %s320 = scalar_select %p319, %s23, 0
      %s321 = scalar_lea.vmem %s4, %s320
      %p322 = pneg %p206
      %p323 = pneg %p203
      %p324 = scmp.lt.s32.totalorder %s23, 0
      %s325 = scalar_select %p324, %s23, 0
      %s326 = scalar_lea.vmem %s5, %s325
      %s327 = smul.u32 64, %s25
      %p328 = scmp.lt.s32.totalorder %s24, 3
      %s329 = scalar_select %p328, %s24, 3
      %p330 = scmp.lt.s32.totalorder %s327, 63
      %s331 = scalar_select %p330, %s327, 63
      %p332 = scmp.lt.s32.totalorder %s26, 0
      %s333 = scalar_select %p332, %s26, 0
      %s334 = sadd.s32 %s333, %s331
      %s335 = smul.addr %s329, 64
      %s336 = sadd.s32 %s334, %s335
      %s337 = smul.addr %s336, 4
      %s338 = scalar_lea.vmem %s0, %s337
      %s339 = smul.u32 64, %s25
      %s340 = smul.u32 16, %s26
      %p341 = scmp.lt.s32.totalorder %s24, 3
      %s342 = scalar_select %p341, %s24, 3
      %p343 = scmp.lt.s32.totalorder %s340, 15
      %s344 = scalar_select %p343, %s340, 15
      %p345 = scmp.lt.s32.totalorder %s23, 0
      %s346 = scalar_select %p345, %s23, 0
      %s347 = sadd.s32 %s346, %s344
      %s348 = smul.addr %s342, 16
      %s349 = sadd.s32 %s347, %s348
      %s350 = smul.addr %s349, 4
      %s351 = scalar_lea.vmem %s1, %s350
      %s352 = smul.u32 16, %s26
      %p353 = scmp.lt.s32.totalorder %s23, 0
      %s354 = scalar_select %p353, %s23, 0
      %s355 = scalar_lea.vmem %s2, %s354
      %s356 = smul.u32 64, %s25
      %p357 = scmp.lt.s32.totalorder %s24, 3
      %s358 = scalar_select %p357, %s24, 3
      %p359 = scmp.lt.s32.totalorder %s356, 63
      %s360 = scalar_select %p359, %s356, 63
      %p361 = scmp.lt.s32.totalorder %s23, 0
      %s362 = scalar_select %p361, %s23, 0
      %s363 = sadd.s32 %s362, %s360
      %s364 = smul.addr %s358, 64
      %s365 = sadd.s32 %s363, %s364
      %s366 = smul.addr %s365, 4
      %s367 = scalar_lea.vmem %s3, %s366
      %s368 = smul.u32 64, %s25
      %p369 = scmp.lt.s32.totalorder %s23, 0
      %s370 = scalar_select %p369, %s23, 0
      %s371 = scalar_lea.vmem %s4, %s370
      %p372 = scmp.lt.s32.totalorder %s23, 0
      %s373 = scalar_select %p372, %s23, 0
      %s374 = scalar_lea.vmem %s5, %s373
      %p376 = scmp.eq.s32.totalorder %s24, 0
      %p377 = scmp.eq.s32.totalorder %s25, 0
      %p378 = pnand %p376, %p377
      %p379 = pneg %p378
      %p380 = scmp.eq.s32.totalorder %s26, 0
      %p381 = pnand %p379, %p380
      %p382 = pneg %p381
      // Predicated region
      $region33: #{conv_trans_bn_conv1.3} parent=31 // pred_check
        _
      $region34: #{conv_trans_bn_conv1.3} parent=31 // pred_check_branch
        %384 = sbr.rel (%p381) target = $region36
      $region35: #{conv_trans_bn_conv1.3} parent=31 // pred_region
        %385 = vst [vmem:[#allocation3] sm:$0x1] 0.0
        %386 = vst [vmem:[#allocation4] sm:$0x1] 0.0
      $region36: #{conv_trans_bn_conv1.3} parent=31 // pred_fallthru
        _
      // Predicated region
      $region37: #{conv_trans_bn_conv1.3} parent=31 // pred_check
        %p387 = pneg %p380
      $region38: #{conv_trans_bn_conv1.3} parent=31 // pred_check_branch
        %389 = sbr.rel (%p387) target = $region40
      $region39: #{conv_trans_bn_conv1.3} parent=31 // pred_region
        %390 = vst [vmem:[#allocation2] sm:$0xff] 0.0
        %391 = vst [vmem:[#allocation2 + $0x8] sm:$0xff] 0.0
        %392 = vst [vmem:[#allocation2 + $0x10] sm:$0xff] 0.0
        %393 = vst [vmem:[#allocation2 + $0x18] sm:$0xff] 0.0
        %394 = vst [vmem:[#allocation2 + $0x20] sm:$0xff] 0.0
        %395 = vst [vmem:[#allocation2 + $0x28] sm:$0xff] 0.0
        %396 = vst [vmem:[#allocation2 + $0x30] sm:$0xff] 0.0
        %397 = vst [vmem:[#allocation2 + $0x38] sm:$0xff] 0.0
        %398 = vst [vmem:[#allocation2 + $0x40] sm:$0xff] 0.0
        %399 = vst [vmem:[#allocation2 + $0x48] sm:$0xff] 0.0
        %400 = vst [vmem:[#allocation2 + $0x50] sm:$0xff] 0.0
        %401 = vst [vmem:[#allocation2 + $0x58] sm:$0xff] 0.0
        %402 = vst [vmem:[#allocation2 + $0x60] sm:$0xff] 0.0
        %403 = vst [vmem:[#allocation2 + $0x68] sm:$0xff] 0.0
        %404 = vst [vmem:[#allocation2 + $0x70] sm:$0xff] 0.0
        %405 = vst [vmem:[#allocation2 + $0x78] sm:$0xff] 0.0
        %406 = vst [vmem:[#allocation2 + $0x80] sm:$0xff] 0.0
        %407 = vst [vmem:[#allocation2 + $0x88] sm:$0xff] 0.0
        %408 = vst [vmem:[#allocation2 + $0x90] sm:$0xff] 0.0
        %409 = vst [vmem:[#allocation2 + $0x98] sm:$0xff] 0.0
        %410 = vst [vmem:[#allocation2 + $0xa0] sm:$0xff] 0.0
        %411 = vst [vmem:[#allocation2 + $0xa8] sm:$0xff] 0.0
        %412 = vst [vmem:[#allocation2 + $0xb0] sm:$0xff] 0.0
        %413 = vst [vmem:[#allocation2 + $0xb8] sm:$0xff] 0.0
        %414 = vst [vmem:[#allocation2 + $0xc0] sm:$0xff] 0.0
        %415 = vst [vmem:[#allocation2 + $0xc8] sm:$0xff] 0.0
        %416 = vst [vmem:[#allocation2 + $0xd0] sm:$0xff] 0.0
        %417 = vst [vmem:[#allocation2 + $0xd8] sm:$0xff] 0.0
        %418 = vst [vmem:[#allocation2 + $0xe0] sm:$0xff] 0.0
        %419 = vst [vmem:[#allocation2 + $0xe8] sm:$0xff] 0.0
        %420 = vst [vmem:[#allocation2 + $0xf0] sm:$0xff] 0.0
        %421 = vst [vmem:[#allocation2 + $0xf8] sm:$0xff] 0.0
        %422 = vst [vmem:[#allocation2 + $0x100] sm:$0xff] 0.0
        %423 = vst [vmem:[#allocation2 + $0x108] sm:$0xff] 0.0
        %424 = vst [vmem:[#allocation2 + $0x110] sm:$0xff] 0.0
        %425 = vst [vmem:[#allocation2 + $0x118] sm:$0xff] 0.0
        %426 = vst [vmem:[#allocation2 + $0x120] sm:$0xff] 0.0
        %427 = vst [vmem:[#allocation2 + $0x128] sm:$0xff] 0.0
        %428 = vst [vmem:[#allocation2 + $0x130] sm:$0xff] 0.0
        %429 = vst [vmem:[#allocation2 + $0x138] sm:$0xff] 0.0
        %430 = vst [vmem:[#allocation2 + $0x140] sm:$0xff] 0.0
        %431 = vst [vmem:[#allocation2 + $0x148] sm:$0xff] 0.0
        %432 = vst [vmem:[#allocation2 + $0x150] sm:$0xff] 0.0
        %433 = vst [vmem:[#allocation2 + $0x158] sm:$0xff] 0.0
        %434 = vst [vmem:[#allocation2 + $0x160] sm:$0xff] 0.0
        %435 = vst [vmem:[#allocation2 + $0x168] sm:$0xff] 0.0
        %436 = vst [vmem:[#allocation2 + $0x170] sm:$0xff] 0.0
        %437 = vst [vmem:[#allocation2 + $0x178] sm:$0xff] 0.0
        %438 = vst [vmem:[#allocation2 + $0x180] sm:$0xff] 0.0
        %439 = vst [vmem:[#allocation2 + $0x188] sm:$0xff] 0.0
        %440 = vst [vmem:[#allocation2 + $0x190] sm:$0xff] 0.0
        %441 = vst [vmem:[#allocation2 + $0x198] sm:$0xff] 0.0
        %442 = vst [vmem:[#allocation2 + $0x1a0] sm:$0xff] 0.0
        %443 = vst [vmem:[#allocation2 + $0x1a8] sm:$0xff] 0.0
        %444 = vst [vmem:[#allocation2 + $0x1b0] sm:$0xff] 0.0
        %445 = vst [vmem:[#allocation2 + $0x1b8] sm:$0xff] 0.0
        %446 = vst [vmem:[#allocation2 + $0x1c0] sm:$0xff] 0.0
        %447 = vst [vmem:[#allocation2 + $0x1c8] sm:$0xff] 0.0
        %448 = vst [vmem:[#allocation2 + $0x1d0] sm:$0xff] 0.0
        %449 = vst [vmem:[#allocation2 + $0x1d8] sm:$0xff] 0.0
        %450 = vst [vmem:[#allocation2 + $0x1e0] sm:$0xff] 0.0
        %451 = vst [vmem:[#allocation2 + $0x1e8] sm:$0xff] 0.0
        %452 = vst [vmem:[#allocation2 + $0x1f0] sm:$0xff] 0.0
        %453 = vst [vmem:[#allocation2 + $0x1f8] sm:$0xff] 0.0
      $region40: #{conv_trans_bn_conv1.3} parent=31 // pred_fallthru
        _
      %v454 = vld [vmem:[#allocation2] sm:$0xff]
      %v455 = vld [vmem:[#allocation2 + $0x8] sm:$0xff]
      %v456 = vld [vmem:[#allocation2 + $0x10] sm:$0xff]
      %v457 = vld [vmem:[#allocation2 + $0x18] sm:$0xff]
      %v458 = vld [vmem:[#allocation2 + $0x20] sm:$0xff]
      %v459 = vld [vmem:[#allocation2 + $0x28] sm:$0xff]
      %v460 = vld [vmem:[#allocation2 + $0x30] sm:$0xff]
      %v461 = vld [vmem:[#allocation2 + $0x38] sm:$0xff]
      %v462 = vld [vmem:[#allocation2 + $0x40] sm:$0xff]
      %v463 = vld [vmem:[#allocation2 + $0x48] sm:$0xff]
      %v464 = vld [vmem:[#allocation2 + $0x50] sm:$0xff]
      %v465 = vld [vmem:[#allocation2 + $0x58] sm:$0xff]
      %v466 = vld [vmem:[#allocation2 + $0x60] sm:$0xff]
      %v467 = vld [vmem:[#allocation2 + $0x68] sm:$0xff]
      %v468 = vld [vmem:[#allocation2 + $0x70] sm:$0xff]
      %v469 = vld [vmem:[#allocation2 + $0x78] sm:$0xff]
      %v470 = vld [vmem:[#allocation2 + $0x80] sm:$0xff]
      %v471 = vld [vmem:[#allocation2 + $0x88] sm:$0xff]
      %v472 = vld [vmem:[#allocation2 + $0x90] sm:$0xff]
      %v473 = vld [vmem:[#allocation2 + $0x98] sm:$0xff]
      %v474 = vld [vmem:[#allocation2 + $0xa0] sm:$0xff]
      %v475 = vld [vmem:[#allocation2 + $0xa8] sm:$0xff]
      %v476 = vld [vmem:[#allocation2 + $0xb0] sm:$0xff]
      %v477 = vld [vmem:[#allocation2 + $0xb8] sm:$0xff]
      %v478 = vld [vmem:[#allocation2 + $0xc0] sm:$0xff]
      %v479 = vld [vmem:[#allocation2 + $0xc8] sm:$0xff]
      %v480 = vld [vmem:[#allocation2 + $0xd0] sm:$0xff]
      %v481 = vld [vmem:[#allocation2 + $0xd8] sm:$0xff]
      %v482 = vld [vmem:[#allocation2 + $0xe0] sm:$0xff]
      %v483 = vld [vmem:[#allocation2 + $0xe8] sm:$0xff]
      %v484 = vld [vmem:[#allocation2 + $0xf0] sm:$0xff]
      %v485 = vld [vmem:[#allocation2 + $0xf8] sm:$0xff]
      %v486 = vld [vmem:[#allocation2 + $0x100] sm:$0xff]
      %v487 = vld [vmem:[#allocation2 + $0x108] sm:$0xff]
      %v488 = vld [vmem:[#allocation2 + $0x110] sm:$0xff]
      %v489 = vld [vmem:[#allocation2 + $0x118] sm:$0xff]
      %v490 = vld [vmem:[#allocation2 + $0x120] sm:$0xff]
      %v491 = vld [vmem:[#allocation2 + $0x128] sm:$0xff]
      %v492 = vld [vmem:[#allocation2 + $0x130] sm:$0xff]
      %v493 = vld [vmem:[#allocation2 + $0x138] sm:$0xff]
      %v494 = vld [vmem:[#allocation2 + $0x140] sm:$0xff]
      %v495 = vld [vmem:[#allocation2 + $0x148] sm:$0xff]
      %v496 = vld [vmem:[#allocation2 + $0x150] sm:$0xff]
      %v497 = vld [vmem:[#allocation2 + $0x158] sm:$0xff]
      %v498 = vld [vmem:[#allocation2 + $0x160] sm:$0xff]
      %v499 = vld [vmem:[#allocation2 + $0x168] sm:$0xff]
      %v500 = vld [vmem:[#allocation2 + $0x170] sm:$0xff]
      %v501 = vld [vmem:[#allocation2 + $0x178] sm:$0xff]
      %v502 = vld [vmem:[#allocation2 + $0x180] sm:$0xff]
      %v503 = vld [vmem:[#allocation2 + $0x188] sm:$0xff]
      %v504 = vld [vmem:[#allocation2 + $0x190] sm:$0xff]
      %v505 = vld [vmem:[#allocation2 + $0x198] sm:$0xff]
      %v506 = vld [vmem:[#allocation2 + $0x1a0] sm:$0xff]
      %v507 = vld [vmem:[#allocation2 + $0x1a8] sm:$0xff]
      %v508 = vld [vmem:[#allocation2 + $0x1b0] sm:$0xff]
      %v509 = vld [vmem:[#allocation2 + $0x1b8] sm:$0xff]
      %v510 = vld [vmem:[#allocation2 + $0x1c0] sm:$0xff]
      %v511 = vld [vmem:[#allocation2 + $0x1c8] sm:$0xff]
      %v512 = vld [vmem:[#allocation2 + $0x1d0] sm:$0xff]
      %v513 = vld [vmem:[#allocation2 + $0x1d8] sm:$0xff]
      %v514 = vld [vmem:[#allocation2 + $0x1e0] sm:$0xff]
      %v515 = vld [vmem:[#allocation2 + $0x1e8] sm:$0xff]
      %v516 = vld [vmem:[#allocation2 + $0x1f0] sm:$0xff]
      %v517 = vld [vmem:[#allocation2 + $0x1f8] sm:$0xff]
      %v518 = vld [vmem:[%s338] sm:$0xf]
      %v519 = vld [vmem:[%s338 + $0x4] sm:$0xf]
      %v520 = vld [vmem:[%s338 + $0x8] sm:$0xf]
      %v521 = vld [vmem:[%s338 + $0xc] sm:$0xf]
      %v522 = vld [vmem:[%s338 + $0x10] sm:$0xf]
      %v523 = vld [vmem:[%s338 + $0x14] sm:$0xf]
      %v524 = vld [vmem:[%s338 + $0x18] sm:$0xf]
      %v525 = vld [vmem:[%s338 + $0x1c] sm:$0xf]
      %v526 = vld [vmem:[%s338 + $0x20] sm:$0xf]
      %v527 = vld [vmem:[%s338 + $0x24] sm:$0xf]
      %v528 = vld [vmem:[%s338 + $0x28] sm:$0xf]
      %v529 = vld [vmem:[%s338 + $0x2c] sm:$0xf]
      %v530 = vld [vmem:[%s338 + $0x30] sm:$0xf]
      %v531 = vld [vmem:[%s338 + $0x34] sm:$0xf]
      %v532 = vld [vmem:[%s338 + $0x38] sm:$0xf]
      %v533 = vld [vmem:[%s338 + $0x3c] sm:$0xf]
      %v534 = vld [vmem:[%s338 + $0x40] sm:$0xf]
      %v535 = vld [vmem:[%s338 + $0x44] sm:$0xf]
      %v536 = vld [vmem:[%s338 + $0x48] sm:$0xf]
      %v537 = vld [vmem:[%s338 + $0x4c] sm:$0xf]
      %v538 = vld [vmem:[%s338 + $0x50] sm:$0xf]
      %v539 = vld [vmem:[%s338 + $0x54] sm:$0xf]
      %v540 = vld [vmem:[%s338 + $0x58] sm:$0xf]
      %v541 = vld [vmem:[%s338 + $0x5c] sm:$0xf]
      %v542 = vld [vmem:[%s338 + $0x60] sm:$0xf]
      %v543 = vld [vmem:[%s338 + $0x64] sm:$0xf]
      %v544 = vld [vmem:[%s338 + $0x68] sm:$0xf]
      %v545 = vld [vmem:[%s338 + $0x6c] sm:$0xf]
      %v546 = vld [vmem:[%s338 + $0x70] sm:$0xf]
      %v547 = vld [vmem:[%s338 + $0x74] sm:$0xf]
      %v548 = vld [vmem:[%s338 + $0x78] sm:$0xf]
      %v549 = vld [vmem:[%s338 + $0x7c] sm:$0xf]
      %v550 = vld [vmem:[%s338 + $0x80] sm:$0xf]
      %v551 = vld [vmem:[%s338 + $0x84] sm:$0xf]
      %v552 = vld [vmem:[%s338 + $0x88] sm:$0xf]
      %v553 = vld [vmem:[%s338 + $0x8c] sm:$0xf]
      %v554 = vld [vmem:[%s338 + $0x90] sm:$0xf]
      %v555 = vld [vmem:[%s338 + $0x94] sm:$0xf]
      %v556 = vld [vmem:[%s338 + $0x98] sm:$0xf]
      %v557 = vld [vmem:[%s338 + $0x9c] sm:$0xf]
      %v558 = vld [vmem:[%s338 + $0xa0] sm:$0xf]
      %v559 = vld [vmem:[%s338 + $0xa4] sm:$0xf]
      %v560 = vld [vmem:[%s338 + $0xa8] sm:$0xf]
      %v561 = vld [vmem:[%s338 + $0xac] sm:$0xf]
      %v562 = vld [vmem:[%s338 + $0xb0] sm:$0xf]
      %v563 = vld [vmem:[%s338 + $0xb4] sm:$0xf]
      %v564 = vld [vmem:[%s338 + $0xb8] sm:$0xf]
      %v565 = vld [vmem:[%s338 + $0xbc] sm:$0xf]
      %v566 = vld [vmem:[%s338 + $0xc0] sm:$0xf]
      %v567 = vld [vmem:[%s338 + $0xc4] sm:$0xf]
      %v568 = vld [vmem:[%s338 + $0xc8] sm:$0xf]
      %v569 = vld [vmem:[%s338 + $0xcc] sm:$0xf]
      %v570 = vld [vmem:[%s338 + $0xd0] sm:$0xf]
      %v571 = vld [vmem:[%s338 + $0xd4] sm:$0xf]
      %v572 = vld [vmem:[%s338 + $0xd8] sm:$0xf]
      %v573 = vld [vmem:[%s338 + $0xdc] sm:$0xf]
      %v574 = vld [vmem:[%s338 + $0xe0] sm:$0xf]
      %v575 = vld [vmem:[%s338 + $0xe4] sm:$0xf]
      %v576 = vld [vmem:[%s338 + $0xe8] sm:$0xf]
      %v577 = vld [vmem:[%s338 + $0xec] sm:$0xf]
      %v578 = vld [vmem:[%s338 + $0xf0] sm:$0xf]
      %v579 = vld [vmem:[%s338 + $0xf4] sm:$0xf]
      %v580 = vld [vmem:[%s338 + $0xf8] sm:$0xf]
      %v581 = vld [vmem:[%s338 + $0xfc] sm:$0xf]
      %v582 = vld [vmem:[%s351] sm:$0xf]
      %v583 = vld [vmem:[%s351 + $0x4] sm:$0xf]
      %v584 = vld [vmem:[%s351 + $0x8] sm:$0xf]
      %v585 = vld [vmem:[%s351 + $0xc] sm:$0xf]
      %v586 = vld [vmem:[%s351 + $0x10] sm:$0xf]
      %v587 = vld [vmem:[%s351 + $0x14] sm:$0xf]
      %v588 = vld [vmem:[%s351 + $0x18] sm:$0xf]
      %v589 = vld [vmem:[%s351 + $0x1c] sm:$0xf]
      %v590 = vld [vmem:[%s351 + $0x20] sm:$0xf]
      %v591 = vld [vmem:[%s351 + $0x24] sm:$0xf]
      %v592 = vld [vmem:[%s351 + $0x28] sm:$0xf]
      %v593 = vld [vmem:[%s351 + $0x2c] sm:$0xf]
      %v594 = vld [vmem:[%s351 + $0x30] sm:$0xf]
      %v595 = vld [vmem:[%s351 + $0x34] sm:$0xf]
      %v596 = vld [vmem:[%s351 + $0x38] sm:$0xf]
      %v597 = vld [vmem:[%s351 + $0x3c] sm:$0xf]
      %v662 = vunpack.c.l.b16 %v518
      %v663 = vunpack.c.l.b16 %v519
      %v664 = vunpack.c.l.b16 %v520
      %v665 = vunpack.c.l.b16 %v521
      %v666 = vunpack.c.l.b16 %v522
      %v667 = vunpack.c.l.b16 %v523
      %v668 = vunpack.c.l.b16 %v524
      %v669 = vunpack.c.l.b16 %v525
      %v670 = vunpack.c.l.b16 %v526
      %v671 = vunpack.c.l.b16 %v527
      %v672 = vunpack.c.l.b16 %v528
      %v673 = vunpack.c.l.b16 %v529
      %v674 = vunpack.c.l.b16 %v530
      %v675 = vunpack.c.l.b16 %v531
      %v676 = vunpack.c.l.b16 %v532
      %v677 = vunpack.c.l.b16 %v533
      %v678 = vunpack.c.l.b16 %v534
      %v679 = vunpack.c.l.b16 %v535
      %v680 = vunpack.c.l.b16 %v536
      %v681 = vunpack.c.l.b16 %v537
      %v682 = vunpack.c.l.b16 %v538
      %v683 = vunpack.c.l.b16 %v539
      %v684 = vunpack.c.l.b16 %v540
      %v685 = vunpack.c.l.b16 %v541
      %v686 = vunpack.c.l.b16 %v542
      %v687 = vunpack.c.l.b16 %v543
      %v688 = vunpack.c.l.b16 %v544
      %v689 = vunpack.c.l.b16 %v545
      %v690 = vunpack.c.l.b16 %v546
      %v691 = vunpack.c.l.b16 %v547
      %v692 = vunpack.c.l.b16 %v548
      %v693 = vunpack.c.l.b16 %v549
      %v694 = vunpack.c.l.b16 %v550
      %v695 = vunpack.c.l.b16 %v551
      %v696 = vunpack.c.l.b16 %v552
      %v697 = vunpack.c.l.b16 %v553
      %v698 = vunpack.c.l.b16 %v554
      %v699 = vunpack.c.l.b16 %v555
      %v700 = vunpack.c.l.b16 %v556
      %v701 = vunpack.c.l.b16 %v557
      %v702 = vunpack.c.l.b16 %v558
      %v703 = vunpack.c.l.b16 %v559
      %v704 = vunpack.c.l.b16 %v560
      %v705 = vunpack.c.l.b16 %v561
      %v706 = vunpack.c.l.b16 %v562
      %v707 = vunpack.c.l.b16 %v563
      %v708 = vunpack.c.l.b16 %v564
      %v709 = vunpack.c.l.b16 %v565
      %v710 = vunpack.c.l.b16 %v566
      %v711 = vunpack.c.l.b16 %v567
      %v712 = vunpack.c.l.b16 %v568
      %v713 = vunpack.c.l.b16 %v569
      %v714 = vunpack.c.l.b16 %v570
      %v715 = vunpack.c.l.b16 %v571
      %v716 = vunpack.c.l.b16 %v572
      %v717 = vunpack.c.l.b16 %v573
      %v718 = vunpack.c.l.b16 %v574
      %v719 = vunpack.c.l.b16 %v575
      %v720 = vunpack.c.l.b16 %v576
      %v721 = vunpack.c.l.b16 %v577
      %v722 = vunpack.c.l.b16 %v578
      %v723 = vunpack.c.l.b16 %v579
      %v724 = vunpack.c.l.b16 %v580
      %v725 = vunpack.c.l.b16 %v581
      %v726 = vpack.c.b16 %v663, %v662
      %v727 = vpack.c.b16 %v665, %v664
      %v728 = vpack.c.b16 %v667, %v666
      %v729 = vpack.c.b16 %v669, %v668
      %v730 = vpack.c.b16 %v671, %v670
      %v731 = vpack.c.b16 %v673, %v672
      %v732 = vpack.c.b16 %v675, %v674
      %v733 = vpack.c.b16 %v677, %v676
      %v734 = vpack.c.b16 %v679, %v678
      %v735 = vpack.c.b16 %v681, %v680
      %v736 = vpack.c.b16 %v683, %v682
      %v737 = vpack.c.b16 %v685, %v684
      %v738 = vpack.c.b16 %v687, %v686
      %v739 = vpack.c.b16 %v689, %v688
      %v740 = vpack.c.b16 %v691, %v690
      %v741 = vpack.c.b16 %v693, %v692
      %v742 = vpack.c.b16 %v695, %v694
      %v743 = vpack.c.b16 %v697, %v696
      %v744 = vpack.c.b16 %v699, %v698
      %v745 = vpack.c.b16 %v701, %v700
      %v746 = vpack.c.b16 %v703, %v702
      %v747 = vpack.c.b16 %v705, %v704
      %v748 = vpack.c.b16 %v707, %v706
      %v749 = vpack.c.b16 %v709, %v708
      %v750 = vpack.c.b16 %v711, %v710
      %v751 = vpack.c.b16 %v713, %v712
      %v752 = vpack.c.b16 %v715, %v714
      %v753 = vpack.c.b16 %v717, %v716
      %v754 = vpack.c.b16 %v719, %v718
      %v755 = vpack.c.b16 %v721, %v720
      %v756 = vpack.c.b16 %v723, %v722
      %v757 = vpack.c.b16 %v725, %v724
      %v806 = vunpack.c.l.b16 %v582
      %v807 = vunpack.c.l.b16 %v583
      %v808 = vunpack.c.l.b16 %v584
      %v809 = vunpack.c.l.b16 %v585
      %v810 = vunpack.c.l.b16 %v586
      %v811 = vunpack.c.l.b16 %v587
      %v812 = vunpack.c.l.b16 %v588
      %v813 = vunpack.c.l.b16 %v589
      %v814 = vunpack.c.l.b16 %v590
      %v815 = vunpack.c.l.b16 %v591
      %v816 = vunpack.c.l.b16 %v592
      %v817 = vunpack.c.l.b16 %v593
      %v818 = vunpack.c.l.b16 %v594
      %v819 = vunpack.c.l.b16 %v595
      %v820 = vunpack.c.l.b16 %v596
      %v821 = vunpack.c.l.b16 %v597
      %v822 = vpack.c.b16 %v807, %v806
      %v823 = vpack.c.b16 %v809, %v808
      %v824 = vpack.c.b16 %v811, %v810
      %v825 = vpack.c.b16 %v813, %v812
      %v826 = vpack.c.b16 %v815, %v814
      %v827 = vpack.c.b16 %v817, %v816
      %v828 = vpack.c.b16 %v819, %v818
      %v829 = vpack.c.b16 %v821, %v820
      %838 = vmatprep.subr.bf16.mxu0 0
      %839 = vmatpush1.bf16.msra.mxu0 %v829
      %840 = vmatprep.subr.bf16.mxu0 0
      %841 = vmatpush1.bf16.msra.mxu0 %v828
      %842 = vmatprep.subr.bf16.mxu0 0
      %843 = vmatpush1.bf16.msra.mxu0 %v827
      %844 = vmatprep.subr.bf16.mxu0 0
      %845 = vmatpush1.bf16.msra.mxu0 %v826
      %846 = vmatprep.subr.bf16.mxu0 0
      %847 = vmatpush1.bf16.msra.mxu0 %v825
      %848 = vmatprep.subr.bf16.mxu0 0
      %849 = vmatpush1.bf16.msra.mxu0 %v824
      %850 = vmatprep.subr.bf16.mxu0 0
      %851 = vmatpush1.bf16.msra.mxu0 %v823
      %852 = vmatprep.subr.bf16.mxu0 0
      %853 = vmatpush1.bf16.msra.mxu0 %v822
      %854 = vmatprep.subr.bf16.mxu0 0
      %855 = vmatpush2.bf16.msra.mxu0 0
      %856 = vmatprep.subr.bf16.mxu0 0
      %857 = vmatpush2.bf16.msra.mxu0 0
      %858 = vmatprep.subr.bf16.mxu0 0
      %859 = vmatpush2.bf16.msra.mxu0 0
      %860 = vmatprep.subr.bf16.mxu0 0
      %861 = vmatpush2.bf16.msra.mxu0 0
      %862 = vmatprep.subr.bf16.mxu0 0
      %863 = vmatpush2.bf16.msra.mxu0 0
      %864 = vmatprep.subr.bf16.mxu0 0
      %865 = vmatpush2.bf16.msra.mxu0 0
      %866 = vmatprep.subr.bf16.mxu0 0
      %867 = vmatpush2.bf16.msra.mxu0 0
      %868 = vmatprep.subr.bf16.mxu0 0
      %869 = vmatpush2.bf16.msra.mxu0 0
      %870 = vmatprep.mubr.bf16.mxu0 0
      %871 = vmatmul.mubr.bf16.gmra.mxu0 %v726
      %v872 = vpop.f32.mrf.mxu0
      %v873 = vadd.f32 0.0, %v872
      %v874 = vpop.f32.mrf.mxu0
      %v875 = vpop.f32.mrf.mxu0
      %v876 = vadd.f32 0.0, %v875
      %v877 = vpop.f32.mrf.mxu0
      %878 = vmatprep.mubr.bf16.mxu0 0
      %879 = vmatmul.mubr.bf16.gmra.mxu0 %v727
      %v880 = vpop.f32.mrf.mxu0
      %v881 = vadd.f32 0.0, %v880
      %v882 = vpop.f32.mrf.mxu0
      %v883 = vpop.f32.mrf.mxu0
      %v884 = vadd.f32 0.0, %v883
      %v885 = vpop.f32.mrf.mxu0
      %886 = vmatprep.mubr.bf16.mxu0 0
      %887 = vmatmul.mubr.bf16.gmra.mxu0 %v728
      %v888 = vpop.f32.mrf.mxu0
      %v889 = vadd.f32 0.0, %v888
      %v890 = vpop.f32.mrf.mxu0
      %v891 = vpop.f32.mrf.mxu0
      %v892 = vadd.f32 0.0, %v891
      %v893 = vpop.f32.mrf.mxu0
      %894 = vmatprep.mubr.bf16.mxu0 0
      %895 = vmatmul.mubr.bf16.gmra.mxu0 %v729
      %v896 = vpop.f32.mrf.mxu0
      %v897 = vadd.f32 0.0, %v896
      %v898 = vpop.f32.mrf.mxu0
      %v899 = vpop.f32.mrf.mxu0
      %v900 = vadd.f32 0.0, %v899
      %v901 = vpop.f32.mrf.mxu0
      %902 = vmatprep.mubr.bf16.mxu0 0
      %903 = vmatmul.mubr.bf16.gmra.mxu0 %v730
      %v904 = vpop.f32.mrf.mxu0
      %v905 = vadd.f32 0.0, %v904
      %v906 = vpop.f32.mrf.mxu0
      %v907 = vpop.f32.mrf.mxu0
      %v908 = vadd.f32 0.0, %v907
      %v909 = vpop.f32.mrf.mxu0
      %910 = vmatprep.mubr.bf16.mxu0 0
      %911 = vmatmul.mubr.bf16.gmra.mxu0 %v731
      %v912 = vpop.f32.mrf.mxu0
      %v913 = vadd.f32 0.0, %v912
      %v914 = vpop.f32.mrf.mxu0
      %v915 = vpop.f32.mrf.mxu0
      %v916 = vadd.f32 0.0, %v915
      %v917 = vpop.f32.mrf.mxu0
      %918 = vmatprep.mubr.bf16.mxu0 0
      %919 = vmatmul.mubr.bf16.gmra.mxu0 %v732
      %v920 = vpop.f32.mrf.mxu0
      %v921 = vadd.f32 0.0, %v920
      %v922 = vpop.f32.mrf.mxu0
      %v923 = vpop.f32.mrf.mxu0
      %v924 = vadd.f32 0.0, %v923
      %v925 = vpop.f32.mrf.mxu0
      %926 = vmatprep.mubr.bf16.mxu0 0
      %927 = vmatmul.mubr.bf16.gmra.mxu0 %v733
      %v928 = vpop.f32.mrf.mxu0
      %v929 = vadd.f32 0.0, %v928
      %v930 = vpop.f32.mrf.mxu0
      %v931 = vpop.f32.mrf.mxu0
      %v932 = vadd.f32 0.0, %v931
      %v933 = vpop.f32.mrf.mxu0
      %934 = vmatprep.mubr.bf16.mxu0 0
      %935 = vmatmul.mubr.bf16.gmra.mxu0 %v734
      %v936 = vpop.f32.mrf.mxu0
      %v937 = vadd.f32 0.0, %v936
      %v938 = vpop.f32.mrf.mxu0
      %v939 = vpop.f32.mrf.mxu0
      %v940 = vadd.f32 0.0, %v939
      %v941 = vpop.f32.mrf.mxu0
      %942 = vmatprep.mubr.bf16.mxu0 0
      %943 = vmatmul.mubr.bf16.gmra.mxu0 %v735
      %v944 = vpop.f32.mrf.mxu0
      %v945 = vadd.f32 0.0, %v944
      %v946 = vpop.f32.mrf.mxu0
      %v947 = vpop.f32.mrf.mxu0
      %v948 = vadd.f32 0.0, %v947
      %v949 = vpop.f32.mrf.mxu0
      %950 = vmatprep.mubr.bf16.mxu0 0
      %951 = vmatmul.mubr.bf16.gmra.mxu0 %v736
      %v952 = vpop.f32.mrf.mxu0
      %v953 = vadd.f32 0.0, %v952
      %v954 = vpop.f32.mrf.mxu0
      %v955 = vpop.f32.mrf.mxu0
      %v956 = vadd.f32 0.0, %v955
      %v957 = vpop.f32.mrf.mxu0
      %958 = vmatprep.mubr.bf16.mxu0 0
      %959 = vmatmul.mubr.bf16.gmra.mxu0 %v737
      %v960 = vpop.f32.mrf.mxu0
      %v961 = vadd.f32 0.0, %v960
      %v962 = vpop.f32.mrf.mxu0
      %v963 = vpop.f32.mrf.mxu0
      %v964 = vadd.f32 0.0, %v963
      %v965 = vpop.f32.mrf.mxu0
      %966 = vmatprep.mubr.bf16.mxu0 0
      %967 = vmatmul.mubr.bf16.gmra.mxu0 %v738
      %v968 = vpop.f32.mrf.mxu0
      %v969 = vadd.f32 0.0, %v968
      %v970 = vpop.f32.mrf.mxu0
      %v971 = vpop.f32.mrf.mxu0
      %v972 = vadd.f32 0.0, %v971
      %v973 = vpop.f32.mrf.mxu0
      %974 = vmatprep.mubr.bf16.mxu0 0
      %975 = vmatmul.mubr.bf16.gmra.mxu0 %v739
      %v976 = vpop.f32.mrf.mxu0
      %v977 = vadd.f32 0.0, %v976
      %v978 = vpop.f32.mrf.mxu0
      %v979 = vpop.f32.mrf.mxu0
      %v980 = vadd.f32 0.0, %v979
      %v981 = vpop.f32.mrf.mxu0
      %982 = vmatprep.mubr.bf16.mxu0 0
      %983 = vmatmul.mubr.bf16.gmra.mxu0 %v740
      %v984 = vpop.f32.mrf.mxu0
      %v985 = vadd.f32 0.0, %v984
      %v986 = vpop.f32.mrf.mxu0
      %v987 = vpop.f32.mrf.mxu0
      %v988 = vadd.f32 0.0, %v987
      %v989 = vpop.f32.mrf.mxu0
      %990 = vmatprep.mubr.bf16.mxu0 0
      %991 = vmatmul.mubr.bf16.gmra.mxu0 %v741
      %v992 = vpop.f32.mrf.mxu0
      %v993 = vadd.f32 0.0, %v992
      %v994 = vpop.f32.mrf.mxu0
      %v995 = vpop.f32.mrf.mxu0
      %v996 = vadd.f32 0.0, %v995
      %v997 = vpop.f32.mrf.mxu0
      %998 = vmatprep.mubr.bf16.mxu0 0
      %999 = vmatmul.mubr.bf16.gmra.mxu0 %v742
      %v1000 = vpop.f32.mrf.mxu0
      %v1001 = vadd.f32 0.0, %v1000
      %v1002 = vpop.f32.mrf.mxu0
      %v1003 = vpop.f32.mrf.mxu0
      %v1004 = vadd.f32 0.0, %v1003
      %v1005 = vpop.f32.mrf.mxu0
      %1006 = vmatprep.mubr.bf16.mxu0 0
      %1007 = vmatmul.mubr.bf16.gmra.mxu0 %v743
      %v1008 = vpop.f32.mrf.mxu0
      %v1009 = vadd.f32 0.0, %v1008
      %v1010 = vpop.f32.mrf.mxu0
      %v1011 = vpop.f32.mrf.mxu0
      %v1012 = vadd.f32 0.0, %v1011
      %v1013 = vpop.f32.mrf.mxu0
      %1014 = vmatprep.mubr.bf16.mxu0 0
      %1015 = vmatmul.mubr.bf16.gmra.mxu0 %v744
      %v1016 = vpop.f32.mrf.mxu0
      %v1017 = vadd.f32 0.0, %v1016
      %v1018 = vpop.f32.mrf.mxu0
      %v1019 = vpop.f32.mrf.mxu0
      %v1020 = vadd.f32 0.0, %v1019
      %v1021 = vpop.f32.mrf.mxu0
      %1022 = vmatprep.mubr.bf16.mxu0 0
      %1023 = vmatmul.mubr.bf16.gmra.mxu0 %v745
      %v1024 = vpop.f32.mrf.mxu0
      %v1025 = vadd.f32 0.0, %v1024
      %v1026 = vpop.f32.mrf.mxu0
      %v1027 = vpop.f32.mrf.mxu0
      %v1028 = vadd.f32 0.0, %v1027
      %v1029 = vpop.f32.mrf.mxu0
      %1030 = vmatprep.mubr.bf16.mxu0 0
      %1031 = vmatmul.mubr.bf16.gmra.mxu0 %v746
      %v1032 = vpop.f32.mrf.mxu0
      %v1033 = vadd.f32 0.0, %v1032
      %v1034 = vpop.f32.mrf.mxu0
      %v1035 = vpop.f32.mrf.mxu0
      %v1036 = vadd.f32 0.0, %v1035
      %v1037 = vpop.f32.mrf.mxu0
      %1038 = vmatprep.mubr.bf16.mxu0 0
      %1039 = vmatmul.mubr.bf16.gmra.mxu0 %v747
      %v1040 = vpop.f32.mrf.mxu0
      %v1041 = vadd.f32 0.0, %v1040
      %v1042 = vpop.f32.mrf.mxu0
      %v1043 = vpop.f32.mrf.mxu0
      %v1044 = vadd.f32 0.0, %v1043
      %v1045 = vpop.f32.mrf.mxu0
      %1046 = vmatprep.mubr.bf16.mxu0 0
      %1047 = vmatmul.mubr.bf16.gmra.mxu0 %v748
      %v1048 = vpop.f32.mrf.mxu0
      %v1049 = vadd.f32 0.0, %v1048
      %v1050 = vpop.f32.mrf.mxu0
      %v1051 = vpop.f32.mrf.mxu0
      %v1052 = vadd.f32 0.0, %v1051
      %v1053 = vpop.f32.mrf.mxu0
      %1054 = vmatprep.mubr.bf16.mxu0 0
      %1055 = vmatmul.mubr.bf16.gmra.mxu0 %v749
      %v1056 = vpop.f32.mrf.mxu0
      %v1057 = vadd.f32 0.0, %v1056
      %v1058 = vpop.f32.mrf.mxu0
      %v1059 = vpop.f32.mrf.mxu0
      %v1060 = vadd.f32 0.0, %v1059
      %v1061 = vpop.f32.mrf.mxu0
      %1062 = vmatprep.mubr.bf16.mxu0 0
      %1063 = vmatmul.mubr.bf16.gmra.mxu0 %v750
      %v1064 = vpop.f32.mrf.mxu0
      %v1065 = vadd.f32 0.0, %v1064
      %v1066 = vpop.f32.mrf.mxu0
      %v1067 = vpop.f32.mrf.mxu0
      %v1068 = vadd.f32 0.0, %v1067
      %v1069 = vpop.f32.mrf.mxu0
      %1070 = vmatprep.mubr.bf16.mxu0 0
      %1071 = vmatmul.mubr.bf16.gmra.mxu0 %v751
      %v1072 = vpop.f32.mrf.mxu0
      %v1073 = vadd.f32 0.0, %v1072
      %v1074 = vpop.f32.mrf.mxu0
      %v1075 = vpop.f32.mrf.mxu0
      %v1076 = vadd.f32 0.0, %v1075
      %v1077 = vpop.f32.mrf.mxu0
      %1078 = vmatprep.mubr.bf16.mxu0 0
      %1079 = vmatmul.mubr.bf16.gmra.mxu0 %v752
      %v1080 = vpop.f32.mrf.mxu0
      %v1081 = vadd.f32 0.0, %v1080
      %v1082 = vpop.f32.mrf.mxu0
      %v1083 = vpop.f32.mrf.mxu0
      %v1084 = vadd.f32 0.0, %v1083
      %v1085 = vpop.f32.mrf.mxu0
      %1086 = vmatprep.mubr.bf16.mxu0 0
      %1087 = vmatmul.mubr.bf16.gmra.mxu0 %v753
      %v1088 = vpop.f32.mrf.mxu0
      %v1089 = vadd.f32 0.0, %v1088
      %v1090 = vpop.f32.mrf.mxu0
      %v1091 = vpop.f32.mrf.mxu0
      %v1092 = vadd.f32 0.0, %v1091
      %v1093 = vpop.f32.mrf.mxu0
      %1094 = vmatprep.mubr.bf16.mxu0 0
      %1095 = vmatmul.mubr.bf16.gmra.mxu0 %v754
      %v1096 = vpop.f32.mrf.mxu0
      %v1097 = vadd.f32 0.0, %v1096
      %v1098 = vpop.f32.mrf.mxu0
      %v1099 = vpop.f32.mrf.mxu0
      %v1100 = vadd.f32 0.0, %v1099
      %v1101 = vpop.f32.mrf.mxu0
      %1102 = vmatprep.mubr.bf16.mxu0 0
      %1103 = vmatmul.mubr.bf16.gmra.mxu0 %v755
      %v1104 = vpop.f32.mrf.mxu0
      %v1105 = vadd.f32 0.0, %v1104
      %v1106 = vpop.f32.mrf.mxu0
      %v1107 = vpop.f32.mrf.mxu0
      %v1108 = vadd.f32 0.0, %v1107
      %v1109 = vpop.f32.mrf.mxu0
      %1110 = vmatprep.mubr.bf16.mxu0 0
      %1111 = vmatmul.mubr.bf16.gmra.mxu0 %v756
      %v1112 = vpop.f32.mrf.mxu0
      %v1113 = vadd.f32 0.0, %v1112
      %v1114 = vpop.f32.mrf.mxu0
      %v1115 = vpop.f32.mrf.mxu0
      %v1116 = vadd.f32 0.0, %v1115
      %v1117 = vpop.f32.mrf.mxu0
      %1118 = vmatprep.mubr.bf16.mxu0 0
      %1119 = vmatmul.mubr.bf16.gmra.mxu0 %v757
      %v1120 = vpop.f32.mrf.mxu0
      %v1121 = vadd.f32 0.0, %v1120
      %v1122 = vpop.f32.mrf.mxu0
      %v1123 = vpop.f32.mrf.mxu0
      %v1124 = vadd.f32 0.0, %v1123
      %v1125 = vpop.f32.mrf.mxu0
      %1126 = vdwg.mxu0
      %v1127 = vadd.f32 %v454, %v873
      %v1128 = vadd.f32 %v455, %v876
      %v1129 = vadd.f32 %v456, %v881
      %v1130 = vadd.f32 %v457, %v884
      %v1131 = vadd.f32 %v458, %v889
      %v1132 = vadd.f32 %v459, %v892
      %v1133 = vadd.f32 %v460, %v897
      %v1134 = vadd.f32 %v461, %v900
      %v1135 = vadd.f32 %v462, %v905
      %v1136 = vadd.f32 %v463, %v908
      %v1137 = vadd.f32 %v464, %v913
      %v1138 = vadd.f32 %v465, %v916
      %v1139 = vadd.f32 %v466, %v921
      %v1140 = vadd.f32 %v467, %v924
      %v1141 = vadd.f32 %v468, %v929
      %v1142 = vadd.f32 %v469, %v932
      %v1143 = vadd.f32 %v470, %v937
      %v1144 = vadd.f32 %v471, %v940
      %v1145 = vadd.f32 %v472, %v945
      %v1146 = vadd.f32 %v473, %v948
      %v1147 = vadd.f32 %v474, %v953
      %v1148 = vadd.f32 %v475, %v956
      %v1149 = vadd.f32 %v476, %v961
      %v1150 = vadd.f32 %v477, %v964
      %v1151 = vadd.f32 %v478, %v969
      %v1152 = vadd.f32 %v479, %v972
      %v1153 = vadd.f32 %v480, %v977
      %v1154 = vadd.f32 %v481, %v980
      %v1155 = vadd.f32 %v482, %v985
      %v1156 = vadd.f32 %v483, %v988
      %v1157 = vadd.f32 %v484, %v993
      %v1158 = vadd.f32 %v485, %v996
      %v1159 = vadd.f32 %v486, %v1001
      %v1160 = vadd.f32 %v487, %v1004
      %v1161 = vadd.f32 %v488, %v1009
      %v1162 = vadd.f32 %v489, %v1012
      %v1163 = vadd.f32 %v490, %v1017
      %v1164 = vadd.f32 %v491, %v1020
      %v1165 = vadd.f32 %v492, %v1025
      %v1166 = vadd.f32 %v493, %v1028
      %v1167 = vadd.f32 %v494, %v1033
      %v1168 = vadd.f32 %v495, %v1036
      %v1169 = vadd.f32 %v496, %v1041
      %v1170 = vadd.f32 %v497, %v1044
      %v1171 = vadd.f32 %v498, %v1049
      %v1172 = vadd.f32 %v499, %v1052
      %v1173 = vadd.f32 %v500, %v1057
      %v1174 = vadd.f32 %v501, %v1060
      %v1175 = vadd.f32 %v502, %v1065
      %v1176 = vadd.f32 %v503, %v1068
      %v1177 = vadd.f32 %v504, %v1073
      %v1178 = vadd.f32 %v505, %v1076
      %v1179 = vadd.f32 %v506, %v1081
      %v1180 = vadd.f32 %v507, %v1084
      %v1181 = vadd.f32 %v508, %v1089
      %v1182 = vadd.f32 %v509, %v1092
      %v1183 = vadd.f32 %v510, %v1097
      %v1184 = vadd.f32 %v511, %v1100
      %v1185 = vadd.f32 %v512, %v1105
      %v1186 = vadd.f32 %v513, %v1108
      %v1187 = vadd.f32 %v514, %v1113
      %v1188 = vadd.f32 %v515, %v1116
      %v1189 = vadd.f32 %v516, %v1121
      %v1190 = vadd.f32 %v517, %v1124
      %1191 = vst [vmem:[#allocation2] sm:$0xff] %v1127
      %1192 = vst [vmem:[#allocation2 + $0x8] sm:$0xff] %v1128
      %1193 = vst [vmem:[#allocation2 + $0x10] sm:$0xff] %v1129
      %1194 = vst [vmem:[#allocation2 + $0x18] sm:$0xff] %v1130
      %1195 = vst [vmem:[#allocation2 + $0x20] sm:$0xff] %v1131
      %1196 = vst [vmem:[#allocation2 + $0x28] sm:$0xff] %v1132
      %1197 = vst [vmem:[#allocation2 + $0x30] sm:$0xff] %v1133
      %1198 = vst [vmem:[#allocation2 + $0x38] sm:$0xff] %v1134
      %1199 = vst [vmem:[#allocation2 + $0x40] sm:$0xff] %v1135
      %1200 = vst [vmem:[#allocation2 + $0x48] sm:$0xff] %v1136
      %1201 = vst [vmem:[#allocation2 + $0x50] sm:$0xff] %v1137
      %1202 = vst [vmem:[#allocation2 + $0x58] sm:$0xff] %v1138
      %1203 = vst [vmem:[#allocation2 + $0x60] sm:$0xff] %v1139
      %1204 = vst [vmem:[#allocation2 + $0x68] sm:$0xff] %v1140
      %1205 = vst [vmem:[#allocation2 + $0x70] sm:$0xff] %v1141
      %1206 = vst [vmem:[#allocation2 + $0x78] sm:$0xff] %v1142
      %1207 = vst [vmem:[#allocation2 + $0x80] sm:$0xff] %v1143
      %1208 = vst [vmem:[#allocation2 + $0x88] sm:$0xff] %v1144
      %1209 = vst [vmem:[#allocation2 + $0x90] sm:$0xff] %v1145
      %1210 = vst [vmem:[#allocation2 + $0x98] sm:$0xff] %v1146
      %1211 = vst [vmem:[#allocation2 + $0xa0] sm:$0xff] %v1147
      %1212 = vst [vmem:[#allocation2 + $0xa8] sm:$0xff] %v1148
      %1213 = vst [vmem:[#allocation2 + $0xb0] sm:$0xff] %v1149
      %1214 = vst [vmem:[#allocation2 + $0xb8] sm:$0xff] %v1150
      %1215 = vst [vmem:[#allocation2 + $0xc0] sm:$0xff] %v1151
      %1216 = vst [vmem:[#allocation2 + $0xc8] sm:$0xff] %v1152
      %1217 = vst [vmem:[#allocation2 + $0xd0] sm:$0xff] %v1153
      %1218 = vst [vmem:[#allocation2 + $0xd8] sm:$0xff] %v1154
      %1219 = vst [vmem:[#allocation2 + $0xe0] sm:$0xff] %v1155
      %1220 = vst [vmem:[#allocation2 + $0xe8] sm:$0xff] %v1156
      %1221 = vst [vmem:[#allocation2 + $0xf0] sm:$0xff] %v1157
      %1222 = vst [vmem:[#allocation2 + $0xf8] sm:$0xff] %v1158
      %1223 = vst [vmem:[#allocation2 + $0x100] sm:$0xff] %v1159
      %1224 = vst [vmem:[#allocation2 + $0x108] sm:$0xff] %v1160
      %1225 = vst [vmem:[#allocation2 + $0x110] sm:$0xff] %v1161
      %1226 = vst [vmem:[#allocation2 + $0x118] sm:$0xff] %v1162
      %1227 = vst [vmem:[#allocation2 + $0x120] sm:$0xff] %v1163
      %1228 = vst [vmem:[#allocation2 + $0x128] sm:$0xff] %v1164
      %1229 = vst [vmem:[#allocation2 + $0x130] sm:$0xff] %v1165
      %1230 = vst [vmem:[#allocation2 + $0x138] sm:$0xff] %v1166
      %1231 = vst [vmem:[#allocation2 + $0x140] sm:$0xff] %v1167
      %1232 = vst [vmem:[#allocation2 + $0x148] sm:$0xff] %v1168
      %1233 = vst [vmem:[#allocation2 + $0x150] sm:$0xff] %v1169
      %1234 = vst [vmem:[#allocation2 + $0x158] sm:$0xff] %v1170
      %1235 = vst [vmem:[#allocation2 + $0x160] sm:$0xff] %v1171
      %1236 = vst [vmem:[#allocation2 + $0x168] sm:$0xff] %v1172
      %1237 = vst [vmem:[#allocation2 + $0x170] sm:$0xff] %v1173
      %1238 = vst [vmem:[#allocation2 + $0x178] sm:$0xff] %v1174
      %1239 = vst [vmem:[#allocation2 + $0x180] sm:$0xff] %v1175
      %1240 = vst [vmem:[#allocation2 + $0x188] sm:$0xff] %v1176
      %1241 = vst [vmem:[#allocation2 + $0x190] sm:$0xff] %v1177
      %1242 = vst [vmem:[#allocation2 + $0x198] sm:$0xff] %v1178
      %1243 = vst [vmem:[#allocation2 + $0x1a0] sm:$0xff] %v1179
      %1244 = vst [vmem:[#allocation2 + $0x1a8] sm:$0xff] %v1180
      %1245 = vst [vmem:[#allocation2 + $0x1b0] sm:$0xff] %v1181
      %1246 = vst [vmem:[#allocation2 + $0x1b8] sm:$0xff] %v1182
      %1247 = vst [vmem:[#allocation2 + $0x1c0] sm:$0xff] %v1183
      %1248 = vst [vmem:[#allocation2 + $0x1c8] sm:$0xff] %v1184
      %1249 = vst [vmem:[#allocation2 + $0x1d0] sm:$0xff] %v1185
      %1250 = vst [vmem:[#allocation2 + $0x1d8] sm:$0xff] %v1186
      %1251 = vst [vmem:[#allocation2 + $0x1e0] sm:$0xff] %v1187
      %1252 = vst [vmem:[#allocation2 + $0x1e8] sm:$0xff] %v1188
      %1253 = vst [vmem:[#allocation2 + $0x1f0] sm:$0xff] %v1189
      %1254 = vst [vmem:[#allocation2 + $0x1f8] sm:$0xff] %v1190
      // Predicated region
      $region41: #{conv_trans_bn_conv1.3} parent=31 // pred_check
        %p1255 = pneg %p380
      $region42: #{conv_trans_bn_conv1.3} parent=31 // pred_check_branch
        %1257 = sbr.rel (%p1255) target = $region44
      $region43: #{conv_trans_bn_conv1.3} parent=31 // pred_region
        %v1258 = vld [vmem:[#allocation2] sm:$0xff]
        %v1259 = vld [vmem:[#allocation2 + $0x8] sm:$0xff]
        %v1260 = vld [vmem:[#allocation2 + $0x10] sm:$0xff]
        %v1261 = vld [vmem:[#allocation2 + $0x18] sm:$0xff]
        %v1262 = vld [vmem:[#allocation2 + $0x20] sm:$0xff]
        %v1263 = vld [vmem:[#allocation2 + $0x28] sm:$0xff]
        %v1264 = vld [vmem:[#allocation2 + $0x30] sm:$0xff]
        %v1265 = vld [vmem:[#allocation2 + $0x38] sm:$0xff]
        %v1266 = vld [vmem:[#allocation2 + $0x40] sm:$0xff]
        %v1267 = vld [vmem:[#allocation2 + $0x48] sm:$0xff]
        %v1268 = vld [vmem:[#allocation2 + $0x50] sm:$0xff]
        %v1269 = vld [vmem:[#allocation2 + $0x58] sm:$0xff]
        %v1270 = vld [vmem:[#allocation2 + $0x60] sm:$0xff]
        %v1271 = vld [vmem:[#allocation2 + $0x68] sm:$0xff]
        %v1272 = vld [vmem:[#allocation2 + $0x70] sm:$0xff]
        %v1273 = vld [vmem:[#allocation2 + $0x78] sm:$0xff]
        %v1274 = vld [vmem:[#allocation2 + $0x80] sm:$0xff]
        %v1275 = vld [vmem:[#allocation2 + $0x88] sm:$0xff]
        %v1276 = vld [vmem:[#allocation2 + $0x90] sm:$0xff]
        %v1277 = vld [vmem:[#allocation2 + $0x98] sm:$0xff]
        %v1278 = vld [vmem:[#allocation2 + $0xa0] sm:$0xff]
        %v1279 = vld [vmem:[#allocation2 + $0xa8] sm:$0xff]
        %v1280 = vld [vmem:[#allocation2 + $0xb0] sm:$0xff]
        %v1281 = vld [vmem:[#allocation2 + $0xb8] sm:$0xff]
        %v1282 = vld [vmem:[#allocation2 + $0xc0] sm:$0xff]
        %v1283 = vld [vmem:[#allocation2 + $0xc8] sm:$0xff]
        %v1284 = vld [vmem:[#allocation2 + $0xd0] sm:$0xff]
        %v1285 = vld [vmem:[#allocation2 + $0xd8] sm:$0xff]
        %v1286 = vld [vmem:[#allocation2 + $0xe0] sm:$0xff]
        %v1287 = vld [vmem:[#allocation2 + $0xe8] sm:$0xff]
        %v1288 = vld [vmem:[#allocation2 + $0xf0] sm:$0xff]
        %v1289 = vld [vmem:[#allocation2 + $0xf8] sm:$0xff]
        %v1290 = vld [vmem:[#allocation2 + $0x100] sm:$0xff]
        %v1291 = vld [vmem:[#allocation2 + $0x108] sm:$0xff]
        %v1292 = vld [vmem:[#allocation2 + $0x110] sm:$0xff]
        %v1293 = vld [vmem:[#allocation2 + $0x118] sm:$0xff]
        %v1294 = vld [vmem:[#allocation2 + $0x120] sm:$0xff]
        %v1295 = vld [vmem:[#allocation2 + $0x128] sm:$0xff]
        %v1296 = vld [vmem:[#allocation2 + $0x130] sm:$0xff]
        %v1297 = vld [vmem:[#allocation2 + $0x138] sm:$0xff]
        %v1298 = vld [vmem:[#allocation2 + $0x140] sm:$0xff]
        %v1299 = vld [vmem:[#allocation2 + $0x148] sm:$0xff]
        %v1300 = vld [vmem:[#allocation2 + $0x150] sm:$0xff]
        %v1301 = vld [vmem:[#allocation2 + $0x158] sm:$0xff]
        %v1302 = vld [vmem:[#allocation2 + $0x160] sm:$0xff]
        %v1303 = vld [vmem:[#allocation2 + $0x168] sm:$0xff]
        %v1304 = vld [vmem:[#allocation2 + $0x170] sm:$0xff]
        %v1305 = vld [vmem:[#allocation2 + $0x178] sm:$0xff]
        %v1306 = vld [vmem:[#allocation2 + $0x180] sm:$0xff]
        %v1307 = vld [vmem:[#allocation2 + $0x188] sm:$0xff]
        %v1308 = vld [vmem:[#allocation2 + $0x190] sm:$0xff]
        %v1309 = vld [vmem:[#allocation2 + $0x198] sm:$0xff]
        %v1310 = vld [vmem:[#allocation2 + $0x1a0] sm:$0xff]
        %v1311 = vld [vmem:[#allocation2 + $0x1a8] sm:$0xff]
        %v1312 = vld [vmem:[#allocation2 + $0x1b0] sm:$0xff]
        %v1313 = vld [vmem:[#allocation2 + $0x1b8] sm:$0xff]
        %v1314 = vld [vmem:[#allocation2 + $0x1c0] sm:$0xff]
        %v1315 = vld [vmem:[#allocation2 + $0x1c8] sm:$0xff]
        %v1316 = vld [vmem:[#allocation2 + $0x1d0] sm:$0xff]
        %v1317 = vld [vmem:[#allocation2 + $0x1d8] sm:$0xff]
        %v1318 = vld [vmem:[#allocation2 + $0x1e0] sm:$0xff]
        %v1319 = vld [vmem:[#allocation2 + $0x1e8] sm:$0xff]
        %v1320 = vld [vmem:[#allocation2 + $0x1f0] sm:$0xff]
        %v1321 = vld [vmem:[#allocation2 + $0x1f8] sm:$0xff]
        %v1322 = vld [vmem:[%s355] sm:$0x1]
        %v1324 = vlaneseq
        %v1325 = vshrl.u32 %v1324, 7
        %v1326 = vsub.s32 0, %v1325
        %v1327 = vrot.slane %v1322, %v1326
        %v1329 = vadd.f32 %v1258, %v1327
        %v1330 = vadd.f32 %v1259, %v1327
        %v1331 = vadd.f32 %v1260, %v1327
        %v1332 = vadd.f32 %v1261, %v1327
        %v1333 = vadd.f32 %v1262, %v1327
        %v1334 = vadd.f32 %v1263, %v1327
        %v1335 = vadd.f32 %v1264, %v1327
        %v1336 = vadd.f32 %v1265, %v1327
        %v1337 = vadd.f32 %v1266, %v1327
        %v1338 = vadd.f32 %v1267, %v1327
        %v1339 = vadd.f32 %v1268, %v1327
        %v1340 = vadd.f32 %v1269, %v1327
        %v1341 = vadd.f32 %v1270, %v1327
        %v1342 = vadd.f32 %v1271, %v1327
        %v1343 = vadd.f32 %v1272, %v1327
        %v1344 = vadd.f32 %v1273, %v1327
        %v1345 = vadd.f32 %v1274, %v1327
        %v1346 = vadd.f32 %v1275, %v1327
        %v1347 = vadd.f32 %v1276, %v1327
        %v1348 = vadd.f32 %v1277, %v1327
        %v1349 = vadd.f32 %v1278, %v1327
        %v1350 = vadd.f32 %v1279, %v1327
        %v1351 = vadd.f32 %v1280, %v1327
        %v1352 = vadd.f32 %v1281, %v1327
        %v1353 = vadd.f32 %v1282, %v1327
        %v1354 = vadd.f32 %v1283, %v1327
        %v1355 = vadd.f32 %v1284, %v1327
        %v1356 = vadd.f32 %v1285, %v1327
        %v1357 = vadd.f32 %v1286, %v1327
        %v1358 = vadd.f32 %v1287, %v1327
        %v1359 = vadd.f32 %v1288, %v1327
        %v1360 = vadd.f32 %v1289, %v1327
        %v1361 = vadd.f32 %v1290, %v1327
        %v1362 = vadd.f32 %v1291, %v1327
        %v1363 = vadd.f32 %v1292, %v1327
        %v1364 = vadd.f32 %v1293, %v1327
        %v1365 = vadd.f32 %v1294, %v1327
        %v1366 = vadd.f32 %v1295, %v1327
        %v1367 = vadd.f32 %v1296, %v1327
        %v1368 = vadd.f32 %v1297, %v1327
        %v1369 = vadd.f32 %v1298, %v1327
        %v1370 = vadd.f32 %v1299, %v1327
        %v1371 = vadd.f32 %v1300, %v1327
        %v1372 = vadd.f32 %v1301, %v1327
        %v1373 = vadd.f32 %v1302, %v1327
        %v1374 = vadd.f32 %v1303, %v1327
        %v1375 = vadd.f32 %v1304, %v1327
        %v1376 = vadd.f32 %v1305, %v1327
        %v1377 = vadd.f32 %v1306, %v1327
        %v1378 = vadd.f32 %v1307, %v1327
        %v1379 = vadd.f32 %v1308, %v1327
        %v1380 = vadd.f32 %v1309, %v1327
        %v1381 = vadd.f32 %v1310, %v1327
        %v1382 = vadd.f32 %v1311, %v1327
        %v1383 = vadd.f32 %v1312, %v1327
        %v1384 = vadd.f32 %v1313, %v1327
        %v1385 = vadd.f32 %v1314, %v1327
        %v1386 = vadd.f32 %v1315, %v1327
        %v1387 = vadd.f32 %v1316, %v1327
        %v1388 = vadd.f32 %v1317, %v1327
        %v1389 = vadd.f32 %v1318, %v1327
        %v1390 = vadd.f32 %v1319, %v1327
        %v1391 = vadd.f32 %v1320, %v1327
        %v1392 = vadd.f32 %v1321, %v1327
        %v1393 = vpack.c.bf16 %v1330, %v1329
        %v1394 = vpack.c.bf16 %v1332, %v1331
        %v1395 = vpack.c.bf16 %v1334, %v1333
        %v1396 = vpack.c.bf16 %v1336, %v1335
        %v1397 = vpack.c.bf16 %v1338, %v1337
        %v1398 = vpack.c.bf16 %v1340, %v1339
        %v1399 = vpack.c.bf16 %v1342, %v1341
        %v1400 = vpack.c.bf16 %v1344, %v1343
        %v1401 = vpack.c.bf16 %v1346, %v1345
        %v1402 = vpack.c.bf16 %v1348, %v1347
        %v1403 = vpack.c.bf16 %v1350, %v1349
        %v1404 = vpack.c.bf16 %v1352, %v1351
        %v1405 = vpack.c.bf16 %v1354, %v1353
        %v1406 = vpack.c.bf16 %v1356, %v1355
        %v1407 = vpack.c.bf16 %v1358, %v1357
        %v1408 = vpack.c.bf16 %v1360, %v1359
        %v1409 = vpack.c.bf16 %v1362, %v1361
        %v1410 = vpack.c.bf16 %v1364, %v1363
        %v1411 = vpack.c.bf16 %v1366, %v1365
        %v1412 = vpack.c.bf16 %v1368, %v1367
        %v1413 = vpack.c.bf16 %v1370, %v1369
        %v1414 = vpack.c.bf16 %v1372, %v1371
        %v1415 = vpack.c.bf16 %v1374, %v1373
        %v1416 = vpack.c.bf16 %v1376, %v1375
        %v1417 = vpack.c.bf16 %v1378, %v1377
        %v1418 = vpack.c.bf16 %v1380, %v1379
        %v1419 = vpack.c.bf16 %v1382, %v1381
        %v1420 = vpack.c.bf16 %v1384, %v1383
        %v1421 = vpack.c.bf16 %v1386, %v1385
        %v1422 = vpack.c.bf16 %v1388, %v1387
        %v1423 = vpack.c.bf16 %v1390, %v1389
        %v1424 = vpack.c.bf16 %v1392, %v1391
        %v1457 = vunpack.c.l.b16 %v1393
        %v1458 = vunpack.c.h.b16 %v1393
        %v1459 = vunpack.c.l.b16 %v1394
        %v1460 = vunpack.c.h.b16 %v1394
        %v1461 = vunpack.c.l.b16 %v1395
        %v1462 = vunpack.c.h.b16 %v1395
        %v1463 = vunpack.c.l.b16 %v1396
        %v1464 = vunpack.c.h.b16 %v1396
        %v1465 = vunpack.c.l.b16 %v1397
        %v1466 = vunpack.c.h.b16 %v1397
        %v1467 = vunpack.c.l.b16 %v1398
        %v1468 = vunpack.c.h.b16 %v1398
        %v1469 = vunpack.c.l.b16 %v1399
        %v1470 = vunpack.c.h.b16 %v1399
        %v1471 = vunpack.c.l.b16 %v1400
        %v1472 = vunpack.c.h.b16 %v1400
        %v1473 = vunpack.c.l.b16 %v1401
        %v1474 = vunpack.c.h.b16 %v1401
        %v1475 = vunpack.c.l.b16 %v1402
        %v1476 = vunpack.c.h.b16 %v1402
        %v1477 = vunpack.c.l.b16 %v1403
        %v1478 = vunpack.c.h.b16 %v1403
        %v1479 = vunpack.c.l.b16 %v1404
        %v1480 = vunpack.c.h.b16 %v1404
        %v1481 = vunpack.c.l.b16 %v1405
        %v1482 = vunpack.c.h.b16 %v1405
        %v1483 = vunpack.c.l.b16 %v1406
        %v1484 = vunpack.c.h.b16 %v1406
        %v1485 = vunpack.c.l.b16 %v1407
        %v1486 = vunpack.c.h.b16 %v1407
        %v1487 = vunpack.c.l.b16 %v1408
        %v1488 = vunpack.c.h.b16 %v1408
        %v1489 = vunpack.c.l.b16 %v1409
        %v1490 = vunpack.c.h.b16 %v1409
        %v1491 = vunpack.c.l.b16 %v1410
        %v1492 = vunpack.c.h.b16 %v1410
        %v1493 = vunpack.c.l.b16 %v1411
        %v1494 = vunpack.c.h.b16 %v1411
        %v1495 = vunpack.c.l.b16 %v1412
        %v1496 = vunpack.c.h.b16 %v1412
        %v1497 = vunpack.c.l.b16 %v1413
        %v1498 = vunpack.c.h.b16 %v1413
        %v1499 = vunpack.c.l.b16 %v1414
        %v1500 = vunpack.c.h.b16 %v1414
        %v1501 = vunpack.c.l.b16 %v1415
        %v1502 = vunpack.c.h.b16 %v1415
        %v1503 = vunpack.c.l.b16 %v1416
        %v1504 = vunpack.c.h.b16 %v1416
        %v1505 = vunpack.c.l.b16 %v1417
        %v1506 = vunpack.c.h.b16 %v1417
        %v1507 = vunpack.c.l.b16 %v1418
        %v1508 = vunpack.c.h.b16 %v1418
        %v1509 = vunpack.c.l.b16 %v1419
        %v1510 = vunpack.c.h.b16 %v1419
        %v1511 = vunpack.c.l.b16 %v1420
        %v1512 = vunpack.c.h.b16 %v1420
        %v1513 = vunpack.c.l.b16 %v1421
        %v1514 = vunpack.c.h.b16 %v1421
        %v1515 = vunpack.c.l.b16 %v1422
        %v1516 = vunpack.c.h.b16 %v1422
        %v1517 = vunpack.c.l.b16 %v1423
        %v1518 = vunpack.c.h.b16 %v1423
        %v1519 = vunpack.c.l.b16 %v1424
        %v1520 = vunpack.c.h.b16 %v1424
        %v1521 = vpack.c.b16 %v1457, %v1457
        %v1522 = vpack.c.b16 %v1458, %v1458
        %v1523 = vpack.c.b16 %v1459, %v1459
        %v1524 = vpack.c.b16 %v1460, %v1460
        %v1525 = vpack.c.b16 %v1461, %v1461
        %v1526 = vpack.c.b16 %v1462, %v1462
        %v1527 = vpack.c.b16 %v1463, %v1463
        %v1528 = vpack.c.b16 %v1464, %v1464
        %v1529 = vpack.c.b16 %v1465, %v1465
        %v1530 = vpack.c.b16 %v1466, %v1466
        %v1531 = vpack.c.b16 %v1467, %v1467
        %v1532 = vpack.c.b16 %v1468, %v1468
        %v1533 = vpack.c.b16 %v1469, %v1469
        %v1534 = vpack.c.b16 %v1470, %v1470
        %v1535 = vpack.c.b16 %v1471, %v1471
        %v1536 = vpack.c.b16 %v1472, %v1472
        %v1537 = vpack.c.b16 %v1473, %v1473
        %v1538 = vpack.c.b16 %v1474, %v1474
        %v1539 = vpack.c.b16 %v1475, %v1475
        %v1540 = vpack.c.b16 %v1476, %v1476
        %v1541 = vpack.c.b16 %v1477, %v1477
        %v1542 = vpack.c.b16 %v1478, %v1478
        %v1543 = vpack.c.b16 %v1479, %v1479
        %v1544 = vpack.c.b16 %v1480, %v1480
        %v1545 = vpack.c.b16 %v1481, %v1481
        %v1546 = vpack.c.b16 %v1482, %v1482
        %v1547 = vpack.c.b16 %v1483, %v1483
        %v1548 = vpack.c.b16 %v1484, %v1484
        %v1549 = vpack.c.b16 %v1485, %v1485
        %v1550 = vpack.c.b16 %v1486, %v1486
        %v1551 = vpack.c.b16 %v1487, %v1487
        %v1552 = vpack.c.b16 %v1488, %v1488
        %v1553 = vpack.c.b16 %v1489, %v1489
        %v1554 = vpack.c.b16 %v1490, %v1490
        %v1555 = vpack.c.b16 %v1491, %v1491
        %v1556 = vpack.c.b16 %v1492, %v1492
        %v1557 = vpack.c.b16 %v1493, %v1493
        %v1558 = vpack.c.b16 %v1494, %v1494
        %v1559 = vpack.c.b16 %v1495, %v1495
        %v1560 = vpack.c.b16 %v1496, %v1496
        %v1561 = vpack.c.b16 %v1497, %v1497
        %v1562 = vpack.c.b16 %v1498, %v1498
        %v1563 = vpack.c.b16 %v1499, %v1499
        %v1564 = vpack.c.b16 %v1500, %v1500
        %v1565 = vpack.c.b16 %v1501, %v1501
        %v1566 = vpack.c.b16 %v1502, %v1502
        %v1567 = vpack.c.b16 %v1503, %v1503
        %v1568 = vpack.c.b16 %v1504, %v1504
        %v1569 = vpack.c.b16 %v1505, %v1505
        %v1570 = vpack.c.b16 %v1506, %v1506
        %v1571 = vpack.c.b16 %v1507, %v1507
        %v1572 = vpack.c.b16 %v1508, %v1508
        %v1573 = vpack.c.b16 %v1509, %v1509
        %v1574 = vpack.c.b16 %v1510, %v1510
        %v1575 = vpack.c.b16 %v1511, %v1511
        %v1576 = vpack.c.b16 %v1512, %v1512
        %v1577 = vpack.c.b16 %v1513, %v1513
        %v1578 = vpack.c.b16 %v1514, %v1514
        %v1579 = vpack.c.b16 %v1515, %v1515
        %v1580 = vpack.c.b16 %v1516, %v1516
        %v1581 = vpack.c.b16 %v1517, %v1517
        %v1582 = vpack.c.b16 %v1518, %v1518
        %v1583 = vpack.c.b16 %v1519, %v1519
        %v1584 = vpack.c.b16 %v1520, %v1520
        %1649 = vst [vmem:[%s367] sm:$0xf] %v1521
        %1650 = vst [vmem:[%s367 + $0x4] sm:$0xf] %v1522
        %1651 = vst [vmem:[%s367 + $0x8] sm:$0xf] %v1523
        %1652 = vst [vmem:[%s367 + $0xc] sm:$0xf] %v1524
        %1653 = vst [vmem:[%s367 + $0x10] sm:$0xf] %v1525
        %1654 = vst [vmem:[%s367 + $0x14] sm:$0xf] %v1526
        %1655 = vst [vmem:[%s367 + $0x18] sm:$0xf] %v1527
        %1656 = vst [vmem:[%s367 + $0x1c] sm:$0xf] %v1528
        %1657 = vst [vmem:[%s367 + $0x20] sm:$0xf] %v1529
        %1658 = vst [vmem:[%s367 + $0x24] sm:$0xf] %v1530
        %1659 = vst [vmem:[%s367 + $0x28] sm:$0xf] %v1531
        %1660 = vst [vmem:[%s367 + $0x2c] sm:$0xf] %v1532
        %1661 = vst [vmem:[%s367 + $0x30] sm:$0xf] %v1533
        %1662 = vst [vmem:[%s367 + $0x34] sm:$0xf] %v1534
        %1663 = vst [vmem:[%s367 + $0x38] sm:$0xf] %v1535
        %1664 = vst [vmem:[%s367 + $0x3c] sm:$0xf] %v1536
        %1665 = vst [vmem:[%s367 + $0x40] sm:$0xf] %v1537
        %1666 = vst [vmem:[%s367 + $0x44] sm:$0xf] %v1538
        %1667 = vst [vmem:[%s367 + $0x48] sm:$0xf] %v1539
        %1668 = vst [vmem:[%s367 + $0x4c] sm:$0xf] %v1540
        %1669 = vst [vmem:[%s367 + $0x50] sm:$0xf] %v1541
        %1670 = vst [vmem:[%s367 + $0x54] sm:$0xf] %v1542
        %1671 = vst [vmem:[%s367 + $0x58] sm:$0xf] %v1543
        %1672 = vst [vmem:[%s367 + $0x5c] sm:$0xf] %v1544
        %1673 = vst [vmem:[%s367 + $0x60] sm:$0xf] %v1545
        %1674 = vst [vmem:[%s367 + $0x64] sm:$0xf] %v1546
        %1675 = vst [vmem:[%s367 + $0x68] sm:$0xf] %v1547
        %1676 = vst [vmem:[%s367 + $0x6c] sm:$0xf] %v1548
        %1677 = vst [vmem:[%s367 + $0x70] sm:$0xf] %v1549
        %1678 = vst [vmem:[%s367 + $0x74] sm:$0xf] %v1550
        %1679 = vst [vmem:[%s367 + $0x78] sm:$0xf] %v1551
        %1680 = vst [vmem:[%s367 + $0x7c] sm:$0xf] %v1552
        %1681 = vst [vmem:[%s367 + $0x80] sm:$0xf] %v1553
        %1682 = vst [vmem:[%s367 + $0x84] sm:$0xf] %v1554
        %1683 = vst [vmem:[%s367 + $0x88] sm:$0xf] %v1555
        %1684 = vst [vmem:[%s367 + $0x8c] sm:$0xf] %v1556
        %1685 = vst [vmem:[%s367 + $0x90] sm:$0xf] %v1557
        %1686 = vst [vmem:[%s367 + $0x94] sm:$0xf] %v1558
        %1687 = vst [vmem:[%s367 + $0x98] sm:$0xf] %v1559
        %1688 = vst [vmem:[%s367 + $0x9c] sm:$0xf] %v1560
        %1689 = vst [vmem:[%s367 + $0xa0] sm:$0xf] %v1561
        %1690 = vst [vmem:[%s367 + $0xa4] sm:$0xf] %v1562
        %1691 = vst [vmem:[%s367 + $0xa8] sm:$0xf] %v1563
        %1692 = vst [vmem:[%s367 + $0xac] sm:$0xf] %v1564
        %1693 = vst [vmem:[%s367 + $0xb0] sm:$0xf] %v1565
        %1694 = vst [vmem:[%s367 + $0xb4] sm:$0xf] %v1566
        %1695 = vst [vmem:[%s367 + $0xb8] sm:$0xf] %v1567
        %1696 = vst [vmem:[%s367 + $0xbc] sm:$0xf] %v1568
        %1697 = vst [vmem:[%s367 + $0xc0] sm:$0xf] %v1569
        %1698 = vst [vmem:[%s367 + $0xc4] sm:$0xf] %v1570
        %1699 = vst [vmem:[%s367 + $0xc8] sm:$0xf] %v1571
        %1700 = vst [vmem:[%s367 + $0xcc] sm:$0xf] %v1572
        %1701 = vst [vmem:[%s367 + $0xd0] sm:$0xf] %v1573
        %1702 = vst [vmem:[%s367 + $0xd4] sm:$0xf] %v1574
        %1703 = vst [vmem:[%s367 + $0xd8] sm:$0xf] %v1575
        %1704 = vst [vmem:[%s367 + $0xdc] sm:$0xf] %v1576
        %1705 = vst [vmem:[%s367 + $0xe0] sm:$0xf] %v1577
        %1706 = vst [vmem:[%s367 + $0xe4] sm:$0xf] %v1578
        %1707 = vst [vmem:[%s367 + $0xe8] sm:$0xf] %v1579
        %1708 = vst [vmem:[%s367 + $0xec] sm:$0xf] %v1580
        %1709 = vst [vmem:[%s367 + $0xf0] sm:$0xf] %v1581
        %1710 = vst [vmem:[%s367 + $0xf4] sm:$0xf] %v1582
        %1711 = vst [vmem:[%s367 + $0xf8] sm:$0xf] %v1583
        %1712 = vst [vmem:[%s367 + $0xfc] sm:$0xf] %v1584
        %v1713 = vld [vmem:[#allocation3] sm:$0x1]
        %v1714 = vadd.f32 %v1329, %v1330
        %v1715 = vadd.f32 %v1714, %v1331
        %v1716 = vadd.f32 %v1715, %v1332
        %v1717 = vadd.f32 %v1716, %v1333
        %v1718 = vadd.f32 %v1717, %v1334
        %v1719 = vadd.f32 %v1718, %v1335
        %v1720 = vadd.f32 %v1719, %v1336
        %v1721 = vadd.f32 %v1720, %v1337
        %v1722 = vadd.f32 %v1721, %v1338
        %v1723 = vadd.f32 %v1722, %v1339
        %v1724 = vadd.f32 %v1723, %v1340
        %v1725 = vadd.f32 %v1724, %v1341
        %v1726 = vadd.f32 %v1725, %v1342
        %v1727 = vadd.f32 %v1726, %v1343
        %v1728 = vadd.f32 %v1727, %v1344
        %v1729 = vadd.f32 %v1728, %v1345
        %v1730 = vadd.f32 %v1729, %v1346
        %v1731 = vadd.f32 %v1730, %v1347
        %v1732 = vadd.f32 %v1731, %v1348
        %v1733 = vadd.f32 %v1732, %v1349
        %v1734 = vadd.f32 %v1733, %v1350
        %v1735 = vadd.f32 %v1734, %v1351
        %v1736 = vadd.f32 %v1735, %v1352
        %v1737 = vadd.f32 %v1736, %v1353
        %v1738 = vadd.f32 %v1737, %v1354
        %v1739 = vadd.f32 %v1738, %v1355
        %v1740 = vadd.f32 %v1739, %v1356
        %v1741 = vadd.f32 %v1740, %v1357
        %v1742 = vadd.f32 %v1741, %v1358
        %v1743 = vadd.f32 %v1742, %v1359
        %v1744 = vadd.f32 %v1743, %v1360
        %v1745 = vadd.f32 %v1744, %v1361
        %v1746 = vadd.f32 %v1745, %v1362
        %v1747 = vadd.f32 %v1746, %v1363
        %v1748 = vadd.f32 %v1747, %v1364
        %v1749 = vadd.f32 %v1748, %v1365
        %v1750 = vadd.f32 %v1749, %v1366
        %v1751 = vadd.f32 %v1750, %v1367
        %v1752 = vadd.f32 %v1751, %v1368
        %v1753 = vadd.f32 %v1752, %v1369
        %v1754 = vadd.f32 %v1753, %v1370
        %v1755 = vadd.f32 %v1754, %v1371
        %v1756 = vadd.f32 %v1755, %v1372
        %v1757 = vadd.f32 %v1756, %v1373
        %v1758 = vadd.f32 %v1757, %v1374
        %v1759 = vadd.f32 %v1758, %v1375
        %v1760 = vadd.f32 %v1759, %v1376
        %v1761 = vadd.f32 %v1760, %v1377
        %v1762 = vadd.f32 %v1761, %v1378
        %v1763 = vadd.f32 %v1762, %v1379
        %v1764 = vadd.f32 %v1763, %v1380
        %v1765 = vadd.f32 %v1764, %v1381
        %v1766 = vadd.f32 %v1765, %v1382
        %v1767 = vadd.f32 %v1766, %v1383
        %v1768 = vadd.f32 %v1767, %v1384
        %v1769 = vadd.f32 %v1768, %v1385
        %v1770 = vadd.f32 %v1769, %v1386
        %v1771 = vadd.f32 %v1770, %v1387
        %v1772 = vadd.f32 %v1771, %v1388
        %v1773 = vadd.f32 %v1772, %v1389
        %v1774 = vadd.f32 %v1773, %v1390
        %v1775 = vadd.f32 %v1774, %v1391
        %v1776 = vadd.f32 %v1775, %v1392
        %v1777 = vrot.slane %v1776, 4
        %v1778 = vadd.f32 %v1776, %v1777
        %v1779 = vrot.slane %v1778, 2
        %v1780 = vadd.f32 %v1778, %v1779
        %v1781 = vrot.slane %v1780, 1
        %v1782 = vadd.f32 %v1780, %v1781
        %v1783 = vadd.f32 %v1713, %v1782
        %1784 = vst [vmem:[#allocation3] sm:$0x1] %v1783
        %v1785 = vld [vmem:[#allocation4] sm:$0x1]
        %v1786 = vmul.f32 %v1329, %v1329
        %v1787 = vmul.f32 %v1330, %v1330
        %v1788 = vmul.f32 %v1331, %v1331
        %v1789 = vmul.f32 %v1332, %v1332
        %v1790 = vmul.f32 %v1333, %v1333
        %v1791 = vmul.f32 %v1334, %v1334
        %v1792 = vmul.f32 %v1335, %v1335
        %v1793 = vmul.f32 %v1336, %v1336
        %v1794 = vmul.f32 %v1337, %v1337
        %v1795 = vmul.f32 %v1338, %v1338
        %v1796 = vmul.f32 %v1339, %v1339
        %v1797 = vmul.f32 %v1340, %v1340
        %v1798 = vmul.f32 %v1341, %v1341
        %v1799 = vmul.f32 %v1342, %v1342
        %v1800 = vmul.f32 %v1343, %v1343
        %v1801 = vmul.f32 %v1344, %v1344
        %v1802 = vmul.f32 %v1345, %v1345
        %v1803 = vmul.f32 %v1346, %v1346
        %v1804 = vmul.f32 %v1347, %v1347
        %v1805 = vmul.f32 %v1348, %v1348
        %v1806 = vmul.f32 %v1349, %v1349
        %v1807 = vmul.f32 %v1350, %v1350
        %v1808 = vmul.f32 %v1351, %v1351
        %v1809 = vmul.f32 %v1352, %v1352
        %v1810 = vmul.f32 %v1353, %v1353
        %v1811 = vmul.f32 %v1354, %v1354
        %v1812 = vmul.f32 %v1355, %v1355
        %v1813 = vmul.f32 %v1356, %v1356
        %v1814 = vmul.f32 %v1357, %v1357
        %v1815 = vmul.f32 %v1358, %v1358
        %v1816 = vmul.f32 %v1359, %v1359
        %v1817 = vmul.f32 %v1360, %v1360
        %v1818 = vmul.f32 %v1361, %v1361
        %v1819 = vmul.f32 %v1362, %v1362
        %v1820 = vmul.f32 %v1363, %v1363
        %v1821 = vmul.f32 %v1364, %v1364
        %v1822 = vmul.f32 %v1365, %v1365
        %v1823 = vmul.f32 %v1366, %v1366
        %v1824 = vmul.f32 %v1367, %v1367
        %v1825 = vmul.f32 %v1368, %v1368
        %v1826 = vmul.f32 %v1369, %v1369
        %v1827 = vmul.f32 %v1370, %v1370
        %v1828 = vmul.f32 %v1371, %v1371
        %v1829 = vmul.f32 %v1372, %v1372
        %v1830 = vmul.f32 %v1373, %v1373
        %v1831 = vmul.f32 %v1374, %v1374
        %v1832 = vmul.f32 %v1375, %v1375
        %v1833 = vmul.f32 %v1376, %v1376
        %v1834 = vmul.f32 %v1377, %v1377
        %v1835 = vmul.f32 %v1378, %v1378
        %v1836 = vmul.f32 %v1379, %v1379
        %v1837 = vmul.f32 %v1380, %v1380
        %v1838 = vmul.f32 %v1381, %v1381
        %v1839 = vmul.f32 %v1382, %v1382
        %v1840 = vmul.f32 %v1383, %v1383
        %v1841 = vmul.f32 %v1384, %v1384
        %v1842 = vmul.f32 %v1385, %v1385
        %v1843 = vmul.f32 %v1386, %v1386
        %v1844 = vmul.f32 %v1387, %v1387
        %v1845 = vmul.f32 %v1388, %v1388
        %v1846 = vmul.f32 %v1389, %v1389
        %v1847 = vmul.f32 %v1390, %v1390
        %v1848 = vmul.f32 %v1391, %v1391
        %v1849 = vmul.f32 %v1392, %v1392
        %v1850 = vadd.f32 %v1786, %v1787
        %v1851 = vadd.f32 %v1850, %v1788
        %v1852 = vadd.f32 %v1851, %v1789
        %v1853 = vadd.f32 %v1852, %v1790
        %v1854 = vadd.f32 %v1853, %v1791
        %v1855 = vadd.f32 %v1854, %v1792
        %v1856 = vadd.f32 %v1855, %v1793
        %v1857 = vadd.f32 %v1856, %v1794
        %v1858 = vadd.f32 %v1857, %v1795
        %v1859 = vadd.f32 %v1858, %v1796
        %v1860 = vadd.f32 %v1859, %v1797
        %v1861 = vadd.f32 %v1860, %v1798
        %v1862 = vadd.f32 %v1861, %v1799
        %v1863 = vadd.f32 %v1862, %v1800
        %v1864 = vadd.f32 %v1863, %v1801
        %v1865 = vadd.f32 %v1864, %v1802
        %v1866 = vadd.f32 %v1865, %v1803
        %v1867 = vadd.f32 %v1866, %v1804
        %v1868 = vadd.f32 %v1867, %v1805
        %v1869 = vadd.f32 %v1868, %v1806
        %v1870 = vadd.f32 %v1869, %v1807
        %v1871 = vadd.f32 %v1870, %v1808
        %v1872 = vadd.f32 %v1871, %v1809
        %v1873 = vadd.f32 %v1872, %v1810
        %v1874 = vadd.f32 %v1873, %v1811
        %v1875 = vadd.f32 %v1874, %v1812
        %v1876 = vadd.f32 %v1875, %v1813
        %v1877 = vadd.f32 %v1876, %v1814
        %v1878 = vadd.f32 %v1877, %v1815
        %v1879 = vadd.f32 %v1878, %v1816
        %v1880 = vadd.f32 %v1879, %v1817
        %v1881 = vadd.f32 %v1880, %v1818
        %v1882 = vadd.f32 %v1881, %v1819
        %v1883 = vadd.f32 %v1882, %v1820
        %v1884 = vadd.f32 %v1883, %v1821
        %v1885 = vadd.f32 %v1884, %v1822
        %v1886 = vadd.f32 %v1885, %v1823
        %v1887 = vadd.f32 %v1886, %v1824
        %v1888 = vadd.f32 %v1887, %v1825
        %v1889 = vadd.f32 %v1888, %v1826
        %v1890 = vadd.f32 %v1889, %v1827
        %v1891 = vadd.f32 %v1890, %v1828
        %v1892 = vadd.f32 %v1891, %v1829
        %v1893 = vadd.f32 %v1892, %v1830
        %v1894 = vadd.f32 %v1893, %v1831
        %v1895 = vadd.f32 %v1894, %v1832
        %v1896 = vadd.f32 %v1895, %v1833
        %v1897 = vadd.f32 %v1896, %v1834
        %v1898 = vadd.f32 %v1897, %v1835
        %v1899 = vadd.f32 %v1898, %v1836
        %v1900 = vadd.f32 %v1899, %v1837
        %v1901 = vadd.f32 %v1900, %v1838
        %v1902 = vadd.f32 %v1901, %v1839
        %v1903 = vadd.f32 %v1902, %v1840
        %v1904 = vadd.f32 %v1903, %v1841
        %v1905 = vadd.f32 %v1904, %v1842
        %v1906 = vadd.f32 %v1905, %v1843
        %v1907 = vadd.f32 %v1906, %v1844
        %v1908 = vadd.f32 %v1907, %v1845
        %v1909 = vadd.f32 %v1908, %v1846
        %v1910 = vadd.f32 %v1909, %v1847
        %v1911 = vadd.f32 %v1910, %v1848
        %v1912 = vadd.f32 %v1911, %v1849
        %v1913 = vrot.slane %v1912, 4
        %v1914 = vadd.f32 %v1912, %v1913
        %v1915 = vrot.slane %v1914, 2
        %v1916 = vadd.f32 %v1914, %v1915
        %v1917 = vrot.slane %v1916, 1
        %v1918 = vadd.f32 %v1916, %v1917
        %v1919 = vadd.f32 %v1785, %v1918
        %1920 = vst [vmem:[#allocation4] sm:$0x1] %v1919
      $region44: #{conv_trans_bn_conv1.3} parent=31 // pred_fallthru
        _
      %p1921 = scmp.eq.s32.totalorder %s24, 3
      %p1922 = pnand %p1921, %p377
      %p1923 = pneg %p1922
      %p1924 = pnand %p1923, %p380
      %p1925 = pneg %p1924
      // Predicated region
      $region45: #{conv_trans_bn_conv1.3} parent=31 // pred_check
        _
      $region46: #{conv_trans_bn_conv1.3} parent=31 // pred_check_branch
        %1927 = sbr.rel (%p1924) target = $region48
      $region47: #{conv_trans_bn_conv1.3} parent=31 // pred_region
        %v1928 = vld [vmem:[#allocation3] sm:$0x1]
        %v1929 = vmul.f32 %v1928, 0.00048828125
        %v1930 = vld [vmem:[#allocation4] sm:$0x1]
        %v1931 = vmul.f32 %v1930, 0.00048828125
        %v1932 = vmul.f32 %v1929, %v1929
        %v1933 = vsub.f32 %v1931, %v1932
        %v1934 = vmax.f32 %v1933, 0.0
        %1935 = vst [vmem:[%s371] sm:$0x1] %v1929
        %v1936 = vadd.f32 %v1934, 1e-05
        %v1937 = vrsqrt.pop %v1936
        %1938 = vst [vmem:[%s374] sm:$0x1] %v1937
      $region48: #{conv_trans_bn_conv1.3} parent=31 // pred_fallthru
        _
      %s1939 = smul.u32 64, %s25
      %p1940 = scmp.lt.s32.totalorder %s24, 3
      %s1941 = scalar_select %p1940, %s24, 3
      %p1942 = scmp.lt.s32.totalorder %s1939, 63
      %s1943 = scalar_select %p1942, %s1939, 63
      %p1944 = scmp.lt.s32.totalorder %s23, 0
      %s1945 = scalar_select %p1944, %s23, 0
      %s1946 = sadd.s32 %s1945, %s1943
      %s1947 = smul.addr %s1941, 64
      %s1948 = sadd.s32 %s1946, %s1947
      %s1949 = smul.addr %s1948, 4
      %s1950 = scalar_lea.vmem %s3, %s1949
      %p1951 = scmp.lt.s32.totalorder %s23, 0
      %s1952 = scalar_select %p1951, %s23, 0
      %s1953 = scalar_lea.vmem %s4, %s1952
      %p1954 = scmp.lt.s32.totalorder %s23, 0
      %s1955 = scalar_select %p1954, %s23, 0
      %s1956 = scalar_lea.vmem %s5, %s1955
      // Predicated region
      $region49: #{conv_trans_bn_conv1.3} parent=31 // pred_check
        %p1957 = pneg %p151
      $region50: #{conv_trans_bn_conv1.3} parent=31 // pred_check_branch
        %1959 = sbr.rel (%p1957) target = $region52
      $region51: #{conv_trans_bn_conv1.3} parent=31 // pred_region
        %s1960 = smul.u32 64, %s25
      $region52: #{conv_trans_bn_conv1.3} parent=31 // pred_fallthru
        _
      // Predicated region
      $region53: #{conv_trans_bn_conv1.3} parent=31 // pred_check
        %p1961 = pneg %p177
      $region54: #{conv_trans_bn_conv1.3} parent=31 // pred_check_branch
        %1963 = sbr.rel (%p1961) target = $region56
      $region55: #{conv_trans_bn_conv1.3} parent=31 // pred_region
        _
      $region56: #{conv_trans_bn_conv1.3} parent=31 // pred_fallthru
        _
      // Predicated region
      $region57: #{conv_trans_bn_conv1.3} parent=31 // pred_check
        %p1964 = pneg %p203
      $region58: #{conv_trans_bn_conv1.3} parent=31 // pred_check_branch
        %1966 = sbr.rel (%p1964) target = $region60
      $region59: #{conv_trans_bn_conv1.3} parent=31 // pred_region
        _
      $region60: #{conv_trans_bn_conv1.3} parent=31 // pred_fallthru
        _
      // Predicated region
      $region61: #{conv_trans_bn_conv1.3} parent=31 // pred_check
        %p1967 = pneg %p177
      $region62: #{conv_trans_bn_conv1.3} parent=31 // pred_check_branch
        %1969 = sbr.rel (%p1967) target = $region64
      $region63: #{conv_trans_bn_conv1.3} parent=31 // pred_region
        %p1970 = scmp.lt.s32.totalorder %s23, 0
        %s1971 = scalar_select %p1970, %s23, 0
        %s1972 = scalar_lea.vmem %s4, %s1971
      $region64: #{conv_trans_bn_conv1.3} parent=31 // pred_fallthru
        _
      // Predicated region
      $region65: #{conv_trans_bn_conv1.3} parent=31 // pred_check
        %p1973 = pneg %p203
      $region66: #{conv_trans_bn_conv1.3} parent=31 // pred_check_branch
        %1975 = sbr.rel (%p1973) target = $region68
      $region67: #{conv_trans_bn_conv1.3} parent=31 // pred_region
        %p1976 = scmp.lt.s32.totalorder %s23, 0
        %s1977 = scalar_select %p1976, %s23, 0
        %s1978 = scalar_lea.vmem %s5, %s1977
      $region68: #{conv_trans_bn_conv1.3} parent=31 // pred_fallthru
        _
    $region32: #{conv_trans_bn_conv1.3} parent=5 // pred_fallthru
      _
    %p1979 = scmp.le.s32.totalorder 2, %s12
    // Predicated region
    $region69: #{conv_trans_bn_conv1.3} parent=5 // pred_check
      %p1980 = pneg %p1979
    $region70: #{conv_trans_bn_conv1.3} parent=5 // pred_check_branch
      %1982 = sbr.rel (%p1980) target = $region72
    $region71: #{conv_trans_bn_conv1.3} parent=5 // pred_region
      %s1983 = ssub.s32 %s12, 2
      // Predicated region
      $region73: #{conv_trans_bn_conv1.3} parent=71 // pred_check
        %p1984 = pneg %p157
      $region74: #{conv_trans_bn_conv1.3} parent=71 // pred_check_branch
        %1986 = sbr.rel (%p1984) target = $region76
      $region75: #{conv_trans_bn_conv1.3} parent=71 // pred_region
        %s1987 = smul.u32 64, %s29
        %p1988 = scmp.lt.s32.totalorder %s28, 3
        %s1989 = scalar_select %p1988, %s28, 3
        %p1990 = scmp.lt.s32.totalorder %s1987, 63
        %s1991 = scalar_select %p1990, %s1987, 63
        %p1992 = scmp.lt.s32.totalorder %s27, 0
        %s1993 = scalar_select %p1992, %s27, 0
        %s1994 = sadd.s32 %s1993, %s1991
        %s1995 = smul.addr %s1989, 64
        %s1996 = sadd.s32 %s1994, %s1995
        %s1997 = smul.addr %s1996, 4
        %s1998 = scalar_lea.vmem %s3, %s1997
      $region76: #{conv_trans_bn_conv1.3} parent=71 // pred_fallthru
        _
    $region72: #{conv_trans_bn_conv1.3} parent=5 // pred_fallthru
      _
  $region6: #{conv_trans_bn_conv1.3} parent=0 // loop_footer
    %s16 = sadd.s32 1, %s12
  $region7: #{conv_trans_bn_conv1.3} parent=0 // loop_footer_branch
    %11 = sbr.rel target = $region3
  $region8: #{conv_trans_bn_conv1.3} parent=0 // loop_exit
    _

// kernel: conv_trans_bn_conv1.4
$region0: #{conv_trans_bn_conv1.4}
  #allocation0 [shape = 'u32[]', space=smem, size = 0x4, offset = 0x4, fixed_abs, tag = 'smem constant byte address 0x4 - core index']
  #allocation1 [shape = 'u32[144,128]{1,0:T(1,128)}', space=vmem, size = 0x12000, scoped, tag = 'internal scratch']
  #allocation2 [shape = 'f32[512,128]{1,0:T(8,128)}', space=vmem, size = 0x40000, scoped, tag = 'scratch operand']
  #allocation3 [shape = 'f32[1,128]{1,0:T(1,128)}', space=vmem, size = 0x200, scoped, tag = 'scratch operand']
  #allocation4 [shape = 'f32[1,128]{1,0:T(1,128)}', space=vmem, size = 0x200, scoped, tag = 'scratch operand']
  %s0 = inlined_call_operand.vmem [shape: bf16[4,512,128], index: 0, kind: input, shape index: {}]
  %s1 = inlined_call_operand.vmem [shape: f32[1,128], index: 1, kind: input, shape index: {}]
  %s2 = inlined_call_operand.vmem [shape: f32[1,128], index: 2, kind: input, shape index: {}]
  %s3 = inlined_call_operand.vmem [shape: f32[1,128], index: 3, kind: input, shape index: {}]
  %s4 = inlined_call_operand.vmem [shape: f32[1,128], index: 4, kind: input, shape index: {}]
  %s5 = inlined_call_operand.vmem [shape: bf16[128,128], index: 5, kind: input, shape index: {}]
  %s6 = inlined_call_operand.vmem [shape: f32[1,128], index: 6, kind: input, shape index: {}]
  %s7 = inlined_call_operand.vmem [shape: bf16[4,512,128], index: 7, kind: output, shape index: {0}]
  %s8 = inlined_call_operand.vmem [shape: f32[1,128], index: 8, kind: output, shape index: {1}]
  %s9 = inlined_call_operand.vmem [shape: f32[1,128], index: 9, kind: output, shape index: {2}]
  %10 = xla_tuple %s7, %s8, %s9
  %s11 = sld [smem:[#allocation0]]
  $region93: #{conv_trans_bn_conv1.4} parent=0
    _
  %s13 = ssub.s32 1, %s11
  %s14 = scalar_select 0, %s13, %s11
  loop: start=0, step=1, limit=6
  $region2: #{conv_trans_bn_conv1.4} parent=0 // loop_pre_header
    _
  $region3: #{conv_trans_bn_conv1.4} parent=0 // loop_header
    %s16 = sphi 0, %s20
    %p17 = scmp.ge.s32.totalorder %s16, 6
    %s23 = sphi 0, %s49
    %s24 = sphi 0, %s45
    %s25 = sphi 0, %s41
    %s26 = sphi 0, %s37
    %s27 = sphi 0, %s23
    %s28 = sphi 0, %s24
    %s29 = sphi 0, %s25
    %s30 = sphi 0, %s26
    %s31 = sphi 0, %s27
    %s32 = sphi 0, %s28
    %s33 = sphi 0, %s29
    %s34 = sphi 0, %s30
    %s56 = sphi 0, %s58
    %s59 = sphi 0, %s56
    %s60 = sphi 0, %s59
    %s76 = sphi 0, %s60
    %s82 = sphi 0, %s84
    %s85 = sphi 0, %s82
    %s86 = sphi 0, %s85
    %s102 = sphi 0, %s86
    %s108 = sphi 0, %s110
    %s111 = sphi 0, %s108
    %s112 = sphi 0, %s111
    %s128 = sphi 0, %s112
    %s134 = sphi 0, %s136
    %s137 = sphi 0, %s134
    %s138 = sphi 0, %s137
    %s154 = sphi 0, %s138
    %s160 = sphi 0, %s162
    %s163 = sphi 0, %s160
    %s164 = sphi 0, %s163
    %s180 = sphi 0, %s164
    %s188 = sphi 0, %s190
    %s191 = sphi 0, %s188
    %s192 = sphi 0, %s191
    %s208 = sphi 0, %s192
    %s214 = sphi 0, %s216
    %s217 = sphi 0, %s214
    %s218 = sphi 0, %s217
    %s234 = sphi 0, %s218
    %s244 = sphi 0, %s246
    %s247 = sphi 0, %s244
    %s248 = sphi 0, %s247
    %s264 = sphi 0, %s248
    %s270 = sphi 0, %s272
    %s273 = sphi 0, %s270
    %s274 = sphi 0, %s273
    %s290 = sphi 0, %s274
    %s296 = sphi 0, %s298
    %s299 = sphi 0, %s296
    %s300 = sphi 0, %s299
    %s316 = sphi 0, %s300
  $region4: #{conv_trans_bn_conv1.4} parent=0 // loop_header_branch
    %19 = sbr.rel (%p17) target = $region8
  $region5: #{conv_trans_bn_conv1.4} parent=0 // loop_body
    %s21 = ssub.s32 %s16, 1
    %s22 = ssub.s32 %s16, 2
    %s35 = sadd.s32 1, %s26
    %p36 = scmp.ge.s32.totalorder %s35, 1
    %s37 = scalar_select %p36, 0, %s35
    %s38 = sadd.s32 1, %s25
    %s39 = scalar_select %p36, %s38, %s25
    %p40 = scmp.ge.s32.totalorder %s39, 1
    %s41 = scalar_select %p40, 0, %s39
    %s42 = sadd.s32 1, %s24
    %s43 = scalar_select %p40, %s42, %s24
    %p44 = scmp.ge.s32.totalorder %s43, 4
    %s45 = scalar_select %p44, 0, %s43
    %s46 = sadd.s32 1, %s23
    %s47 = scalar_select %p44, %s46, %s23
    %p48 = scmp.ge.s32.totalorder %s47, 1
    %s49 = scalar_select %p48, 0, %s47
    %s50 = ssub.s32 %s24, %s45
    %s51 = ssub.s32 %s25, %s41
    %s52 = sor.u32 %s50, %s51
    %s53 = ssub.s32 %s26, %s37
    %s54 = sor.u32 %s52, %s53
    %p55 = scmp.eq.s32.totalorder %s54, 0
    %s57 = sadd.s32 %s56, 1
    %s58 = scalar_select %p55, %s56, %s57
    %p61 = pneg %p55
    %p62 = scmp.eq.s32.totalorder %s16, 3
    %p63 = por %p61, %p62
    %p64 = scmp.ne.s32.totalorder %s56, %s59
    %p65 = scmp.eq.s32.totalorder %s16, 0
    %p66 = por %p64, %p65
    %p67 = scmp.ne.s32.totalorder %s56, %s59
    %p68 = scmp.eq.s32.totalorder %s21, 3
    %p69 = por %p67, %p68
    %p70 = scmp.ne.s32.totalorder %s59, %s60
    %p71 = scmp.eq.s32.totalorder %s21, 0
    %p72 = por %p70, %p71
    %p73 = scmp.ne.s32.totalorder %s59, %s60
    %p74 = scmp.eq.s32.totalorder %s22, 3
    %p75 = por %p73, %p74
    %p77 = scmp.ne.s32.totalorder %s60, %s76
    %p78 = scmp.eq.s32.totalorder %s22, 0
    %p79 = por %p77, %p78
    %s80 = ssub.s32 %s26, %s37
    %p81 = scmp.eq.s32.totalorder %s80, 0
    %s83 = sadd.s32 %s82, 1
    %s84 = scalar_select %p81, %s82, %s83
    %p87 = pneg %p81
    %p88 = scmp.eq.s32.totalorder %s16, 3
    %p89 = por %p87, %p88
    %p90 = scmp.ne.s32.totalorder %s82, %s85
    %p91 = scmp.eq.s32.totalorder %s16, 0
    %p92 = por %p90, %p91
    %p93 = scmp.ne.s32.totalorder %s82, %s85
    %p94 = scmp.eq.s32.totalorder %s21, 3
    %p95 = por %p93, %p94
    %p96 = scmp.ne.s32.totalorder %s85, %s86
    %p97 = scmp.eq.s32.totalorder %s21, 0
    %p98 = por %p96, %p97
    %p99 = scmp.ne.s32.totalorder %s85, %s86
    %p100 = scmp.eq.s32.totalorder %s22, 3
    %p101 = por %p99, %p100
    %p103 = scmp.ne.s32.totalorder %s86, %s102
    %p104 = scmp.eq.s32.totalorder %s22, 0
    %p105 = por %p103, %p104
    %s106 = ssub.s32 %s26, %s37
    %p107 = scmp.eq.s32.totalorder %s106, 0
    %s109 = sadd.s32 %s108, 1
    %s110 = scalar_select %p107, %s108, %s109
    %p113 = pneg %p107
    %p114 = scmp.eq.s32.totalorder %s16, 3
    %p115 = por %p113, %p114
    %p116 = scmp.ne.s32.totalorder %s108, %s111
    %p117 = scmp.eq.s32.totalorder %s16, 0
    %p118 = por %p116, %p117
    %p119 = scmp.ne.s32.totalorder %s108, %s111
    %p120 = scmp.eq.s32.totalorder %s21, 3
    %p121 = por %p119, %p120
    %p122 = scmp.ne.s32.totalorder %s111, %s112
    %p123 = scmp.eq.s32.totalorder %s21, 0
    %p124 = por %p122, %p123
    %p125 = scmp.ne.s32.totalorder %s111, %s112
    %p126 = scmp.eq.s32.totalorder %s22, 3
    %p127 = por %p125, %p126
    %p129 = scmp.ne.s32.totalorder %s112, %s128
    %p130 = scmp.eq.s32.totalorder %s22, 0
    %p131 = por %p129, %p130
    %s132 = ssub.s32 %s26, %s37
    %p133 = scmp.eq.s32.totalorder %s132, 0
    %s135 = sadd.s32 %s134, 1
    %s136 = scalar_select %p133, %s134, %s135
    %p139 = pneg %p133
    %p140 = scmp.eq.s32.totalorder %s16, 3
    %p141 = por %p139, %p140
    %p142 = scmp.ne.s32.totalorder %s134, %s137
    %p143 = scmp.eq.s32.totalorder %s16, 0
    %p144 = por %p142, %p143
    %p145 = scmp.ne.s32.totalorder %s134, %s137
    %p146 = scmp.eq.s32.totalorder %s21, 3
    %p147 = por %p145, %p146
    %p148 = scmp.ne.s32.totalorder %s137, %s138
    %p149 = scmp.eq.s32.totalorder %s21, 0
    %p150 = por %p148, %p149
    %p151 = scmp.ne.s32.totalorder %s137, %s138
    %p152 = scmp.eq.s32.totalorder %s22, 3
    %p153 = por %p151, %p152
    %p155 = scmp.ne.s32.totalorder %s138, %s154
    %p156 = scmp.eq.s32.totalorder %s22, 0
    %p157 = por %p155, %p156
    %s158 = ssub.s32 %s26, %s37
    %p159 = scmp.eq.s32.totalorder %s158, 0
    %s161 = sadd.s32 %s160, 1
    %s162 = scalar_select %p159, %s160, %s161
    %p165 = pneg %p159
    %p166 = scmp.eq.s32.totalorder %s16, 3
    %p167 = por %p165, %p166
    %p168 = scmp.ne.s32.totalorder %s160, %s163
    %p169 = scmp.eq.s32.totalorder %s16, 0
    %p170 = por %p168, %p169
    %p171 = scmp.ne.s32.totalorder %s160, %s163
    %p172 = scmp.eq.s32.totalorder %s21, 3
    %p173 = por %p171, %p172
    %p174 = scmp.ne.s32.totalorder %s163, %s164
    %p175 = scmp.eq.s32.totalorder %s21, 0
    %p176 = por %p174, %p175
    %p177 = scmp.ne.s32.totalorder %s163, %s164
    %p178 = scmp.eq.s32.totalorder %s22, 3
    %p179 = por %p177, %p178
    %p181 = scmp.ne.s32.totalorder %s164, %s180
    %p182 = scmp.eq.s32.totalorder %s22, 0
    %p183 = por %p181, %p182
    %s184 = ssub.s32 %s26, %s37
    %s185 = ssub.s32 %s23, %s49
    %s186 = sor.u32 %s184, %s185
    %p187 = scmp.eq.s32.totalorder %s186, 0
    %s189 = sadd.s32 %s188, 1
    %s190 = scalar_select %p187, %s188, %s189
    %p193 = pneg %p187
    %p194 = scmp.eq.s32.totalorder %s16, 3
    %p195 = por %p193, %p194
    %p196 = scmp.ne.s32.totalorder %s188, %s191
    %p197 = scmp.eq.s32.totalorder %s16, 0
    %p198 = por %p196, %p197
    %p199 = scmp.ne.s32.totalorder %s188, %s191
    %p200 = scmp.eq.s32.totalorder %s21, 3
    %p201 = por %p199, %p200
    %p202 = scmp.ne.s32.totalorder %s191, %s192
    %p203 = scmp.eq.s32.totalorder %s21, 0
    %p204 = por %p202, %p203
    %p205 = scmp.ne.s32.totalorder %s191, %s192
    %p206 = scmp.eq.s32.totalorder %s22, 3
    %p207 = por %p205, %p206
    %p209 = scmp.ne.s32.totalorder %s192, %s208
    %p210 = scmp.eq.s32.totalorder %s22, 0
    %p211 = por %p209, %p210
    %s212 = ssub.s32 %s23, %s49
    %p213 = scmp.eq.s32.totalorder %s212, 0
    %s215 = sadd.s32 %s214, 1
    %s216 = scalar_select %p213, %s214, %s215
    %p219 = pneg %p213
    %p220 = scmp.eq.s32.totalorder %s16, 3
    %p221 = por %p219, %p220
    %p222 = scmp.ne.s32.totalorder %s214, %s217
    %p223 = scmp.eq.s32.totalorder %s16, 0
    %p224 = por %p222, %p223
    %p225 = scmp.ne.s32.totalorder %s214, %s217
    %p226 = scmp.eq.s32.totalorder %s21, 3
    %p227 = por %p225, %p226
    %p228 = scmp.ne.s32.totalorder %s217, %s218
    %p229 = scmp.eq.s32.totalorder %s21, 0
    %p230 = por %p228, %p229
    %p231 = scmp.ne.s32.totalorder %s217, %s218
    %p232 = scmp.eq.s32.totalorder %s22, 3
    %p233 = por %p231, %p232
    %p235 = scmp.ne.s32.totalorder %s218, %s234
    %p236 = scmp.eq.s32.totalorder %s22, 0
    %p237 = por %p235, %p236
    %s238 = ssub.s32 %s24, %s45
    %s239 = ssub.s32 %s25, %s41
    %s240 = sor.u32 %s238, %s239
    %s241 = ssub.s32 %s23, %s49
    %s242 = sor.u32 %s240, %s241
    %p243 = scmp.eq.s32.totalorder %s242, 0
    %s245 = sadd.s32 %s244, 1
    %s246 = scalar_select %p243, %s244, %s245
    %p249 = pneg %p243
    %p250 = scmp.eq.s32.totalorder %s16, 3
    %p251 = por %p249, %p250
    %p252 = scmp.ne.s32.totalorder %s244, %s247
    %p253 = scmp.eq.s32.totalorder %s16, 0
    %p254 = por %p252, %p253
    %p255 = scmp.ne.s32.totalorder %s244, %s247
    %p256 = scmp.eq.s32.totalorder %s21, 3
    %p257 = por %p255, %p256
    %p258 = scmp.ne.s32.totalorder %s247, %s248
    %p259 = scmp.eq.s32.totalorder %s21, 0
    %p260 = por %p258, %p259
    %p261 = scmp.ne.s32.totalorder %s247, %s248
    %p262 = scmp.eq.s32.totalorder %s22, 3
    %p263 = por %p261, %p262
    %p265 = scmp.ne.s32.totalorder %s248, %s264
    %p266 = scmp.eq.s32.totalorder %s22, 0
    %p267 = por %p265, %p266
    %s268 = ssub.s32 %s23, %s49
    %p269 = scmp.eq.s32.totalorder %s268, 0
    %s271 = sadd.s32 %s270, 1
    %s272 = scalar_select %p269, %s270, %s271
    %p275 = pneg %p269
    %p276 = scmp.eq.s32.totalorder %s16, 3
    %p277 = por %p275, %p276
    %p278 = scmp.ne.s32.totalorder %s270, %s273
    %p279 = scmp.eq.s32.totalorder %s16, 0
    %p280 = por %p278, %p279
    %p281 = scmp.ne.s32.totalorder %s270, %s273
    %p282 = scmp.eq.s32.totalorder %s21, 3
    %p283 = por %p281, %p282
    %p284 = scmp.ne.s32.totalorder %s273, %s274
    %p285 = scmp.eq.s32.totalorder %s21, 0
    %p286 = por %p284, %p285
    %p287 = scmp.ne.s32.totalorder %s273, %s274
    %p288 = scmp.eq.s32.totalorder %s22, 3
    %p289 = por %p287, %p288
    %p291 = scmp.ne.s32.totalorder %s274, %s290
    %p292 = scmp.eq.s32.totalorder %s22, 0
    %p293 = por %p291, %p292
    %s294 = ssub.s32 %s23, %s49
    %p295 = scmp.eq.s32.totalorder %s294, 0
    %s297 = sadd.s32 %s296, 1
    %s298 = scalar_select %p295, %s296, %s297
    %p301 = pneg %p295
    %p302 = scmp.eq.s32.totalorder %s16, 3
    %p303 = por %p301, %p302
    %p304 = scmp.ne.s32.totalorder %s296, %s299
    %p305 = scmp.eq.s32.totalorder %s16, 0
    %p306 = por %p304, %p305
    %p307 = scmp.ne.s32.totalorder %s296, %s299
    %p308 = scmp.eq.s32.totalorder %s21, 3
    %p309 = por %p307, %p308
    %p310 = scmp.ne.s32.totalorder %s299, %s300
    %p311 = scmp.eq.s32.totalorder %s21, 0
    %p312 = por %p310, %p311
    %p313 = scmp.ne.s32.totalorder %s299, %s300
    %p314 = scmp.eq.s32.totalorder %s22, 3
    %p315 = por %p313, %p314
    %p317 = scmp.ne.s32.totalorder %s300, %s316
    %p318 = scmp.eq.s32.totalorder %s22, 0
    %p319 = por %p317, %p318
    %p320 = scmp.le.s32.totalorder 1, %s16
    %p321 = scmp.lt.s32.totalorder %s16, 5
    %p322 = pnand %p320, %p321
    %p323 = pneg %p322
    // Predicated region
    $region9: #{conv_trans_bn_conv1.4} parent=5 // pred_check
      _
    $region10: #{conv_trans_bn_conv1.4} parent=5 // pred_check_branch
      %325 = sbr.rel (%p322) target = $region12
    $region11: #{conv_trans_bn_conv1.4} parent=5 // pred_region
      %s326 = ssub.s32 %s16, 1
      // Predicated region
      $region13: #{conv_trans_bn_conv1.4} parent=11 // pred_check
        %p327 = pneg %p98
      $region14: #{conv_trans_bn_conv1.4} parent=11 // pred_check_branch
        %329 = sbr.rel (%p327) target = $region16
      $region15: #{conv_trans_bn_conv1.4} parent=11 // pred_region
        %p330 = scmp.lt.s32.totalorder %s30, 0
        %s331 = scalar_select %p330, %s30, 0
        %s332 = scalar_lea.vmem %s1, %s331
      $region16: #{conv_trans_bn_conv1.4} parent=11 // pred_fallthru
        _
      // Predicated region
      $region17: #{conv_trans_bn_conv1.4} parent=11 // pred_check
        %p333 = pneg %p124
      $region18: #{conv_trans_bn_conv1.4} parent=11 // pred_check_branch
        %335 = sbr.rel (%p333) target = $region20
      $region19: #{conv_trans_bn_conv1.4} parent=11 // pred_region
        %p336 = scmp.lt.s32.totalorder %s30, 0
        %s337 = scalar_select %p336, %s30, 0
        %s338 = scalar_lea.vmem %s2, %s337
      $region20: #{conv_trans_bn_conv1.4} parent=11 // pred_fallthru
        _
      // Predicated region
      $region21: #{conv_trans_bn_conv1.4} parent=11 // pred_check
        %p339 = pneg %p150
      $region22: #{conv_trans_bn_conv1.4} parent=11 // pred_check_branch
        %341 = sbr.rel (%p339) target = $region24
      $region23: #{conv_trans_bn_conv1.4} parent=11 // pred_region
        %p342 = scmp.lt.s32.totalorder %s30, 0
        %s343 = scalar_select %p342, %s30, 0
        %s344 = scalar_lea.vmem %s3, %s343
      $region24: #{conv_trans_bn_conv1.4} parent=11 // pred_fallthru
        _
      // Predicated region
      $region25: #{conv_trans_bn_conv1.4} parent=11 // pred_check
        %p345 = pneg %p176
      $region26: #{conv_trans_bn_conv1.4} parent=11 // pred_check_branch
        %347 = sbr.rel (%p345) target = $region28
      $region27: #{conv_trans_bn_conv1.4} parent=11 // pred_region
        %p348 = scmp.lt.s32.totalorder %s30, 0
        %s349 = scalar_select %p348, %s30, 0
        %s350 = scalar_lea.vmem %s4, %s349
      $region28: #{conv_trans_bn_conv1.4} parent=11 // pred_fallthru
        _
      // Predicated region
      $region29: #{conv_trans_bn_conv1.4} parent=11 // pred_check
        %p351 = pneg %p204
      $region30: #{conv_trans_bn_conv1.4} parent=11 // pred_check_branch
        %353 = sbr.rel (%p351) target = $region32
      $region31: #{conv_trans_bn_conv1.4} parent=11 // pred_region
        %s354 = smul.u32 16, %s30
        %p355 = scmp.lt.s32.totalorder %s354, 15
        %s356 = scalar_select %p355, %s354, 15
        %p357 = scmp.lt.s32.totalorder %s27, 0
        %s358 = scalar_select %p357, %s27, 0
        %s359 = sadd.s32 %s358, %s356
        %s360 = smul.addr %s359, 4
        %s361 = scalar_lea.vmem %s5, %s360
        %s362 = smul.u32 16, %s30
      $region32: #{conv_trans_bn_conv1.4} parent=11 // pred_fallthru
        _
      // Predicated region
      $region33: #{conv_trans_bn_conv1.4} parent=11 // pred_check
        %p363 = pneg %p230
      $region34: #{conv_trans_bn_conv1.4} parent=11 // pred_check_branch
        %365 = sbr.rel (%p363) target = $region36
      $region35: #{conv_trans_bn_conv1.4} parent=11 // pred_region
        %p366 = scmp.lt.s32.totalorder %s27, 0
        %s367 = scalar_select %p366, %s27, 0
        %s368 = scalar_lea.vmem %s6, %s367
      $region36: #{conv_trans_bn_conv1.4} parent=11 // pred_fallthru
        _
    $region12: #{conv_trans_bn_conv1.4} parent=5 // pred_fallthru
      _
    %p369 = scmp.lt.s32.totalorder %s16, 4
    // Predicated region
    $region37: #{conv_trans_bn_conv1.4} parent=5 // pred_check
      %p370 = pneg %p369
    $region38: #{conv_trans_bn_conv1.4} parent=5 // pred_check_branch
      %372 = sbr.rel (%p370) target = $region40
    $region39: #{conv_trans_bn_conv1.4} parent=5 // pred_region
      // Predicated region
      $region41: #{conv_trans_bn_conv1.4} parent=39 // pred_check
        %p373 = pneg %p66
      $region42: #{conv_trans_bn_conv1.4} parent=39 // pred_check_branch
        %375 = sbr.rel (%p373) target = $region44
      $region43: #{conv_trans_bn_conv1.4} parent=39 // pred_region
        %s376 = smul.u32 64, %s25
        %p377 = scmp.lt.s32.totalorder %s24, 3
        %s378 = scalar_select %p377, %s24, 3
        %p379 = scmp.lt.s32.totalorder %s376, 63
        %s380 = scalar_select %p379, %s376, 63
        %p381 = scmp.lt.s32.totalorder %s26, 0
        %s382 = scalar_select %p381, %s26, 0
        %s383 = sadd.s32 %s382, %s380
        %s384 = smul.addr %s378, 64
        %s385 = sadd.s32 %s383, %s384
        %s386 = smul.addr %s385, 4
        %s387 = scalar_lea.vmem %s0, %s386
        %s388 = smul.u32 64, %s25
      $region44: #{conv_trans_bn_conv1.4} parent=39 // pred_fallthru
        _
    $region40: #{conv_trans_bn_conv1.4} parent=5 // pred_fallthru
      _
    %p389 = scmp.le.s32.totalorder 1, %s16
    %p390 = scmp.lt.s32.totalorder %s16, 5
    %p391 = pnand %p389, %p390
    %p392 = pneg %p391
    // Predicated region
    $region45: #{conv_trans_bn_conv1.4} parent=5 // pred_check
      _
    $region46: #{conv_trans_bn_conv1.4} parent=5 // pred_check_branch
      %394 = sbr.rel (%p391) target = $region48
    $region47: #{conv_trans_bn_conv1.4} parent=5 // pred_region
      %s395 = ssub.s32 %s16, 1
      %s396 = smul.u32 64, %s29
      %p397 = scmp.lt.s32.totalorder %s28, 3
      %s398 = scalar_select %p397, %s28, 3
      %p399 = scmp.lt.s32.totalorder %s396, 63
      %s400 = scalar_select %p399, %s396, 63
      %p401 = scmp.lt.s32.totalorder %s30, 0
      %s402 = scalar_select %p401, %s30, 0
      %s403 = sadd.s32 %s402, %s400
      %s404 = smul.addr %s398, 64
      %s405 = sadd.s32 %s403, %s404
      %s406 = smul.addr %s405, 4
      %s407 = scalar_lea.vmem %s0, %s406
      %p408 = pneg %p72
      %p409 = pneg %p69
      %p410 = scmp.lt.s32.totalorder %s30, 0
      %s411 = scalar_select %p410, %s30, 0
      %s412 = scalar_lea.vmem %s1, %s411
      %p413 = pneg %p98
      %p414 = pneg %p95
      %p415 = scmp.lt.s32.totalorder %s30, 0
      %s416 = scalar_select %p415, %s30, 0
      %s417 = scalar_lea.vmem %s2, %s416
      %p418 = pneg %p124
      %p419 = pneg %p121
      %p420 = scmp.lt.s32.totalorder %s30, 0
      %s421 = scalar_select %p420, %s30, 0
      %s422 = scalar_lea.vmem %s3, %s421
      %p423 = pneg %p150
      %p424 = pneg %p147
      %p425 = scmp.lt.s32.totalorder %s30, 0
      %s426 = scalar_select %p425, %s30, 0
      %s427 = scalar_lea.vmem %s4, %s426
      %p428 = pneg %p176
      %p429 = pneg %p173
      %s430 = smul.u32 16, %s30
      %p431 = scmp.lt.s32.totalorder %s430, 15
      %s432 = scalar_select %p431, %s430, 15
      %p433 = scmp.lt.s32.totalorder %s27, 0
      %s434 = scalar_select %p433, %s27, 0
      %s435 = sadd.s32 %s434, %s432
      %s436 = smul.addr %s435, 4
      %s437 = scalar_lea.vmem %s5, %s436
      %p438 = pneg %p204
      %p439 = pneg %p201
      %p440 = scmp.lt.s32.totalorder %s27, 0
      %s441 = scalar_select %p440, %s27, 0
      %s442 = scalar_lea.vmem %s6, %s441
      %p443 = pneg %p230
      %p444 = pneg %p227
      %p445 = pneg %p260
      %p446 = pneg %p257
      %s447 = smul.u32 64, %s29
      %p448 = scmp.lt.s32.totalorder %s28, 3
      %s449 = scalar_select %p448, %s28, 3
      %p450 = scmp.lt.s32.totalorder %s447, 63
      %s451 = scalar_select %p450, %s447, 63
      %p452 = scmp.lt.s32.totalorder %s27, 0
      %s453 = scalar_select %p452, %s27, 0
      %s454 = sadd.s32 %s453, %s451
      %s455 = smul.addr %s449, 64
      %s456 = sadd.s32 %s454, %s455
      %s457 = smul.addr %s456, 4
      %s458 = scalar_lea.vmem %s7, %s457
      %p459 = pneg %p286
      %p460 = pneg %p283
      %p461 = scmp.lt.s32.totalorder %s27, 0
      %s462 = scalar_select %p461, %s27, 0
      %s463 = scalar_lea.vmem %s8, %s462
      %p464 = pneg %p312
      %p465 = pneg %p309
      %p466 = scmp.lt.s32.totalorder %s27, 0
      %s467 = scalar_select %p466, %s27, 0
      %s468 = scalar_lea.vmem %s9, %s467
      %s469 = smul.u32 64, %s29
      %p470 = scmp.lt.s32.totalorder %s28, 3
      %s471 = scalar_select %p470, %s28, 3
      %p472 = scmp.lt.s32.totalorder %s469, 63
      %s473 = scalar_select %p472, %s469, 63
      %p474 = scmp.lt.s32.totalorder %s30, 0
      %s475 = scalar_select %p474, %s30, 0
      %s476 = sadd.s32 %s475, %s473
      %s477 = smul.addr %s471, 64
      %s478 = sadd.s32 %s476, %s477
      %s479 = smul.addr %s478, 4
      %s480 = scalar_lea.vmem %s0, %s479
      %s481 = smul.u32 64, %s29
      %p482 = scmp.lt.s32.totalorder %s30, 0
      %s483 = scalar_select %p482, %s30, 0
      %s484 = scalar_lea.vmem %s1, %s483
      %p485 = scmp.lt.s32.totalorder %s30, 0
      %s486 = scalar_select %p485, %s30, 0
      %s487 = scalar_lea.vmem %s2, %s486
      %p488 = scmp.lt.s32.totalorder %s30, 0
      %s489 = scalar_select %p488, %s30, 0
      %s490 = scalar_lea.vmem %s3, %s489
      %p491 = scmp.lt.s32.totalorder %s30, 0
      %s492 = scalar_select %p491, %s30, 0
      %s493 = scalar_lea.vmem %s4, %s492
      %s494 = smul.u32 16, %s30
      %p495 = scmp.lt.s32.totalorder %s494, 15
      %s496 = scalar_select %p495, %s494, 15
      %p497 = scmp.lt.s32.totalorder %s27, 0
      %s498 = scalar_select %p497, %s27, 0
      %s499 = sadd.s32 %s498, %s496
      %s500 = smul.addr %s499, 4
      %s501 = scalar_lea.vmem %s5, %s500
      %s502 = smul.u32 16, %s30
      %p503 = scmp.lt.s32.totalorder %s27, 0
      %s504 = scalar_select %p503, %s27, 0
      %s505 = scalar_lea.vmem %s6, %s504
      %s506 = smul.u32 64, %s29
      %p507 = scmp.lt.s32.totalorder %s28, 3
      %s508 = scalar_select %p507, %s28, 3
      %p509 = scmp.lt.s32.totalorder %s506, 63
      %s510 = scalar_select %p509, %s506, 63
      %p511 = scmp.lt.s32.totalorder %s27, 0
      %s512 = scalar_select %p511, %s27, 0
      %s513 = sadd.s32 %s512, %s510
      %s514 = smul.addr %s508, 64
      %s515 = sadd.s32 %s513, %s514
      %s516 = smul.addr %s515, 4
      %s517 = scalar_lea.vmem %s7, %s516
      %s518 = smul.u32 64, %s29
      %p519 = scmp.lt.s32.totalorder %s27, 0
      %s520 = scalar_select %p519, %s27, 0
      %s521 = scalar_lea.vmem %s8, %s520
      %p522 = scmp.lt.s32.totalorder %s27, 0
      %s523 = scalar_select %p522, %s27, 0
      %s524 = scalar_lea.vmem %s9, %s523
      %p526 = scmp.eq.s32.totalorder %s28, 0
      %p527 = scmp.eq.s32.totalorder %s29, 0
      %p528 = pnand %p526, %p527
      %p529 = pneg %p528
      %p530 = scmp.eq.s32.totalorder %s30, 0
      %p531 = pnand %p529, %p530
      %p532 = pneg %p531
      // Predicated region
      $region49: #{conv_trans_bn_conv1.4} parent=47 // pred_check
        _
      $region50: #{conv_trans_bn_conv1.4} parent=47 // pred_check_branch
        %534 = sbr.rel (%p531) target = $region52
      $region51: #{conv_trans_bn_conv1.4} parent=47 // pred_region
        %535 = vst [vmem:[#allocation3] sm:$0x1] 0.0
        %536 = vst [vmem:[#allocation4] sm:$0x1] 0.0
      $region52: #{conv_trans_bn_conv1.4} parent=47 // pred_fallthru
        _
      // Predicated region
      $region53: #{conv_trans_bn_conv1.4} parent=47 // pred_check
        %p537 = pneg %p530
      $region54: #{conv_trans_bn_conv1.4} parent=47 // pred_check_branch
        %539 = sbr.rel (%p537) target = $region56
      $region55: #{conv_trans_bn_conv1.4} parent=47 // pred_region
        %540 = vst [vmem:[#allocation2] sm:$0xff] 0.0
        %541 = vst [vmem:[#allocation2 + $0x8] sm:$0xff] 0.0
        %542 = vst [vmem:[#allocation2 + $0x10] sm:$0xff] 0.0
        %543 = vst [vmem:[#allocation2 + $0x18] sm:$0xff] 0.0
        %544 = vst [vmem:[#allocation2 + $0x20] sm:$0xff] 0.0
        %545 = vst [vmem:[#allocation2 + $0x28] sm:$0xff] 0.0
        %546 = vst [vmem:[#allocation2 + $0x30] sm:$0xff] 0.0
        %547 = vst [vmem:[#allocation2 + $0x38] sm:$0xff] 0.0
        %548 = vst [vmem:[#allocation2 + $0x40] sm:$0xff] 0.0
        %549 = vst [vmem:[#allocation2 + $0x48] sm:$0xff] 0.0
        %550 = vst [vmem:[#allocation2 + $0x50] sm:$0xff] 0.0
        %551 = vst [vmem:[#allocation2 + $0x58] sm:$0xff] 0.0
        %552 = vst [vmem:[#allocation2 + $0x60] sm:$0xff] 0.0
        %553 = vst [vmem:[#allocation2 + $0x68] sm:$0xff] 0.0
        %554 = vst [vmem:[#allocation2 + $0x70] sm:$0xff] 0.0
        %555 = vst [vmem:[#allocation2 + $0x78] sm:$0xff] 0.0
        %556 = vst [vmem:[#allocation2 + $0x80] sm:$0xff] 0.0
        %557 = vst [vmem:[#allocation2 + $0x88] sm:$0xff] 0.0
        %558 = vst [vmem:[#allocation2 + $0x90] sm:$0xff] 0.0
        %559 = vst [vmem:[#allocation2 + $0x98] sm:$0xff] 0.0
        %560 = vst [vmem:[#allocation2 + $0xa0] sm:$0xff] 0.0
        %561 = vst [vmem:[#allocation2 + $0xa8] sm:$0xff] 0.0
        %562 = vst [vmem:[#allocation2 + $0xb0] sm:$0xff] 0.0
        %563 = vst [vmem:[#allocation2 + $0xb8] sm:$0xff] 0.0
        %564 = vst [vmem:[#allocation2 + $0xc0] sm:$0xff] 0.0
        %565 = vst [vmem:[#allocation2 + $0xc8] sm:$0xff] 0.0
        %566 = vst [vmem:[#allocation2 + $0xd0] sm:$0xff] 0.0
        %567 = vst [vmem:[#allocation2 + $0xd8] sm:$0xff] 0.0
        %568 = vst [vmem:[#allocation2 + $0xe0] sm:$0xff] 0.0
        %569 = vst [vmem:[#allocation2 + $0xe8] sm:$0xff] 0.0
        %570 = vst [vmem:[#allocation2 + $0xf0] sm:$0xff] 0.0
        %571 = vst [vmem:[#allocation2 + $0xf8] sm:$0xff] 0.0
        %572 = vst [vmem:[#allocation2 + $0x100] sm:$0xff] 0.0
        %573 = vst [vmem:[#allocation2 + $0x108] sm:$0xff] 0.0
        %574 = vst [vmem:[#allocation2 + $0x110] sm:$0xff] 0.0
        %575 = vst [vmem:[#allocation2 + $0x118] sm:$0xff] 0.0
        %576 = vst [vmem:[#allocation2 + $0x120] sm:$0xff] 0.0
        %577 = vst [vmem:[#allocation2 + $0x128] sm:$0xff] 0.0
        %578 = vst [vmem:[#allocation2 + $0x130] sm:$0xff] 0.0
        %579 = vst [vmem:[#allocation2 + $0x138] sm:$0xff] 0.0
        %580 = vst [vmem:[#allocation2 + $0x140] sm:$0xff] 0.0
        %581 = vst [vmem:[#allocation2 + $0x148] sm:$0xff] 0.0
        %582 = vst [vmem:[#allocation2 + $0x150] sm:$0xff] 0.0
        %583 = vst [vmem:[#allocation2 + $0x158] sm:$0xff] 0.0
        %584 = vst [vmem:[#allocation2 + $0x160] sm:$0xff] 0.0
        %585 = vst [vmem:[#allocation2 + $0x168] sm:$0xff] 0.0
        %586 = vst [vmem:[#allocation2 + $0x170] sm:$0xff] 0.0
        %587 = vst [vmem:[#allocation2 + $0x178] sm:$0xff] 0.0
        %588 = vst [vmem:[#allocation2 + $0x180] sm:$0xff] 0.0
        %589 = vst [vmem:[#allocation2 + $0x188] sm:$0xff] 0.0
        %590 = vst [vmem:[#allocation2 + $0x190] sm:$0xff] 0.0
        %591 = vst [vmem:[#allocation2 + $0x198] sm:$0xff] 0.0
        %592 = vst [vmem:[#allocation2 + $0x1a0] sm:$0xff] 0.0
        %593 = vst [vmem:[#allocation2 + $0x1a8] sm:$0xff] 0.0
        %594 = vst [vmem:[#allocation2 + $0x1b0] sm:$0xff] 0.0
        %595 = vst [vmem:[#allocation2 + $0x1b8] sm:$0xff] 0.0
        %596 = vst [vmem:[#allocation2 + $0x1c0] sm:$0xff] 0.0
        %597 = vst [vmem:[#allocation2 + $0x1c8] sm:$0xff] 0.0
        %598 = vst [vmem:[#allocation2 + $0x1d0] sm:$0xff] 0.0
        %599 = vst [vmem:[#allocation2 + $0x1d8] sm:$0xff] 0.0
        %600 = vst [vmem:[#allocation2 + $0x1e0] sm:$0xff] 0.0
        %601 = vst [vmem:[#allocation2 + $0x1e8] sm:$0xff] 0.0
        %602 = vst [vmem:[#allocation2 + $0x1f0] sm:$0xff] 0.0
        %603 = vst [vmem:[#allocation2 + $0x1f8] sm:$0xff] 0.0
      $region56: #{conv_trans_bn_conv1.4} parent=47 // pred_fallthru
        _
      %v604 = vld [vmem:[%s480] sm:$0xf]
      %v605 = vld [vmem:[%s480 + $0x4] sm:$0xf]
      %v606 = vld [vmem:[%s480 + $0x8] sm:$0xf]
      %v607 = vld [vmem:[%s480 + $0xc] sm:$0xf]
      %v608 = vld [vmem:[%s480 + $0x10] sm:$0xf]
      %v609 = vld [vmem:[%s480 + $0x14] sm:$0xf]
      %v610 = vld [vmem:[%s480 + $0x18] sm:$0xf]
      %v611 = vld [vmem:[%s480 + $0x1c] sm:$0xf]
      %v612 = vld [vmem:[%s480 + $0x20] sm:$0xf]
      %v613 = vld [vmem:[%s480 + $0x24] sm:$0xf]
      %v614 = vld [vmem:[%s480 + $0x28] sm:$0xf]
      %v615 = vld [vmem:[%s480 + $0x2c] sm:$0xf]
      %v616 = vld [vmem:[%s480 + $0x30] sm:$0xf]
      %v617 = vld [vmem:[%s480 + $0x34] sm:$0xf]
      %v618 = vld [vmem:[%s480 + $0x38] sm:$0xf]
      %v619 = vld [vmem:[%s480 + $0x3c] sm:$0xf]
      %v620 = vld [vmem:[%s480 + $0x40] sm:$0xf]
      %v621 = vld [vmem:[%s480 + $0x44] sm:$0xf]
      %v622 = vld [vmem:[%s480 + $0x48] sm:$0xf]
      %v623 = vld [vmem:[%s480 + $0x4c] sm:$0xf]
      %v624 = vld [vmem:[%s480 + $0x50] sm:$0xf]
      %v625 = vld [vmem:[%s480 + $0x54] sm:$0xf]
      %v626 = vld [vmem:[%s480 + $0x58] sm:$0xf]
      %v627 = vld [vmem:[%s480 + $0x5c] sm:$0xf]
      %v628 = vld [vmem:[%s480 + $0x60] sm:$0xf]
      %v629 = vld [vmem:[%s480 + $0x64] sm:$0xf]
      %v630 = vld [vmem:[%s480 + $0x68] sm:$0xf]
      %v631 = vld [vmem:[%s480 + $0x6c] sm:$0xf]
      %v632 = vld [vmem:[%s480 + $0x70] sm:$0xf]
      %v633 = vld [vmem:[%s480 + $0x74] sm:$0xf]
      %v634 = vld [vmem:[%s480 + $0x78] sm:$0xf]
      %v635 = vld [vmem:[%s480 + $0x7c] sm:$0xf]
      %v636 = vld [vmem:[%s480 + $0x80] sm:$0xf]
      %v637 = vld [vmem:[%s480 + $0x84] sm:$0xf]
      %v638 = vld [vmem:[%s480 + $0x88] sm:$0xf]
      %v639 = vld [vmem:[%s480 + $0x8c] sm:$0xf]
      %v640 = vld [vmem:[%s480 + $0x90] sm:$0xf]
      %v641 = vld [vmem:[%s480 + $0x94] sm:$0xf]
      %v642 = vld [vmem:[%s480 + $0x98] sm:$0xf]
      %v643 = vld [vmem:[%s480 + $0x9c] sm:$0xf]
      %v644 = vld [vmem:[%s480 + $0xa0] sm:$0xf]
      %v645 = vld [vmem:[%s480 + $0xa4] sm:$0xf]
      %v646 = vld [vmem:[%s480 + $0xa8] sm:$0xf]
      %v647 = vld [vmem:[%s480 + $0xac] sm:$0xf]
      %v648 = vld [vmem:[%s480 + $0xb0] sm:$0xf]
      %v649 = vld [vmem:[%s480 + $0xb4] sm:$0xf]
      %v650 = vld [vmem:[%s480 + $0xb8] sm:$0xf]
      %v651 = vld [vmem:[%s480 + $0xbc] sm:$0xf]
      %v652 = vld [vmem:[%s480 + $0xc0] sm:$0xf]
      %v653 = vld [vmem:[%s480 + $0xc4] sm:$0xf]
      %v654 = vld [vmem:[%s480 + $0xc8] sm:$0xf]
      %v655 = vld [vmem:[%s480 + $0xcc] sm:$0xf]
      %v656 = vld [vmem:[%s480 + $0xd0] sm:$0xf]
      %v657 = vld [vmem:[%s480 + $0xd4] sm:$0xf]
      %v658 = vld [vmem:[%s480 + $0xd8] sm:$0xf]
      %v659 = vld [vmem:[%s480 + $0xdc] sm:$0xf]
      %v660 = vld [vmem:[%s480 + $0xe0] sm:$0xf]
      %v661 = vld [vmem:[%s480 + $0xe4] sm:$0xf]
      %v662 = vld [vmem:[%s480 + $0xe8] sm:$0xf]
      %v663 = vld [vmem:[%s480 + $0xec] sm:$0xf]
      %v664 = vld [vmem:[%s480 + $0xf0] sm:$0xf]
      %v665 = vld [vmem:[%s480 + $0xf4] sm:$0xf]
      %v666 = vld [vmem:[%s480 + $0xf8] sm:$0xf]
      %v667 = vld [vmem:[%s480 + $0xfc] sm:$0xf]
      %v668 = vunpack.c.l.bf16 %v604
      %v669 = vunpack.c.l.bf16 %v605
      %v670 = vunpack.c.l.bf16 %v606
      %v671 = vunpack.c.l.bf16 %v607
      %v672 = vunpack.c.l.bf16 %v608
      %v673 = vunpack.c.l.bf16 %v609
      %v674 = vunpack.c.l.bf16 %v610
      %v675 = vunpack.c.l.bf16 %v611
      %v676 = vunpack.c.l.bf16 %v612
      %v677 = vunpack.c.l.bf16 %v613
      %v678 = vunpack.c.l.bf16 %v614
      %v679 = vunpack.c.l.bf16 %v615
      %v680 = vunpack.c.l.bf16 %v616
      %v681 = vunpack.c.l.bf16 %v617
      %v682 = vunpack.c.l.bf16 %v618
      %v683 = vunpack.c.l.bf16 %v619
      %v684 = vunpack.c.l.bf16 %v620
      %v685 = vunpack.c.l.bf16 %v621
      %v686 = vunpack.c.l.bf16 %v622
      %v687 = vunpack.c.l.bf16 %v623
      %v688 = vunpack.c.l.bf16 %v624
      %v689 = vunpack.c.l.bf16 %v625
      %v690 = vunpack.c.l.bf16 %v626
      %v691 = vunpack.c.l.bf16 %v627
      %v692 = vunpack.c.l.bf16 %v628
      %v693 = vunpack.c.l.bf16 %v629
      %v694 = vunpack.c.l.bf16 %v630
      %v695 = vunpack.c.l.bf16 %v631
      %v696 = vunpack.c.l.bf16 %v632
      %v697 = vunpack.c.l.bf16 %v633
      %v698 = vunpack.c.l.bf16 %v634
      %v699 = vunpack.c.l.bf16 %v635
      %v700 = vunpack.c.l.bf16 %v636
      %v701 = vunpack.c.l.bf16 %v637
      %v702 = vunpack.c.l.bf16 %v638
      %v703 = vunpack.c.l.bf16 %v639
      %v704 = vunpack.c.l.bf16 %v640
      %v705 = vunpack.c.l.bf16 %v641
      %v706 = vunpack.c.l.bf16 %v642
      %v707 = vunpack.c.l.bf16 %v643
      %v708 = vunpack.c.l.bf16 %v644
      %v709 = vunpack.c.l.bf16 %v645
      %v710 = vunpack.c.l.bf16 %v646
      %v711 = vunpack.c.l.bf16 %v647
      %v712 = vunpack.c.l.bf16 %v648
      %v713 = vunpack.c.l.bf16 %v649
      %v714 = vunpack.c.l.bf16 %v650
      %v715 = vunpack.c.l.bf16 %v651
      %v716 = vunpack.c.l.bf16 %v652
      %v717 = vunpack.c.l.bf16 %v653
      %v718 = vunpack.c.l.bf16 %v654
      %v719 = vunpack.c.l.bf16 %v655
      %v720 = vunpack.c.l.bf16 %v656
      %v721 = vunpack.c.l.bf16 %v657
      %v722 = vunpack.c.l.bf16 %v658
      %v723 = vunpack.c.l.bf16 %v659
      %v724 = vunpack.c.l.bf16 %v660
      %v725 = vunpack.c.l.bf16 %v661
      %v726 = vunpack.c.l.bf16 %v662
      %v727 = vunpack.c.l.bf16 %v663
      %v728 = vunpack.c.l.bf16 %v664
      %v729 = vunpack.c.l.bf16 %v665
      %v730 = vunpack.c.l.bf16 %v666
      %v731 = vunpack.c.l.bf16 %v667
      %v732 = vld [vmem:[%s484] sm:$0x1]
      %v734 = vlaneseq
      %v735 = vshrl.u32 %v734, 7
      %v736 = vsub.s32 0, %v735
      %v737 = vrot.slane %v732, %v736
      %v739 = vsub.f32 %v668, %v737
      %v740 = vsub.f32 %v669, %v737
      %v741 = vsub.f32 %v670, %v737
      %v742 = vsub.f32 %v671, %v737
      %v743 = vsub.f32 %v672, %v737
      %v744 = vsub.f32 %v673, %v737
      %v745 = vsub.f32 %v674, %v737
      %v746 = vsub.f32 %v675, %v737
      %v747 = vsub.f32 %v676, %v737
      %v748 = vsub.f32 %v677, %v737
      %v749 = vsub.f32 %v678, %v737
      %v750 = vsub.f32 %v679, %v737
      %v751 = vsub.f32 %v680, %v737
      %v752 = vsub.f32 %v681, %v737
      %v753 = vsub.f32 %v682, %v737
      %v754 = vsub.f32 %v683, %v737
      %v755 = vsub.f32 %v684, %v737
      %v756 = vsub.f32 %v685, %v737
      %v757 = vsub.f32 %v686, %v737
      %v758 = vsub.f32 %v687, %v737
      %v759 = vsub.f32 %v688, %v737
      %v760 = vsub.f32 %v689, %v737
      %v761 = vsub.f32 %v690, %v737
      %v762 = vsub.f32 %v691, %v737
      %v763 = vsub.f32 %v692, %v737
      %v764 = vsub.f32 %v693, %v737
      %v765 = vsub.f32 %v694, %v737
      %v766 = vsub.f32 %v695, %v737
      %v767 = vsub.f32 %v696, %v737
      %v768 = vsub.f32 %v697, %v737
      %v769 = vsub.f32 %v698, %v737
      %v770 = vsub.f32 %v699, %v737
      %v771 = vsub.f32 %v700, %v737
      %v772 = vsub.f32 %v701, %v737
      %v773 = vsub.f32 %v702, %v737
      %v774 = vsub.f32 %v703, %v737
      %v775 = vsub.f32 %v704, %v737
      %v776 = vsub.f32 %v705, %v737
      %v777 = vsub.f32 %v706, %v737
      %v778 = vsub.f32 %v707, %v737
      %v779 = vsub.f32 %v708, %v737
      %v780 = vsub.f32 %v709, %v737
      %v781 = vsub.f32 %v710, %v737
      %v782 = vsub.f32 %v711, %v737
      %v783 = vsub.f32 %v712, %v737
      %v784 = vsub.f32 %v713, %v737
      %v785 = vsub.f32 %v714, %v737
      %v786 = vsub.f32 %v715, %v737
      %v787 = vsub.f32 %v716, %v737
      %v788 = vsub.f32 %v717, %v737
      %v789 = vsub.f32 %v718, %v737
      %v790 = vsub.f32 %v719, %v737
      %v791 = vsub.f32 %v720, %v737
      %v792 = vsub.f32 %v721, %v737
      %v793 = vsub.f32 %v722, %v737
      %v794 = vsub.f32 %v723, %v737
      %v795 = vsub.f32 %v724, %v737
      %v796 = vsub.f32 %v725, %v737
      %v797 = vsub.f32 %v726, %v737
      %v798 = vsub.f32 %v727, %v737
      %v799 = vsub.f32 %v728, %v737
      %v800 = vsub.f32 %v729, %v737
      %v801 = vsub.f32 %v730, %v737
      %v802 = vsub.f32 %v731, %v737
      %v803 = vld [vmem:[%s487] sm:$0x1]
      %v805 = vlaneseq
      %v806 = vshrl.u32 %v805, 7
      %v807 = vsub.s32 0, %v806
      %v808 = vrot.slane %v803, %v807
      %v810 = vmul.f32 %v739, %v808
      %v811 = vmul.f32 %v740, %v808
      %v812 = vmul.f32 %v741, %v808
      %v813 = vmul.f32 %v742, %v808
      %v814 = vmul.f32 %v743, %v808
      %v815 = vmul.f32 %v744, %v808
      %v816 = vmul.f32 %v745, %v808
      %v817 = vmul.f32 %v746, %v808
      %v818 = vmul.f32 %v747, %v808
      %v819 = vmul.f32 %v748, %v808
      %v820 = vmul.f32 %v749, %v808
      %v821 = vmul.f32 %v750, %v808
      %v822 = vmul.f32 %v751, %v808
      %v823 = vmul.f32 %v752, %v808
      %v824 = vmul.f32 %v753, %v808
      %v825 = vmul.f32 %v754, %v808
      %v826 = vmul.f32 %v755, %v808
      %v827 = vmul.f32 %v756, %v808
      %v828 = vmul.f32 %v757, %v808
      %v829 = vmul.f32 %v758, %v808
      %v830 = vmul.f32 %v759, %v808
      %v831 = vmul.f32 %v760, %v808
      %v832 = vmul.f32 %v761, %v808
      %v833 = vmul.f32 %v762, %v808
      %v834 = vmul.f32 %v763, %v808
      %v835 = vmul.f32 %v764, %v808
      %v836 = vmul.f32 %v765, %v808
      %v837 = vmul.f32 %v766, %v808
      %v838 = vmul.f32 %v767, %v808
      %v839 = vmul.f32 %v768, %v808
      %v840 = vmul.f32 %v769, %v808
      %v841 = vmul.f32 %v770, %v808
      %v842 = vmul.f32 %v771, %v808
      %v843 = vmul.f32 %v772, %v808
      %v844 = vmul.f32 %v773, %v808
      %v845 = vmul.f32 %v774, %v808
      %v846 = vmul.f32 %v775, %v808
      %v847 = vmul.f32 %v776, %v808
      %v848 = vmul.f32 %v777, %v808
      %v849 = vmul.f32 %v778, %v808
      %v850 = vmul.f32 %v779, %v808
      %v851 = vmul.f32 %v780, %v808
      %v852 = vmul.f32 %v781, %v808
      %v853 = vmul.f32 %v782, %v808
      %v854 = vmul.f32 %v783, %v808
      %v855 = vmul.f32 %v784, %v808
      %v856 = vmul.f32 %v785, %v808
      %v857 = vmul.f32 %v786, %v808
      %v858 = vmul.f32 %v787, %v808
      %v859 = vmul.f32 %v788, %v808
      %v860 = vmul.f32 %v789, %v808
      %v861 = vmul.f32 %v790, %v808
      %v862 = vmul.f32 %v791, %v808
      %v863 = vmul.f32 %v792, %v808
      %v864 = vmul.f32 %v793, %v808
      %v865 = vmul.f32 %v794, %v808
      %v866 = vmul.f32 %v795, %v808
      %v867 = vmul.f32 %v796, %v808
      %v868 = vmul.f32 %v797, %v808
      %v869 = vmul.f32 %v798, %v808
      %v870 = vmul.f32 %v799, %v808
      %v871 = vmul.f32 %v800, %v808
      %v872 = vmul.f32 %v801, %v808
      %v873 = vmul.f32 %v802, %v808
      %v874 = vld [vmem:[%s490] sm:$0x1]
      %v876 = vlaneseq
      %v877 = vshrl.u32 %v876, 7
      %v878 = vsub.s32 0, %v877
      %v879 = vrot.slane %v874, %v878
      %v881 = vmul.f32 %v810, %v879
      %v882 = vmul.f32 %v811, %v879
      %v883 = vmul.f32 %v812, %v879
      %v884 = vmul.f32 %v813, %v879
      %v885 = vmul.f32 %v814, %v879
      %v886 = vmul.f32 %v815, %v879
      %v887 = vmul.f32 %v816, %v879
      %v888 = vmul.f32 %v817, %v879
      %v889 = vmul.f32 %v818, %v879
      %v890 = vmul.f32 %v819, %v879
      %v891 = vmul.f32 %v820, %v879
      %v892 = vmul.f32 %v821, %v879
      %v893 = vmul.f32 %v822, %v879
      %v894 = vmul.f32 %v823, %v879
      %v895 = vmul.f32 %v824, %v879
      %v896 = vmul.f32 %v825, %v879
      %v897 = vmul.f32 %v826, %v879
      %v898 = vmul.f32 %v827, %v879
      %v899 = vmul.f32 %v828, %v879
      %v900 = vmul.f32 %v829, %v879
      %v901 = vmul.f32 %v830, %v879
      %v902 = vmul.f32 %v831, %v879
      %v903 = vmul.f32 %v832, %v879
      %v904 = vmul.f32 %v833, %v879
      %v905 = vmul.f32 %v834, %v879
      %v906 = vmul.f32 %v835, %v879
      %v907 = vmul.f32 %v836, %v879
      %v908 = vmul.f32 %v837, %v879
      %v909 = vmul.f32 %v838, %v879
      %v910 = vmul.f32 %v839, %v879
      %v911 = vmul.f32 %v840, %v879
      %v912 = vmul.f32 %v841, %v879
      %v913 = vmul.f32 %v842, %v879
      %v914 = vmul.f32 %v843, %v879
      %v915 = vmul.f32 %v844, %v879
      %v916 = vmul.f32 %v845, %v879
      %v917 = vmul.f32 %v846, %v879
      %v918 = vmul.f32 %v847, %v879
      %v919 = vmul.f32 %v848, %v879
      %v920 = vmul.f32 %v849, %v879
      %v921 = vmul.f32 %v850, %v879
      %v922 = vmul.f32 %v851, %v879
      %v923 = vmul.f32 %v852, %v879
      %v924 = vmul.f32 %v853, %v879
      %v925 = vmul.f32 %v854, %v879
      %v926 = vmul.f32 %v855, %v879
      %v927 = vmul.f32 %v856, %v879
      %v928 = vmul.f32 %v857, %v879
      %v929 = vmul.f32 %v858, %v879
      %v930 = vmul.f32 %v859, %v879
      %v931 = vmul.f32 %v860, %v879
      %v932 = vmul.f32 %v861, %v879
      %v933 = vmul.f32 %v862, %v879
      %v934 = vmul.f32 %v863, %v879
      %v935 = vmul.f32 %v864, %v879
      %v936 = vmul.f32 %v865, %v879
      %v937 = vmul.f32 %v866, %v879
      %v938 = vmul.f32 %v867, %v879
      %v939 = vmul.f32 %v868, %v879
      %v940 = vmul.f32 %v869, %v879
      %v941 = vmul.f32 %v870, %v879
      %v942 = vmul.f32 %v871, %v879
      %v943 = vmul.f32 %v872, %v879
      %v944 = vmul.f32 %v873, %v879
      %v945 = vld [vmem:[%s493] sm:$0x1]
      %v947 = vlaneseq
      %v948 = vshrl.u32 %v947, 7
      %v949 = vsub.s32 0, %v948
      %v950 = vrot.slane %v945, %v949
      %v952 = vadd.f32 %v881, %v950
      %v953 = vadd.f32 %v882, %v950
      %v954 = vadd.f32 %v883, %v950
      %v955 = vadd.f32 %v884, %v950
      %v956 = vadd.f32 %v885, %v950
      %v957 = vadd.f32 %v886, %v950
      %v958 = vadd.f32 %v887, %v950
      %v959 = vadd.f32 %v888, %v950
      %v960 = vadd.f32 %v889, %v950
      %v961 = vadd.f32 %v890, %v950
      %v962 = vadd.f32 %v891, %v950
      %v963 = vadd.f32 %v892, %v950
      %v964 = vadd.f32 %v893, %v950
      %v965 = vadd.f32 %v894, %v950
      %v966 = vadd.f32 %v895, %v950
      %v967 = vadd.f32 %v896, %v950
      %v968 = vadd.f32 %v897, %v950
      %v969 = vadd.f32 %v898, %v950
      %v970 = vadd.f32 %v899, %v950
      %v971 = vadd.f32 %v900, %v950
      %v972 = vadd.f32 %v901, %v950
      %v973 = vadd.f32 %v902, %v950
      %v974 = vadd.f32 %v903, %v950
      %v975 = vadd.f32 %v904, %v950
      %v976 = vadd.f32 %v905, %v950
      %v977 = vadd.f32 %v906, %v950
      %v978 = vadd.f32 %v907, %v950
      %v979 = vadd.f32 %v908, %v950
      %v980 = vadd.f32 %v909, %v950
      %v981 = vadd.f32 %v910, %v950
      %v982 = vadd.f32 %v911, %v950
      %v983 = vadd.f32 %v912, %v950
      %v984 = vadd.f32 %v913, %v950
      %v985 = vadd.f32 %v914, %v950
      %v986 = vadd.f32 %v915, %v950
      %v987 = vadd.f32 %v916, %v950
      %v988 = vadd.f32 %v917, %v950
      %v989 = vadd.f32 %v918, %v950
      %v990 = vadd.f32 %v919, %v950
      %v991 = vadd.f32 %v920, %v950
      %v992 = vadd.f32 %v921, %v950
      %v993 = vadd.f32 %v922, %v950
      %v994 = vadd.f32 %v923, %v950
      %v995 = vadd.f32 %v924, %v950
      %v996 = vadd.f32 %v925, %v950
      %v997 = vadd.f32 %v926, %v950
      %v998 = vadd.f32 %v927, %v950
      %v999 = vadd.f32 %v928, %v950
      %v1000 = vadd.f32 %v929, %v950
      %v1001 = vadd.f32 %v930, %v950
      %v1002 = vadd.f32 %v931, %v950
      %v1003 = vadd.f32 %v932, %v950
      %v1004 = vadd.f32 %v933, %v950
      %v1005 = vadd.f32 %v934, %v950
      %v1006 = vadd.f32 %v935, %v950
      %v1007 = vadd.f32 %v936, %v950
      %v1008 = vadd.f32 %v937, %v950
      %v1009 = vadd.f32 %v938, %v950
      %v1010 = vadd.f32 %v939, %v950
      %v1011 = vadd.f32 %v940, %v950
      %v1012 = vadd.f32 %v941, %v950
      %v1013 = vadd.f32 %v942, %v950
      %v1014 = vadd.f32 %v943, %v950
      %v1015 = vadd.f32 %v944, %v950
      %vm1016 = vcmp.gt.f32.partialorder %v952, 0.0
      %vm1017 = vcmp.gt.f32.partialorder %v953, 0.0
      %vm1018 = vcmp.gt.f32.partialorder %v954, 0.0
      %vm1019 = vcmp.gt.f32.partialorder %v955, 0.0
      %vm1020 = vcmp.gt.f32.partialorder %v956, 0.0
      %vm1021 = vcmp.gt.f32.partialorder %v957, 0.0
      %vm1022 = vcmp.gt.f32.partialorder %v958, 0.0
      %vm1023 = vcmp.gt.f32.partialorder %v959, 0.0
      %vm1024 = vcmp.gt.f32.partialorder %v960, 0.0
      %vm1025 = vcmp.gt.f32.partialorder %v961, 0.0
      %vm1026 = vcmp.gt.f32.partialorder %v962, 0.0
      %vm1027 = vcmp.gt.f32.partialorder %v963, 0.0
      %vm1028 = vcmp.gt.f32.partialorder %v964, 0.0
      %vm1029 = vcmp.gt.f32.partialorder %v965, 0.0
      %vm1030 = vcmp.gt.f32.partialorder %v966, 0.0
      %vm1031 = vcmp.gt.f32.partialorder %v967, 0.0
      %vm1032 = vcmp.gt.f32.partialorder %v968, 0.0
      %vm1033 = vcmp.gt.f32.partialorder %v969, 0.0
      %vm1034 = vcmp.gt.f32.partialorder %v970, 0.0
      %vm1035 = vcmp.gt.f32.partialorder %v971, 0.0
      %vm1036 = vcmp.gt.f32.partialorder %v972, 0.0
      %vm1037 = vcmp.gt.f32.partialorder %v973, 0.0
      %vm1038 = vcmp.gt.f32.partialorder %v974, 0.0
      %vm1039 = vcmp.gt.f32.partialorder %v975, 0.0
      %vm1040 = vcmp.gt.f32.partialorder %v976, 0.0
      %vm1041 = vcmp.gt.f32.partialorder %v977, 0.0
      %vm1042 = vcmp.gt.f32.partialorder %v978, 0.0
      %vm1043 = vcmp.gt.f32.partialorder %v979, 0.0
      %vm1044 = vcmp.gt.f32.partialorder %v980, 0.0
      %vm1045 = vcmp.gt.f32.partialorder %v981, 0.0
      %vm1046 = vcmp.gt.f32.partialorder %v982, 0.0
      %vm1047 = vcmp.gt.f32.partialorder %v983, 0.0
      %vm1048 = vcmp.gt.f32.partialorder %v984, 0.0
      %vm1049 = vcmp.gt.f32.partialorder %v985, 0.0
      %vm1050 = vcmp.gt.f32.partialorder %v986, 0.0
      %vm1051 = vcmp.gt.f32.partialorder %v987, 0.0
      %vm1052 = vcmp.gt.f32.partialorder %v988, 0.0
      %vm1053 = vcmp.gt.f32.partialorder %v989, 0.0
      %vm1054 = vcmp.gt.f32.partialorder %v990, 0.0
      %vm1055 = vcmp.gt.f32.partialorder %v991, 0.0
      %vm1056 = vcmp.gt.f32.partialorder %v992, 0.0
      %vm1057 = vcmp.gt.f32.partialorder %v993, 0.0
      %vm1058 = vcmp.gt.f32.partialorder %v994, 0.0
      %vm1059 = vcmp.gt.f32.partialorder %v995, 0.0
      %vm1060 = vcmp.gt.f32.partialorder %v996, 0.0
      %vm1061 = vcmp.gt.f32.partialorder %v997, 0.0
      %vm1062 = vcmp.gt.f32.partialorder %v998, 0.0
      %vm1063 = vcmp.gt.f32.partialorder %v999, 0.0
      %vm1064 = vcmp.gt.f32.partialorder %v1000, 0.0
      %vm1065 = vcmp.gt.f32.partialorder %v1001, 0.0
      %vm1066 = vcmp.gt.f32.partialorder %v1002, 0.0
      %vm1067 = vcmp.gt.f32.partialorder %v1003, 0.0
      %vm1068 = vcmp.gt.f32.partialorder %v1004, 0.0
      %vm1069 = vcmp.gt.f32.partialorder %v1005, 0.0
      %vm1070 = vcmp.gt.f32.partialorder %v1006, 0.0
      %vm1071 = vcmp.gt.f32.partialorder %v1007, 0.0
      %vm1072 = vcmp.gt.f32.partialorder %v1008, 0.0
      %vm1073 = vcmp.gt.f32.partialorder %v1009, 0.0
      %vm1074 = vcmp.gt.f32.partialorder %v1010, 0.0
      %vm1075 = vcmp.gt.f32.partialorder %v1011, 0.0
      %vm1076 = vcmp.gt.f32.partialorder %v1012, 0.0
      %vm1077 = vcmp.gt.f32.partialorder %v1013, 0.0
      %vm1078 = vcmp.gt.f32.partialorder %v1014, 0.0
      %vm1079 = vcmp.gt.f32.partialorder %v1015, 0.0
      %v1080 = vmul.f32 %v952, 0.2
      %v1081 = vmul.f32 %v953, 0.2
      %v1082 = vmul.f32 %v954, 0.2
      %v1083 = vmul.f32 %v955, 0.2
      %v1084 = vmul.f32 %v956, 0.2
      %v1085 = vmul.f32 %v957, 0.2
      %v1086 = vmul.f32 %v958, 0.2
      %v1087 = vmul.f32 %v959, 0.2
      %v1088 = vmul.f32 %v960, 0.2
      %v1089 = vmul.f32 %v961, 0.2
      %v1090 = vmul.f32 %v962, 0.2
      %v1091 = vmul.f32 %v963, 0.2
      %v1092 = vmul.f32 %v964, 0.2
      %v1093 = vmul.f32 %v965, 0.2
      %v1094 = vmul.f32 %v966, 0.2
      %v1095 = vmul.f32 %v967, 0.2
      %v1096 = vmul.f32 %v968, 0.2
      %v1097 = vmul.f32 %v969, 0.2
      %v1098 = vmul.f32 %v970, 0.2
      %v1099 = vmul.f32 %v971, 0.2
      %v1100 = vmul.f32 %v972, 0.2
      %v1101 = vmul.f32 %v973, 0.2
      %v1102 = vmul.f32 %v974, 0.2
      %v1103 = vmul.f32 %v975, 0.2
      %v1104 = vmul.f32 %v976, 0.2
      %v1105 = vmul.f32 %v977, 0.2
      %v1106 = vmul.f32 %v978, 0.2
      %v1107 = vmul.f32 %v979, 0.2
      %v1108 = vmul.f32 %v980, 0.2
      %v1109 = vmul.f32 %v981, 0.2
      %v1110 = vmul.f32 %v982, 0.2
      %v1111 = vmul.f32 %v983, 0.2
      %v1112 = vmul.f32 %v984, 0.2
      %v1113 = vmul.f32 %v985, 0.2
      %v1114 = vmul.f32 %v986, 0.2
      %v1115 = vmul.f32 %v987, 0.2
      %v1116 = vmul.f32 %v988, 0.2
      %v1117 = vmul.f32 %v989, 0.2
      %v1118 = vmul.f32 %v990, 0.2
      %v1119 = vmul.f32 %v991, 0.2
      %v1120 = vmul.f32 %v992, 0.2
      %v1121 = vmul.f32 %v993, 0.2
      %v1122 = vmul.f32 %v994, 0.2
      %v1123 = vmul.f32 %v995, 0.2
      %v1124 = vmul.f32 %v996, 0.2
      %v1125 = vmul.f32 %v997, 0.2
      %v1126 = vmul.f32 %v998, 0.2
      %v1127 = vmul.f32 %v999, 0.2
      %v1128 = vmul.f32 %v1000, 0.2
      %v1129 = vmul.f32 %v1001, 0.2
      %v1130 = vmul.f32 %v1002, 0.2
      %v1131 = vmul.f32 %v1003, 0.2
      %v1132 = vmul.f32 %v1004, 0.2
      %v1133 = vmul.f32 %v1005, 0.2
      %v1134 = vmul.f32 %v1006, 0.2
      %v1135 = vmul.f32 %v1007, 0.2
      %v1136 = vmul.f32 %v1008, 0.2
      %v1137 = vmul.f32 %v1009, 0.2
      %v1138 = vmul.f32 %v1010, 0.2
      %v1139 = vmul.f32 %v1011, 0.2
      %v1140 = vmul.f32 %v1012, 0.2
      %v1141 = vmul.f32 %v1013, 0.2
      %v1142 = vmul.f32 %v1014, 0.2
      %v1143 = vmul.f32 %v1015, 0.2
      %v1144 = vsel %vm1016, %v952, %v1080
      %v1145 = vsel %vm1017, %v953, %v1081
      %v1146 = vsel %vm1018, %v954, %v1082
      %v1147 = vsel %vm1019, %v955, %v1083
      %v1148 = vsel %vm1020, %v956, %v1084
      %v1149 = vsel %vm1021, %v957, %v1085
      %v1150 = vsel %vm1022, %v958, %v1086
      %v1151 = vsel %vm1023, %v959, %v1087
      %v1152 = vsel %vm1024, %v960, %v1088
      %v1153 = vsel %vm1025, %v961, %v1089
      %v1154 = vsel %vm1026, %v962, %v1090
      %v1155 = vsel %vm1027, %v963, %v1091
      %v1156 = vsel %vm1028, %v964, %v1092
      %v1157 = vsel %vm1029, %v965, %v1093
      %v1158 = vsel %vm1030, %v966, %v1094
      %v1159 = vsel %vm1031, %v967, %v1095
      %v1160 = vsel %vm1032, %v968, %v1096
      %v1161 = vsel %vm1033, %v969, %v1097
      %v1162 = vsel %vm1034, %v970, %v1098
      %v1163 = vsel %vm1035, %v971, %v1099
      %v1164 = vsel %vm1036, %v972, %v1100
      %v1165 = vsel %vm1037, %v973, %v1101
      %v1166 = vsel %vm1038, %v974, %v1102
      %v1167 = vsel %vm1039, %v975, %v1103
      %v1168 = vsel %vm1040, %v976, %v1104
      %v1169 = vsel %vm1041, %v977, %v1105
      %v1170 = vsel %vm1042, %v978, %v1106
      %v1171 = vsel %vm1043, %v979, %v1107
      %v1172 = vsel %vm1044, %v980, %v1108
      %v1173 = vsel %vm1045, %v981, %v1109
      %v1174 = vsel %vm1046, %v982, %v1110
      %v1175 = vsel %vm1047, %v983, %v1111
      %v1176 = vsel %vm1048, %v984, %v1112
      %v1177 = vsel %vm1049, %v985, %v1113
      %v1178 = vsel %vm1050, %v986, %v1114
      %v1179 = vsel %vm1051, %v987, %v1115
      %v1180 = vsel %vm1052, %v988, %v1116
      %v1181 = vsel %vm1053, %v989, %v1117
      %v1182 = vsel %vm1054, %v990, %v1118
      %v1183 = vsel %vm1055, %v991, %v1119
      %v1184 = vsel %vm1056, %v992, %v1120
      %v1185 = vsel %vm1057, %v993, %v1121
      %v1186 = vsel %vm1058, %v994, %v1122
      %v1187 = vsel %vm1059, %v995, %v1123
      %v1188 = vsel %vm1060, %v996, %v1124
      %v1189 = vsel %vm1061, %v997, %v1125
      %v1190 = vsel %vm1062, %v998, %v1126
      %v1191 = vsel %vm1063, %v999, %v1127
      %v1192 = vsel %vm1064, %v1000, %v1128
      %v1193 = vsel %vm1065, %v1001, %v1129
      %v1194 = vsel %vm1066, %v1002, %v1130
      %v1195 = vsel %vm1067, %v1003, %v1131
      %v1196 = vsel %vm1068, %v1004, %v1132
      %v1197 = vsel %vm1069, %v1005, %v1133
      %v1198 = vsel %vm1070, %v1006, %v1134
      %v1199 = vsel %vm1071, %v1007, %v1135
      %v1200 = vsel %vm1072, %v1008, %v1136
      %v1201 = vsel %vm1073, %v1009, %v1137
      %v1202 = vsel %vm1074, %v1010, %v1138
      %v1203 = vsel %vm1075, %v1011, %v1139
      %v1204 = vsel %vm1076, %v1012, %v1140
      %v1205 = vsel %vm1077, %v1013, %v1141
      %v1206 = vsel %vm1078, %v1014, %v1142
      %v1207 = vsel %vm1079, %v1015, %v1143
      %v1208 = vld [vmem:[#allocation2] sm:$0xff]
      %v1209 = vld [vmem:[#allocation2 + $0x8] sm:$0xff]
      %v1210 = vld [vmem:[#allocation2 + $0x10] sm:$0xff]
      %v1211 = vld [vmem:[#allocation2 + $0x18] sm:$0xff]
      %v1212 = vld [vmem:[#allocation2 + $0x20] sm:$0xff]
      %v1213 = vld [vmem:[#allocation2 + $0x28] sm:$0xff]
      %v1214 = vld [vmem:[#allocation2 + $0x30] sm:$0xff]
      %v1215 = vld [vmem:[#allocation2 + $0x38] sm:$0xff]
      %v1216 = vld [vmem:[#allocation2 + $0x40] sm:$0xff]
      %v1217 = vld [vmem:[#allocation2 + $0x48] sm:$0xff]
      %v1218 = vld [vmem:[#allocation2 + $0x50] sm:$0xff]
      %v1219 = vld [vmem:[#allocation2 + $0x58] sm:$0xff]
      %v1220 = vld [vmem:[#allocation2 + $0x60] sm:$0xff]
      %v1221 = vld [vmem:[#allocation2 + $0x68] sm:$0xff]
      %v1222 = vld [vmem:[#allocation2 + $0x70] sm:$0xff]
      %v1223 = vld [vmem:[#allocation2 + $0x78] sm:$0xff]
      %v1224 = vld [vmem:[#allocation2 + $0x80] sm:$0xff]
      %v1225 = vld [vmem:[#allocation2 + $0x88] sm:$0xff]
      %v1226 = vld [vmem:[#allocation2 + $0x90] sm:$0xff]
      %v1227 = vld [vmem:[#allocation2 + $0x98] sm:$0xff]
      %v1228 = vld [vmem:[#allocation2 + $0xa0] sm:$0xff]
      %v1229 = vld [vmem:[#allocation2 + $0xa8] sm:$0xff]
      %v1230 = vld [vmem:[#allocation2 + $0xb0] sm:$0xff]
      %v1231 = vld [vmem:[#allocation2 + $0xb8] sm:$0xff]
      %v1232 = vld [vmem:[#allocation2 + $0xc0] sm:$0xff]
      %v1233 = vld [vmem:[#allocation2 + $0xc8] sm:$0xff]
      %v1234 = vld [vmem:[#allocation2 + $0xd0] sm:$0xff]
      %v1235 = vld [vmem:[#allocation2 + $0xd8] sm:$0xff]
      %v1236 = vld [vmem:[#allocation2 + $0xe0] sm:$0xff]
      %v1237 = vld [vmem:[#allocation2 + $0xe8] sm:$0xff]
      %v1238 = vld [vmem:[#allocation2 + $0xf0] sm:$0xff]
      %v1239 = vld [vmem:[#allocation2 + $0xf8] sm:$0xff]
      %v1240 = vld [vmem:[#allocation2 + $0x100] sm:$0xff]
      %v1241 = vld [vmem:[#allocation2 + $0x108] sm:$0xff]
      %v1242 = vld [vmem:[#allocation2 + $0x110] sm:$0xff]
      %v1243 = vld [vmem:[#allocation2 + $0x118] sm:$0xff]
      %v1244 = vld [vmem:[#allocation2 + $0x120] sm:$0xff]
      %v1245 = vld [vmem:[#allocation2 + $0x128] sm:$0xff]
      %v1246 = vld [vmem:[#allocation2 + $0x130] sm:$0xff]
      %v1247 = vld [vmem:[#allocation2 + $0x138] sm:$0xff]
      %v1248 = vld [vmem:[#allocation2 + $0x140] sm:$0xff]
      %v1249 = vld [vmem:[#allocation2 + $0x148] sm:$0xff]
      %v1250 = vld [vmem:[#allocation2 + $0x150] sm:$0xff]
      %v1251 = vld [vmem:[#allocation2 + $0x158] sm:$0xff]
      %v1252 = vld [vmem:[#allocation2 + $0x160] sm:$0xff]
      %v1253 = vld [vmem:[#allocation2 + $0x168] sm:$0xff]
      %v1254 = vld [vmem:[#allocation2 + $0x170] sm:$0xff]
      %v1255 = vld [vmem:[#allocation2 + $0x178] sm:$0xff]
      %v1256 = vld [vmem:[#allocation2 + $0x180] sm:$0xff]
      %v1257 = vld [vmem:[#allocation2 + $0x188] sm:$0xff]
      %v1258 = vld [vmem:[#allocation2 + $0x190] sm:$0xff]
      %v1259 = vld [vmem:[#allocation2 + $0x198] sm:$0xff]
      %v1260 = vld [vmem:[#allocation2 + $0x1a0] sm:$0xff]
      %v1261 = vld [vmem:[#allocation2 + $0x1a8] sm:$0xff]
      %v1262 = vld [vmem:[#allocation2 + $0x1b0] sm:$0xff]
      %v1263 = vld [vmem:[#allocation2 + $0x1b8] sm:$0xff]
      %v1264 = vld [vmem:[#allocation2 + $0x1c0] sm:$0xff]
      %v1265 = vld [vmem:[#allocation2 + $0x1c8] sm:$0xff]
      %v1266 = vld [vmem:[#allocation2 + $0x1d0] sm:$0xff]
      %v1267 = vld [vmem:[#allocation2 + $0x1d8] sm:$0xff]
      %v1268 = vld [vmem:[#allocation2 + $0x1e0] sm:$0xff]
      %v1269 = vld [vmem:[#allocation2 + $0x1e8] sm:$0xff]
      %v1270 = vld [vmem:[#allocation2 + $0x1f0] sm:$0xff]
      %v1271 = vld [vmem:[#allocation2 + $0x1f8] sm:$0xff]
      %v1272 = vpack.c.bf16 %v1145, %v1144
      %v1273 = vpack.c.bf16 %v1147, %v1146
      %v1274 = vpack.c.bf16 %v1149, %v1148
      %v1275 = vpack.c.bf16 %v1151, %v1150
      %v1276 = vpack.c.bf16 %v1153, %v1152
      %v1277 = vpack.c.bf16 %v1155, %v1154
      %v1278 = vpack.c.bf16 %v1157, %v1156
      %v1279 = vpack.c.bf16 %v1159, %v1158
      %v1280 = vpack.c.bf16 %v1161, %v1160
      %v1281 = vpack.c.bf16 %v1163, %v1162
      %v1282 = vpack.c.bf16 %v1165, %v1164
      %v1283 = vpack.c.bf16 %v1167, %v1166
      %v1284 = vpack.c.bf16 %v1169, %v1168
      %v1285 = vpack.c.bf16 %v1171, %v1170
      %v1286 = vpack.c.bf16 %v1173, %v1172
      %v1287 = vpack.c.bf16 %v1175, %v1174
      %v1288 = vpack.c.bf16 %v1177, %v1176
      %v1289 = vpack.c.bf16 %v1179, %v1178
      %v1290 = vpack.c.bf16 %v1181, %v1180
      %v1291 = vpack.c.bf16 %v1183, %v1182
      %v1292 = vpack.c.bf16 %v1185, %v1184
      %v1293 = vpack.c.bf16 %v1187, %v1186
      %v1294 = vpack.c.bf16 %v1189, %v1188
      %v1295 = vpack.c.bf16 %v1191, %v1190
      %v1296 = vpack.c.bf16 %v1193, %v1192
      %v1297 = vpack.c.bf16 %v1195, %v1194
      %v1298 = vpack.c.bf16 %v1197, %v1196
      %v1299 = vpack.c.bf16 %v1199, %v1198
      %v1300 = vpack.c.bf16 %v1201, %v1200
      %v1301 = vpack.c.bf16 %v1203, %v1202
      %v1302 = vpack.c.bf16 %v1205, %v1204
      %v1303 = vpack.c.bf16 %v1207, %v1206
      %v1304 = vld [vmem:[%s501] sm:$0xf]
      %v1305 = vld [vmem:[%s501 + $0x4] sm:$0xf]
      %v1306 = vld [vmem:[%s501 + $0x8] sm:$0xf]
      %v1307 = vld [vmem:[%s501 + $0xc] sm:$0xf]
      %v1308 = vld [vmem:[%s501 + $0x10] sm:$0xf]
      %v1309 = vld [vmem:[%s501 + $0x14] sm:$0xf]
      %v1310 = vld [vmem:[%s501 + $0x18] sm:$0xf]
      %v1311 = vld [vmem:[%s501 + $0x1c] sm:$0xf]
      %v1312 = vld [vmem:[%s501 + $0x20] sm:$0xf]
      %v1313 = vld [vmem:[%s501 + $0x24] sm:$0xf]
      %v1314 = vld [vmem:[%s501 + $0x28] sm:$0xf]
      %v1315 = vld [vmem:[%s501 + $0x2c] sm:$0xf]
      %v1316 = vld [vmem:[%s501 + $0x30] sm:$0xf]
      %v1317 = vld [vmem:[%s501 + $0x34] sm:$0xf]
      %v1318 = vld [vmem:[%s501 + $0x38] sm:$0xf]
      %v1319 = vld [vmem:[%s501 + $0x3c] sm:$0xf]
      %v1336 = vunpack.c.l.b16 %v1304
      %v1337 = vunpack.c.l.b16 %v1305
      %v1338 = vunpack.c.l.b16 %v1306
      %v1339 = vunpack.c.l.b16 %v1307
      %v1340 = vunpack.c.l.b16 %v1308
      %v1341 = vunpack.c.l.b16 %v1309
      %v1342 = vunpack.c.l.b16 %v1310
      %v1343 = vunpack.c.l.b16 %v1311
      %v1344 = vunpack.c.l.b16 %v1312
      %v1345 = vunpack.c.l.b16 %v1313
      %v1346 = vunpack.c.l.b16 %v1314
      %v1347 = vunpack.c.l.b16 %v1315
      %v1348 = vunpack.c.l.b16 %v1316
      %v1349 = vunpack.c.l.b16 %v1317
      %v1350 = vunpack.c.l.b16 %v1318
      %v1351 = vunpack.c.l.b16 %v1319
      %v1352 = vpack.c.b16 %v1337, %v1336
      %v1353 = vpack.c.b16 %v1339, %v1338
      %v1354 = vpack.c.b16 %v1341, %v1340
      %v1355 = vpack.c.b16 %v1343, %v1342
      %v1356 = vpack.c.b16 %v1345, %v1344
      %v1357 = vpack.c.b16 %v1347, %v1346
      %v1358 = vpack.c.b16 %v1349, %v1348
      %v1359 = vpack.c.b16 %v1351, %v1350
      %1368 = vmatprep.subr.bf16.mxu0 0
      %1369 = vmatpush1.bf16.msra.mxu0 %v1359
      %1370 = vmatprep.subr.bf16.mxu0 0
      %1371 = vmatpush1.bf16.msra.mxu0 %v1358
      %1372 = vmatprep.subr.bf16.mxu0 0
      %1373 = vmatpush1.bf16.msra.mxu0 %v1357
      %1374 = vmatprep.subr.bf16.mxu0 0
      %1375 = vmatpush1.bf16.msra.mxu0 %v1356
      %1376 = vmatprep.subr.bf16.mxu0 0
      %1377 = vmatpush1.bf16.msra.mxu0 %v1355
      %1378 = vmatprep.subr.bf16.mxu0 0
      %1379 = vmatpush1.bf16.msra.mxu0 %v1354
      %1380 = vmatprep.subr.bf16.mxu0 0
      %1381 = vmatpush1.bf16.msra.mxu0 %v1353
      %1382 = vmatprep.subr.bf16.mxu0 0
      %1383 = vmatpush1.bf16.msra.mxu0 %v1352
      %1384 = vmatprep.subr.bf16.mxu0 0
      %1385 = vmatpush2.bf16.msra.mxu0 0
      %1386 = vmatprep.subr.bf16.mxu0 0
      %1387 = vmatpush2.bf16.msra.mxu0 0
      %1388 = vmatprep.subr.bf16.mxu0 0
      %1389 = vmatpush2.bf16.msra.mxu0 0
      %1390 = vmatprep.subr.bf16.mxu0 0
      %1391 = vmatpush2.bf16.msra.mxu0 0
      %1392 = vmatprep.subr.bf16.mxu0 0
      %1393 = vmatpush2.bf16.msra.mxu0 0
      %1394 = vmatprep.subr.bf16.mxu0 0
      %1395 = vmatpush2.bf16.msra.mxu0 0
      %1396 = vmatprep.subr.bf16.mxu0 0
      %1397 = vmatpush2.bf16.msra.mxu0 0
      %1398 = vmatprep.subr.bf16.mxu0 0
      %1399 = vmatpush2.bf16.msra.mxu0 0
      %1400 = vmatprep.mubr.bf16.mxu0 0
      %1401 = vmatmul.mubr.bf16.gmra.mxu0 %v1272
      %v1402 = vpop.f32.mrf.mxu0
      %v1403 = vadd.f32 0.0, %v1402
      %v1404 = vpop.f32.mrf.mxu0
      %v1405 = vpop.f32.mrf.mxu0
      %v1406 = vadd.f32 0.0, %v1405
      %v1407 = vpop.f32.mrf.mxu0
      %1408 = vmatprep.mubr.bf16.mxu0 0
      %1409 = vmatmul.mubr.bf16.gmra.mxu0 %v1273
      %v1410 = vpop.f32.mrf.mxu0
      %v1411 = vadd.f32 0.0, %v1410
      %v1412 = vpop.f32.mrf.mxu0
      %v1413 = vpop.f32.mrf.mxu0
      %v1414 = vadd.f32 0.0, %v1413
      %v1415 = vpop.f32.mrf.mxu0
      %1416 = vmatprep.mubr.bf16.mxu0 0
      %1417 = vmatmul.mubr.bf16.gmra.mxu0 %v1274
      %v1418 = vpop.f32.mrf.mxu0
      %v1419 = vadd.f32 0.0, %v1418
      %v1420 = vpop.f32.mrf.mxu0
      %v1421 = vpop.f32.mrf.mxu0
      %v1422 = vadd.f32 0.0, %v1421
      %v1423 = vpop.f32.mrf.mxu0
      %1424 = vmatprep.mubr.bf16.mxu0 0
      %1425 = vmatmul.mubr.bf16.gmra.mxu0 %v1275
      %v1426 = vpop.f32.mrf.mxu0
      %v1427 = vadd.f32 0.0, %v1426
      %v1428 = vpop.f32.mrf.mxu0
      %v1429 = vpop.f32.mrf.mxu0
      %v1430 = vadd.f32 0.0, %v1429
      %v1431 = vpop.f32.mrf.mxu0
      %1432 = vmatprep.mubr.bf16.mxu0 0
      %1433 = vmatmul.mubr.bf16.gmra.mxu0 %v1276
      %v1434 = vpop.f32.mrf.mxu0
      %v1435 = vadd.f32 0.0, %v1434
      %v1436 = vpop.f32.mrf.mxu0
      %v1437 = vpop.f32.mrf.mxu0
      %v1438 = vadd.f32 0.0, %v1437
      %v1439 = vpop.f32.mrf.mxu0
      %1440 = vmatprep.mubr.bf16.mxu0 0
      %1441 = vmatmul.mubr.bf16.gmra.mxu0 %v1277
      %v1442 = vpop.f32.mrf.mxu0
      %v1443 = vadd.f32 0.0, %v1442
      %v1444 = vpop.f32.mrf.mxu0
      %v1445 = vpop.f32.mrf.mxu0
      %v1446 = vadd.f32 0.0, %v1445
      %v1447 = vpop.f32.mrf.mxu0
      %1448 = vmatprep.mubr.bf16.mxu0 0
      %1449 = vmatmul.mubr.bf16.gmra.mxu0 %v1278
      %v1450 = vpop.f32.mrf.mxu0
      %v1451 = vadd.f32 0.0, %v1450
      %v1452 = vpop.f32.mrf.mxu0
      %v1453 = vpop.f32.mrf.mxu0
      %v1454 = vadd.f32 0.0, %v1453
      %v1455 = vpop.f32.mrf.mxu0
      %1456 = vmatprep.mubr.bf16.mxu0 0
      %1457 = vmatmul.mubr.bf16.gmra.mxu0 %v1279
      %v1458 = vpop.f32.mrf.mxu0
      %v1459 = vadd.f32 0.0, %v1458
      %v1460 = vpop.f32.mrf.mxu0
      %v1461 = vpop.f32.mrf.mxu0
      %v1462 = vadd.f32 0.0, %v1461
      %v1463 = vpop.f32.mrf.mxu0
      %1464 = vmatprep.mubr.bf16.mxu0 0
      %1465 = vmatmul.mubr.bf16.gmra.mxu0 %v1280
      %v1466 = vpop.f32.mrf.mxu0
      %v1467 = vadd.f32 0.0, %v1466
      %v1468 = vpop.f32.mrf.mxu0
      %v1469 = vpop.f32.mrf.mxu0
      %v1470 = vadd.f32 0.0, %v1469
      %v1471 = vpop.f32.mrf.mxu0
      %1472 = vmatprep.mubr.bf16.mxu0 0
      %1473 = vmatmul.mubr.bf16.gmra.mxu0 %v1281
      %v1474 = vpop.f32.mrf.mxu0
      %v1475 = vadd.f32 0.0, %v1474
      %v1476 = vpop.f32.mrf.mxu0
      %v1477 = vpop.f32.mrf.mxu0
      %v1478 = vadd.f32 0.0, %v1477
      %v1479 = vpop.f32.mrf.mxu0
      %1480 = vmatprep.mubr.bf16.mxu0 0
      %1481 = vmatmul.mubr.bf16.gmra.mxu0 %v1282
      %v1482 = vpop.f32.mrf.mxu0
      %v1483 = vadd.f32 0.0, %v1482
      %v1484 = vpop.f32.mrf.mxu0
      %v1485 = vpop.f32.mrf.mxu0
      %v1486 = vadd.f32 0.0, %v1485
      %v1487 = vpop.f32.mrf.mxu0
      %1488 = vmatprep.mubr.bf16.mxu0 0
      %1489 = vmatmul.mubr.bf16.gmra.mxu0 %v1283
      %v1490 = vpop.f32.mrf.mxu0
      %v1491 = vadd.f32 0.0, %v1490
      %v1492 = vpop.f32.mrf.mxu0
      %v1493 = vpop.f32.mrf.mxu0
      %v1494 = vadd.f32 0.0, %v1493
      %v1495 = vpop.f32.mrf.mxu0
      %1496 = vmatprep.mubr.bf16.mxu0 0
      %1497 = vmatmul.mubr.bf16.gmra.mxu0 %v1284
      %v1498 = vpop.f32.mrf.mxu0
      %v1499 = vadd.f32 0.0, %v1498
      %v1500 = vpop.f32.mrf.mxu0
      %v1501 = vpop.f32.mrf.mxu0
      %v1502 = vadd.f32 0.0, %v1501
      %v1503 = vpop.f32.mrf.mxu0
      %1504 = vmatprep.mubr.bf16.mxu0 0
      %1505 = vmatmul.mubr.bf16.gmra.mxu0 %v1285
      %v1506 = vpop.f32.mrf.mxu0
      %v1507 = vadd.f32 0.0, %v1506
      %v1508 = vpop.f32.mrf.mxu0
      %v1509 = vpop.f32.mrf.mxu0
      %v1510 = vadd.f32 0.0, %v1509
      %v1511 = vpop.f32.mrf.mxu0
      %1512 = vmatprep.mubr.bf16.mxu0 0
      %1513 = vmatmul.mubr.bf16.gmra.mxu0 %v1286
      %v1514 = vpop.f32.mrf.mxu0
      %v1515 = vadd.f32 0.0, %v1514
      %v1516 = vpop.f32.mrf.mxu0
      %v1517 = vpop.f32.mrf.mxu0
      %v1518 = vadd.f32 0.0, %v1517
      %v1519 = vpop.f32.mrf.mxu0
      %1520 = vmatprep.mubr.bf16.mxu0 0
      %1521 = vmatmul.mubr.bf16.gmra.mxu0 %v1287
      %v1522 = vpop.f32.mrf.mxu0
      %v1523 = vadd.f32 0.0, %v1522
      %v1524 = vpop.f32.mrf.mxu0
      %v1525 = vpop.f32.mrf.mxu0
      %v1526 = vadd.f32 0.0, %v1525
      %v1527 = vpop.f32.mrf.mxu0
      %1528 = vmatprep.mubr.bf16.mxu0 0
      %1529 = vmatmul.mubr.bf16.gmra.mxu0 %v1288
      %v1530 = vpop.f32.mrf.mxu0
      %v1531 = vadd.f32 0.0, %v1530
      %v1532 = vpop.f32.mrf.mxu0
      %v1533 = vpop.f32.mrf.mxu0
      %v1534 = vadd.f32 0.0, %v1533
      %v1535 = vpop.f32.mrf.mxu0
      %1536 = vmatprep.mubr.bf16.mxu0 0
      %1537 = vmatmul.mubr.bf16.gmra.mxu0 %v1289
      %v1538 = vpop.f32.mrf.mxu0
      %v1539 = vadd.f32 0.0, %v1538
      %v1540 = vpop.f32.mrf.mxu0
      %v1541 = vpop.f32.mrf.mxu0
      %v1542 = vadd.f32 0.0, %v1541
      %v1543 = vpop.f32.mrf.mxu0
      %1544 = vmatprep.mubr.bf16.mxu0 0
      %1545 = vmatmul.mubr.bf16.gmra.mxu0 %v1290
      %v1546 = vpop.f32.mrf.mxu0
      %v1547 = vadd.f32 0.0, %v1546
      %v1548 = vpop.f32.mrf.mxu0
      %v1549 = vpop.f32.mrf.mxu0
      %v1550 = vadd.f32 0.0, %v1549
      %v1551 = vpop.f32.mrf.mxu0
      %1552 = vmatprep.mubr.bf16.mxu0 0
      %1553 = vmatmul.mubr.bf16.gmra.mxu0 %v1291
      %v1554 = vpop.f32.mrf.mxu0
      %v1555 = vadd.f32 0.0, %v1554
      %v1556 = vpop.f32.mrf.mxu0
      %v1557 = vpop.f32.mrf.mxu0
      %v1558 = vadd.f32 0.0, %v1557
      %v1559 = vpop.f32.mrf.mxu0
      %1560 = vmatprep.mubr.bf16.mxu0 0
      %1561 = vmatmul.mubr.bf16.gmra.mxu0 %v1292
      %v1562 = vpop.f32.mrf.mxu0
      %v1563 = vadd.f32 0.0, %v1562
      %v1564 = vpop.f32.mrf.mxu0
      %v1565 = vpop.f32.mrf.mxu0
      %v1566 = vadd.f32 0.0, %v1565
      %v1567 = vpop.f32.mrf.mxu0
      %1568 = vmatprep.mubr.bf16.mxu0 0
      %1569 = vmatmul.mubr.bf16.gmra.mxu0 %v1293
      %v1570 = vpop.f32.mrf.mxu0
      %v1571 = vadd.f32 0.0, %v1570
      %v1572 = vpop.f32.mrf.mxu0
      %v1573 = vpop.f32.mrf.mxu0
      %v1574 = vadd.f32 0.0, %v1573
      %v1575 = vpop.f32.mrf.mxu0
      %1576 = vmatprep.mubr.bf16.mxu0 0
      %1577 = vmatmul.mubr.bf16.gmra.mxu0 %v1294
      %v1578 = vpop.f32.mrf.mxu0
      %v1579 = vadd.f32 0.0, %v1578
      %v1580 = vpop.f32.mrf.mxu0
      %v1581 = vpop.f32.mrf.mxu0
      %v1582 = vadd.f32 0.0, %v1581
      %v1583 = vpop.f32.mrf.mxu0
      %1584 = vmatprep.mubr.bf16.mxu0 0
      %1585 = vmatmul.mubr.bf16.gmra.mxu0 %v1295
      %v1586 = vpop.f32.mrf.mxu0
      %v1587 = vadd.f32 0.0, %v1586
      %v1588 = vpop.f32.mrf.mxu0
      %v1589 = vpop.f32.mrf.mxu0
      %v1590 = vadd.f32 0.0, %v1589
      %v1591 = vpop.f32.mrf.mxu0
      %1592 = vmatprep.mubr.bf16.mxu0 0
      %1593 = vmatmul.mubr.bf16.gmra.mxu0 %v1296
      %v1594 = vpop.f32.mrf.mxu0
      %v1595 = vadd.f32 0.0, %v1594
      %v1596 = vpop.f32.mrf.mxu0
      %v1597 = vpop.f32.mrf.mxu0
      %v1598 = vadd.f32 0.0, %v1597
      %v1599 = vpop.f32.mrf.mxu0
      %1600 = vmatprep.mubr.bf16.mxu0 0
      %1601 = vmatmul.mubr.bf16.gmra.mxu0 %v1297
      %v1602 = vpop.f32.mrf.mxu0
      %v1603 = vadd.f32 0.0, %v1602
      %v1604 = vpop.f32.mrf.mxu0
      %v1605 = vpop.f32.mrf.mxu0
      %v1606 = vadd.f32 0.0, %v1605
      %v1607 = vpop.f32.mrf.mxu0
      %1608 = vmatprep.mubr.bf16.mxu0 0
      %1609 = vmatmul.mubr.bf16.gmra.mxu0 %v1298
      %v1610 = vpop.f32.mrf.mxu0
      %v1611 = vadd.f32 0.0, %v1610
      %v1612 = vpop.f32.mrf.mxu0
      %v1613 = vpop.f32.mrf.mxu0
      %v1614 = vadd.f32 0.0, %v1613
      %v1615 = vpop.f32.mrf.mxu0
      %1616 = vmatprep.mubr.bf16.mxu0 0
      %1617 = vmatmul.mubr.bf16.gmra.mxu0 %v1299
      %v1618 = vpop.f32.mrf.mxu0
      %v1619 = vadd.f32 0.0, %v1618
      %v1620 = vpop.f32.mrf.mxu0
      %v1621 = vpop.f32.mrf.mxu0
      %v1622 = vadd.f32 0.0, %v1621
      %v1623 = vpop.f32.mrf.mxu0
      %1624 = vmatprep.mubr.bf16.mxu0 0
      %1625 = vmatmul.mubr.bf16.gmra.mxu0 %v1300
      %v1626 = vpop.f32.mrf.mxu0
      %v1627 = vadd.f32 0.0, %v1626
      %v1628 = vpop.f32.mrf.mxu0
      %v1629 = vpop.f32.mrf.mxu0
      %v1630 = vadd.f32 0.0, %v1629
      %v1631 = vpop.f32.mrf.mxu0
      %1632 = vmatprep.mubr.bf16.mxu0 0
      %1633 = vmatmul.mubr.bf16.gmra.mxu0 %v1301
      %v1634 = vpop.f32.mrf.mxu0
      %v1635 = vadd.f32 0.0, %v1634
      %v1636 = vpop.f32.mrf.mxu0
      %v1637 = vpop.f32.mrf.mxu0
      %v1638 = vadd.f32 0.0, %v1637
      %v1639 = vpop.f32.mrf.mxu0
      %1640 = vmatprep.mubr.bf16.mxu0 0
      %1641 = vmatmul.mubr.bf16.gmra.mxu0 %v1302
      %v1642 = vpop.f32.mrf.mxu0
      %v1643 = vadd.f32 0.0, %v1642
      %v1644 = vpop.f32.mrf.mxu0
      %v1645 = vpop.f32.mrf.mxu0
      %v1646 = vadd.f32 0.0, %v1645
      %v1647 = vpop.f32.mrf.mxu0
      %1648 = vmatprep.mubr.bf16.mxu0 0
      %1649 = vmatmul.mubr.bf16.gmra.mxu0 %v1303
      %v1650 = vpop.f32.mrf.mxu0
      %v1651 = vadd.f32 0.0, %v1650
      %v1652 = vpop.f32.mrf.mxu0
      %v1653 = vpop.f32.mrf.mxu0
      %v1654 = vadd.f32 0.0, %v1653
      %v1655 = vpop.f32.mrf.mxu0
      %1656 = vdwg.mxu0
      %v1657 = vadd.f32 %v1208, %v1403
      %v1658 = vadd.f32 %v1209, %v1406
      %v1659 = vadd.f32 %v1210, %v1411
      %v1660 = vadd.f32 %v1211, %v1414
      %v1661 = vadd.f32 %v1212, %v1419
      %v1662 = vadd.f32 %v1213, %v1422
      %v1663 = vadd.f32 %v1214, %v1427
      %v1664 = vadd.f32 %v1215, %v1430
      %v1665 = vadd.f32 %v1216, %v1435
      %v1666 = vadd.f32 %v1217, %v1438
      %v1667 = vadd.f32 %v1218, %v1443
      %v1668 = vadd.f32 %v1219, %v1446
      %v1669 = vadd.f32 %v1220, %v1451
      %v1670 = vadd.f32 %v1221, %v1454
      %v1671 = vadd.f32 %v1222, %v1459
      %v1672 = vadd.f32 %v1223, %v1462
      %v1673 = vadd.f32 %v1224, %v1467
      %v1674 = vadd.f32 %v1225, %v1470
      %v1675 = vadd.f32 %v1226, %v1475
      %v1676 = vadd.f32 %v1227, %v1478
      %v1677 = vadd.f32 %v1228, %v1483
      %v1678 = vadd.f32 %v1229, %v1486
      %v1679 = vadd.f32 %v1230, %v1491
      %v1680 = vadd.f32 %v1231, %v1494
      %v1681 = vadd.f32 %v1232, %v1499
      %v1682 = vadd.f32 %v1233, %v1502
      %v1683 = vadd.f32 %v1234, %v1507
      %v1684 = vadd.f32 %v1235, %v1510
      %v1685 = vadd.f32 %v1236, %v1515
      %v1686 = vadd.f32 %v1237, %v1518
      %v1687 = vadd.f32 %v1238, %v1523
      %v1688 = vadd.f32 %v1239, %v1526
      %v1689 = vadd.f32 %v1240, %v1531
      %v1690 = vadd.f32 %v1241, %v1534
      %v1691 = vadd.f32 %v1242, %v1539
      %v1692 = vadd.f32 %v1243, %v1542
      %v1693 = vadd.f32 %v1244, %v1547
      %v1694 = vadd.f32 %v1245, %v1550
      %v1695 = vadd.f32 %v1246, %v1555
      %v1696 = vadd.f32 %v1247, %v1558
      %v1697 = vadd.f32 %v1248, %v1563
      %v1698 = vadd.f32 %v1249, %v1566
      %v1699 = vadd.f32 %v1250, %v1571
      %v1700 = vadd.f32 %v1251, %v1574
      %v1701 = vadd.f32 %v1252, %v1579
      %v1702 = vadd.f32 %v1253, %v1582
      %v1703 = vadd.f32 %v1254, %v1587
      %v1704 = vadd.f32 %v1255, %v1590
      %v1705 = vadd.f32 %v1256, %v1595
      %v1706 = vadd.f32 %v1257, %v1598
      %v1707 = vadd.f32 %v1258, %v1603
      %v1708 = vadd.f32 %v1259, %v1606
      %v1709 = vadd.f32 %v1260, %v1611
      %v1710 = vadd.f32 %v1261, %v1614
      %v1711 = vadd.f32 %v1262, %v1619
      %v1712 = vadd.f32 %v1263, %v1622
      %v1713 = vadd.f32 %v1264, %v1627
      %v1714 = vadd.f32 %v1265, %v1630
      %v1715 = vadd.f32 %v1266, %v1635
      %v1716 = vadd.f32 %v1267, %v1638
      %v1717 = vadd.f32 %v1268, %v1643
      %v1718 = vadd.f32 %v1269, %v1646
      %v1719 = vadd.f32 %v1270, %v1651
      %v1720 = vadd.f32 %v1271, %v1654
      %1721 = vst [vmem:[#allocation2] sm:$0xff] %v1657
      %1722 = vst [vmem:[#allocation2 + $0x8] sm:$0xff] %v1658
      %1723 = vst [vmem:[#allocation2 + $0x10] sm:$0xff] %v1659
      %1724 = vst [vmem:[#allocation2 + $0x18] sm:$0xff] %v1660
      %1725 = vst [vmem:[#allocation2 + $0x20] sm:$0xff] %v1661
      %1726 = vst [vmem:[#allocation2 + $0x28] sm:$0xff] %v1662
      %1727 = vst [vmem:[#allocation2 + $0x30] sm:$0xff] %v1663
      %1728 = vst [vmem:[#allocation2 + $0x38] sm:$0xff] %v1664
      %1729 = vst [vmem:[#allocation2 + $0x40] sm:$0xff] %v1665
      %1730 = vst [vmem:[#allocation2 + $0x48] sm:$0xff] %v1666
      %1731 = vst [vmem:[#allocation2 + $0x50] sm:$0xff] %v1667
      %1732 = vst [vmem:[#allocation2 + $0x58] sm:$0xff] %v1668
      %1733 = vst [vmem:[#allocation2 + $0x60] sm:$0xff] %v1669
      %1734 = vst [vmem:[#allocation2 + $0x68] sm:$0xff] %v1670
      %1735 = vst [vmem:[#allocation2 + $0x70] sm:$0xff] %v1671
      %1736 = vst [vmem:[#allocation2 + $0x78] sm:$0xff] %v1672
      %1737 = vst [vmem:[#allocation2 + $0x80] sm:$0xff] %v1673
      %1738 = vst [vmem:[#allocation2 + $0x88] sm:$0xff] %v1674
      %1739 = vst [vmem:[#allocation2 + $0x90] sm:$0xff] %v1675
      %1740 = vst [vmem:[#allocation2 + $0x98] sm:$0xff] %v1676
      %1741 = vst [vmem:[#allocation2 + $0xa0] sm:$0xff] %v1677
      %1742 = vst [vmem:[#allocation2 + $0xa8] sm:$0xff] %v1678
      %1743 = vst [vmem:[#allocation2 + $0xb0] sm:$0xff] %v1679
      %1744 = vst [vmem:[#allocation2 + $0xb8] sm:$0xff] %v1680
      %1745 = vst [vmem:[#allocation2 + $0xc0] sm:$0xff] %v1681
      %1746 = vst [vmem:[#allocation2 + $0xc8] sm:$0xff] %v1682
      %1747 = vst [vmem:[#allocation2 + $0xd0] sm:$0xff] %v1683
      %1748 = vst [vmem:[#allocation2 + $0xd8] sm:$0xff] %v1684
      %1749 = vst [vmem:[#allocation2 + $0xe0] sm:$0xff] %v1685
      %1750 = vst [vmem:[#allocation2 + $0xe8] sm:$0xff] %v1686
      %1751 = vst [vmem:[#allocation2 + $0xf0] sm:$0xff] %v1687
      %1752 = vst [vmem:[#allocation2 + $0xf8] sm:$0xff] %v1688
      %1753 = vst [vmem:[#allocation2 + $0x100] sm:$0xff] %v1689
      %1754 = vst [vmem:[#allocation2 + $0x108] sm:$0xff] %v1690
      %1755 = vst [vmem:[#allocation2 + $0x110] sm:$0xff] %v1691
      %1756 = vst [vmem:[#allocation2 + $0x118] sm:$0xff] %v1692
      %1757 = vst [vmem:[#allocation2 + $0x120] sm:$0xff] %v1693
      %1758 = vst [vmem:[#allocation2 + $0x128] sm:$0xff] %v1694
      %1759 = vst [vmem:[#allocation2 + $0x130] sm:$0xff] %v1695
      %1760 = vst [vmem:[#allocation2 + $0x138] sm:$0xff] %v1696
      %1761 = vst [vmem:[#allocation2 + $0x140] sm:$0xff] %v1697
      %1762 = vst [vmem:[#allocation2 + $0x148] sm:$0xff] %v1698
      %1763 = vst [vmem:[#allocation2 + $0x150] sm:$0xff] %v1699
      %1764 = vst [vmem:[#allocation2 + $0x158] sm:$0xff] %v1700
      %1765 = vst [vmem:[#allocation2 + $0x160] sm:$0xff] %v1701
      %1766 = vst [vmem:[#allocation2 + $0x168] sm:$0xff] %v1702
      %1767 = vst [vmem:[#allocation2 + $0x170] sm:$0xff] %v1703
      %1768 = vst [vmem:[#allocation2 + $0x178] sm:$0xff] %v1704
      %1769 = vst [vmem:[#allocation2 + $0x180] sm:$0xff] %v1705
      %1770 = vst [vmem:[#allocation2 + $0x188] sm:$0xff] %v1706
      %1771 = vst [vmem:[#allocation2 + $0x190] sm:$0xff] %v1707
      %1772 = vst [vmem:[#allocation2 + $0x198] sm:$0xff] %v1708
      %1773 = vst [vmem:[#allocation2 + $0x1a0] sm:$0xff] %v1709
      %1774 = vst [vmem:[#allocation2 + $0x1a8] sm:$0xff] %v1710
      %1775 = vst [vmem:[#allocation2 + $0x1b0] sm:$0xff] %v1711
      %1776 = vst [vmem:[#allocation2 + $0x1b8] sm:$0xff] %v1712
      %1777 = vst [vmem:[#allocation2 + $0x1c0] sm:$0xff] %v1713
      %1778 = vst [vmem:[#allocation2 + $0x1c8] sm:$0xff] %v1714
      %1779 = vst [vmem:[#allocation2 + $0x1d0] sm:$0xff] %v1715
      %1780 = vst [vmem:[#allocation2 + $0x1d8] sm:$0xff] %v1716
      %1781 = vst [vmem:[#allocation2 + $0x1e0] sm:$0xff] %v1717
      %1782 = vst [vmem:[#allocation2 + $0x1e8] sm:$0xff] %v1718
      %1783 = vst [vmem:[#allocation2 + $0x1f0] sm:$0xff] %v1719
      %1784 = vst [vmem:[#allocation2 + $0x1f8] sm:$0xff] %v1720
      // Predicated region
      $region57: #{conv_trans_bn_conv1.4} parent=47 // pred_check
        %p1785 = pneg %p530
      $region58: #{conv_trans_bn_conv1.4} parent=47 // pred_check_branch
        %1787 = sbr.rel (%p1785) target = $region60
      $region59: #{conv_trans_bn_conv1.4} parent=47 // pred_region
        %v1788 = vld [vmem:[#allocation2] sm:$0xff]
        %v1789 = vld [vmem:[#allocation2 + $0x8] sm:$0xff]
        %v1790 = vld [vmem:[#allocation2 + $0x10] sm:$0xff]
        %v1791 = vld [vmem:[#allocation2 + $0x18] sm:$0xff]
        %v1792 = vld [vmem:[#allocation2 + $0x20] sm:$0xff]
        %v1793 = vld [vmem:[#allocation2 + $0x28] sm:$0xff]
        %v1794 = vld [vmem:[#allocation2 + $0x30] sm:$0xff]
        %v1795 = vld [vmem:[#allocation2 + $0x38] sm:$0xff]
        %v1796 = vld [vmem:[#allocation2 + $0x40] sm:$0xff]
        %v1797 = vld [vmem:[#allocation2 + $0x48] sm:$0xff]
        %v1798 = vld [vmem:[#allocation2 + $0x50] sm:$0xff]
        %v1799 = vld [vmem:[#allocation2 + $0x58] sm:$0xff]
        %v1800 = vld [vmem:[#allocation2 + $0x60] sm:$0xff]
        %v1801 = vld [vmem:[#allocation2 + $0x68] sm:$0xff]
        %v1802 = vld [vmem:[#allocation2 + $0x70] sm:$0xff]
        %v1803 = vld [vmem:[#allocation2 + $0x78] sm:$0xff]
        %v1804 = vld [vmem:[#allocation2 + $0x80] sm:$0xff]
        %v1805 = vld [vmem:[#allocation2 + $0x88] sm:$0xff]
        %v1806 = vld [vmem:[#allocation2 + $0x90] sm:$0xff]
        %v1807 = vld [vmem:[#allocation2 + $0x98] sm:$0xff]
        %v1808 = vld [vmem:[#allocation2 + $0xa0] sm:$0xff]
        %v1809 = vld [vmem:[#allocation2 + $0xa8] sm:$0xff]
        %v1810 = vld [vmem:[#allocation2 + $0xb0] sm:$0xff]
        %v1811 = vld [vmem:[#allocation2 + $0xb8] sm:$0xff]
        %v1812 = vld [vmem:[#allocation2 + $0xc0] sm:$0xff]
        %v1813 = vld [vmem:[#allocation2 + $0xc8] sm:$0xff]
        %v1814 = vld [vmem:[#allocation2 + $0xd0] sm:$0xff]
        %v1815 = vld [vmem:[#allocation2 + $0xd8] sm:$0xff]
        %v1816 = vld [vmem:[#allocation2 + $0xe0] sm:$0xff]
        %v1817 = vld [vmem:[#allocation2 + $0xe8] sm:$0xff]
        %v1818 = vld [vmem:[#allocation2 + $0xf0] sm:$0xff]
        %v1819 = vld [vmem:[#allocation2 + $0xf8] sm:$0xff]
        %v1820 = vld [vmem:[#allocation2 + $0x100] sm:$0xff]
        %v1821 = vld [vmem:[#allocation2 + $0x108] sm:$0xff]
        %v1822 = vld [vmem:[#allocation2 + $0x110] sm:$0xff]
        %v1823 = vld [vmem:[#allocation2 + $0x118] sm:$0xff]
        %v1824 = vld [vmem:[#allocation2 + $0x120] sm:$0xff]
        %v1825 = vld [vmem:[#allocation2 + $0x128] sm:$0xff]
        %v1826 = vld [vmem:[#allocation2 + $0x130] sm:$0xff]
        %v1827 = vld [vmem:[#allocation2 + $0x138] sm:$0xff]
        %v1828 = vld [vmem:[#allocation2 + $0x140] sm:$0xff]
        %v1829 = vld [vmem:[#allocation2 + $0x148] sm:$0xff]
        %v1830 = vld [vmem:[#allocation2 + $0x150] sm:$0xff]
        %v1831 = vld [vmem:[#allocation2 + $0x158] sm:$0xff]
        %v1832 = vld [vmem:[#allocation2 + $0x160] sm:$0xff]
        %v1833 = vld [vmem:[#allocation2 + $0x168] sm:$0xff]
        %v1834 = vld [vmem:[#allocation2 + $0x170] sm:$0xff]
        %v1835 = vld [vmem:[#allocation2 + $0x178] sm:$0xff]
        %v1836 = vld [vmem:[#allocation2 + $0x180] sm:$0xff]
        %v1837 = vld [vmem:[#allocation2 + $0x188] sm:$0xff]
        %v1838 = vld [vmem:[#allocation2 + $0x190] sm:$0xff]
        %v1839 = vld [vmem:[#allocation2 + $0x198] sm:$0xff]
        %v1840 = vld [vmem:[#allocation2 + $0x1a0] sm:$0xff]
        %v1841 = vld [vmem:[#allocation2 + $0x1a8] sm:$0xff]
        %v1842 = vld [vmem:[#allocation2 + $0x1b0] sm:$0xff]
        %v1843 = vld [vmem:[#allocation2 + $0x1b8] sm:$0xff]
        %v1844 = vld [vmem:[#allocation2 + $0x1c0] sm:$0xff]
        %v1845 = vld [vmem:[#allocation2 + $0x1c8] sm:$0xff]
        %v1846 = vld [vmem:[#allocation2 + $0x1d0] sm:$0xff]
        %v1847 = vld [vmem:[#allocation2 + $0x1d8] sm:$0xff]
        %v1848 = vld [vmem:[#allocation2 + $0x1e0] sm:$0xff]
        %v1849 = vld [vmem:[#allocation2 + $0x1e8] sm:$0xff]
        %v1850 = vld [vmem:[#allocation2 + $0x1f0] sm:$0xff]
        %v1851 = vld [vmem:[#allocation2 + $0x1f8] sm:$0xff]
        %v1852 = vld [vmem:[%s505] sm:$0x1]
        %v1854 = vlaneseq
        %v1855 = vshrl.u32 %v1854, 7
        %v1856 = vsub.s32 0, %v1855
        %v1857 = vrot.slane %v1852, %v1856
        %v1859 = vadd.f32 %v1788, %v1857
        %v1860 = vadd.f32 %v1789, %v1857
        %v1861 = vadd.f32 %v1790, %v1857
        %v1862 = vadd.f32 %v1791, %v1857
        %v1863 = vadd.f32 %v1792, %v1857
        %v1864 = vadd.f32 %v1793, %v1857
        %v1865 = vadd.f32 %v1794, %v1857
        %v1866 = vadd.f32 %v1795, %v1857
        %v1867 = vadd.f32 %v1796, %v1857
        %v1868 = vadd.f32 %v1797, %v1857
        %v1869 = vadd.f32 %v1798, %v1857
        %v1870 = vadd.f32 %v1799, %v1857
        %v1871 = vadd.f32 %v1800, %v1857
        %v1872 = vadd.f32 %v1801, %v1857
        %v1873 = vadd.f32 %v1802, %v1857
        %v1874 = vadd.f32 %v1803, %v1857
        %v1875 = vadd.f32 %v1804, %v1857
        %v1876 = vadd.f32 %v1805, %v1857
        %v1877 = vadd.f32 %v1806, %v1857
        %v1878 = vadd.f32 %v1807, %v1857
        %v1879 = vadd.f32 %v1808, %v1857
        %v1880 = vadd.f32 %v1809, %v1857
        %v1881 = vadd.f32 %v1810, %v1857
        %v1882 = vadd.f32 %v1811, %v1857
        %v1883 = vadd.f32 %v1812, %v1857
        %v1884 = vadd.f32 %v1813, %v1857
        %v1885 = vadd.f32 %v1814, %v1857
        %v1886 = vadd.f32 %v1815, %v1857
        %v1887 = vadd.f32 %v1816, %v1857
        %v1888 = vadd.f32 %v1817, %v1857
        %v1889 = vadd.f32 %v1818, %v1857
        %v1890 = vadd.f32 %v1819, %v1857
        %v1891 = vadd.f32 %v1820, %v1857
        %v1892 = vadd.f32 %v1821, %v1857
        %v1893 = vadd.f32 %v1822, %v1857
        %v1894 = vadd.f32 %v1823, %v1857
        %v1895 = vadd.f32 %v1824, %v1857
        %v1896 = vadd.f32 %v1825, %v1857
        %v1897 = vadd.f32 %v1826, %v1857
        %v1898 = vadd.f32 %v1827, %v1857
        %v1899 = vadd.f32 %v1828, %v1857
        %v1900 = vadd.f32 %v1829, %v1857
        %v1901 = vadd.f32 %v1830, %v1857
        %v1902 = vadd.f32 %v1831, %v1857
        %v1903 = vadd.f32 %v1832, %v1857
        %v1904 = vadd.f32 %v1833, %v1857
        %v1905 = vadd.f32 %v1834, %v1857
        %v1906 = vadd.f32 %v1835, %v1857
        %v1907 = vadd.f32 %v1836, %v1857
        %v1908 = vadd.f32 %v1837, %v1857
        %v1909 = vadd.f32 %v1838, %v1857
        %v1910 = vadd.f32 %v1839, %v1857
        %v1911 = vadd.f32 %v1840, %v1857
        %v1912 = vadd.f32 %v1841, %v1857
        %v1913 = vadd.f32 %v1842, %v1857
        %v1914 = vadd.f32 %v1843, %v1857
        %v1915 = vadd.f32 %v1844, %v1857
        %v1916 = vadd.f32 %v1845, %v1857
        %v1917 = vadd.f32 %v1846, %v1857
        %v1918 = vadd.f32 %v1847, %v1857
        %v1919 = vadd.f32 %v1848, %v1857
        %v1920 = vadd.f32 %v1849, %v1857
        %v1921 = vadd.f32 %v1850, %v1857
        %v1922 = vadd.f32 %v1851, %v1857
        %v1923 = vpack.c.bf16 %v1860, %v1859
        %v1924 = vpack.c.bf16 %v1862, %v1861
        %v1925 = vpack.c.bf16 %v1864, %v1863
        %v1926 = vpack.c.bf16 %v1866, %v1865
        %v1927 = vpack.c.bf16 %v1868, %v1867
        %v1928 = vpack.c.bf16 %v1870, %v1869
        %v1929 = vpack.c.bf16 %v1872, %v1871
        %v1930 = vpack.c.bf16 %v1874, %v1873
        %v1931 = vpack.c.bf16 %v1876, %v1875
        %v1932 = vpack.c.bf16 %v1878, %v1877
        %v1933 = vpack.c.bf16 %v1880, %v1879
        %v1934 = vpack.c.bf16 %v1882, %v1881
        %v1935 = vpack.c.bf16 %v1884, %v1883
        %v1936 = vpack.c.bf16 %v1886, %v1885
        %v1937 = vpack.c.bf16 %v1888, %v1887
        %v1938 = vpack.c.bf16 %v1890, %v1889
        %v1939 = vpack.c.bf16 %v1892, %v1891
        %v1940 = vpack.c.bf16 %v1894, %v1893
        %v1941 = vpack.c.bf16 %v1896, %v1895
        %v1942 = vpack.c.bf16 %v1898, %v1897
        %v1943 = vpack.c.bf16 %v1900, %v1899
        %v1944 = vpack.c.bf16 %v1902, %v1901
        %v1945 = vpack.c.bf16 %v1904, %v1903
        %v1946 = vpack.c.bf16 %v1906, %v1905
        %v1947 = vpack.c.bf16 %v1908, %v1907
        %v1948 = vpack.c.bf16 %v1910, %v1909
        %v1949 = vpack.c.bf16 %v1912, %v1911
        %v1950 = vpack.c.bf16 %v1914, %v1913
        %v1951 = vpack.c.bf16 %v1916, %v1915
        %v1952 = vpack.c.bf16 %v1918, %v1917
        %v1953 = vpack.c.bf16 %v1920, %v1919
        %v1954 = vpack.c.bf16 %v1922, %v1921
        %v1987 = vunpack.c.l.b16 %v1923
        %v1988 = vunpack.c.h.b16 %v1923
        %v1989 = vunpack.c.l.b16 %v1924
        %v1990 = vunpack.c.h.b16 %v1924
        %v1991 = vunpack.c.l.b16 %v1925
        %v1992 = vunpack.c.h.b16 %v1925
        %v1993 = vunpack.c.l.b16 %v1926
        %v1994 = vunpack.c.h.b16 %v1926
        %v1995 = vunpack.c.l.b16 %v1927
        %v1996 = vunpack.c.h.b16 %v1927
        %v1997 = vunpack.c.l.b16 %v1928
        %v1998 = vunpack.c.h.b16 %v1928
        %v1999 = vunpack.c.l.b16 %v1929
        %v2000 = vunpack.c.h.b16 %v1929
        %v2001 = vunpack.c.l.b16 %v1930
        %v2002 = vunpack.c.h.b16 %v1930
        %v2003 = vunpack.c.l.b16 %v1931
        %v2004 = vunpack.c.h.b16 %v1931
        %v2005 = vunpack.c.l.b16 %v1932
        %v2006 = vunpack.c.h.b16 %v1932
        %v2007 = vunpack.c.l.b16 %v1933
        %v2008 = vunpack.c.h.b16 %v1933
        %v2009 = vunpack.c.l.b16 %v1934
        %v2010 = vunpack.c.h.b16 %v1934
        %v2011 = vunpack.c.l.b16 %v1935
        %v2012 = vunpack.c.h.b16 %v1935
        %v2013 = vunpack.c.l.b16 %v1936
        %v2014 = vunpack.c.h.b16 %v1936
        %v2015 = vunpack.c.l.b16 %v1937
        %v2016 = vunpack.c.h.b16 %v1937
        %v2017 = vunpack.c.l.b16 %v1938
        %v2018 = vunpack.c.h.b16 %v1938
        %v2019 = vunpack.c.l.b16 %v1939
        %v2020 = vunpack.c.h.b16 %v1939
        %v2021 = vunpack.c.l.b16 %v1940
        %v2022 = vunpack.c.h.b16 %v1940
        %v2023 = vunpack.c.l.b16 %v1941
        %v2024 = vunpack.c.h.b16 %v1941
        %v2025 = vunpack.c.l.b16 %v1942
        %v2026 = vunpack.c.h.b16 %v1942
        %v2027 = vunpack.c.l.b16 %v1943
        %v2028 = vunpack.c.h.b16 %v1943
        %v2029 = vunpack.c.l.b16 %v1944
        %v2030 = vunpack.c.h.b16 %v1944
        %v2031 = vunpack.c.l.b16 %v1945
        %v2032 = vunpack.c.h.b16 %v1945
        %v2033 = vunpack.c.l.b16 %v1946
        %v2034 = vunpack.c.h.b16 %v1946
        %v2035 = vunpack.c.l.b16 %v1947
        %v2036 = vunpack.c.h.b16 %v1947
        %v2037 = vunpack.c.l.b16 %v1948
        %v2038 = vunpack.c.h.b16 %v1948
        %v2039 = vunpack.c.l.b16 %v1949
        %v2040 = vunpack.c.h.b16 %v1949
        %v2041 = vunpack.c.l.b16 %v1950
        %v2042 = vunpack.c.h.b16 %v1950
        %v2043 = vunpack.c.l.b16 %v1951
        %v2044 = vunpack.c.h.b16 %v1951
        %v2045 = vunpack.c.l.b16 %v1952
        %v2046 = vunpack.c.h.b16 %v1952
        %v2047 = vunpack.c.l.b16 %v1953
        %v2048 = vunpack.c.h.b16 %v1953
        %v2049 = vunpack.c.l.b16 %v1954
        %v2050 = vunpack.c.h.b16 %v1954
        %v2051 = vpack.c.b16 %v1987, %v1987
        %v2052 = vpack.c.b16 %v1988, %v1988
        %v2053 = vpack.c.b16 %v1989, %v1989
        %v2054 = vpack.c.b16 %v1990, %v1990
        %v2055 = vpack.c.b16 %v1991, %v1991
        %v2056 = vpack.c.b16 %v1992, %v1992
        %v2057 = vpack.c.b16 %v1993, %v1993
        %v2058 = vpack.c.b16 %v1994, %v1994
        %v2059 = vpack.c.b16 %v1995, %v1995
        %v2060 = vpack.c.b16 %v1996, %v1996
        %v2061 = vpack.c.b16 %v1997, %v1997
        %v2062 = vpack.c.b16 %v1998, %v1998
        %v2063 = vpack.c.b16 %v1999, %v1999
        %v2064 = vpack.c.b16 %v2000, %v2000
        %v2065 = vpack.c.b16 %v2001, %v2001
        %v2066 = vpack.c.b16 %v2002, %v2002
        %v2067 = vpack.c.b16 %v2003, %v2003
        %v2068 = vpack.c.b16 %v2004, %v2004
        %v2069 = vpack.c.b16 %v2005, %v2005
        %v2070 = vpack.c.b16 %v2006, %v2006
        %v2071 = vpack.c.b16 %v2007, %v2007
        %v2072 = vpack.c.b16 %v2008, %v2008
        %v2073 = vpack.c.b16 %v2009, %v2009
        %v2074 = vpack.c.b16 %v2010, %v2010
        %v2075 = vpack.c.b16 %v2011, %v2011
        %v2076 = vpack.c.b16 %v2012, %v2012
        %v2077 = vpack.c.b16 %v2013, %v2013
        %v2078 = vpack.c.b16 %v2014, %v2014
        %v2079 = vpack.c.b16 %v2015, %v2015
        %v2080 = vpack.c.b16 %v2016, %v2016
        %v2081 = vpack.c.b16 %v2017, %v2017
        %v2082 = vpack.c.b16 %v2018, %v2018
        %v2083 = vpack.c.b16 %v2019, %v2019
        %v2084 = vpack.c.b16 %v2020, %v2020
        %v2085 = vpack.c.b16 %v2021, %v2021
        %v2086 = vpack.c.b16 %v2022, %v2022
        %v2087 = vpack.c.b16 %v2023, %v2023
        %v2088 = vpack.c.b16 %v2024, %v2024
        %v2089 = vpack.c.b16 %v2025, %v2025
        %v2090 = vpack.c.b16 %v2026, %v2026
        %v2091 = vpack.c.b16 %v2027, %v2027
        %v2092 = vpack.c.b16 %v2028, %v2028
        %v2093 = vpack.c.b16 %v2029, %v2029
        %v2094 = vpack.c.b16 %v2030, %v2030
        %v2095 = vpack.c.b16 %v2031, %v2031
        %v2096 = vpack.c.b16 %v2032, %v2032
        %v2097 = vpack.c.b16 %v2033, %v2033
        %v2098 = vpack.c.b16 %v2034, %v2034
        %v2099 = vpack.c.b16 %v2035, %v2035
        %v2100 = vpack.c.b16 %v2036, %v2036
        %v2101 = vpack.c.b16 %v2037, %v2037
        %v2102 = vpack.c.b16 %v2038, %v2038
        %v2103 = vpack.c.b16 %v2039, %v2039
        %v2104 = vpack.c.b16 %v2040, %v2040
        %v2105 = vpack.c.b16 %v2041, %v2041
        %v2106 = vpack.c.b16 %v2042, %v2042
        %v2107 = vpack.c.b16 %v2043, %v2043
        %v2108 = vpack.c.b16 %v2044, %v2044
        %v2109 = vpack.c.b16 %v2045, %v2045
        %v2110 = vpack.c.b16 %v2046, %v2046
        %v2111 = vpack.c.b16 %v2047, %v2047
        %v2112 = vpack.c.b16 %v2048, %v2048
        %v2113 = vpack.c.b16 %v2049, %v2049
        %v2114 = vpack.c.b16 %v2050, %v2050
        %2179 = vst [vmem:[%s517] sm:$0xf] %v2051
        %2180 = vst [vmem:[%s517 + $0x4] sm:$0xf] %v2052
        %2181 = vst [vmem:[%s517 + $0x8] sm:$0xf] %v2053
        %2182 = vst [vmem:[%s517 + $0xc] sm:$0xf] %v2054
        %2183 = vst [vmem:[%s517 + $0x10] sm:$0xf] %v2055
        %2184 = vst [vmem:[%s517 + $0x14] sm:$0xf] %v2056
        %2185 = vst [vmem:[%s517 + $0x18] sm:$0xf] %v2057
        %2186 = vst [vmem:[%s517 + $0x1c] sm:$0xf] %v2058
        %2187 = vst [vmem:[%s517 + $0x20] sm:$0xf] %v2059
        %2188 = vst [vmem:[%s517 + $0x24] sm:$0xf] %v2060
        %2189 = vst [vmem:[%s517 + $0x28] sm:$0xf] %v2061
        %2190 = vst [vmem:[%s517 + $0x2c] sm:$0xf] %v2062
        %2191 = vst [vmem:[%s517 + $0x30] sm:$0xf] %v2063
        %2192 = vst [vmem:[%s517 + $0x34] sm:$0xf] %v2064
        %2193 = vst [vmem:[%s517 + $0x38] sm:$0xf] %v2065
        %2194 = vst [vmem:[%s517 + $0x3c] sm:$0xf] %v2066
        %2195 = vst [vmem:[%s517 + $0x40] sm:$0xf] %v2067
        %2196 = vst [vmem:[%s517 + $0x44] sm:$0xf] %v2068
        %2197 = vst [vmem:[%s517 + $0x48] sm:$0xf] %v2069
        %2198 = vst [vmem:[%s517 + $0x4c] sm:$0xf] %v2070
        %2199 = vst [vmem:[%s517 + $0x50] sm:$0xf] %v2071
        %2200 = vst [vmem:[%s517 + $0x54] sm:$0xf] %v2072
        %2201 = vst [vmem:[%s517 + $0x58] sm:$0xf] %v2073
        %2202 = vst [vmem:[%s517 + $0x5c] sm:$0xf] %v2074
        %2203 = vst [vmem:[%s517 + $0x60] sm:$0xf] %v2075
        %2204 = vst [vmem:[%s517 + $0x64] sm:$0xf] %v2076
        %2205 = vst [vmem:[%s517 + $0x68] sm:$0xf] %v2077
        %2206 = vst [vmem:[%s517 + $0x6c] sm:$0xf] %v2078
        %2207 = vst [vmem:[%s517 + $0x70] sm:$0xf] %v2079
        %2208 = vst [vmem:[%s517 + $0x74] sm:$0xf] %v2080
        %2209 = vst [vmem:[%s517 + $0x78] sm:$0xf] %v2081
        %2210 = vst [vmem:[%s517 + $0x7c] sm:$0xf] %v2082
        %2211 = vst [vmem:[%s517 + $0x80] sm:$0xf] %v2083
        %2212 = vst [vmem:[%s517 + $0x84] sm:$0xf] %v2084
        %2213 = vst [vmem:[%s517 + $0x88] sm:$0xf] %v2085
        %2214 = vst [vmem:[%s517 + $0x8c] sm:$0xf] %v2086
        %2215 = vst [vmem:[%s517 + $0x90] sm:$0xf] %v2087
        %2216 = vst [vmem:[%s517 + $0x94] sm:$0xf] %v2088
        %2217 = vst [vmem:[%s517 + $0x98] sm:$0xf] %v2089
        %2218 = vst [vmem:[%s517 + $0x9c] sm:$0xf] %v2090
        %2219 = vst [vmem:[%s517 + $0xa0] sm:$0xf] %v2091
        %2220 = vst [vmem:[%s517 + $0xa4] sm:$0xf] %v2092
        %2221 = vst [vmem:[%s517 + $0xa8] sm:$0xf] %v2093
        %2222 = vst [vmem:[%s517 + $0xac] sm:$0xf] %v2094
        %2223 = vst [vmem:[%s517 + $0xb0] sm:$0xf] %v2095
        %2224 = vst [vmem:[%s517 + $0xb4] sm:$0xf] %v2096
        %2225 = vst [vmem:[%s517 + $0xb8] sm:$0xf] %v2097
        %2226 = vst [vmem:[%s517 + $0xbc] sm:$0xf] %v2098
        %2227 = vst [vmem:[%s517 + $0xc0] sm:$0xf] %v2099
        %2228 = vst [vmem:[%s517 + $0xc4] sm:$0xf] %v2100
        %2229 = vst [vmem:[%s517 + $0xc8] sm:$0xf] %v2101
        %2230 = vst [vmem:[%s517 + $0xcc] sm:$0xf] %v2102
        %2231 = vst [vmem:[%s517 + $0xd0] sm:$0xf] %v2103
        %2232 = vst [vmem:[%s517 + $0xd4] sm:$0xf] %v2104
        %2233 = vst [vmem:[%s517 + $0xd8] sm:$0xf] %v2105
        %2234 = vst [vmem:[%s517 + $0xdc] sm:$0xf] %v2106
        %2235 = vst [vmem:[%s517 + $0xe0] sm:$0xf] %v2107
        %2236 = vst [vmem:[%s517 + $0xe4] sm:$0xf] %v2108
        %2237 = vst [vmem:[%s517 + $0xe8] sm:$0xf] %v2109
        %2238 = vst [vmem:[%s517 + $0xec] sm:$0xf] %v2110
        %2239 = vst [vmem:[%s517 + $0xf0] sm:$0xf] %v2111
        %2240 = vst [vmem:[%s517 + $0xf4] sm:$0xf] %v2112
        %2241 = vst [vmem:[%s517 + $0xf8] sm:$0xf] %v2113
        %2242 = vst [vmem:[%s517 + $0xfc] sm:$0xf] %v2114
        %v2243 = vld [vmem:[#allocation3] sm:$0x1]
        %v2244 = vadd.f32 %v1859, %v1860
        %v2245 = vadd.f32 %v2244, %v1861
        %v2246 = vadd.f32 %v2245, %v1862
        %v2247 = vadd.f32 %v2246, %v1863
        %v2248 = vadd.f32 %v2247, %v1864
        %v2249 = vadd.f32 %v2248, %v1865
        %v2250 = vadd.f32 %v2249, %v1866
        %v2251 = vadd.f32 %v2250, %v1867
        %v2252 = vadd.f32 %v2251, %v1868
        %v2253 = vadd.f32 %v2252, %v1869
        %v2254 = vadd.f32 %v2253, %v1870
        %v2255 = vadd.f32 %v2254, %v1871
        %v2256 = vadd.f32 %v2255, %v1872
        %v2257 = vadd.f32 %v2256, %v1873
        %v2258 = vadd.f32 %v2257, %v1874
        %v2259 = vadd.f32 %v2258, %v1875
        %v2260 = vadd.f32 %v2259, %v1876
        %v2261 = vadd.f32 %v2260, %v1877
        %v2262 = vadd.f32 %v2261, %v1878
        %v2263 = vadd.f32 %v2262, %v1879
        %v2264 = vadd.f32 %v2263, %v1880
        %v2265 = vadd.f32 %v2264, %v1881
        %v2266 = vadd.f32 %v2265, %v1882
        %v2267 = vadd.f32 %v2266, %v1883
        %v2268 = vadd.f32 %v2267, %v1884
        %v2269 = vadd.f32 %v2268, %v1885
        %v2270 = vadd.f32 %v2269, %v1886
        %v2271 = vadd.f32 %v2270, %v1887
        %v2272 = vadd.f32 %v2271, %v1888
        %v2273 = vadd.f32 %v2272, %v1889
        %v2274 = vadd.f32 %v2273, %v1890
        %v2275 = vadd.f32 %v2274, %v1891
        %v2276 = vadd.f32 %v2275, %v1892
        %v2277 = vadd.f32 %v2276, %v1893
        %v2278 = vadd.f32 %v2277, %v1894
        %v2279 = vadd.f32 %v2278, %v1895
        %v2280 = vadd.f32 %v2279, %v1896
        %v2281 = vadd.f32 %v2280, %v1897
        %v2282 = vadd.f32 %v2281, %v1898
        %v2283 = vadd.f32 %v2282, %v1899
        %v2284 = vadd.f32 %v2283, %v1900
        %v2285 = vadd.f32 %v2284, %v1901
        %v2286 = vadd.f32 %v2285, %v1902
        %v2287 = vadd.f32 %v2286, %v1903
        %v2288 = vadd.f32 %v2287, %v1904
        %v2289 = vadd.f32 %v2288, %v1905
        %v2290 = vadd.f32 %v2289, %v1906
        %v2291 = vadd.f32 %v2290, %v1907
        %v2292 = vadd.f32 %v2291, %v1908
        %v2293 = vadd.f32 %v2292, %v1909
        %v2294 = vadd.f32 %v2293, %v1910
        %v2295 = vadd.f32 %v2294, %v1911
        %v2296 = vadd.f32 %v2295, %v1912
        %v2297 = vadd.f32 %v2296, %v1913
        %v2298 = vadd.f32 %v2297, %v1914
        %v2299 = vadd.f32 %v2298, %v1915
        %v2300 = vadd.f32 %v2299, %v1916
        %v2301 = vadd.f32 %v2300, %v1917
        %v2302 = vadd.f32 %v2301, %v1918
        %v2303 = vadd.f32 %v2302, %v1919
        %v2304 = vadd.f32 %v2303, %v1920
        %v2305 = vadd.f32 %v2304, %v1921
        %v2306 = vadd.f32 %v2305, %v1922
        %v2307 = vrot.slane %v2306, 4
        %v2308 = vadd.f32 %v2306, %v2307
        %v2309 = vrot.slane %v2308, 2
        %v2310 = vadd.f32 %v2308, %v2309
        %v2311 = vrot.slane %v2310, 1
        %v2312 = vadd.f32 %v2310, %v2311
        %v2313 = vadd.f32 %v2243, %v2312
        %2314 = vst [vmem:[#allocation3] sm:$0x1] %v2313
        %v2315 = vld [vmem:[#allocation4] sm:$0x1]
        %v2316 = vmul.f32 %v1859, %v1859
        %v2317 = vmul.f32 %v1860, %v1860
        %v2318 = vmul.f32 %v1861, %v1861
        %v2319 = vmul.f32 %v1862, %v1862
        %v2320 = vmul.f32 %v1863, %v1863
        %v2321 = vmul.f32 %v1864, %v1864
        %v2322 = vmul.f32 %v1865, %v1865
        %v2323 = vmul.f32 %v1866, %v1866
        %v2324 = vmul.f32 %v1867, %v1867
        %v2325 = vmul.f32 %v1868, %v1868
        %v2326 = vmul.f32 %v1869, %v1869
        %v2327 = vmul.f32 %v1870, %v1870
        %v2328 = vmul.f32 %v1871, %v1871
        %v2329 = vmul.f32 %v1872, %v1872
        %v2330 = vmul.f32 %v1873, %v1873
        %v2331 = vmul.f32 %v1874, %v1874
        %v2332 = vmul.f32 %v1875, %v1875
        %v2333 = vmul.f32 %v1876, %v1876
        %v2334 = vmul.f32 %v1877, %v1877
        %v2335 = vmul.f32 %v1878, %v1878
        %v2336 = vmul.f32 %v1879, %v1879
        %v2337 = vmul.f32 %v1880, %v1880
        %v2338 = vmul.f32 %v1881, %v1881
        %v2339 = vmul.f32 %v1882, %v1882
        %v2340 = vmul.f32 %v1883, %v1883
        %v2341 = vmul.f32 %v1884, %v1884
        %v2342 = vmul.f32 %v1885, %v1885
        %v2343 = vmul.f32 %v1886, %v1886
        %v2344 = vmul.f32 %v1887, %v1887
        %v2345 = vmul.f32 %v1888, %v1888
        %v2346 = vmul.f32 %v1889, %v1889
        %v2347 = vmul.f32 %v1890, %v1890
        %v2348 = vmul.f32 %v1891, %v1891
        %v2349 = vmul.f32 %v1892, %v1892
        %v2350 = vmul.f32 %v1893, %v1893
        %v2351 = vmul.f32 %v1894, %v1894
        %v2352 = vmul.f32 %v1895, %v1895
        %v2353 = vmul.f32 %v1896, %v1896
        %v2354 = vmul.f32 %v1897, %v1897
        %v2355 = vmul.f32 %v1898, %v1898
        %v2356 = vmul.f32 %v1899, %v1899
        %v2357 = vmul.f32 %v1900, %v1900
        %v2358 = vmul.f32 %v1901, %v1901
        %v2359 = vmul.f32 %v1902, %v1902
        %v2360 = vmul.f32 %v1903, %v1903
        %v2361 = vmul.f32 %v1904, %v1904
        %v2362 = vmul.f32 %v1905, %v1905
        %v2363 = vmul.f32 %v1906, %v1906
        %v2364 = vmul.f32 %v1907, %v1907
        %v2365 = vmul.f32 %v1908, %v1908
        %v2366 = vmul.f32 %v1909, %v1909
        %v2367 = vmul.f32 %v1910, %v1910
        %v2368 = vmul.f32 %v1911, %v1911
        %v2369 = vmul.f32 %v1912, %v1912
        %v2370 = vmul.f32 %v1913, %v1913
        %v2371 = vmul.f32 %v1914, %v1914
        %v2372 = vmul.f32 %v1915, %v1915
        %v2373 = vmul.f32 %v1916, %v1916
        %v2374 = vmul.f32 %v1917, %v1917
        %v2375 = vmul.f32 %v1918, %v1918
        %v2376 = vmul.f32 %v1919, %v1919
        %v2377 = vmul.f32 %v1920, %v1920
        %v2378 = vmul.f32 %v1921, %v1921
        %v2379 = vmul.f32 %v1922, %v1922
        %v2380 = vadd.f32 %v2316, %v2317
        %v2381 = vadd.f32 %v2380, %v2318
        %v2382 = vadd.f32 %v2381, %v2319
        %v2383 = vadd.f32 %v2382, %v2320
        %v2384 = vadd.f32 %v2383, %v2321
        %v2385 = vadd.f32 %v2384, %v2322
        %v2386 = vadd.f32 %v2385, %v2323
        %v2387 = vadd.f32 %v2386, %v2324
        %v2388 = vadd.f32 %v2387, %v2325
        %v2389 = vadd.f32 %v2388, %v2326
        %v2390 = vadd.f32 %v2389, %v2327
        %v2391 = vadd.f32 %v2390, %v2328
        %v2392 = vadd.f32 %v2391, %v2329
        %v2393 = vadd.f32 %v2392, %v2330
        %v2394 = vadd.f32 %v2393, %v2331
        %v2395 = vadd.f32 %v2394, %v2332
        %v2396 = vadd.f32 %v2395, %v2333
        %v2397 = vadd.f32 %v2396, %v2334
        %v2398 = vadd.f32 %v2397, %v2335
        %v2399 = vadd.f32 %v2398, %v2336
        %v2400 = vadd.f32 %v2399, %v2337
        %v2401 = vadd.f32 %v2400, %v2338
        %v2402 = vadd.f32 %v2401, %v2339
        %v2403 = vadd.f32 %v2402, %v2340
        %v2404 = vadd.f32 %v2403, %v2341
        %v2405 = vadd.f32 %v2404, %v2342
        %v2406 = vadd.f32 %v2405, %v2343
        %v2407 = vadd.f32 %v2406, %v2344
        %v2408 = vadd.f32 %v2407, %v2345
        %v2409 = vadd.f32 %v2408, %v2346
        %v2410 = vadd.f32 %v2409, %v2347
        %v2411 = vadd.f32 %v2410, %v2348
        %v2412 = vadd.f32 %v2411, %v2349
        %v2413 = vadd.f32 %v2412, %v2350
        %v2414 = vadd.f32 %v2413, %v2351
        %v2415 = vadd.f32 %v2414, %v2352
        %v2416 = vadd.f32 %v2415, %v2353
        %v2417 = vadd.f32 %v2416, %v2354
        %v2418 = vadd.f32 %v2417, %v2355
        %v2419 = vadd.f32 %v2418, %v2356
        %v2420 = vadd.f32 %v2419, %v2357
        %v2421 = vadd.f32 %v2420, %v2358
        %v2422 = vadd.f32 %v2421, %v2359
        %v2423 = vadd.f32 %v2422, %v2360
        %v2424 = vadd.f32 %v2423, %v2361
        %v2425 = vadd.f32 %v2424, %v2362
        %v2426 = vadd.f32 %v2425, %v2363
        %v2427 = vadd.f32 %v2426, %v2364
        %v2428 = vadd.f32 %v2427, %v2365
        %v2429 = vadd.f32 %v2428, %v2366
        %v2430 = vadd.f32 %v2429, %v2367
        %v2431 = vadd.f32 %v2430, %v2368
        %v2432 = vadd.f32 %v2431, %v2369
        %v2433 = vadd.f32 %v2432, %v2370
        %v2434 = vadd.f32 %v2433, %v2371
        %v2435 = vadd.f32 %v2434, %v2372
        %v2436 = vadd.f32 %v2435, %v2373
        %v2437 = vadd.f32 %v2436, %v2374
        %v2438 = vadd.f32 %v2437, %v2375
        %v2439 = vadd.f32 %v2438, %v2376
        %v2440 = vadd.f32 %v2439, %v2377
        %v2441 = vadd.f32 %v2440, %v2378
        %v2442 = vadd.f32 %v2441, %v2379
        %v2443 = vrot.slane %v2442, 4
        %v2444 = vadd.f32 %v2442, %v2443
        %v2445 = vrot.slane %v2444, 2
        %v2446 = vadd.f32 %v2444, %v2445
        %v2447 = vrot.slane %v2446, 1
        %v2448 = vadd.f32 %v2446, %v2447
        %v2449 = vadd.f32 %v2315, %v2448
        %2450 = vst [vmem:[#allocation4] sm:$0x1] %v2449
      $region60: #{conv_trans_bn_conv1.4} parent=47 // pred_fallthru
        _
      %p2451 = scmp.eq.s32.totalorder %s28, 3
      %p2452 = pnand %p2451, %p527
      %p2453 = pneg %p2452
      %p2454 = pnand %p2453, %p530
      %p2455 = pneg %p2454
      // Predicated region
      $region61: #{conv_trans_bn_conv1.4} parent=47 // pred_check
        _
      $region62: #{conv_trans_bn_conv1.4} parent=47 // pred_check_branch
        %2457 = sbr.rel (%p2454) target = $region64
      $region63: #{conv_trans_bn_conv1.4} parent=47 // pred_region
        %v2458 = vld [vmem:[#allocation3] sm:$0x1]
        %v2459 = vmul.f32 %v2458, 0.00048828125
        %v2460 = vld [vmem:[#allocation4] sm:$0x1]
        %v2461 = vmul.f32 %v2460, 0.00048828125
        %v2462 = vmul.f32 %v2459, %v2459
        %v2463 = vsub.f32 %v2461, %v2462
        %v2464 = vmax.f32 %v2463, 0.0
        %2465 = vst [vmem:[%s521] sm:$0x1] %v2459
        %v2466 = vadd.f32 %v2464, 1e-05
        %v2467 = vrsqrt.pop %v2466
        %2468 = vst [vmem:[%s524] sm:$0x1] %v2467
      $region64: #{conv_trans_bn_conv1.4} parent=47 // pred_fallthru
        _
      %s2469 = smul.u32 64, %s29
      %p2470 = scmp.lt.s32.totalorder %s28, 3
      %s2471 = scalar_select %p2470, %s28, 3
      %p2472 = scmp.lt.s32.totalorder %s2469, 63
      %s2473 = scalar_select %p2472, %s2469, 63
      %p2474 = scmp.lt.s32.totalorder %s27, 0
      %s2475 = scalar_select %p2474, %s27, 0
      %s2476 = sadd.s32 %s2475, %s2473
      %s2477 = smul.addr %s2471, 64
      %s2478 = sadd.s32 %s2476, %s2477
      %s2479 = smul.addr %s2478, 4
      %s2480 = scalar_lea.vmem %s7, %s2479
      %p2481 = scmp.lt.s32.totalorder %s27, 0
      %s2482 = scalar_select %p2481, %s27, 0
      %s2483 = scalar_lea.vmem %s8, %s2482
      %p2484 = scmp.lt.s32.totalorder %s27, 0
      %s2485 = scalar_select %p2484, %s27, 0
      %s2486 = scalar_lea.vmem %s9, %s2485
      // Predicated region
      $region65: #{conv_trans_bn_conv1.4} parent=47 // pred_check
        %p2487 = pneg %p257
      $region66: #{conv_trans_bn_conv1.4} parent=47 // pred_check_branch
        %2489 = sbr.rel (%p2487) target = $region68
      $region67: #{conv_trans_bn_conv1.4} parent=47 // pred_region
        %s2490 = smul.u32 64, %s29
      $region68: #{conv_trans_bn_conv1.4} parent=47 // pred_fallthru
        _
      // Predicated region
      $region69: #{conv_trans_bn_conv1.4} parent=47 // pred_check
        %p2491 = pneg %p283
      $region70: #{conv_trans_bn_conv1.4} parent=47 // pred_check_branch
        %2493 = sbr.rel (%p2491) target = $region72
      $region71: #{conv_trans_bn_conv1.4} parent=47 // pred_region
        _
      $region72: #{conv_trans_bn_conv1.4} parent=47 // pred_fallthru
        _
      // Predicated region
      $region73: #{conv_trans_bn_conv1.4} parent=47 // pred_check
        %p2494 = pneg %p309
      $region74: #{conv_trans_bn_conv1.4} parent=47 // pred_check_branch
        %2496 = sbr.rel (%p2494) target = $region76
      $region75: #{conv_trans_bn_conv1.4} parent=47 // pred_region
        _
      $region76: #{conv_trans_bn_conv1.4} parent=47 // pred_fallthru
        _
      // Predicated region
      $region77: #{conv_trans_bn_conv1.4} parent=47 // pred_check
        %p2497 = pneg %p283
      $region78: #{conv_trans_bn_conv1.4} parent=47 // pred_check_branch
        %2499 = sbr.rel (%p2497) target = $region80
      $region79: #{conv_trans_bn_conv1.4} parent=47 // pred_region
        %p2500 = scmp.lt.s32.totalorder %s27, 0
        %s2501 = scalar_select %p2500, %s27, 0
        %s2502 = scalar_lea.vmem %s8, %s2501
      $region80: #{conv_trans_bn_conv1.4} parent=47 // pred_fallthru
        _
      // Predicated region
      $region81: #{conv_trans_bn_conv1.4} parent=47 // pred_check
        %p2503 = pneg %p309
      $region82: #{conv_trans_bn_conv1.4} parent=47 // pred_check_branch
        %2505 = sbr.rel (%p2503) target = $region84
      $region83: #{conv_trans_bn_conv1.4} parent=47 // pred_region
        %p2506 = scmp.lt.s32.totalorder %s27, 0
        %s2507 = scalar_select %p2506, %s27, 0
        %s2508 = scalar_lea.vmem %s9, %s2507
      $region84: #{conv_trans_bn_conv1.4} parent=47 // pred_fallthru
        _
    $region48: #{conv_trans_bn_conv1.4} parent=5 // pred_fallthru
      _
    %p2509 = scmp.le.s32.totalorder 2, %s16
    // Predicated region
    $region85: #{conv_trans_bn_conv1.4} parent=5 // pred_check
      %p2510 = pneg %p2509
    $region86: #{conv_trans_bn_conv1.4} parent=5 // pred_check_branch
      %2512 = sbr.rel (%p2510) target = $region88
    $region87: #{conv_trans_bn_conv1.4} parent=5 // pred_region
      %s2513 = ssub.s32 %s16, 2
      // Predicated region
      $region89: #{conv_trans_bn_conv1.4} parent=87 // pred_check
        %p2514 = pneg %p263
      $region90: #{conv_trans_bn_conv1.4} parent=87 // pred_check_branch
        %2516 = sbr.rel (%p2514) target = $region92
      $region91: #{conv_trans_bn_conv1.4} parent=87 // pred_region
        %s2517 = smul.u32 64, %s33
        %p2518 = scmp.lt.s32.totalorder %s32, 3
        %s2519 = scalar_select %p2518, %s32, 3
        %p2520 = scmp.lt.s32.totalorder %s2517, 63
        %s2521 = scalar_select %p2520, %s2517, 63
        %p2522 = scmp.lt.s32.totalorder %s31, 0
        %s2523 = scalar_select %p2522, %s31, 0
        %s2524 = sadd.s32 %s2523, %s2521
        %s2525 = smul.addr %s2519, 64
        %s2526 = sadd.s32 %s2524, %s2525
        %s2527 = smul.addr %s2526, 4
        %s2528 = scalar_lea.vmem %s7, %s2527
      $region92: #{conv_trans_bn_conv1.4} parent=87 // pred_fallthru
        _
    $region88: #{conv_trans_bn_conv1.4} parent=5 // pred_fallthru
      _
  $region6: #{conv_trans_bn_conv1.4} parent=0 // loop_footer
    %s20 = sadd.s32 1, %s16
  $region7: #{conv_trans_bn_conv1.4} parent=0 // loop_footer_branch
    %15 = sbr.rel target = $region3
  $region8: #{conv_trans_bn_conv1.4} parent=0 // loop_exit
    _

// kernel: conv_trans_bn_conv1.5
$region0: #{conv_trans_bn_conv1.5}
  #allocation0 [shape = 'u32[]', space=smem, size = 0x4, offset = 0x4, fixed_abs, tag = 'smem constant byte address 0x4 - core index']
  #allocation1 [shape = 'u32[144,128]{1,0:T(1,128)}', space=vmem, size = 0x12000, scoped, tag = 'internal scratch']
  %s0 = inlined_call_operand.vmem [shape: bf16[2048,128], index: 0, kind: input, shape index: {}]
  %s1 = inlined_call_operand.vmem [shape: f32[1,128], index: 1, kind: input, shape index: {}]
  %s2 = inlined_call_operand.vmem [shape: f32[1,128], index: 2, kind: input, shape index: {}]
  %s3 = inlined_call_operand.vmem [shape: f32[1,128], index: 3, kind: input, shape index: {}]
  %s4 = inlined_call_operand.vmem [shape: f32[1,128], index: 4, kind: input, shape index: {}]
  %s5 = inlined_call_operand.vmem [shape: f32[2048,128], index: 5, kind: output, shape index: {}]
  %s6 = sld [smem:[#allocation0]]
  $region53: #{conv_trans_bn_conv1.5} parent=0
    _
  %s8 = ssub.s32 1, %s6
  %s9 = scalar_select 0, %s8, %s6
  loop: start=0, step=1, limit=4
  $region2: #{conv_trans_bn_conv1.5} parent=0 // loop_pre_header
    _
  $region3: #{conv_trans_bn_conv1.5} parent=0 // loop_header
    %s11 = sphi 0, %s15
    %p12 = scmp.ge.s32.totalorder %s11, 4
    %s21 = sphi 0, %s23
    %s24 = sphi 0, %s21
    %s25 = sphi 0, %s24
    %s41 = sphi 0, %s25
    %s45 = sphi 0, %s45
    %s47 = sphi 0, %s45
    %s48 = sphi 0, %s47
    %s62 = sphi 0, %s48
    %s66 = sphi 0, %s66
    %s68 = sphi 0, %s66
    %s69 = sphi 0, %s68
    %s83 = sphi 0, %s69
    %s87 = sphi 0, %s87
    %s89 = sphi 0, %s87
    %s90 = sphi 0, %s89
    %s104 = sphi 0, %s90
    %s108 = sphi 0, %s108
    %s110 = sphi 0, %s108
    %s111 = sphi 0, %s110
    %s125 = sphi 0, %s111
    %s131 = sphi 0, %s133
    %s134 = sphi 0, %s131
    %s135 = sphi 0, %s134
    %s151 = sphi 0, %s135
  $region4: #{conv_trans_bn_conv1.5} parent=0 // loop_header_branch
    %14 = sbr.rel (%p12) target = $region8
  $region5: #{conv_trans_bn_conv1.5} parent=0 // loop_body
    %s16 = ssub.s32 %s11, 1
    %s17 = ssub.s32 %s11, 2
    %s18 = sadd.s32 %s11, 1
    %s19 = ssub.s32 %s11, %s18
    %p20 = scmp.eq.s32.totalorder %s19, 0
    %s22 = sadd.s32 %s21, 1
    %s23 = scalar_select %p20, %s21, %s22
    %p26 = pneg %p20
    %p27 = scmp.eq.s32.totalorder %s11, 1
    %p28 = por %p26, %p27
    %p29 = scmp.ne.s32.totalorder %s21, %s24
    %p30 = scmp.eq.s32.totalorder %s11, 0
    %p31 = por %p29, %p30
    %p32 = scmp.ne.s32.totalorder %s21, %s24
    %p33 = scmp.eq.s32.totalorder %s16, 1
    %p34 = por %p32, %p33
    %p35 = scmp.ne.s32.totalorder %s24, %s25
    %p36 = scmp.eq.s32.totalorder %s16, 0
    %p37 = por %p35, %p36
    %p38 = scmp.ne.s32.totalorder %s24, %s25
    %p39 = scmp.eq.s32.totalorder %s17, 1
    %p40 = por %p38, %p39
    %p42 = scmp.ne.s32.totalorder %s25, %s41
    %p43 = scmp.eq.s32.totalorder %s17, 0
    %p44 = por %p42, %p43
    %s46 = sadd.s32 %s45, 1
    %p49 = scmp.eq.s32.totalorder %s11, 1
    %p50 = scmp.ne.s32.totalorder %s45, %s47
    %p51 = scmp.eq.s32.totalorder %s11, 0
    %p52 = por %p50, %p51
    %p53 = scmp.ne.s32.totalorder %s45, %s47
    %p54 = scmp.eq.s32.totalorder %s16, 1
    %p55 = por %p53, %p54
    %p56 = scmp.ne.s32.totalorder %s47, %s48
    %p57 = scmp.eq.s32.totalorder %s16, 0
    %p58 = por %p56, %p57
    %p59 = scmp.ne.s32.totalorder %s47, %s48
    %p60 = scmp.eq.s32.totalorder %s17, 1
    %p61 = por %p59, %p60
    %p63 = scmp.ne.s32.totalorder %s48, %s62
    %p64 = scmp.eq.s32.totalorder %s17, 0
    %p65 = por %p63, %p64
    %s67 = sadd.s32 %s66, 1
    %p70 = scmp.eq.s32.totalorder %s11, 1
    %p71 = scmp.ne.s32.totalorder %s66, %s68
    %p72 = scmp.eq.s32.totalorder %s11, 0
    %p73 = por %p71, %p72
    %p74 = scmp.ne.s32.totalorder %s66, %s68
    %p75 = scmp.eq.s32.totalorder %s16, 1
    %p76 = por %p74, %p75
    %p77 = scmp.ne.s32.totalorder %s68, %s69
    %p78 = scmp.eq.s32.totalorder %s16, 0
    %p79 = por %p77, %p78
    %p80 = scmp.ne.s32.totalorder %s68, %s69
    %p81 = scmp.eq.s32.totalorder %s17, 1
    %p82 = por %p80, %p81
    %p84 = scmp.ne.s32.totalorder %s69, %s83
    %p85 = scmp.eq.s32.totalorder %s17, 0
    %p86 = por %p84, %p85
    %s88 = sadd.s32 %s87, 1
    %p91 = scmp.eq.s32.totalorder %s11, 1
    %p92 = scmp.ne.s32.totalorder %s87, %s89
    %p93 = scmp.eq.s32.totalorder %s11, 0
    %p94 = por %p92, %p93
    %p95 = scmp.ne.s32.totalorder %s87, %s89
    %p96 = scmp.eq.s32.totalorder %s16, 1
    %p97 = por %p95, %p96
    %p98 = scmp.ne.s32.totalorder %s89, %s90
    %p99 = scmp.eq.s32.totalorder %s16, 0
    %p100 = por %p98, %p99
    %p101 = scmp.ne.s32.totalorder %s89, %s90
    %p102 = scmp.eq.s32.totalorder %s17, 1
    %p103 = por %p101, %p102
    %p105 = scmp.ne.s32.totalorder %s90, %s104
    %p106 = scmp.eq.s32.totalorder %s17, 0
    %p107 = por %p105, %p106
    %s109 = sadd.s32 %s108, 1
    %p112 = scmp.eq.s32.totalorder %s11, 1
    %p113 = scmp.ne.s32.totalorder %s108, %s110
    %p114 = scmp.eq.s32.totalorder %s11, 0
    %p115 = por %p113, %p114
    %p116 = scmp.ne.s32.totalorder %s108, %s110
    %p117 = scmp.eq.s32.totalorder %s16, 1
    %p118 = por %p116, %p117
    %p119 = scmp.ne.s32.totalorder %s110, %s111
    %p120 = scmp.eq.s32.totalorder %s16, 0
    %p121 = por %p119, %p120
    %p122 = scmp.ne.s32.totalorder %s110, %s111
    %p123 = scmp.eq.s32.totalorder %s17, 1
    %p124 = por %p122, %p123
    %p126 = scmp.ne.s32.totalorder %s111, %s125
    %p127 = scmp.eq.s32.totalorder %s17, 0
    %p128 = por %p126, %p127
    %s129 = ssub.s32 %s11, %s18
    %p130 = scmp.eq.s32.totalorder %s129, 0
    %s132 = sadd.s32 %s131, 1
    %s133 = scalar_select %p130, %s131, %s132
    %p136 = pneg %p130
    %p137 = scmp.eq.s32.totalorder %s11, 1
    %p138 = por %p136, %p137
    %p139 = scmp.ne.s32.totalorder %s131, %s134
    %p140 = scmp.eq.s32.totalorder %s11, 0
    %p141 = por %p139, %p140
    %p142 = scmp.ne.s32.totalorder %s131, %s134
    %p143 = scmp.eq.s32.totalorder %s16, 1
    %p144 = por %p142, %p143
    %p145 = scmp.ne.s32.totalorder %s134, %s135
    %p146 = scmp.eq.s32.totalorder %s16, 0
    %p147 = por %p145, %p146
    %p148 = scmp.ne.s32.totalorder %s134, %s135
    %p149 = scmp.eq.s32.totalorder %s17, 1
    %p150 = por %p148, %p149
    %p152 = scmp.ne.s32.totalorder %s135, %s151
    %p153 = scmp.eq.s32.totalorder %s17, 0
    %p154 = por %p152, %p153
    %p155 = scmp.le.s32.totalorder 1, %s11
    %p156 = scmp.lt.s32.totalorder %s11, 3
    %p157 = pnand %p155, %p156
    %p158 = pneg %p157
    // Predicated region
    $region9: #{conv_trans_bn_conv1.5} parent=5 // pred_check
      _
    $region10: #{conv_trans_bn_conv1.5} parent=5 // pred_check_branch
      %160 = sbr.rel (%p157) target = $region12
    $region11: #{conv_trans_bn_conv1.5} parent=5 // pred_region
      %s161 = ssub.s32 %s11, 1
      // Predicated region
      $region13: #{conv_trans_bn_conv1.5} parent=11 // pred_check
        %p162 = pneg %p58
      $region14: #{conv_trans_bn_conv1.5} parent=11 // pred_check_branch
        %164 = sbr.rel (%p162) target = $region16
      $region15: #{conv_trans_bn_conv1.5} parent=11 // pred_region
        _
      $region16: #{conv_trans_bn_conv1.5} parent=11 // pred_fallthru
        _
      // Predicated region
      $region17: #{conv_trans_bn_conv1.5} parent=11 // pred_check
        %p165 = pneg %p79
      $region18: #{conv_trans_bn_conv1.5} parent=11 // pred_check_branch
        %167 = sbr.rel (%p165) target = $region20
      $region19: #{conv_trans_bn_conv1.5} parent=11 // pred_region
        _
      $region20: #{conv_trans_bn_conv1.5} parent=11 // pred_fallthru
        _
      // Predicated region
      $region21: #{conv_trans_bn_conv1.5} parent=11 // pred_check
        %p168 = pneg %p100
      $region22: #{conv_trans_bn_conv1.5} parent=11 // pred_check_branch
        %170 = sbr.rel (%p168) target = $region24
      $region23: #{conv_trans_bn_conv1.5} parent=11 // pred_region
        _
      $region24: #{conv_trans_bn_conv1.5} parent=11 // pred_fallthru
        _
      // Predicated region
      $region25: #{conv_trans_bn_conv1.5} parent=11 // pred_check
        %p171 = pneg %p121
      $region26: #{conv_trans_bn_conv1.5} parent=11 // pred_check_branch
        %173 = sbr.rel (%p171) target = $region28
      $region27: #{conv_trans_bn_conv1.5} parent=11 // pred_region
        _
      $region28: #{conv_trans_bn_conv1.5} parent=11 // pred_fallthru
        _
    $region12: #{conv_trans_bn_conv1.5} parent=5 // pred_fallthru
      _
    %p174 = scmp.lt.s32.totalorder %s11, 2
    // Predicated region
    $region29: #{conv_trans_bn_conv1.5} parent=5 // pred_check
      %p175 = pneg %p174
    $region30: #{conv_trans_bn_conv1.5} parent=5 // pred_check_branch
      %177 = sbr.rel (%p175) target = $region32
    $region31: #{conv_trans_bn_conv1.5} parent=5 // pred_region
      // Predicated region
      $region33: #{conv_trans_bn_conv1.5} parent=31 // pred_check
        %p178 = pneg %p31
      $region34: #{conv_trans_bn_conv1.5} parent=31 // pred_check_branch
        %180 = sbr.rel (%p178) target = $region36
      $region35: #{conv_trans_bn_conv1.5} parent=31 // pred_region
        %s181 = smul.u32 128, %s11
        %p182 = scmp.lt.s32.totalorder %s181, 255
        %s183 = scalar_select %p182, %s181, 255
        %s184 = smul.addr %s183, 4
        %s185 = scalar_lea.vmem %s0, %s184
        %s186 = smul.u32 128, %s11
      $region36: #{conv_trans_bn_conv1.5} parent=31 // pred_fallthru
        _
    $region32: #{conv_trans_bn_conv1.5} parent=5 // pred_fallthru
      _
    %p187 = scmp.le.s32.totalorder 1, %s11
    %p188 = scmp.lt.s32.totalorder %s11, 3
    %p189 = pnand %p187, %p188
    %p190 = pneg %p189
    // Predicated region
    $region37: #{conv_trans_bn_conv1.5} parent=5 // pred_check
      _
    $region38: #{conv_trans_bn_conv1.5} parent=5 // pred_check_branch
      %192 = sbr.rel (%p189) target = $region40
    $region39: #{conv_trans_bn_conv1.5} parent=5 // pred_region
      %s193 = ssub.s32 %s11, 1
      %s194 = smul.u32 128, %s16
      %p195 = scmp.lt.s32.totalorder %s194, 255
      %s196 = scalar_select %p195, %s194, 255
      %s197 = smul.addr %s196, 4
      %s198 = scalar_lea.vmem %s0, %s197
      %p199 = pneg %p37
      %p200 = pneg %p34
      %p201 = pneg %p58
      %p202 = pneg %p55
      %p203 = pneg %p79
      %p204 = pneg %p76
      %p205 = pneg %p100
      %p206 = pneg %p97
      %p207 = pneg %p121
      %p208 = pneg %p118
      %p209 = pneg %p147
      %p210 = pneg %p144
      %s211 = smul.u32 128, %s16
      %p212 = scmp.lt.s32.totalorder %s211, 255
      %s213 = scalar_select %p212, %s211, 255
      %s214 = smul.addr %s213, 8
      %s215 = scalar_lea.vmem %s5, %s214
      %s216 = smul.u32 128, %s16
      %p217 = scmp.lt.s32.totalorder %s216, 255
      %s218 = scalar_select %p217, %s216, 255
      %s219 = smul.addr %s218, 4
      %s220 = scalar_lea.vmem %s0, %s219
      %s221 = smul.u32 128, %s16
      %s222 = smul.u32 128, %s16
      %p223 = scmp.lt.s32.totalorder %s222, 255
      %s224 = scalar_select %p223, %s222, 255
      %s225 = smul.addr %s224, 8
      %s226 = scalar_lea.vmem %s5, %s225
      %s227 = smul.u32 128, %s16
      %v228 = vld [vmem:[%s220] sm:$0xf]
      %v229 = vld [vmem:[%s220 + $0x4] sm:$0xf]
      %v230 = vld [vmem:[%s220 + $0x8] sm:$0xf]
      %v231 = vld [vmem:[%s220 + $0xc] sm:$0xf]
      %v232 = vld [vmem:[%s220 + $0x10] sm:$0xf]
      %v233 = vld [vmem:[%s220 + $0x14] sm:$0xf]
      %v234 = vld [vmem:[%s220 + $0x18] sm:$0xf]
      %v235 = vld [vmem:[%s220 + $0x1c] sm:$0xf]
      %v236 = vld [vmem:[%s220 + $0x20] sm:$0xf]
      %v237 = vld [vmem:[%s220 + $0x24] sm:$0xf]
      %v238 = vld [vmem:[%s220 + $0x28] sm:$0xf]
      %v239 = vld [vmem:[%s220 + $0x2c] sm:$0xf]
      %v240 = vld [vmem:[%s220 + $0x30] sm:$0xf]
      %v241 = vld [vmem:[%s220 + $0x34] sm:$0xf]
      %v242 = vld [vmem:[%s220 + $0x38] sm:$0xf]
      %v243 = vld [vmem:[%s220 + $0x3c] sm:$0xf]
      %v244 = vld [vmem:[%s220 + $0x40] sm:$0xf]
      %v245 = vld [vmem:[%s220 + $0x44] sm:$0xf]
      %v246 = vld [vmem:[%s220 + $0x48] sm:$0xf]
      %v247 = vld [vmem:[%s220 + $0x4c] sm:$0xf]
      %v248 = vld [vmem:[%s220 + $0x50] sm:$0xf]
      %v249 = vld [vmem:[%s220 + $0x54] sm:$0xf]
      %v250 = vld [vmem:[%s220 + $0x58] sm:$0xf]
      %v251 = vld [vmem:[%s220 + $0x5c] sm:$0xf]
      %v252 = vld [vmem:[%s220 + $0x60] sm:$0xf]
      %v253 = vld [vmem:[%s220 + $0x64] sm:$0xf]
      %v254 = vld [vmem:[%s220 + $0x68] sm:$0xf]
      %v255 = vld [vmem:[%s220 + $0x6c] sm:$0xf]
      %v256 = vld [vmem:[%s220 + $0x70] sm:$0xf]
      %v257 = vld [vmem:[%s220 + $0x74] sm:$0xf]
      %v258 = vld [vmem:[%s220 + $0x78] sm:$0xf]
      %v259 = vld [vmem:[%s220 + $0x7c] sm:$0xf]
      %v260 = vld [vmem:[%s220 + $0x80] sm:$0xf]
      %v261 = vld [vmem:[%s220 + $0x84] sm:$0xf]
      %v262 = vld [vmem:[%s220 + $0x88] sm:$0xf]
      %v263 = vld [vmem:[%s220 + $0x8c] sm:$0xf]
      %v264 = vld [vmem:[%s220 + $0x90] sm:$0xf]
      %v265 = vld [vmem:[%s220 + $0x94] sm:$0xf]
      %v266 = vld [vmem:[%s220 + $0x98] sm:$0xf]
      %v267 = vld [vmem:[%s220 + $0x9c] sm:$0xf]
      %v268 = vld [vmem:[%s220 + $0xa0] sm:$0xf]
      %v269 = vld [vmem:[%s220 + $0xa4] sm:$0xf]
      %v270 = vld [vmem:[%s220 + $0xa8] sm:$0xf]
      %v271 = vld [vmem:[%s220 + $0xac] sm:$0xf]
      %v272 = vld [vmem:[%s220 + $0xb0] sm:$0xf]
      %v273 = vld [vmem:[%s220 + $0xb4] sm:$0xf]
      %v274 = vld [vmem:[%s220 + $0xb8] sm:$0xf]
      %v275 = vld [vmem:[%s220 + $0xbc] sm:$0xf]
      %v276 = vld [vmem:[%s220 + $0xc0] sm:$0xf]
      %v277 = vld [vmem:[%s220 + $0xc4] sm:$0xf]
      %v278 = vld [vmem:[%s220 + $0xc8] sm:$0xf]
      %v279 = vld [vmem:[%s220 + $0xcc] sm:$0xf]
      %v280 = vld [vmem:[%s220 + $0xd0] sm:$0xf]
      %v281 = vld [vmem:[%s220 + $0xd4] sm:$0xf]
      %v282 = vld [vmem:[%s220 + $0xd8] sm:$0xf]
      %v283 = vld [vmem:[%s220 + $0xdc] sm:$0xf]
      %v284 = vld [vmem:[%s220 + $0xe0] sm:$0xf]
      %v285 = vld [vmem:[%s220 + $0xe4] sm:$0xf]
      %v286 = vld [vmem:[%s220 + $0xe8] sm:$0xf]
      %v287 = vld [vmem:[%s220 + $0xec] sm:$0xf]
      %v288 = vld [vmem:[%s220 + $0xf0] sm:$0xf]
      %v289 = vld [vmem:[%s220 + $0xf4] sm:$0xf]
      %v290 = vld [vmem:[%s220 + $0xf8] sm:$0xf]
      %v291 = vld [vmem:[%s220 + $0xfc] sm:$0xf]
      %v292 = vld [vmem:[%s220 + $0x100] sm:$0xf]
      %v293 = vld [vmem:[%s220 + $0x104] sm:$0xf]
      %v294 = vld [vmem:[%s220 + $0x108] sm:$0xf]
      %v295 = vld [vmem:[%s220 + $0x10c] sm:$0xf]
      %v296 = vld [vmem:[%s220 + $0x110] sm:$0xf]
      %v297 = vld [vmem:[%s220 + $0x114] sm:$0xf]
      %v298 = vld [vmem:[%s220 + $0x118] sm:$0xf]
      %v299 = vld [vmem:[%s220 + $0x11c] sm:$0xf]
      %v300 = vld [vmem:[%s220 + $0x120] sm:$0xf]
      %v301 = vld [vmem:[%s220 + $0x124] sm:$0xf]
      %v302 = vld [vmem:[%s220 + $0x128] sm:$0xf]
      %v303 = vld [vmem:[%s220 + $0x12c] sm:$0xf]
      %v304 = vld [vmem:[%s220 + $0x130] sm:$0xf]
      %v305 = vld [vmem:[%s220 + $0x134] sm:$0xf]
      %v306 = vld [vmem:[%s220 + $0x138] sm:$0xf]
      %v307 = vld [vmem:[%s220 + $0x13c] sm:$0xf]
      %v308 = vld [vmem:[%s220 + $0x140] sm:$0xf]
      %v309 = vld [vmem:[%s220 + $0x144] sm:$0xf]
      %v310 = vld [vmem:[%s220 + $0x148] sm:$0xf]
      %v311 = vld [vmem:[%s220 + $0x14c] sm:$0xf]
      %v312 = vld [vmem:[%s220 + $0x150] sm:$0xf]
      %v313 = vld [vmem:[%s220 + $0x154] sm:$0xf]
      %v314 = vld [vmem:[%s220 + $0x158] sm:$0xf]
      %v315 = vld [vmem:[%s220 + $0x15c] sm:$0xf]
      %v316 = vld [vmem:[%s220 + $0x160] sm:$0xf]
      %v317 = vld [vmem:[%s220 + $0x164] sm:$0xf]
      %v318 = vld [vmem:[%s220 + $0x168] sm:$0xf]
      %v319 = vld [vmem:[%s220 + $0x16c] sm:$0xf]
      %v320 = vld [vmem:[%s220 + $0x170] sm:$0xf]
      %v321 = vld [vmem:[%s220 + $0x174] sm:$0xf]
      %v322 = vld [vmem:[%s220 + $0x178] sm:$0xf]
      %v323 = vld [vmem:[%s220 + $0x17c] sm:$0xf]
      %v324 = vld [vmem:[%s220 + $0x180] sm:$0xf]
      %v325 = vld [vmem:[%s220 + $0x184] sm:$0xf]
      %v326 = vld [vmem:[%s220 + $0x188] sm:$0xf]
      %v327 = vld [vmem:[%s220 + $0x18c] sm:$0xf]
      %v328 = vld [vmem:[%s220 + $0x190] sm:$0xf]
      %v329 = vld [vmem:[%s220 + $0x194] sm:$0xf]
      %v330 = vld [vmem:[%s220 + $0x198] sm:$0xf]
      %v331 = vld [vmem:[%s220 + $0x19c] sm:$0xf]
      %v332 = vld [vmem:[%s220 + $0x1a0] sm:$0xf]
      %v333 = vld [vmem:[%s220 + $0x1a4] sm:$0xf]
      %v334 = vld [vmem:[%s220 + $0x1a8] sm:$0xf]
      %v335 = vld [vmem:[%s220 + $0x1ac] sm:$0xf]
      %v336 = vld [vmem:[%s220 + $0x1b0] sm:$0xf]
      %v337 = vld [vmem:[%s220 + $0x1b4] sm:$0xf]
      %v338 = vld [vmem:[%s220 + $0x1b8] sm:$0xf]
      %v339 = vld [vmem:[%s220 + $0x1bc] sm:$0xf]
      %v340 = vld [vmem:[%s220 + $0x1c0] sm:$0xf]
      %v341 = vld [vmem:[%s220 + $0x1c4] sm:$0xf]
      %v342 = vld [vmem:[%s220 + $0x1c8] sm:$0xf]
      %v343 = vld [vmem:[%s220 + $0x1cc] sm:$0xf]
      %v344 = vld [vmem:[%s220 + $0x1d0] sm:$0xf]
      %v345 = vld [vmem:[%s220 + $0x1d4] sm:$0xf]
      %v346 = vld [vmem:[%s220 + $0x1d8] sm:$0xf]
      %v347 = vld [vmem:[%s220 + $0x1dc] sm:$0xf]
      %v348 = vld [vmem:[%s220 + $0x1e0] sm:$0xf]
      %v349 = vld [vmem:[%s220 + $0x1e4] sm:$0xf]
      %v350 = vld [vmem:[%s220 + $0x1e8] sm:$0xf]
      %v351 = vld [vmem:[%s220 + $0x1ec] sm:$0xf]
      %v352 = vld [vmem:[%s220 + $0x1f0] sm:$0xf]
      %v353 = vld [vmem:[%s220 + $0x1f4] sm:$0xf]
      %v354 = vld [vmem:[%s220 + $0x1f8] sm:$0xf]
      %v355 = vld [vmem:[%s220 + $0x1fc] sm:$0xf]
      %v356 = vunpack.c.l.bf16 %v228
      %v357 = vunpack.c.l.bf16 %v229
      %v358 = vunpack.c.l.bf16 %v230
      %v359 = vunpack.c.l.bf16 %v231
      %v360 = vunpack.c.l.bf16 %v232
      %v361 = vunpack.c.l.bf16 %v233
      %v362 = vunpack.c.l.bf16 %v234
      %v363 = vunpack.c.l.bf16 %v235
      %v364 = vunpack.c.l.bf16 %v236
      %v365 = vunpack.c.l.bf16 %v237
      %v366 = vunpack.c.l.bf16 %v238
      %v367 = vunpack.c.l.bf16 %v239
      %v368 = vunpack.c.l.bf16 %v240
      %v369 = vunpack.c.l.bf16 %v241
      %v370 = vunpack.c.l.bf16 %v242
      %v371 = vunpack.c.l.bf16 %v243
      %v372 = vunpack.c.l.bf16 %v244
      %v373 = vunpack.c.l.bf16 %v245
      %v374 = vunpack.c.l.bf16 %v246
      %v375 = vunpack.c.l.bf16 %v247
      %v376 = vunpack.c.l.bf16 %v248
      %v377 = vunpack.c.l.bf16 %v249
      %v378 = vunpack.c.l.bf16 %v250
      %v379 = vunpack.c.l.bf16 %v251
      %v380 = vunpack.c.l.bf16 %v252
      %v381 = vunpack.c.l.bf16 %v253
      %v382 = vunpack.c.l.bf16 %v254
      %v383 = vunpack.c.l.bf16 %v255
      %v384 = vunpack.c.l.bf16 %v256
      %v385 = vunpack.c.l.bf16 %v257
      %v386 = vunpack.c.l.bf16 %v258
      %v387 = vunpack.c.l.bf16 %v259
      %v388 = vunpack.c.l.bf16 %v260
      %v389 = vunpack.c.l.bf16 %v261
      %v390 = vunpack.c.l.bf16 %v262
      %v391 = vunpack.c.l.bf16 %v263
      %v392 = vunpack.c.l.bf16 %v264
      %v393 = vunpack.c.l.bf16 %v265
      %v394 = vunpack.c.l.bf16 %v266
      %v395 = vunpack.c.l.bf16 %v267
      %v396 = vunpack.c.l.bf16 %v268
      %v397 = vunpack.c.l.bf16 %v269
      %v398 = vunpack.c.l.bf16 %v270
      %v399 = vunpack.c.l.bf16 %v271
      %v400 = vunpack.c.l.bf16 %v272
      %v401 = vunpack.c.l.bf16 %v273
      %v402 = vunpack.c.l.bf16 %v274
      %v403 = vunpack.c.l.bf16 %v275
      %v404 = vunpack.c.l.bf16 %v276
      %v405 = vunpack.c.l.bf16 %v277
      %v406 = vunpack.c.l.bf16 %v278
      %v407 = vunpack.c.l.bf16 %v279
      %v408 = vunpack.c.l.bf16 %v280
      %v409 = vunpack.c.l.bf16 %v281
      %v410 = vunpack.c.l.bf16 %v282
      %v411 = vunpack.c.l.bf16 %v283
      %v412 = vunpack.c.l.bf16 %v284
      %v413 = vunpack.c.l.bf16 %v285
      %v414 = vunpack.c.l.bf16 %v286
      %v415 = vunpack.c.l.bf16 %v287
      %v416 = vunpack.c.l.bf16 %v288
      %v417 = vunpack.c.l.bf16 %v289
      %v418 = vunpack.c.l.bf16 %v290
      %v419 = vunpack.c.l.bf16 %v291
      %v420 = vunpack.c.l.bf16 %v292
      %v421 = vunpack.c.l.bf16 %v293
      %v422 = vunpack.c.l.bf16 %v294
      %v423 = vunpack.c.l.bf16 %v295
      %v424 = vunpack.c.l.bf16 %v296
      %v425 = vunpack.c.l.bf16 %v297
      %v426 = vunpack.c.l.bf16 %v298
      %v427 = vunpack.c.l.bf16 %v299
      %v428 = vunpack.c.l.bf16 %v300
      %v429 = vunpack.c.l.bf16 %v301
      %v430 = vunpack.c.l.bf16 %v302
      %v431 = vunpack.c.l.bf16 %v303
      %v432 = vunpack.c.l.bf16 %v304
      %v433 = vunpack.c.l.bf16 %v305
      %v434 = vunpack.c.l.bf16 %v306
      %v435 = vunpack.c.l.bf16 %v307
      %v436 = vunpack.c.l.bf16 %v308
      %v437 = vunpack.c.l.bf16 %v309
      %v438 = vunpack.c.l.bf16 %v310
      %v439 = vunpack.c.l.bf16 %v311
      %v440 = vunpack.c.l.bf16 %v312
      %v441 = vunpack.c.l.bf16 %v313
      %v442 = vunpack.c.l.bf16 %v314
      %v443 = vunpack.c.l.bf16 %v315
      %v444 = vunpack.c.l.bf16 %v316
      %v445 = vunpack.c.l.bf16 %v317
      %v446 = vunpack.c.l.bf16 %v318
      %v447 = vunpack.c.l.bf16 %v319
      %v448 = vunpack.c.l.bf16 %v320
      %v449 = vunpack.c.l.bf16 %v321
      %v450 = vunpack.c.l.bf16 %v322
      %v451 = vunpack.c.l.bf16 %v323
      %v452 = vunpack.c.l.bf16 %v324
      %v453 = vunpack.c.l.bf16 %v325
      %v454 = vunpack.c.l.bf16 %v326
      %v455 = vunpack.c.l.bf16 %v327
      %v456 = vunpack.c.l.bf16 %v328
      %v457 = vunpack.c.l.bf16 %v329
      %v458 = vunpack.c.l.bf16 %v330
      %v459 = vunpack.c.l.bf16 %v331
      %v460 = vunpack.c.l.bf16 %v332
      %v461 = vunpack.c.l.bf16 %v333
      %v462 = vunpack.c.l.bf16 %v334
      %v463 = vunpack.c.l.bf16 %v335
      %v464 = vunpack.c.l.bf16 %v336
      %v465 = vunpack.c.l.bf16 %v337
      %v466 = vunpack.c.l.bf16 %v338
      %v467 = vunpack.c.l.bf16 %v339
      %v468 = vunpack.c.l.bf16 %v340
      %v469 = vunpack.c.l.bf16 %v341
      %v470 = vunpack.c.l.bf16 %v342
      %v471 = vunpack.c.l.bf16 %v343
      %v472 = vunpack.c.l.bf16 %v344
      %v473 = vunpack.c.l.bf16 %v345
      %v474 = vunpack.c.l.bf16 %v346
      %v475 = vunpack.c.l.bf16 %v347
      %v476 = vunpack.c.l.bf16 %v348
      %v477 = vunpack.c.l.bf16 %v349
      %v478 = vunpack.c.l.bf16 %v350
      %v479 = vunpack.c.l.bf16 %v351
      %v480 = vunpack.c.l.bf16 %v352
      %v481 = vunpack.c.l.bf16 %v353
      %v482 = vunpack.c.l.bf16 %v354
      %v483 = vunpack.c.l.bf16 %v355
      %v484 = vld [vmem:[%s1] sm:$0x1]
      %v486 = vlaneseq
      %v487 = vshrl.u32 %v486, 7
      %v488 = vsub.s32 0, %v487
      %v489 = vrot.slane %v484, %v488
      %v491 = vsub.f32 %v356, %v489
      %v492 = vsub.f32 %v357, %v489
      %v493 = vsub.f32 %v358, %v489
      %v494 = vsub.f32 %v359, %v489
      %v495 = vsub.f32 %v360, %v489
      %v496 = vsub.f32 %v361, %v489
      %v497 = vsub.f32 %v362, %v489
      %v498 = vsub.f32 %v363, %v489
      %v499 = vsub.f32 %v364, %v489
      %v500 = vsub.f32 %v365, %v489
      %v501 = vsub.f32 %v366, %v489
      %v502 = vsub.f32 %v367, %v489
      %v503 = vsub.f32 %v368, %v489
      %v504 = vsub.f32 %v369, %v489
      %v505 = vsub.f32 %v370, %v489
      %v506 = vsub.f32 %v371, %v489
      %v507 = vsub.f32 %v372, %v489
      %v508 = vsub.f32 %v373, %v489
      %v509 = vsub.f32 %v374, %v489
      %v510 = vsub.f32 %v375, %v489
      %v511 = vsub.f32 %v376, %v489
      %v512 = vsub.f32 %v377, %v489
      %v513 = vsub.f32 %v378, %v489
      %v514 = vsub.f32 %v379, %v489
      %v515 = vsub.f32 %v380, %v489
      %v516 = vsub.f32 %v381, %v489
      %v517 = vsub.f32 %v382, %v489
      %v518 = vsub.f32 %v383, %v489
      %v519 = vsub.f32 %v384, %v489
      %v520 = vsub.f32 %v385, %v489
      %v521 = vsub.f32 %v386, %v489
      %v522 = vsub.f32 %v387, %v489
      %v523 = vsub.f32 %v388, %v489
      %v524 = vsub.f32 %v389, %v489
      %v525 = vsub.f32 %v390, %v489
      %v526 = vsub.f32 %v391, %v489
      %v527 = vsub.f32 %v392, %v489
      %v528 = vsub.f32 %v393, %v489
      %v529 = vsub.f32 %v394, %v489
      %v530 = vsub.f32 %v395, %v489
      %v531 = vsub.f32 %v396, %v489
      %v532 = vsub.f32 %v397, %v489
      %v533 = vsub.f32 %v398, %v489
      %v534 = vsub.f32 %v399, %v489
      %v535 = vsub.f32 %v400, %v489
      %v536 = vsub.f32 %v401, %v489
      %v537 = vsub.f32 %v402, %v489
      %v538 = vsub.f32 %v403, %v489
      %v539 = vsub.f32 %v404, %v489
      %v540 = vsub.f32 %v405, %v489
      %v541 = vsub.f32 %v406, %v489
      %v542 = vsub.f32 %v407, %v489
      %v543 = vsub.f32 %v408, %v489
      %v544 = vsub.f32 %v409, %v489
      %v545 = vsub.f32 %v410, %v489
      %v546 = vsub.f32 %v411, %v489
      %v547 = vsub.f32 %v412, %v489
      %v548 = vsub.f32 %v413, %v489
      %v549 = vsub.f32 %v414, %v489
      %v550 = vsub.f32 %v415, %v489
      %v551 = vsub.f32 %v416, %v489
      %v552 = vsub.f32 %v417, %v489
      %v553 = vsub.f32 %v418, %v489
      %v554 = vsub.f32 %v419, %v489
      %v555 = vsub.f32 %v420, %v489
      %v556 = vsub.f32 %v421, %v489
      %v557 = vsub.f32 %v422, %v489
      %v558 = vsub.f32 %v423, %v489
      %v559 = vsub.f32 %v424, %v489
      %v560 = vsub.f32 %v425, %v489
      %v561 = vsub.f32 %v426, %v489
      %v562 = vsub.f32 %v427, %v489
      %v563 = vsub.f32 %v428, %v489
      %v564 = vsub.f32 %v429, %v489
      %v565 = vsub.f32 %v430, %v489
      %v566 = vsub.f32 %v431, %v489
      %v567 = vsub.f32 %v432, %v489
      %v568 = vsub.f32 %v433, %v489
      %v569 = vsub.f32 %v434, %v489
      %v570 = vsub.f32 %v435, %v489
      %v571 = vsub.f32 %v436, %v489
      %v572 = vsub.f32 %v437, %v489
      %v573 = vsub.f32 %v438, %v489
      %v574 = vsub.f32 %v439, %v489
      %v575 = vsub.f32 %v440, %v489
      %v576 = vsub.f32 %v441, %v489
      %v577 = vsub.f32 %v442, %v489
      %v578 = vsub.f32 %v443, %v489
      %v579 = vsub.f32 %v444, %v489
      %v580 = vsub.f32 %v445, %v489
      %v581 = vsub.f32 %v446, %v489
      %v582 = vsub.f32 %v447, %v489
      %v583 = vsub.f32 %v448, %v489
      %v584 = vsub.f32 %v449, %v489
      %v585 = vsub.f32 %v450, %v489
      %v586 = vsub.f32 %v451, %v489
      %v587 = vsub.f32 %v452, %v489
      %v588 = vsub.f32 %v453, %v489
      %v589 = vsub.f32 %v454, %v489
      %v590 = vsub.f32 %v455, %v489
      %v591 = vsub.f32 %v456, %v489
      %v592 = vsub.f32 %v457, %v489
      %v593 = vsub.f32 %v458, %v489
      %v594 = vsub.f32 %v459, %v489
      %v595 = vsub.f32 %v460, %v489
      %v596 = vsub.f32 %v461, %v489
      %v597 = vsub.f32 %v462, %v489
      %v598 = vsub.f32 %v463, %v489
      %v599 = vsub.f32 %v464, %v489
      %v600 = vsub.f32 %v465, %v489
      %v601 = vsub.f32 %v466, %v489
      %v602 = vsub.f32 %v467, %v489
      %v603 = vsub.f32 %v468, %v489
      %v604 = vsub.f32 %v469, %v489
      %v605 = vsub.f32 %v470, %v489
      %v606 = vsub.f32 %v471, %v489
      %v607 = vsub.f32 %v472, %v489
      %v608 = vsub.f32 %v473, %v489
      %v609 = vsub.f32 %v474, %v489
      %v610 = vsub.f32 %v475, %v489
      %v611 = vsub.f32 %v476, %v489
      %v612 = vsub.f32 %v477, %v489
      %v613 = vsub.f32 %v478, %v489
      %v614 = vsub.f32 %v479, %v489
      %v615 = vsub.f32 %v480, %v489
      %v616 = vsub.f32 %v481, %v489
      %v617 = vsub.f32 %v482, %v489
      %v618 = vsub.f32 %v483, %v489
      %v619 = vld [vmem:[%s2] sm:$0x1]
      %v621 = vlaneseq
      %v622 = vshrl.u32 %v621, 7
      %v623 = vsub.s32 0, %v622
      %v624 = vrot.slane %v619, %v623
      %v626 = vmul.f32 %v491, %v624
      %v627 = vmul.f32 %v492, %v624
      %v628 = vmul.f32 %v493, %v624
      %v629 = vmul.f32 %v494, %v624
      %v630 = vmul.f32 %v495, %v624
      %v631 = vmul.f32 %v496, %v624
      %v632 = vmul.f32 %v497, %v624
      %v633 = vmul.f32 %v498, %v624
      %v634 = vmul.f32 %v499, %v624
      %v635 = vmul.f32 %v500, %v624
      %v636 = vmul.f32 %v501, %v624
      %v637 = vmul.f32 %v502, %v624
      %v638 = vmul.f32 %v503, %v624
      %v639 = vmul.f32 %v504, %v624
      %v640 = vmul.f32 %v505, %v624
      %v641 = vmul.f32 %v506, %v624
      %v642 = vmul.f32 %v507, %v624
      %v643 = vmul.f32 %v508, %v624
      %v644 = vmul.f32 %v509, %v624
      %v645 = vmul.f32 %v510, %v624
      %v646 = vmul.f32 %v511, %v624
      %v647 = vmul.f32 %v512, %v624
      %v648 = vmul.f32 %v513, %v624
      %v649 = vmul.f32 %v514, %v624
      %v650 = vmul.f32 %v515, %v624
      %v651 = vmul.f32 %v516, %v624
      %v652 = vmul.f32 %v517, %v624
      %v653 = vmul.f32 %v518, %v624
      %v654 = vmul.f32 %v519, %v624
      %v655 = vmul.f32 %v520, %v624
      %v656 = vmul.f32 %v521, %v624
      %v657 = vmul.f32 %v522, %v624
      %v658 = vmul.f32 %v523, %v624
      %v659 = vmul.f32 %v524, %v624
      %v660 = vmul.f32 %v525, %v624
      %v661 = vmul.f32 %v526, %v624
      %v662 = vmul.f32 %v527, %v624
      %v663 = vmul.f32 %v528, %v624
      %v664 = vmul.f32 %v529, %v624
      %v665 = vmul.f32 %v530, %v624
      %v666 = vmul.f32 %v531, %v624
      %v667 = vmul.f32 %v532, %v624
      %v668 = vmul.f32 %v533, %v624
      %v669 = vmul.f32 %v534, %v624
      %v670 = vmul.f32 %v535, %v624
      %v671 = vmul.f32 %v536, %v624
      %v672 = vmul.f32 %v537, %v624
      %v673 = vmul.f32 %v538, %v624
      %v674 = vmul.f32 %v539, %v624
      %v675 = vmul.f32 %v540, %v624
      %v676 = vmul.f32 %v541, %v624
      %v677 = vmul.f32 %v542, %v624
      %v678 = vmul.f32 %v543, %v624
      %v679 = vmul.f32 %v544, %v624
      %v680 = vmul.f32 %v545, %v624
      %v681 = vmul.f32 %v546, %v624
      %v682 = vmul.f32 %v547, %v624
      %v683 = vmul.f32 %v548, %v624
      %v684 = vmul.f32 %v549, %v624
      %v685 = vmul.f32 %v550, %v624
      %v686 = vmul.f32 %v551, %v624
      %v687 = vmul.f32 %v552, %v624
      %v688 = vmul.f32 %v553, %v624
      %v689 = vmul.f32 %v554, %v624
      %v690 = vmul.f32 %v555, %v624
      %v691 = vmul.f32 %v556, %v624
      %v692 = vmul.f32 %v557, %v624
      %v693 = vmul.f32 %v558, %v624
      %v694 = vmul.f32 %v559, %v624
      %v695 = vmul.f32 %v560, %v624
      %v696 = vmul.f32 %v561, %v624
      %v697 = vmul.f32 %v562, %v624
      %v698 = vmul.f32 %v563, %v624
      %v699 = vmul.f32 %v564, %v624
      %v700 = vmul.f32 %v565, %v624
      %v701 = vmul.f32 %v566, %v624
      %v702 = vmul.f32 %v567, %v624
      %v703 = vmul.f32 %v568, %v624
      %v704 = vmul.f32 %v569, %v624
      %v705 = vmul.f32 %v570, %v624
      %v706 = vmul.f32 %v571, %v624
      %v707 = vmul.f32 %v572, %v624
      %v708 = vmul.f32 %v573, %v624
      %v709 = vmul.f32 %v574, %v624
      %v710 = vmul.f32 %v575, %v624
      %v711 = vmul.f32 %v576, %v624
      %v712 = vmul.f32 %v577, %v624
      %v713 = vmul.f32 %v578, %v624
      %v714 = vmul.f32 %v579, %v624
      %v715 = vmul.f32 %v580, %v624
      %v716 = vmul.f32 %v581, %v624
      %v717 = vmul.f32 %v582, %v624
      %v718 = vmul.f32 %v583, %v624
      %v719 = vmul.f32 %v584, %v624
      %v720 = vmul.f32 %v585, %v624
      %v721 = vmul.f32 %v586, %v624
      %v722 = vmul.f32 %v587, %v624
      %v723 = vmul.f32 %v588, %v624
      %v724 = vmul.f32 %v589, %v624
      %v725 = vmul.f32 %v590, %v624
      %v726 = vmul.f32 %v591, %v624
      %v727 = vmul.f32 %v592, %v624
      %v728 = vmul.f32 %v593, %v624
      %v729 = vmul.f32 %v594, %v624
      %v730 = vmul.f32 %v595, %v624
      %v731 = vmul.f32 %v596, %v624
      %v732 = vmul.f32 %v597, %v624
      %v733 = vmul.f32 %v598, %v624
      %v734 = vmul.f32 %v599, %v624
      %v735 = vmul.f32 %v600, %v624
      %v736 = vmul.f32 %v601, %v624
      %v737 = vmul.f32 %v602, %v624
      %v738 = vmul.f32 %v603, %v624
      %v739 = vmul.f32 %v604, %v624
      %v740 = vmul.f32 %v605, %v624
      %v741 = vmul.f32 %v606, %v624
      %v742 = vmul.f32 %v607, %v624
      %v743 = vmul.f32 %v608, %v624
      %v744 = vmul.f32 %v609, %v624
      %v745 = vmul.f32 %v610, %v624
      %v746 = vmul.f32 %v611, %v624
      %v747 = vmul.f32 %v612, %v624
      %v748 = vmul.f32 %v613, %v624
      %v749 = vmul.f32 %v614, %v624
      %v750 = vmul.f32 %v615, %v624
      %v751 = vmul.f32 %v616, %v624
      %v752 = vmul.f32 %v617, %v624
      %v753 = vmul.f32 %v618, %v624
      %v754 = vld [vmem:[%s3] sm:$0x1]
      %v756 = vlaneseq
      %v757 = vshrl.u32 %v756, 7
      %v758 = vsub.s32 0, %v757
      %v759 = vrot.slane %v754, %v758
      %v761 = vmul.f32 %v626, %v759
      %v762 = vmul.f32 %v627, %v759
      %v763 = vmul.f32 %v628, %v759
      %v764 = vmul.f32 %v629, %v759
      %v765 = vmul.f32 %v630, %v759
      %v766 = vmul.f32 %v631, %v759
      %v767 = vmul.f32 %v632, %v759
      %v768 = vmul.f32 %v633, %v759
      %v769 = vmul.f32 %v634, %v759
      %v770 = vmul.f32 %v635, %v759
      %v771 = vmul.f32 %v636, %v759
      %v772 = vmul.f32 %v637, %v759
      %v773 = vmul.f32 %v638, %v759
      %v774 = vmul.f32 %v639, %v759
      %v775 = vmul.f32 %v640, %v759
      %v776 = vmul.f32 %v641, %v759
      %v777 = vmul.f32 %v642, %v759
      %v778 = vmul.f32 %v643, %v759
      %v779 = vmul.f32 %v644, %v759
      %v780 = vmul.f32 %v645, %v759
      %v781 = vmul.f32 %v646, %v759
      %v782 = vmul.f32 %v647, %v759
      %v783 = vmul.f32 %v648, %v759
      %v784 = vmul.f32 %v649, %v759
      %v785 = vmul.f32 %v650, %v759
      %v786 = vmul.f32 %v651, %v759
      %v787 = vmul.f32 %v652, %v759
      %v788 = vmul.f32 %v653, %v759
      %v789 = vmul.f32 %v654, %v759
      %v790 = vmul.f32 %v655, %v759
      %v791 = vmul.f32 %v656, %v759
      %v792 = vmul.f32 %v657, %v759
      %v793 = vmul.f32 %v658, %v759
      %v794 = vmul.f32 %v659, %v759
      %v795 = vmul.f32 %v660, %v759
      %v796 = vmul.f32 %v661, %v759
      %v797 = vmul.f32 %v662, %v759
      %v798 = vmul.f32 %v663, %v759
      %v799 = vmul.f32 %v664, %v759
      %v800 = vmul.f32 %v665, %v759
      %v801 = vmul.f32 %v666, %v759
      %v802 = vmul.f32 %v667, %v759
      %v803 = vmul.f32 %v668, %v759
      %v804 = vmul.f32 %v669, %v759
      %v805 = vmul.f32 %v670, %v759
      %v806 = vmul.f32 %v671, %v759
      %v807 = vmul.f32 %v672, %v759
      %v808 = vmul.f32 %v673, %v759
      %v809 = vmul.f32 %v674, %v759
      %v810 = vmul.f32 %v675, %v759
      %v811 = vmul.f32 %v676, %v759
      %v812 = vmul.f32 %v677, %v759
      %v813 = vmul.f32 %v678, %v759
      %v814 = vmul.f32 %v679, %v759
      %v815 = vmul.f32 %v680, %v759
      %v816 = vmul.f32 %v681, %v759
      %v817 = vmul.f32 %v682, %v759
      %v818 = vmul.f32 %v683, %v759
      %v819 = vmul.f32 %v684, %v759
      %v820 = vmul.f32 %v685, %v759
      %v821 = vmul.f32 %v686, %v759
      %v822 = vmul.f32 %v687, %v759
      %v823 = vmul.f32 %v688, %v759
      %v824 = vmul.f32 %v689, %v759
      %v825 = vmul.f32 %v690, %v759
      %v826 = vmul.f32 %v691, %v759
      %v827 = vmul.f32 %v692, %v759
      %v828 = vmul.f32 %v693, %v759
      %v829 = vmul.f32 %v694, %v759
      %v830 = vmul.f32 %v695, %v759
      %v831 = vmul.f32 %v696, %v759
      %v832 = vmul.f32 %v697, %v759
      %v833 = vmul.f32 %v698, %v759
      %v834 = vmul.f32 %v699, %v759
      %v835 = vmul.f32 %v700, %v759
      %v836 = vmul.f32 %v701, %v759
      %v837 = vmul.f32 %v702, %v759
      %v838 = vmul.f32 %v703, %v759
      %v839 = vmul.f32 %v704, %v759
      %v840 = vmul.f32 %v705, %v759
      %v841 = vmul.f32 %v706, %v759
      %v842 = vmul.f32 %v707, %v759
      %v843 = vmul.f32 %v708, %v759
      %v844 = vmul.f32 %v709, %v759
      %v845 = vmul.f32 %v710, %v759
      %v846 = vmul.f32 %v711, %v759
      %v847 = vmul.f32 %v712, %v759
      %v848 = vmul.f32 %v713, %v759
      %v849 = vmul.f32 %v714, %v759
      %v850 = vmul.f32 %v715, %v759
      %v851 = vmul.f32 %v716, %v759
      %v852 = vmul.f32 %v717, %v759
      %v853 = vmul.f32 %v718, %v759
      %v854 = vmul.f32 %v719, %v759
      %v855 = vmul.f32 %v720, %v759
      %v856 = vmul.f32 %v721, %v759
      %v857 = vmul.f32 %v722, %v759
      %v858 = vmul.f32 %v723, %v759
      %v859 = vmul.f32 %v724, %v759
      %v860 = vmul.f32 %v725, %v759
      %v861 = vmul.f32 %v726, %v759
      %v862 = vmul.f32 %v727, %v759
      %v863 = vmul.f32 %v728, %v759
      %v864 = vmul.f32 %v729, %v759
      %v865 = vmul.f32 %v730, %v759
      %v866 = vmul.f32 %v731, %v759
      %v867 = vmul.f32 %v732, %v759
      %v868 = vmul.f32 %v733, %v759
      %v869 = vmul.f32 %v734, %v759
      %v870 = vmul.f32 %v735, %v759
      %v871 = vmul.f32 %v736, %v759
      %v872 = vmul.f32 %v737, %v759
      %v873 = vmul.f32 %v738, %v759
      %v874 = vmul.f32 %v739, %v759
      %v875 = vmul.f32 %v740, %v759
      %v876 = vmul.f32 %v741, %v759
      %v877 = vmul.f32 %v742, %v759
      %v878 = vmul.f32 %v743, %v759
      %v879 = vmul.f32 %v744, %v759
      %v880 = vmul.f32 %v745, %v759
      %v881 = vmul.f32 %v746, %v759
      %v882 = vmul.f32 %v747, %v759
      %v883 = vmul.f32 %v748, %v759
      %v884 = vmul.f32 %v749, %v759
      %v885 = vmul.f32 %v750, %v759
      %v886 = vmul.f32 %v751, %v759
      %v887 = vmul.f32 %v752, %v759
      %v888 = vmul.f32 %v753, %v759
      %v889 = vld [vmem:[%s4] sm:$0x1]
      %v891 = vlaneseq
      %v892 = vshrl.u32 %v891, 7
      %v893 = vsub.s32 0, %v892
      %v894 = vrot.slane %v889, %v893
      %v896 = vadd.f32 %v761, %v894
      %v897 = vadd.f32 %v762, %v894
      %v898 = vadd.f32 %v763, %v894
      %v899 = vadd.f32 %v764, %v894
      %v900 = vadd.f32 %v765, %v894
      %v901 = vadd.f32 %v766, %v894
      %v902 = vadd.f32 %v767, %v894
      %v903 = vadd.f32 %v768, %v894
      %v904 = vadd.f32 %v769, %v894
      %v905 = vadd.f32 %v770, %v894
      %v906 = vadd.f32 %v771, %v894
      %v907 = vadd.f32 %v772, %v894
      %v908 = vadd.f32 %v773, %v894
      %v909 = vadd.f32 %v774, %v894
      %v910 = vadd.f32 %v775, %v894
      %v911 = vadd.f32 %v776, %v894
      %v912 = vadd.f32 %v777, %v894
      %v913 = vadd.f32 %v778, %v894
      %v914 = vadd.f32 %v779, %v894
      %v915 = vadd.f32 %v780, %v894
      %v916 = vadd.f32 %v781, %v894
      %v917 = vadd.f32 %v782, %v894
      %v918 = vadd.f32 %v783, %v894
      %v919 = vadd.f32 %v784, %v894
      %v920 = vadd.f32 %v785, %v894
      %v921 = vadd.f32 %v786, %v894
      %v922 = vadd.f32 %v787, %v894
      %v923 = vadd.f32 %v788, %v894
      %v924 = vadd.f32 %v789, %v894
      %v925 = vadd.f32 %v790, %v894
      %v926 = vadd.f32 %v791, %v894
      %v927 = vadd.f32 %v792, %v894
      %v928 = vadd.f32 %v793, %v894
      %v929 = vadd.f32 %v794, %v894
      %v930 = vadd.f32 %v795, %v894
      %v931 = vadd.f32 %v796, %v894
      %v932 = vadd.f32 %v797, %v894
      %v933 = vadd.f32 %v798, %v894
      %v934 = vadd.f32 %v799, %v894
      %v935 = vadd.f32 %v800, %v894
      %v936 = vadd.f32 %v801, %v894
      %v937 = vadd.f32 %v802, %v894
      %v938 = vadd.f32 %v803, %v894
      %v939 = vadd.f32 %v804, %v894
      %v940 = vadd.f32 %v805, %v894
      %v941 = vadd.f32 %v806, %v894
      %v942 = vadd.f32 %v807, %v894
      %v943 = vadd.f32 %v808, %v894
      %v944 = vadd.f32 %v809, %v894
      %v945 = vadd.f32 %v810, %v894
      %v946 = vadd.f32 %v811, %v894
      %v947 = vadd.f32 %v812, %v894
      %v948 = vadd.f32 %v813, %v894
      %v949 = vadd.f32 %v814, %v894
      %v950 = vadd.f32 %v815, %v894
      %v951 = vadd.f32 %v816, %v894
      %v952 = vadd.f32 %v817, %v894
      %v953 = vadd.f32 %v818, %v894
      %v954 = vadd.f32 %v819, %v894
      %v955 = vadd.f32 %v820, %v894
      %v956 = vadd.f32 %v821, %v894
      %v957 = vadd.f32 %v822, %v894
      %v958 = vadd.f32 %v823, %v894
      %v959 = vadd.f32 %v824, %v894
      %v960 = vadd.f32 %v825, %v894
      %v961 = vadd.f32 %v826, %v894
      %v962 = vadd.f32 %v827, %v894
      %v963 = vadd.f32 %v828, %v894
      %v964 = vadd.f32 %v829, %v894
      %v965 = vadd.f32 %v830, %v894
      %v966 = vadd.f32 %v831, %v894
      %v967 = vadd.f32 %v832, %v894
      %v968 = vadd.f32 %v833, %v894
      %v969 = vadd.f32 %v834, %v894
      %v970 = vadd.f32 %v835, %v894
      %v971 = vadd.f32 %v836, %v894
      %v972 = vadd.f32 %v837, %v894
      %v973 = vadd.f32 %v838, %v894
      %v974 = vadd.f32 %v839, %v894
      %v975 = vadd.f32 %v840, %v894
      %v976 = vadd.f32 %v841, %v894
      %v977 = vadd.f32 %v842, %v894
      %v978 = vadd.f32 %v843, %v894
      %v979 = vadd.f32 %v844, %v894
      %v980 = vadd.f32 %v845, %v894
      %v981 = vadd.f32 %v846, %v894
      %v982 = vadd.f32 %v847, %v894
      %v983 = vadd.f32 %v848, %v894
      %v984 = vadd.f32 %v849, %v894
      %v985 = vadd.f32 %v850, %v894
      %v986 = vadd.f32 %v851, %v894
      %v987 = vadd.f32 %v852, %v894
      %v988 = vadd.f32 %v853, %v894
      %v989 = vadd.f32 %v854, %v894
      %v990 = vadd.f32 %v855, %v894
      %v991 = vadd.f32 %v856, %v894
      %v992 = vadd.f32 %v857, %v894
      %v993 = vadd.f32 %v858, %v894
      %v994 = vadd.f32 %v859, %v894
      %v995 = vadd.f32 %v860, %v894
      %v996 = vadd.f32 %v861, %v894
      %v997 = vadd.f32 %v862, %v894
      %v998 = vadd.f32 %v863, %v894
      %v999 = vadd.f32 %v864, %v894
      %v1000 = vadd.f32 %v865, %v894
      %v1001 = vadd.f32 %v866, %v894
      %v1002 = vadd.f32 %v867, %v894
      %v1003 = vadd.f32 %v868, %v894
      %v1004 = vadd.f32 %v869, %v894
      %v1005 = vadd.f32 %v870, %v894
      %v1006 = vadd.f32 %v871, %v894
      %v1007 = vadd.f32 %v872, %v894
      %v1008 = vadd.f32 %v873, %v894
      %v1009 = vadd.f32 %v874, %v894
      %v1010 = vadd.f32 %v875, %v894
      %v1011 = vadd.f32 %v876, %v894
      %v1012 = vadd.f32 %v877, %v894
      %v1013 = vadd.f32 %v878, %v894
      %v1014 = vadd.f32 %v879, %v894
      %v1015 = vadd.f32 %v880, %v894
      %v1016 = vadd.f32 %v881, %v894
      %v1017 = vadd.f32 %v882, %v894
      %v1018 = vadd.f32 %v883, %v894
      %v1019 = vadd.f32 %v884, %v894
      %v1020 = vadd.f32 %v885, %v894
      %v1021 = vadd.f32 %v886, %v894
      %v1022 = vadd.f32 %v887, %v894
      %v1023 = vadd.f32 %v888, %v894
      %vm1024 = vcmp.gt.f32.partialorder %v896, 0.0
      %vm1025 = vcmp.gt.f32.partialorder %v897, 0.0
      %vm1026 = vcmp.gt.f32.partialorder %v898, 0.0
      %vm1027 = vcmp.gt.f32.partialorder %v899, 0.0
      %vm1028 = vcmp.gt.f32.partialorder %v900, 0.0
      %vm1029 = vcmp.gt.f32.partialorder %v901, 0.0
      %vm1030 = vcmp.gt.f32.partialorder %v902, 0.0
      %vm1031 = vcmp.gt.f32.partialorder %v903, 0.0
      %vm1032 = vcmp.gt.f32.partialorder %v904, 0.0
      %vm1033 = vcmp.gt.f32.partialorder %v905, 0.0
      %vm1034 = vcmp.gt.f32.partialorder %v906, 0.0
      %vm1035 = vcmp.gt.f32.partialorder %v907, 0.0
      %vm1036 = vcmp.gt.f32.partialorder %v908, 0.0
      %vm1037 = vcmp.gt.f32.partialorder %v909, 0.0
      %vm1038 = vcmp.gt.f32.partialorder %v910, 0.0
      %vm1039 = vcmp.gt.f32.partialorder %v911, 0.0
      %vm1040 = vcmp.gt.f32.partialorder %v912, 0.0
      %vm1041 = vcmp.gt.f32.partialorder %v913, 0.0
      %vm1042 = vcmp.gt.f32.partialorder %v914, 0.0
      %vm1043 = vcmp.gt.f32.partialorder %v915, 0.0
      %vm1044 = vcmp.gt.f32.partialorder %v916, 0.0
      %vm1045 = vcmp.gt.f32.partialorder %v917, 0.0
      %vm1046 = vcmp.gt.f32.partialorder %v918, 0.0
      %vm1047 = vcmp.gt.f32.partialorder %v919, 0.0
      %vm1048 = vcmp.gt.f32.partialorder %v920, 0.0
      %vm1049 = vcmp.gt.f32.partialorder %v921, 0.0
      %vm1050 = vcmp.gt.f32.partialorder %v922, 0.0
      %vm1051 = vcmp.gt.f32.partialorder %v923, 0.0
      %vm1052 = vcmp.gt.f32.partialorder %v924, 0.0
      %vm1053 = vcmp.gt.f32.partialorder %v925, 0.0
      %vm1054 = vcmp.gt.f32.partialorder %v926, 0.0
      %vm1055 = vcmp.gt.f32.partialorder %v927, 0.0
      %vm1056 = vcmp.gt.f32.partialorder %v928, 0.0
      %vm1057 = vcmp.gt.f32.partialorder %v929, 0.0
      %vm1058 = vcmp.gt.f32.partialorder %v930, 0.0
      %vm1059 = vcmp.gt.f32.partialorder %v931, 0.0
      %vm1060 = vcmp.gt.f32.partialorder %v932, 0.0
      %vm1061 = vcmp.gt.f32.partialorder %v933, 0.0
      %vm1062 = vcmp.gt.f32.partialorder %v934, 0.0
      %vm1063 = vcmp.gt.f32.partialorder %v935, 0.0
      %vm1064 = vcmp.gt.f32.partialorder %v936, 0.0
      %vm1065 = vcmp.gt.f32.partialorder %v937, 0.0
      %vm1066 = vcmp.gt.f32.partialorder %v938, 0.0
      %vm1067 = vcmp.gt.f32.partialorder %v939, 0.0
      %vm1068 = vcmp.gt.f32.partialorder %v940, 0.0
      %vm1069 = vcmp.gt.f32.partialorder %v941, 0.0
      %vm1070 = vcmp.gt.f32.partialorder %v942, 0.0
      %vm1071 = vcmp.gt.f32.partialorder %v943, 0.0
      %vm1072 = vcmp.gt.f32.partialorder %v944, 0.0
      %vm1073 = vcmp.gt.f32.partialorder %v945, 0.0
      %vm1074 = vcmp.gt.f32.partialorder %v946, 0.0
      %vm1075 = vcmp.gt.f32.partialorder %v947, 0.0
      %vm1076 = vcmp.gt.f32.partialorder %v948, 0.0
      %vm1077 = vcmp.gt.f32.partialorder %v949, 0.0
      %vm1078 = vcmp.gt.f32.partialorder %v950, 0.0
      %vm1079 = vcmp.gt.f32.partialorder %v951, 0.0
      %vm1080 = vcmp.gt.f32.partialorder %v952, 0.0
      %vm1081 = vcmp.gt.f32.partialorder %v953, 0.0
      %vm1082 = vcmp.gt.f32.partialorder %v954, 0.0
      %vm1083 = vcmp.gt.f32.partialorder %v955, 0.0
      %vm1084 = vcmp.gt.f32.partialorder %v956, 0.0
      %vm1085 = vcmp.gt.f32.partialorder %v957, 0.0
      %vm1086 = vcmp.gt.f32.partialorder %v958, 0.0
      %vm1087 = vcmp.gt.f32.partialorder %v959, 0.0
      %vm1088 = vcmp.gt.f32.partialorder %v960, 0.0
      %vm1089 = vcmp.gt.f32.partialorder %v961, 0.0
      %vm1090 = vcmp.gt.f32.partialorder %v962, 0.0
      %vm1091 = vcmp.gt.f32.partialorder %v963, 0.0
      %vm1092 = vcmp.gt.f32.partialorder %v964, 0.0
      %vm1093 = vcmp.gt.f32.partialorder %v965, 0.0
      %vm1094 = vcmp.gt.f32.partialorder %v966, 0.0
      %vm1095 = vcmp.gt.f32.partialorder %v967, 0.0
      %vm1096 = vcmp.gt.f32.partialorder %v968, 0.0
      %vm1097 = vcmp.gt.f32.partialorder %v969, 0.0
      %vm1098 = vcmp.gt.f32.partialorder %v970, 0.0
      %vm1099 = vcmp.gt.f32.partialorder %v971, 0.0
      %vm1100 = vcmp.gt.f32.partialorder %v972, 0.0
      %vm1101 = vcmp.gt.f32.partialorder %v973, 0.0
      %vm1102 = vcmp.gt.f32.partialorder %v974, 0.0
      %vm1103 = vcmp.gt.f32.partialorder %v975, 0.0
      %vm1104 = vcmp.gt.f32.partialorder %v976, 0.0
      %vm1105 = vcmp.gt.f32.partialorder %v977, 0.0
      %vm1106 = vcmp.gt.f32.partialorder %v978, 0.0
      %vm1107 = vcmp.gt.f32.partialorder %v979, 0.0
      %vm1108 = vcmp.gt.f32.partialorder %v980, 0.0
      %vm1109 = vcmp.gt.f32.partialorder %v981, 0.0
      %vm1110 = vcmp.gt.f32.partialorder %v982, 0.0
      %vm1111 = vcmp.gt.f32.partialorder %v983, 0.0
      %vm1112 = vcmp.gt.f32.partialorder %v984, 0.0
      %vm1113 = vcmp.gt.f32.partialorder %v985, 0.0
      %vm1114 = vcmp.gt.f32.partialorder %v986, 0.0
      %vm1115 = vcmp.gt.f32.partialorder %v987, 0.0
      %vm1116 = vcmp.gt.f32.partialorder %v988, 0.0
      %vm1117 = vcmp.gt.f32.partialorder %v989, 0.0
      %vm1118 = vcmp.gt.f32.partialorder %v990, 0.0
      %vm1119 = vcmp.gt.f32.partialorder %v991, 0.0
      %vm1120 = vcmp.gt.f32.partialorder %v992, 0.0
      %vm1121 = vcmp.gt.f32.partialorder %v993, 0.0
      %vm1122 = vcmp.gt.f32.partialorder %v994, 0.0
      %vm1123 = vcmp.gt.f32.partialorder %v995, 0.0
      %vm1124 = vcmp.gt.f32.partialorder %v996, 0.0
      %vm1125 = vcmp.gt.f32.partialorder %v997, 0.0
      %vm1126 = vcmp.gt.f32.partialorder %v998, 0.0
      %vm1127 = vcmp.gt.f32.partialorder %v999, 0.0
      %vm1128 = vcmp.gt.f32.partialorder %v1000, 0.0
      %vm1129 = vcmp.gt.f32.partialorder %v1001, 0.0
      %vm1130 = vcmp.gt.f32.partialorder %v1002, 0.0
      %vm1131 = vcmp.gt.f32.partialorder %v1003, 0.0
      %vm1132 = vcmp.gt.f32.partialorder %v1004, 0.0
      %vm1133 = vcmp.gt.f32.partialorder %v1005, 0.0
      %vm1134 = vcmp.gt.f32.partialorder %v1006, 0.0
      %vm1135 = vcmp.gt.f32.partialorder %v1007, 0.0
      %vm1136 = vcmp.gt.f32.partialorder %v1008, 0.0
      %vm1137 = vcmp.gt.f32.partialorder %v1009, 0.0
      %vm1138 = vcmp.gt.f32.partialorder %v1010, 0.0
      %vm1139 = vcmp.gt.f32.partialorder %v1011, 0.0
      %vm1140 = vcmp.gt.f32.partialorder %v1012, 0.0
      %vm1141 = vcmp.gt.f32.partialorder %v1013, 0.0
      %vm1142 = vcmp.gt.f32.partialorder %v1014, 0.0
      %vm1143 = vcmp.gt.f32.partialorder %v1015, 0.0
      %vm1144 = vcmp.gt.f32.partialorder %v1016, 0.0
      %vm1145 = vcmp.gt.f32.partialorder %v1017, 0.0
      %vm1146 = vcmp.gt.f32.partialorder %v1018, 0.0
      %vm1147 = vcmp.gt.f32.partialorder %v1019, 0.0
      %vm1148 = vcmp.gt.f32.partialorder %v1020, 0.0
      %vm1149 = vcmp.gt.f32.partialorder %v1021, 0.0
      %vm1150 = vcmp.gt.f32.partialorder %v1022, 0.0
      %vm1151 = vcmp.gt.f32.partialorder %v1023, 0.0
      %v1152 = vmul.f32 %v896, 0.2
      %v1153 = vmul.f32 %v897, 0.2
      %v1154 = vmul.f32 %v898, 0.2
      %v1155 = vmul.f32 %v899, 0.2
      %v1156 = vmul.f32 %v900, 0.2
      %v1157 = vmul.f32 %v901, 0.2
      %v1158 = vmul.f32 %v902, 0.2
      %v1159 = vmul.f32 %v903, 0.2
      %v1160 = vmul.f32 %v904, 0.2
      %v1161 = vmul.f32 %v905, 0.2
      %v1162 = vmul.f32 %v906, 0.2
      %v1163 = vmul.f32 %v907, 0.2
      %v1164 = vmul.f32 %v908, 0.2
      %v1165 = vmul.f32 %v909, 0.2
      %v1166 = vmul.f32 %v910, 0.2
      %v1167 = vmul.f32 %v911, 0.2
      %v1168 = vmul.f32 %v912, 0.2
      %v1169 = vmul.f32 %v913, 0.2
      %v1170 = vmul.f32 %v914, 0.2
      %v1171 = vmul.f32 %v915, 0.2
      %v1172 = vmul.f32 %v916, 0.2
      %v1173 = vmul.f32 %v917, 0.2
      %v1174 = vmul.f32 %v918, 0.2
      %v1175 = vmul.f32 %v919, 0.2
      %v1176 = vmul.f32 %v920, 0.2
      %v1177 = vmul.f32 %v921, 0.2
      %v1178 = vmul.f32 %v922, 0.2
      %v1179 = vmul.f32 %v923, 0.2
      %v1180 = vmul.f32 %v924, 0.2
      %v1181 = vmul.f32 %v925, 0.2
      %v1182 = vmul.f32 %v926, 0.2
      %v1183 = vmul.f32 %v927, 0.2
      %v1184 = vmul.f32 %v928, 0.2
      %v1185 = vmul.f32 %v929, 0.2
      %v1186 = vmul.f32 %v930, 0.2
      %v1187 = vmul.f32 %v931, 0.2
      %v1188 = vmul.f32 %v932, 0.2
      %v1189 = vmul.f32 %v933, 0.2
      %v1190 = vmul.f32 %v934, 0.2
      %v1191 = vmul.f32 %v935, 0.2
      %v1192 = vmul.f32 %v936, 0.2
      %v1193 = vmul.f32 %v937, 0.2
      %v1194 = vmul.f32 %v938, 0.2
      %v1195 = vmul.f32 %v939, 0.2
      %v1196 = vmul.f32 %v940, 0.2
      %v1197 = vmul.f32 %v941, 0.2
      %v1198 = vmul.f32 %v942, 0.2
      %v1199 = vmul.f32 %v943, 0.2
      %v1200 = vmul.f32 %v944, 0.2
      %v1201 = vmul.f32 %v945, 0.2
      %v1202 = vmul.f32 %v946, 0.2
      %v1203 = vmul.f32 %v947, 0.2
      %v1204 = vmul.f32 %v948, 0.2
      %v1205 = vmul.f32 %v949, 0.2
      %v1206 = vmul.f32 %v950, 0.2
      %v1207 = vmul.f32 %v951, 0.2
      %v1208 = vmul.f32 %v952, 0.2
      %v1209 = vmul.f32 %v953, 0.2
      %v1210 = vmul.f32 %v954, 0.2
      %v1211 = vmul.f32 %v955, 0.2
      %v1212 = vmul.f32 %v956, 0.2
      %v1213 = vmul.f32 %v957, 0.2
      %v1214 = vmul.f32 %v958, 0.2
      %v1215 = vmul.f32 %v959, 0.2
      %v1216 = vmul.f32 %v960, 0.2
      %v1217 = vmul.f32 %v961, 0.2
      %v1218 = vmul.f32 %v962, 0.2
      %v1219 = vmul.f32 %v963, 0.2
      %v1220 = vmul.f32 %v964, 0.2
      %v1221 = vmul.f32 %v965, 0.2
      %v1222 = vmul.f32 %v966, 0.2
      %v1223 = vmul.f32 %v967, 0.2
      %v1224 = vmul.f32 %v968, 0.2
      %v1225 = vmul.f32 %v969, 0.2
      %v1226 = vmul.f32 %v970, 0.2
      %v1227 = vmul.f32 %v971, 0.2
      %v1228 = vmul.f32 %v972, 0.2
      %v1229 = vmul.f32 %v973, 0.2
      %v1230 = vmul.f32 %v974, 0.2
      %v1231 = vmul.f32 %v975, 0.2
      %v1232 = vmul.f32 %v976, 0.2
      %v1233 = vmul.f32 %v977, 0.2
      %v1234 = vmul.f32 %v978, 0.2
      %v1235 = vmul.f32 %v979, 0.2
      %v1236 = vmul.f32 %v980, 0.2
      %v1237 = vmul.f32 %v981, 0.2
      %v1238 = vmul.f32 %v982, 0.2
      %v1239 = vmul.f32 %v983, 0.2
      %v1240 = vmul.f32 %v984, 0.2
      %v1241 = vmul.f32 %v985, 0.2
      %v1242 = vmul.f32 %v986, 0.2
      %v1243 = vmul.f32 %v987, 0.2
      %v1244 = vmul.f32 %v988, 0.2
      %v1245 = vmul.f32 %v989, 0.2
      %v1246 = vmul.f32 %v990, 0.2
      %v1247 = vmul.f32 %v991, 0.2
      %v1248 = vmul.f32 %v992, 0.2
      %v1249 = vmul.f32 %v993, 0.2
      %v1250 = vmul.f32 %v994, 0.2
      %v1251 = vmul.f32 %v995, 0.2
      %v1252 = vmul.f32 %v996, 0.2
      %v1253 = vmul.f32 %v997, 0.2
      %v1254 = vmul.f32 %v998, 0.2
      %v1255 = vmul.f32 %v999, 0.2
      %v1256 = vmul.f32 %v1000, 0.2
      %v1257 = vmul.f32 %v1001, 0.2
      %v1258 = vmul.f32 %v1002, 0.2
      %v1259 = vmul.f32 %v1003, 0.2
      %v1260 = vmul.f32 %v1004, 0.2
      %v1261 = vmul.f32 %v1005, 0.2
      %v1262 = vmul.f32 %v1006, 0.2
      %v1263 = vmul.f32 %v1007, 0.2
      %v1264 = vmul.f32 %v1008, 0.2
      %v1265 = vmul.f32 %v1009, 0.2
      %v1266 = vmul.f32 %v1010, 0.2
      %v1267 = vmul.f32 %v1011, 0.2
      %v1268 = vmul.f32 %v1012, 0.2
      %v1269 = vmul.f32 %v1013, 0.2
      %v1270 = vmul.f32 %v1014, 0.2
      %v1271 = vmul.f32 %v1015, 0.2
      %v1272 = vmul.f32 %v1016, 0.2
      %v1273 = vmul.f32 %v1017, 0.2
      %v1274 = vmul.f32 %v1018, 0.2
      %v1275 = vmul.f32 %v1019, 0.2
      %v1276 = vmul.f32 %v1020, 0.2
      %v1277 = vmul.f32 %v1021, 0.2
      %v1278 = vmul.f32 %v1022, 0.2
      %v1279 = vmul.f32 %v1023, 0.2
      %v1280 = vsel %vm1024, %v896, %v1152
      %v1281 = vsel %vm1025, %v897, %v1153
      %v1282 = vsel %vm1026, %v898, %v1154
      %v1283 = vsel %vm1027, %v899, %v1155
      %v1284 = vsel %vm1028, %v900, %v1156
      %v1285 = vsel %vm1029, %v901, %v1157
      %v1286 = vsel %vm1030, %v902, %v1158
      %v1287 = vsel %vm1031, %v903, %v1159
      %v1288 = vsel %vm1032, %v904, %v1160
      %v1289 = vsel %vm1033, %v905, %v1161
      %v1290 = vsel %vm1034, %v906, %v1162
      %v1291 = vsel %vm1035, %v907, %v1163
      %v1292 = vsel %vm1036, %v908, %v1164
      %v1293 = vsel %vm1037, %v909, %v1165
      %v1294 = vsel %vm1038, %v910, %v1166
      %v1295 = vsel %vm1039, %v911, %v1167
      %v1296 = vsel %vm1040, %v912, %v1168
      %v1297 = vsel %vm1041, %v913, %v1169
      %v1298 = vsel %vm1042, %v914, %v1170
      %v1299 = vsel %vm1043, %v915, %v1171
      %v1300 = vsel %vm1044, %v916, %v1172
      %v1301 = vsel %vm1045, %v917, %v1173
      %v1302 = vsel %vm1046, %v918, %v1174
      %v1303 = vsel %vm1047, %v919, %v1175
      %v1304 = vsel %vm1048, %v920, %v1176
      %v1305 = vsel %vm1049, %v921, %v1177
      %v1306 = vsel %vm1050, %v922, %v1178
      %v1307 = vsel %vm1051, %v923, %v1179
      %v1308 = vsel %vm1052, %v924, %v1180
      %v1309 = vsel %vm1053, %v925, %v1181
      %v1310 = vsel %vm1054, %v926, %v1182
      %v1311 = vsel %vm1055, %v927, %v1183
      %v1312 = vsel %vm1056, %v928, %v1184
      %v1313 = vsel %vm1057, %v929, %v1185
      %v1314 = vsel %vm1058, %v930, %v1186
      %v1315 = vsel %vm1059, %v931, %v1187
      %v1316 = vsel %vm1060, %v932, %v1188
      %v1317 = vsel %vm1061, %v933, %v1189
      %v1318 = vsel %vm1062, %v934, %v1190
      %v1319 = vsel %vm1063, %v935, %v1191
      %v1320 = vsel %vm1064, %v936, %v1192
      %v1321 = vsel %vm1065, %v937, %v1193
      %v1322 = vsel %vm1066, %v938, %v1194
      %v1323 = vsel %vm1067, %v939, %v1195
      %v1324 = vsel %vm1068, %v940, %v1196
      %v1325 = vsel %vm1069, %v941, %v1197
      %v1326 = vsel %vm1070, %v942, %v1198
      %v1327 = vsel %vm1071, %v943, %v1199
      %v1328 = vsel %vm1072, %v944, %v1200
      %v1329 = vsel %vm1073, %v945, %v1201
      %v1330 = vsel %vm1074, %v946, %v1202
      %v1331 = vsel %vm1075, %v947, %v1203
      %v1332 = vsel %vm1076, %v948, %v1204
      %v1333 = vsel %vm1077, %v949, %v1205
      %v1334 = vsel %vm1078, %v950, %v1206
      %v1335 = vsel %vm1079, %v951, %v1207
      %v1336 = vsel %vm1080, %v952, %v1208
      %v1337 = vsel %vm1081, %v953, %v1209
      %v1338 = vsel %vm1082, %v954, %v1210
      %v1339 = vsel %vm1083, %v955, %v1211
      %v1340 = vsel %vm1084, %v956, %v1212
      %v1341 = vsel %vm1085, %v957, %v1213
      %v1342 = vsel %vm1086, %v958, %v1214
      %v1343 = vsel %vm1087, %v959, %v1215
      %v1344 = vsel %vm1088, %v960, %v1216
      %v1345 = vsel %vm1089, %v961, %v1217
      %v1346 = vsel %vm1090, %v962, %v1218
      %v1347 = vsel %vm1091, %v963, %v1219
      %v1348 = vsel %vm1092, %v964, %v1220
      %v1349 = vsel %vm1093, %v965, %v1221
      %v1350 = vsel %vm1094, %v966, %v1222
      %v1351 = vsel %vm1095, %v967, %v1223
      %v1352 = vsel %vm1096, %v968, %v1224
      %v1353 = vsel %vm1097, %v969, %v1225
      %v1354 = vsel %vm1098, %v970, %v1226
      %v1355 = vsel %vm1099, %v971, %v1227
      %v1356 = vsel %vm1100, %v972, %v1228
      %v1357 = vsel %vm1101, %v973, %v1229
      %v1358 = vsel %vm1102, %v974, %v1230
      %v1359 = vsel %vm1103, %v975, %v1231
      %v1360 = vsel %vm1104, %v976, %v1232
      %v1361 = vsel %vm1105, %v977, %v1233
      %v1362 = vsel %vm1106, %v978, %v1234
      %v1363 = vsel %vm1107, %v979, %v1235
      %v1364 = vsel %vm1108, %v980, %v1236
      %v1365 = vsel %vm1109, %v981, %v1237
      %v1366 = vsel %vm1110, %v982, %v1238
      %v1367 = vsel %vm1111, %v983, %v1239
      %v1368 = vsel %vm1112, %v984, %v1240
      %v1369 = vsel %vm1113, %v985, %v1241
      %v1370 = vsel %vm1114, %v986, %v1242
      %v1371 = vsel %vm1115, %v987, %v1243
      %v1372 = vsel %vm1116, %v988, %v1244
      %v1373 = vsel %vm1117, %v989, %v1245
      %v1374 = vsel %vm1118, %v990, %v1246
      %v1375 = vsel %vm1119, %v991, %v1247
      %v1376 = vsel %vm1120, %v992, %v1248
      %v1377 = vsel %vm1121, %v993, %v1249
      %v1378 = vsel %vm1122, %v994, %v1250
      %v1379 = vsel %vm1123, %v995, %v1251
      %v1380 = vsel %vm1124, %v996, %v1252
      %v1381 = vsel %vm1125, %v997, %v1253
      %v1382 = vsel %vm1126, %v998, %v1254
      %v1383 = vsel %vm1127, %v999, %v1255
      %v1384 = vsel %vm1128, %v1000, %v1256
      %v1385 = vsel %vm1129, %v1001, %v1257
      %v1386 = vsel %vm1130, %v1002, %v1258
      %v1387 = vsel %vm1131, %v1003, %v1259
      %v1388 = vsel %vm1132, %v1004, %v1260
      %v1389 = vsel %vm1133, %v1005, %v1261
      %v1390 = vsel %vm1134, %v1006, %v1262
      %v1391 = vsel %vm1135, %v1007, %v1263
      %v1392 = vsel %vm1136, %v1008, %v1264
      %v1393 = vsel %vm1137, %v1009, %v1265
      %v1394 = vsel %vm1138, %v1010, %v1266
      %v1395 = vsel %vm1139, %v1011, %v1267
      %v1396 = vsel %vm1140, %v1012, %v1268
      %v1397 = vsel %vm1141, %v1013, %v1269
      %v1398 = vsel %vm1142, %v1014, %v1270
      %v1399 = vsel %vm1143, %v1015, %v1271
      %v1400 = vsel %vm1144, %v1016, %v1272
      %v1401 = vsel %vm1145, %v1017, %v1273
      %v1402 = vsel %vm1146, %v1018, %v1274
      %v1403 = vsel %vm1147, %v1019, %v1275
      %v1404 = vsel %vm1148, %v1020, %v1276
      %v1405 = vsel %vm1149, %v1021, %v1277
      %v1406 = vsel %vm1150, %v1022, %v1278
      %v1407 = vsel %vm1151, %v1023, %v1279
      %1408 = vst [vmem:[%s226] sm:$0xff] %v1280
      %1409 = vst [vmem:[%s226 + $0x8] sm:$0xff] %v1281
      %1410 = vst [vmem:[%s226 + $0x10] sm:$0xff] %v1282
      %1411 = vst [vmem:[%s226 + $0x18] sm:$0xff] %v1283
      %1412 = vst [vmem:[%s226 + $0x20] sm:$0xff] %v1284
      %1413 = vst [vmem:[%s226 + $0x28] sm:$0xff] %v1285
      %1414 = vst [vmem:[%s226 + $0x30] sm:$0xff] %v1286
      %1415 = vst [vmem:[%s226 + $0x38] sm:$0xff] %v1287
      %1416 = vst [vmem:[%s226 + $0x40] sm:$0xff] %v1288
      %1417 = vst [vmem:[%s226 + $0x48] sm:$0xff] %v1289
      %1418 = vst [vmem:[%s226 + $0x50] sm:$0xff] %v1290
      %1419 = vst [vmem:[%s226 + $0x58] sm:$0xff] %v1291
      %1420 = vst [vmem:[%s226 + $0x60] sm:$0xff] %v1292
      %1421 = vst [vmem:[%s226 + $0x68] sm:$0xff] %v1293
      %1422 = vst [vmem:[%s226 + $0x70] sm:$0xff] %v1294
      %1423 = vst [vmem:[%s226 + $0x78] sm:$0xff] %v1295
      %1424 = vst [vmem:[%s226 + $0x80] sm:$0xff] %v1296
      %1425 = vst [vmem:[%s226 + $0x88] sm:$0xff] %v1297
      %1426 = vst [vmem:[%s226 + $0x90] sm:$0xff] %v1298
      %1427 = vst [vmem:[%s226 + $0x98] sm:$0xff] %v1299
      %1428 = vst [vmem:[%s226 + $0xa0] sm:$0xff] %v1300
      %1429 = vst [vmem:[%s226 + $0xa8] sm:$0xff] %v1301
      %1430 = vst [vmem:[%s226 + $0xb0] sm:$0xff] %v1302
      %1431 = vst [vmem:[%s226 + $0xb8] sm:$0xff] %v1303
      %1432 = vst [vmem:[%s226 + $0xc0] sm:$0xff] %v1304
      %1433 = vst [vmem:[%s226 + $0xc8] sm:$0xff] %v1305
      %1434 = vst [vmem:[%s226 + $0xd0] sm:$0xff] %v1306
      %1435 = vst [vmem:[%s226 + $0xd8] sm:$0xff] %v1307
      %1436 = vst [vmem:[%s226 + $0xe0] sm:$0xff] %v1308
      %1437 = vst [vmem:[%s226 + $0xe8] sm:$0xff] %v1309
      %1438 = vst [vmem:[%s226 + $0xf0] sm:$0xff] %v1310
      %1439 = vst [vmem:[%s226 + $0xf8] sm:$0xff] %v1311
      %1440 = vst [vmem:[%s226 + $0x100] sm:$0xff] %v1312
      %1441 = vst [vmem:[%s226 + $0x108] sm:$0xff] %v1313
      %1442 = vst [vmem:[%s226 + $0x110] sm:$0xff] %v1314
      %1443 = vst [vmem:[%s226 + $0x118] sm:$0xff] %v1315
      %1444 = vst [vmem:[%s226 + $0x120] sm:$0xff] %v1316
      %1445 = vst [vmem:[%s226 + $0x128] sm:$0xff] %v1317
      %1446 = vst [vmem:[%s226 + $0x130] sm:$0xff] %v1318
      %1447 = vst [vmem:[%s226 + $0x138] sm:$0xff] %v1319
      %1448 = vst [vmem:[%s226 + $0x140] sm:$0xff] %v1320
      %1449 = vst [vmem:[%s226 + $0x148] sm:$0xff] %v1321
      %1450 = vst [vmem:[%s226 + $0x150] sm:$0xff] %v1322
      %1451 = vst [vmem:[%s226 + $0x158] sm:$0xff] %v1323
      %1452 = vst [vmem:[%s226 + $0x160] sm:$0xff] %v1324
      %1453 = vst [vmem:[%s226 + $0x168] sm:$0xff] %v1325
      %1454 = vst [vmem:[%s226 + $0x170] sm:$0xff] %v1326
      %1455 = vst [vmem:[%s226 + $0x178] sm:$0xff] %v1327
      %1456 = vst [vmem:[%s226 + $0x180] sm:$0xff] %v1328
      %1457 = vst [vmem:[%s226 + $0x188] sm:$0xff] %v1329
      %1458 = vst [vmem:[%s226 + $0x190] sm:$0xff] %v1330
      %1459 = vst [vmem:[%s226 + $0x198] sm:$0xff] %v1331
      %1460 = vst [vmem:[%s226 + $0x1a0] sm:$0xff] %v1332
      %1461 = vst [vmem:[%s226 + $0x1a8] sm:$0xff] %v1333
      %1462 = vst [vmem:[%s226 + $0x1b0] sm:$0xff] %v1334
      %1463 = vst [vmem:[%s226 + $0x1b8] sm:$0xff] %v1335
      %1464 = vst [vmem:[%s226 + $0x1c0] sm:$0xff] %v1336
      %1465 = vst [vmem:[%s226 + $0x1c8] sm:$0xff] %v1337
      %1466 = vst [vmem:[%s226 + $0x1d0] sm:$0xff] %v1338
      %1467 = vst [vmem:[%s226 + $0x1d8] sm:$0xff] %v1339
      %1468 = vst [vmem:[%s226 + $0x1e0] sm:$0xff] %v1340
      %1469 = vst [vmem:[%s226 + $0x1e8] sm:$0xff] %v1341
      %1470 = vst [vmem:[%s226 + $0x1f0] sm:$0xff] %v1342
      %1471 = vst [vmem:[%s226 + $0x1f8] sm:$0xff] %v1343
      %1472 = vst [vmem:[%s226 + $0x200] sm:$0xff] %v1344
      %1473 = vst [vmem:[%s226 + $0x208] sm:$0xff] %v1345
      %1474 = vst [vmem:[%s226 + $0x210] sm:$0xff] %v1346
      %1475 = vst [vmem:[%s226 + $0x218] sm:$0xff] %v1347
      %1476 = vst [vmem:[%s226 + $0x220] sm:$0xff] %v1348
      %1477 = vst [vmem:[%s226 + $0x228] sm:$0xff] %v1349
      %1478 = vst [vmem:[%s226 + $0x230] sm:$0xff] %v1350
      %1479 = vst [vmem:[%s226 + $0x238] sm:$0xff] %v1351
      %1480 = vst [vmem:[%s226 + $0x240] sm:$0xff] %v1352
      %1481 = vst [vmem:[%s226 + $0x248] sm:$0xff] %v1353
      %1482 = vst [vmem:[%s226 + $0x250] sm:$0xff] %v1354
      %1483 = vst [vmem:[%s226 + $0x258] sm:$0xff] %v1355
      %1484 = vst [vmem:[%s226 + $0x260] sm:$0xff] %v1356
      %1485 = vst [vmem:[%s226 + $0x268] sm:$0xff] %v1357
      %1486 = vst [vmem:[%s226 + $0x270] sm:$0xff] %v1358
      %1487 = vst [vmem:[%s226 + $0x278] sm:$0xff] %v1359
      %1488 = vst [vmem:[%s226 + $0x280] sm:$0xff] %v1360
      %1489 = vst [vmem:[%s226 + $0x288] sm:$0xff] %v1361
      %1490 = vst [vmem:[%s226 + $0x290] sm:$0xff] %v1362
      %1491 = vst [vmem:[%s226 + $0x298] sm:$0xff] %v1363
      %1492 = vst [vmem:[%s226 + $0x2a0] sm:$0xff] %v1364
      %1493 = vst [vmem:[%s226 + $0x2a8] sm:$0xff] %v1365
      %1494 = vst [vmem:[%s226 + $0x2b0] sm:$0xff] %v1366
      %1495 = vst [vmem:[%s226 + $0x2b8] sm:$0xff] %v1367
      %1496 = vst [vmem:[%s226 + $0x2c0] sm:$0xff] %v1368
      %1497 = vst [vmem:[%s226 + $0x2c8] sm:$0xff] %v1369
      %1498 = vst [vmem:[%s226 + $0x2d0] sm:$0xff] %v1370
      %1499 = vst [vmem:[%s226 + $0x2d8] sm:$0xff] %v1371
      %1500 = vst [vmem:[%s226 + $0x2e0] sm:$0xff] %v1372
      %1501 = vst [vmem:[%s226 + $0x2e8] sm:$0xff] %v1373
      %1502 = vst [vmem:[%s226 + $0x2f0] sm:$0xff] %v1374
      %1503 = vst [vmem:[%s226 + $0x2f8] sm:$0xff] %v1375
      %1504 = vst [vmem:[%s226 + $0x300] sm:$0xff] %v1376
      %1505 = vst [vmem:[%s226 + $0x308] sm:$0xff] %v1377
      %1506 = vst [vmem:[%s226 + $0x310] sm:$0xff] %v1378
      %1507 = vst [vmem:[%s226 + $0x318] sm:$0xff] %v1379
      %1508 = vst [vmem:[%s226 + $0x320] sm:$0xff] %v1380
      %1509 = vst [vmem:[%s226 + $0x328] sm:$0xff] %v1381
      %1510 = vst [vmem:[%s226 + $0x330] sm:$0xff] %v1382
      %1511 = vst [vmem:[%s226 + $0x338] sm:$0xff] %v1383
      %1512 = vst [vmem:[%s226 + $0x340] sm:$0xff] %v1384
      %1513 = vst [vmem:[%s226 + $0x348] sm:$0xff] %v1385
      %1514 = vst [vmem:[%s226 + $0x350] sm:$0xff] %v1386
      %1515 = vst [vmem:[%s226 + $0x358] sm:$0xff] %v1387
      %1516 = vst [vmem:[%s226 + $0x360] sm:$0xff] %v1388
      %1517 = vst [vmem:[%s226 + $0x368] sm:$0xff] %v1389
      %1518 = vst [vmem:[%s226 + $0x370] sm:$0xff] %v1390
      %1519 = vst [vmem:[%s226 + $0x378] sm:$0xff] %v1391
      %1520 = vst [vmem:[%s226 + $0x380] sm:$0xff] %v1392
      %1521 = vst [vmem:[%s226 + $0x388] sm:$0xff] %v1393
      %1522 = vst [vmem:[%s226 + $0x390] sm:$0xff] %v1394
      %1523 = vst [vmem:[%s226 + $0x398] sm:$0xff] %v1395
      %1524 = vst [vmem:[%s226 + $0x3a0] sm:$0xff] %v1396
      %1525 = vst [vmem:[%s226 + $0x3a8] sm:$0xff] %v1397
      %1526 = vst [vmem:[%s226 + $0x3b0] sm:$0xff] %v1398
      %1527 = vst [vmem:[%s226 + $0x3b8] sm:$0xff] %v1399
      %1528 = vst [vmem:[%s226 + $0x3c0] sm:$0xff] %v1400
      %1529 = vst [vmem:[%s226 + $0x3c8] sm:$0xff] %v1401
      %1530 = vst [vmem:[%s226 + $0x3d0] sm:$0xff] %v1402
      %1531 = vst [vmem:[%s226 + $0x3d8] sm:$0xff] %v1403
      %1532 = vst [vmem:[%s226 + $0x3e0] sm:$0xff] %v1404
      %1533 = vst [vmem:[%s226 + $0x3e8] sm:$0xff] %v1405
      %1534 = vst [vmem:[%s226 + $0x3f0] sm:$0xff] %v1406
      %1535 = vst [vmem:[%s226 + $0x3f8] sm:$0xff] %v1407
      %s1536 = smul.u32 128, %s16
      %p1537 = scmp.lt.s32.totalorder %s1536, 255
      %s1538 = scalar_select %p1537, %s1536, 255
      %s1539 = smul.addr %s1538, 8
      %s1540 = scalar_lea.vmem %s5, %s1539
      // Predicated region
      $region41: #{conv_trans_bn_conv1.5} parent=39 // pred_check
        %p1541 = pneg %p144
      $region42: #{conv_trans_bn_conv1.5} parent=39 // pred_check_branch
        %1543 = sbr.rel (%p1541) target = $region44
      $region43: #{conv_trans_bn_conv1.5} parent=39 // pred_region
        %s1544 = smul.u32 128, %s16
      $region44: #{conv_trans_bn_conv1.5} parent=39 // pred_fallthru
        _
    $region40: #{conv_trans_bn_conv1.5} parent=5 // pred_fallthru
      _
    %p1545 = scmp.le.s32.totalorder 2, %s11
    // Predicated region
    $region45: #{conv_trans_bn_conv1.5} parent=5 // pred_check
      %p1546 = pneg %p1545
    $region46: #{conv_trans_bn_conv1.5} parent=5 // pred_check_branch
      %1548 = sbr.rel (%p1546) target = $region48
    $region47: #{conv_trans_bn_conv1.5} parent=5 // pred_region
      %s1549 = ssub.s32 %s11, 2
      // Predicated region
      $region49: #{conv_trans_bn_conv1.5} parent=47 // pred_check
        %p1550 = pneg %p150
      $region50: #{conv_trans_bn_conv1.5} parent=47 // pred_check_branch
        %1552 = sbr.rel (%p1550) target = $region52
      $region51: #{conv_trans_bn_conv1.5} parent=47 // pred_region
        %s1553 = smul.u32 128, %s17
        %p1554 = scmp.lt.s32.totalorder %s1553, 255
        %s1555 = scalar_select %p1554, %s1553, 255
        %s1556 = smul.addr %s1555, 8
        %s1557 = scalar_lea.vmem %s5, %s1556
      $region52: #{conv_trans_bn_conv1.5} parent=47 // pred_fallthru
        _
    $region48: #{conv_trans_bn_conv1.5} parent=5 // pred_fallthru
      _
  $region6: #{conv_trans_bn_conv1.5} parent=0 // loop_footer
    %s15 = sadd.s32 1, %s11
  $region7: #{conv_trans_bn_conv1.5} parent=0 // loop_footer_branch
    %10 = sbr.rel target = $region3
  $region8: #{conv_trans_bn_conv1.5} parent=0 // loop_exit
    _

</llo_original>
